<compile_context>
chip_gen: v7x
topology: tpu7x:2x2x1
jax: 0.10.0
libtpu: 0.0.40
codegen_flags: <defaults>
</compile_context>

<pallas_src>
import functools
import random

import jax
import jax.numpy as jnp
from jax.experimental import pallas as pl
from jax.experimental.pallas import tpu as pltpu

EMB = 16          # embedding dim (both languages)
HID = 32          # GRU hidden dim
SRC_VOCAB = 40
TRG_VOCAB = 36
VPAD = 128        # lane-dense padded vocab width for decoder logits
NEG = -1e9        # bias for padded vocab columns (can never win the in-kernel argmax)


def _gru_cell(x_gates, h, whh, bhh):
    """PyTorch-semantics GRU cell. x_gates = x @ W_ih + b_ih, shape [B, 3H] (gate order r,z,n)."""
    H = h.shape[-1]
    gh = jnp.dot(h, whh, preferred_element_type=jnp.float32) + bhh
    i_r, i_z, i_n = x_gates[:, :H], x_gates[:, H:2 * H], x_gates[:, 2 * H:]
    h_r, h_z, h_n = gh[:, :H], gh[:, H:2 * H], gh[:, 2 * H:]
    r = jax.nn.sigmoid(i_r + h_r)
    z = jax.nn.sigmoid(i_z + h_z)
    n = jnp.tanh(i_n + r * h_n)
    return (1.0 - z) * n + z * h


# --------------------------- fused seq2seq kernel --------------------------- #
def seq2seq_kernel(tf_ref,                                   # SMEM [T] int32 0/1 flags
                   src_emb_ref, trg_emb_ref, embtab_ref,
                   enc_wih_ref, enc_whh_ref, enc_bih_ref, enc_bhh_ref,
                   wae_ref,
                   wah_t_ref, ba_t_ref, vblk_ref, rrep_ref, summ_ref,
                   dec_win_ref, dec_whh_ref, dec_bih_ref, dec_bhh_ref,
                   wout_ec_ref, wout_h_ref, bo_ref,
                   out_ref, emb_scr,
                   *, S, B, T):
    H = HID

    # ------------------------------- encoder -------------------------------- #
    enc_whh = enc_whh_ref[...]
    enc_bhh = enc_bhh_ref[...]
    # Hoisted input-gate matmul: one [S*B, EMB] x [EMB, 3H] push instead of S tiny ones.
    gi_all = jnp.dot(src_emb_ref[...], enc_wih_ref[...],
                     preferred_element_type=jnp.float32) + enc_bih_ref[...]     # [S*B, 3H]

    h = jnp.zeros((B, H), jnp.float32)
    hs = []
    for s in range(S):                       # only the true recurrence stays in the loop
        h = _gru_cell(gi_all[s * B:(s + 1) * B, :], h, enc_whh, enc_bhh)
        hs.append(h)

    # Off the recurrence: lane-major [B, S*H] encoder slab + attention-key projection
    # (enc @ W_ae) computed once, with the attention bias folded in (constant over steps).
    wae = wae_ref[...]
    enc_bsh = jnp.concatenate(hs, axis=1)                                       # [B, S*H]
    proj_bsh = jnp.concatenate(
        [jnp.dot(hh, wae, preferred_element_type=jnp.float32) for hh in hs],
        axis=1) + ba_t_ref[...]                                                 # [B, S*H]

    # ------------------------------- decoder -------------------------------- #
    # Hoist the small, hot per-step operands into locals once (the big / oddly-shaped
    # constants are read at their use sites so vreg pressure stays well under 64).
    dec_win = dec_win_ref[...]
    dec_whh = dec_whh_ref[...]
    dec_bih = dec_bih_ref[...]
    dec_bhh = dec_bhh_ref[...]
    wout_h = wout_h_ref[...]
    bo = bo_ref[...]
    col = jax.lax.broadcasted_iota(jnp.int32, (B, VPAD), 1)

    out_ref[0:B, :] = jnp.zeros((B, VPAD), jnp.float32)     # outputs[0] stays zero (torch)

    emb = trg_emb_ref[0:B, :]                                # first input = <sos> row trg[0]
    for t in range(1, T):                                    # static unroll (T small)
        # ---- additive attention, lane-major [B, S] scores ----
        hq = jnp.dot(h, wah_t_ref[...], preferred_element_type=jnp.float32)     # [B, S*H]
        energy = jnp.tanh(proj_bsh + hq)                                        # [B, S*H]
        score = jnp.dot(energy, vblk_ref[...],
                        preferred_element_type=jnp.float32)                     # [B, S]
        m = jnp.max(score, axis=1, keepdims=True)
        p = jnp.exp(score - m)
        den = jnp.sum(p, axis=1, keepdims=True)
        alpha = p / den                                                         # exact softmax
        alpha_rep = jnp.dot(alpha, rrep_ref[...],
                            preferred_element_type=jnp.float32)                 # [B, S*H]
        context = jnp.dot(alpha_rep * enc_bsh, summ_ref[...],
                          preferred_element_type=jnp.float32)                   # [B, H]

        # ---- GRU cell on concat(emb, context), concatenated input weights ----
        xcat = jnp.concatenate([emb, context], axis=1)                          # [B, EMB+H]
        gi = jnp.dot(xcat, dec_win, preferred_element_type=jnp.float32) + dec_bih
        h = _gru_cell(gi, h, dec_whh, dec_bhh)

        # ---- vocab projection, lane-dense VPAD columns ----
        logits = (jnp.dot(xcat, wout_ec_ref[...], preferred_element_type=jnp.float32)
                  + jnp.dot(h, wout_h, preferred_element_type=jnp.float32)
                  + bo)                                                         # [B, VPAD]
        out_ref[t * B:(t + 1) * B, :] = logits                # 128-lane dense row block

        # ---- next input embedding: greedy path only runs when NOT teacher forcing ----
        if t + 1 < T:                                        # last step's choice is unused
            tf = tf_ref[t]

            @pl.when(tf == 0)
            def _greedy():
                # first-max index, like torch .max(1)[1]; pad columns hold NEG so they lose
                mx = jnp.max(logits, axis=1, keepdims=True)
                idx = jnp.where(logits == mx, col, VPAD)
                top1 = jnp.min(idx, axis=1, keepdims=True)                      # [B, 1]
                onehot = (col == top1).astype(jnp.float32)                      # [B, VPAD]
                emb_scr[...] = jnp.dot(onehot, embtab_ref[...],
                                       preferred_element_type=jnp.float32)      # [B, EMB]

            @pl.when(tf != 0)
            def _teacher():
                emb_scr[...] = trg_emb_ref[t * B:(t + 1) * B, :]

            emb = emb_scr[...]


# ------------------------------ pallas wrapper ------------------------------ #
def run_seq2seq(tf_flags, src_emb_flat, trg_emb_flat, prep, S, B, T):
    kernel = functools.partial(seq2seq_kernel, S=S, B=B, T=T)
    vmem = pl.BlockSpec(memory_space=pltpu.MemorySpace.VMEM)
    smem = pl.BlockSpec(memory_space=pltpu.MemorySpace.SMEM)
    return pl.pallas_call(
        kernel,
        out_shape=jax.ShapeDtypeStruct((T * B, VPAD), jnp.float32),
        in_specs=[smem] + [vmem] * 20,
        out_specs=vmem,
        scratch_shapes=[pltpu.VMEM((B, EMB), jnp.float32)],      # carried next-step embedding
    )(tf_flags, src_emb_flat, trg_emb_flat, prep['embtab_pad'],
      prep['enc_w_ih'], prep['enc_w_hh'], prep['enc_b_ih'], prep['enc_b_hh'],
      prep['attn_we'],
      prep['wah_t'], prep['ba_t'], prep['vblk'], prep['rrep'], prep['summ'],
      prep['dec_w_in'], prep['dec_w_hh'], prep['dec_b_ih'], prep['dec_b_hh'],
      prep['w_out_ec'], prep['w_out_h'], prep['b_out'])


# ------------------------------- model glue --------------------------------- #
def init_params(key):
    def nrm(k, shape, scale=0.1):
        return scale * jax.random.normal(k, shape, jnp.float32)

    ks = jax.random.split(key, 19)
    return {
        'src_emb':    nrm(ks[0], (SRC_VOCAB, EMB)),
        'trg_emb':    nrm(ks[1], (TRG_VOCAB, EMB)),
        # encoder GRU
        'enc_w_ih':   nrm(ks[2], (EMB, 3 * HID)),
        'enc_w_hh':   nrm(ks[3], (HID, 3 * HID)),
        'enc_b_ih':   nrm(ks[4], (1, 3 * HID)),
        'enc_b_hh':   nrm(ks[5], (1, 3 * HID)),
        # additive attention
        'attn_wh':    nrm(ks[6], (HID, HID)),
        'attn_we':    nrm(ks[7], (HID, HID)),
        'attn_b':     nrm(ks[8], (1, HID)),
        'attn_v':     nrm(ks[9], (1, HID)),
        # decoder GRU (input = concat(emb, context))
        'dec_w_ih_e': nrm(ks[10], (EMB, 3 * HID)),
        'dec_w_ih_c': nrm(ks[11], (HID, 3 * HID)),
        'dec_w_hh':   nrm(ks[12], (HID, 3 * HID)),
        'dec_b_ih':   nrm(ks[13], (1, 3 * HID)),
        'dec_b_hh':   nrm(ks[14], (1, 3 * HID)),
        # output projection (input = concat(emb, context, hidden))
        'out_w_e':    nrm(ks[15], (EMB, TRG_VOCAB)),
        'out_w_c':    nrm(ks[16], (HID, TRG_VOCAB)),
        'out_w_h':    nrm(ks[17], (HID, TRG_VOCAB)),
        'out_b':      nrm(ks[18], (1, TRG_VOCAB)),
    }


def prepare_params(params, S):
    """One-time (outside jit) padding / concatenation / kron-constant preparation."""
    pad_v = VPAD - TRG_VOCAB
    eye_s = jnp.eye(S, dtype=jnp.float32)
    v_col = params['attn_v'].T                                            # [HID, 1]
    return {
        'src_emb':   params['src_emb'],
        'trg_emb':   params['trg_emb'],
        'embtab_pad': jnp.pad(params['trg_emb'], ((0, pad_v), (0, 0))),   # [VPAD, EMB]
        # encoder GRU
        'enc_w_ih':  params['enc_w_ih'], 'enc_w_hh': params['enc_w_hh'],
        'enc_b_ih':  params['enc_b_ih'], 'enc_b_hh': params['enc_b_hh'],
        # attention (lane-major helpers)
        'attn_we':   params['attn_we'],
        'wah_t':     jnp.tile(params['attn_wh'], (1, S)),                 # [HID, S*HID]
        'ba_t':      jnp.tile(params['attn_b'], (1, S)),                  # [1,   S*HID]
        'vblk':      jnp.kron(eye_s, v_col),                              # [S*HID, S]
        'rrep':      jnp.kron(eye_s, jnp.ones((1, HID), jnp.float32)),    # [S, S*HID]
        'summ':      jnp.kron(jnp.ones((S, 1), jnp.float32),
                              jnp.eye(HID, dtype=jnp.float32)),           # [S*HID, HID]
        # decoder GRU, concatenated input weights
        'dec_w_in':  jnp.concatenate([params['dec_w_ih_e'],
                                      params['dec_w_ih_c']], axis=0),     # [EMB+HID, 3H]
        'dec_w_hh':  params['dec_w_hh'],
        'dec_b_ih':  params['dec_b_ih'], 'dec_b_hh': params['dec_b_hh'],
        # output projection, padded to VPAD lanes and concatenated over (emb, context)
        'w_out_ec':  jnp.concatenate(
            [jnp.pad(params['out_w_e'], ((0, 0), (0, pad_v))),
             jnp.pad(params['out_w_c'], ((0, 0), (0, pad_v)))], axis=0),  # [EMB+HID, VPAD]
        'w_out_h':   jnp.pad(params['out_w_h'], ((0, 0), (0, pad_v))),    # [HID, VPAD]
        'b_out':     jnp.pad(params['out_b'], ((0, 0), (0, pad_v)),
                             constant_values=NEG),                        # [1, VPAD]
    }


@jax.jit
def seq2seq_forward(src, trg, tf_flags, prep):
    """src: [S, B] int32, trg: [T, B] int32, tf_flags: [T] int32 0/1
       -> [T, B, TRG_VOCAB] f32 (row 0 is zeros, like the PyTorch module)."""
    S, B = src.shape
    T = trg.shape[0]
    # embedding gathers are glue (plain XLA)
    src_emb_flat = jnp.take(prep['src_emb'], src.reshape(-1), axis=0)     # [S*B, EMB]
    trg_emb_flat = jnp.take(prep['trg_emb'], trg.reshape(-1), axis=0)     # [T*B, EMB]
    out_flat = run_seq2seq(tf_flags, src_emb_flat, trg_emb_flat, prep, S, B, T)
    return out_flat.reshape(T, B, VPAD)[:, :, :TRG_VOCAB]


if __name__ == "__main__":
    random.seed(0)
    key = jax.random.PRNGKey(0)
    kp, ksrc, ktrg = jax.random.split(key, 3)
    params = init_params(kp)

    SRC_LEN, MAX_LEN, BATCH = 7, 8, 4
    src = jax.random.randint(ksrc, (SRC_LEN, BATCH), 0, SRC_VOCAB, dtype=jnp.int32)
    trg = jax.random.randint(ktrg, (MAX_LEN, BATCH), 0, TRG_VOCAB, dtype=jnp.int32)

    # TODO(synk): torch calls random.random() once per decoded step; we keep identical
    # host-side coin flips and pass them as a runtime int32 0/1 mask so jit never recompiles.
    teacher_forcing_ratio = 0.5
    flips = [0] + [1 if random.random() < teacher_forcing_ratio else 0
                   for _ in range(1, MAX_LEN)]
    tf_flags = jnp.asarray(flips, dtype=jnp.int32)

    prep = prepare_params(params, SRC_LEN)          # one-time weight prep, outside jit

    out = seq2seq_forward(src, trg, tf_flags, prep)
    out = jax.block_until_ready(out)

    assert out.shape == (MAX_LEN, BATCH, TRG_VOCAB), out.shape
    assert out.dtype == jnp.float32
    assert bool(jnp.all(out[0] == 0.0))             # first timestep left as zeros, like torch
    assert bool(jnp.all(jnp.isfinite(out)))
    print("KERNEL_OK")
</pallas_src>

<mosaic_0001>
module attributes {stable_mosaic.version = 11 : i64} {
  func.func @seq2seq_kernel(%arg0: memref<8xi32, #tpu.memory_space<smem>>, %arg1: memref<28x16xf32, #tpu.memory_space<vmem>>, %arg2: memref<32x16xf32, #tpu.memory_space<vmem>>, %arg3: memref<128x16xf32, #tpu.memory_space<vmem>>, %arg4: memref<16x96xf32, #tpu.memory_space<vmem>>, %arg5: memref<32x96xf32, #tpu.memory_space<vmem>>, %arg6: memref<1x96xf32, #tpu.memory_space<vmem>>, %arg7: memref<1x96xf32, #tpu.memory_space<vmem>>, %arg8: memref<32x32xf32, #tpu.memory_space<vmem>>, %arg9: memref<32x224xf32, #tpu.memory_space<vmem>>, %arg10: memref<1x224xf32, #tpu.memory_space<vmem>>, %arg11: memref<224x7xf32, #tpu.memory_space<vmem>>, %arg12: memref<7x224xf32, #tpu.memory_space<vmem>>, %arg13: memref<224x32xf32, #tpu.memory_space<vmem>>, %arg14: memref<48x96xf32, #tpu.memory_space<vmem>>, %arg15: memref<32x96xf32, #tpu.memory_space<vmem>>, %arg16: memref<1x96xf32, #tpu.memory_space<vmem>>, %arg17: memref<1x96xf32, #tpu.memory_space<vmem>>, %arg18: memref<48x128xf32, #tpu.memory_space<vmem>>, %arg19: memref<32x128xf32, #tpu.memory_space<vmem>>, %arg20: memref<1x128xf32, #tpu.memory_space<vmem>>, %arg21: memref<32x128xf32, #tpu.memory_space<vmem>>, %arg22: memref<4x16xf32, #tpu.memory_space<vmem>>) attributes {dimension_semantics = [], scalar_prefetch = 0 : i64, scratch_operands = 1 : i64, tpu.core_type = #tpu.core_type<tc>} {
    %c0 = arith.constant 0 : index
    %c0_0 = arith.constant 0 : index
    %0 = vector.load %arg5[%c0, %c0_0] : memref<32x96xf32, #tpu.memory_space<vmem>>, vector<32x96xf32>
    %c0_1 = arith.constant 0 : index
    %c0_2 = arith.constant 0 : index
    %1 = vector.load %arg7[%c0_1, %c0_2] : memref<1x96xf32, #tpu.memory_space<vmem>>, vector<1x96xf32>
    %c0_3 = arith.constant 0 : index
    %c0_4 = arith.constant 0 : index
    %2 = vector.load %arg1[%c0_3, %c0_4] : memref<28x16xf32, #tpu.memory_space<vmem>>, vector<28x16xf32>
    %c0_5 = arith.constant 0 : index
    %c0_6 = arith.constant 0 : index
    %3 = vector.load %arg4[%c0_5, %c0_6] : memref<16x96xf32, #tpu.memory_space<vmem>>, vector<16x96xf32>
    %cst = arith.constant dense<0.000000e+00> : vector<28x96xf32>
    %4 = tpu.matmul %2, %3, %cst {dimension_numbers = #tpu.dot_dimension_numbers<[1], [0], [0], [1], [0, 0, 1, 1], [], []>} : vector<28x16xf32>, vector<16x96xf32>, vector<28x96xf32> -> vector<28x96xf32>
    %c0_7 = arith.constant 0 : index
    %c0_8 = arith.constant 0 : index
    %5 = vector.load %arg6[%c0_7, %c0_8] : memref<1x96xf32, #tpu.memory_space<vmem>>, vector<1x96xf32>
    %6 = vector.broadcast %5 : vector<1x96xf32> to vector<28x96xf32>
    %7 = arith.addf %4, %6 : vector<28x96xf32>
    %cst_9 = arith.constant 0.000000e+00 : f32
    %8 = vector.broadcast %cst_9 : f32 to vector<4x32xf32>
    %9 = vector.extract_strided_slice %7 {offsets = [0, 0], sizes = [4, 96], strides = [1, 1]} : vector<28x96xf32> to vector<4x96xf32>
    %cst_10 = arith.constant dense<0.000000e+00> : vector<4x96xf32>
    %10 = tpu.matmul %8, %0, %cst_10 {dimension_numbers = #tpu.dot_dimension_numbers<[1], [0], [0], [1], [0, 0, 1, 1], [], []>} : vector<4x32xf32>, vector<32x96xf32>, vector<4x96xf32> -> vector<4x96xf32>
    %11 = vector.broadcast %1 : vector<1x96xf32> to vector<4x96xf32>
    %12 = arith.addf %10, %11 : vector<4x96xf32>
    %13 = vector.extract_strided_slice %9 {offsets = [0, 0], sizes = [4, 32], strides = [1, 1]} : vector<4x96xf32> to vector<4x32xf32>
    %14 = vector.extract_strided_slice %9 {offsets = [0, 32], sizes = [4, 32], strides = [1, 1]} : vector<4x96xf32> to vector<4x32xf32>
    %15 = vector.extract_strided_slice %9 {offsets = [0, 64], sizes = [4, 32], strides = [1, 1]} : vector<4x96xf32> to vector<4x32xf32>
    %16 = vector.extract_strided_slice %12 {offsets = [0, 0], sizes = [4, 32], strides = [1, 1]} : vector<4x96xf32> to vector<4x32xf32>
    %17 = vector.extract_strided_slice %12 {offsets = [0, 32], sizes = [4, 32], strides = [1, 1]} : vector<4x96xf32> to vector<4x32xf32>
    %18 = vector.extract_strided_slice %12 {offsets = [0, 64], sizes = [4, 32], strides = [1, 1]} : vector<4x96xf32> to vector<4x32xf32>
    %19 = arith.addf %13, %16 : vector<4x32xf32>
    %20 = arith.negf %19 : vector<4x32xf32>
    %21 = math.exp %20 : vector<4x32xf32>
    %cst_11 = arith.constant 1.000000e+00 : f32
    %22 = vector.broadcast %cst_11 : f32 to vector<4x32xf32>
    %23 = arith.addf %22, %21 : vector<4x32xf32>
    %24 = arith.divf %22, %23 : vector<4x32xf32>
    %25 = arith.addf %14, %17 : vector<4x32xf32>
    %26 = arith.negf %25 : vector<4x32xf32>
    %27 = math.exp %26 : vector<4x32xf32>
    %cst_12 = arith.constant 1.000000e+00 : f32
    %28 = vector.broadcast %cst_12 : f32 to vector<4x32xf32>
    %29 = arith.addf %28, %27 : vector<4x32xf32>
    %30 = arith.divf %28, %29 : vector<4x32xf32>
    %31 = arith.mulf %24, %18 : vector<4x32xf32>
    %32 = arith.addf %15, %31 : vector<4x32xf32>
    %33 = math.tanh %32 : vector<4x32xf32>
    %cst_13 = arith.constant 1.000000e+00 : f32
    %34 = vector.broadcast %cst_13 : f32 to vector<4x32xf32>
    %35 = arith.subf %34, %30 : vector<4x32xf32>
    %36 = arith.mulf %35, %33 : vector<4x32xf32>
    %37 = arith.mulf %30, %8 : vector<4x32xf32>
    %38 = arith.addf %36, %37 : vector<4x32xf32>
    %39 = vector.extract_strided_slice %7 {offsets = [4, 0], sizes = [4, 96], strides = [1, 1]} : vector<28x96xf32> to vector<4x96xf32>
    %cst_14 = arith.constant dense<0.000000e+00> : vector<4x96xf32>
    %40 = tpu.matmul %38, %0, %cst_14 {dimension_numbers = #tpu.dot_dimension_numbers<[1], [0], [0], [1], [0, 0, 1, 1], [], []>} : vector<4x32xf32>, vector<32x96xf32>, vector<4x96xf32> -> vector<4x96xf32>
    %41 = vector.broadcast %1 : vector<1x96xf32> to vector<4x96xf32>
    %42 = arith.addf %40, %41 : vector<4x96xf32>
    %43 = vector.extract_strided_slice %39 {offsets = [0, 0], sizes = [4, 32], strides = [1, 1]} : vector<4x96xf32> to vector<4x32xf32>
    %44 = vector.extract_strided_slice %39 {offsets = [0, 32], sizes = [4, 32], strides = [1, 1]} : vector<4x96xf32> to vector<4x32xf32>
    %45 = vector.extract_strided_slice %39 {offsets = [0, 64], sizes = [4, 32], strides = [1, 1]} : vector<4x96xf32> to vector<4x32xf32>
    %46 = vector.extract_strided_slice %42 {offsets = [0, 0], sizes = [4, 32], strides = [1, 1]} : vector<4x96xf32> to vector<4x32xf32>
    %47 = vector.extract_strided_slice %42 {offsets = [0, 32], sizes = [4, 32], strides = [1, 1]} : vector<4x96xf32> to vector<4x32xf32>
    %48 = vector.extract_strided_slice %42 {offsets = [0, 64], sizes = [4, 32], strides = [1, 1]} : vector<4x96xf32> to vector<4x32xf32>
    %49 = arith.addf %43, %46 : vector<4x32xf32>
    %50 = arith.negf %49 : vector<4x32xf32>
    %51 = math.exp %50 : vector<4x32xf32>
    %cst_15 = arith.constant 1.000000e+00 : f32
    %52 = vector.broadcast %cst_15 : f32 to vector<4x32xf32>
    %53 = arith.addf %52, %51 : vector<4x32xf32>
    %54 = arith.divf %52, %53 : vector<4x32xf32>
    %55 = arith.addf %44, %47 : vector<4x32xf32>
    %56 = arith.negf %55 : vector<4x32xf32>
    %57 = math.exp %56 : vector<4x32xf32>
    %cst_16 = arith.constant 1.000000e+00 : f32
    %58 = vector.broadcast %cst_16 : f32 to vector<4x32xf32>
    %59 = arith.addf %58, %57 : vector<4x32xf32>
    %60 = arith.divf %58, %59 : vector<4x32xf32>
    %61 = arith.mulf %54, %48 : vector<4x32xf32>
    %62 = arith.addf %45, %61 : vector<4x32xf32>
    %63 = math.tanh %62 : vector<4x32xf32>
    %cst_17 = arith.constant 1.000000e+00 : f32
    %64 = vector.broadcast %cst_17 : f32 to vector<4x32xf32>
    %65 = arith.subf %64, %60 : vector<4x32xf32>
    %66 = arith.mulf %65, %63 : vector<4x32xf32>
    %67 = arith.mulf %60, %38 : vector<4x32xf32>
    %68 = arith.addf %66, %67 : vector<4x32xf32>
    %69 = vector.extract_strided_slice %7 {offsets = [8, 0], sizes = [4, 96], strides = [1, 1]} : vector<28x96xf32> to vector<4x96xf32>
    %cst_18 = arith.constant dense<0.000000e+00> : vector<4x96xf32>
    %70 = tpu.matmul %68, %0, %cst_18 {dimension_numbers = #tpu.dot_dimension_numbers<[1], [0], [0], [1], [0, 0, 1, 1], [], []>} : vector<4x32xf32>, vector<32x96xf32>, vector<4x96xf32> -> vector<4x96xf32>
    %71 = vector.broadcast %1 : vector<1x96xf32> to vector<4x96xf32>
    %72 = arith.addf %70, %71 : vector<4x96xf32>
    %73 = vector.extract_strided_slice %69 {offsets = [0, 0], sizes = [4, 32], strides = [1, 1]} : vector<4x96xf32> to vector<4x32xf32>
    %74 = vector.extract_strided_slice %69 {offsets = [0, 32], sizes = [4, 32], strides = [1, 1]} : vector<4x96xf32> to vector<4x32xf32>
    %75 = vector.extract_strided_slice %69 {offsets = [0, 64], sizes = [4, 32], strides = [1, 1]} : vector<4x96xf32> to vector<4x32xf32>
    %76 = vector.extract_strided_slice %72 {offsets = [0, 0], sizes = [4, 32], strides = [1, 1]} : vector<4x96xf32> to vector<4x32xf32>
    %77 = vector.extract_strided_slice %72 {offsets = [0, 32], sizes = [4, 32], strides = [1, 1]} : vector<4x96xf32> to vector<4x32xf32>
    %78 = vector.extract_strided_slice %72 {offsets = [0, 64], sizes = [4, 32], strides = [1, 1]} : vector<4x96xf32> to vector<4x32xf32>
    %79 = arith.addf %73, %76 : vector<4x32xf32>
    %80 = arith.negf %79 : vector<4x32xf32>
    %81 = math.exp %80 : vector<4x32xf32>
    %cst_19 = arith.constant 1.000000e+00 : f32
    %82 = vector.broadcast %cst_19 : f32 to vector<4x32xf32>
    %83 = arith.addf %82, %81 : vector<4x32xf32>
    %84 = arith.divf %82, %83 : vector<4x32xf32>
    %85 = arith.addf %74, %77 : vector<4x32xf32>
    %86 = arith.negf %85 : vector<4x32xf32>
    %87 = math.exp %86 : vector<4x32xf32>
    %cst_20 = arith.constant 1.000000e+00 : f32
    %88 = vector.broadcast %cst_20 : f32 to vector<4x32xf32>
    %89 = arith.addf %88, %87 : vector<4x32xf32>
    %90 = arith.divf %88, %89 : vector<4x32xf32>
    %91 = arith.mulf %84, %78 : vector<4x32xf32>
    %92 = arith.addf %75, %91 : vector<4x32xf32>
    %93 = math.tanh %92 : vector<4x32xf32>
    %cst_21 = arith.constant 1.000000e+00 : f32
    %94 = vector.broadcast %cst_21 : f32 to vector<4x32xf32>
    %95 = arith.subf %94, %90 : vector<4x32xf32>
    %96 = arith.mulf %95, %93 : vector<4x32xf32>
    %97 = arith.mulf %90, %68 : vector<4x32xf32>
    %98 = arith.addf %96, %97 : vector<4x32xf32>
    %99 = vector.extract_strided_slice %7 {offsets = [12, 0], sizes = [4, 96], strides = [1, 1]} : vector<28x96xf32> to vector<4x96xf32>
    %cst_22 = arith.constant dense<0.000000e+00> : vector<4x96xf32>
    %100 = tpu.matmul %98, %0, %cst_22 {dimension_numbers = #tpu.dot_dimension_numbers<[1], [0], [0], [1], [0, 0, 1, 1], [], []>} : vector<4x32xf32>, vector<32x96xf32>, vector<4x96xf32> -> vector<4x96xf32>
    %101 = vector.broadcast %1 : vector<1x96xf32> to vector<4x96xf32>
    %102 = arith.addf %100, %101 : vector<4x96xf32>
    %103 = vector.extract_strided_slice %99 {offsets = [0, 0], sizes = [4, 32], strides = [1, 1]} : vector<4x96xf32> to vector<4x32xf32>
    %104 = vector.extract_strided_slice %99 {offsets = [0, 32], sizes = [4, 32], strides = [1, 1]} : vector<4x96xf32> to vector<4x32xf32>
    %105 = vector.extract_strided_slice %99 {offsets = [0, 64], sizes = [4, 32], strides = [1, 1]} : vector<4x96xf32> to vector<4x32xf32>
    %106 = vector.extract_strided_slice %102 {offsets = [0, 0], sizes = [4, 32], strides = [1, 1]} : vector<4x96xf32> to vector<4x32xf32>
    %107 = vector.extract_strided_slice %102 {offsets = [0, 32], sizes = [4, 32], strides = [1, 1]} : vector<4x96xf32> to vector<4x32xf32>
    %108 = vector.extract_strided_slice %102 {offsets = [0, 64], sizes = [4, 32], strides = [1, 1]} : vector<4x96xf32> to vector<4x32xf32>
    %109 = arith.addf %103, %106 : vector<4x32xf32>
    %110 = arith.negf %109 : vector<4x32xf32>
    %111 = math.exp %110 : vector<4x32xf32>
    %cst_23 = arith.constant 1.000000e+00 : f32
    %112 = vector.broadcast %cst_23 : f32 to vector<4x32xf32>
    %113 = arith.addf %112, %111 : vector<4x32xf32>
    %114 = arith.divf %112, %113 : vector<4x32xf32>
    %115 = arith.addf %104, %107 : vector<4x32xf32>
    %116 = arith.negf %115 : vector<4x32xf32>
    %117 = math.exp %116 : vector<4x32xf32>
    %cst_24 = arith.constant 1.000000e+00 : f32
    %118 = vector.broadcast %cst_24 : f32 to vector<4x32xf32>
    %119 = arith.addf %118, %117 : vector<4x32xf32>
    %120 = arith.divf %118, %119 : vector<4x32xf32>
    %121 = arith.mulf %114, %108 : vector<4x32xf32>
    %122 = arith.addf %105, %121 : vector<4x32xf32>
    %123 = math.tanh %122 : vector<4x32xf32>
    %cst_25 = arith.constant 1.000000e+00 : f32
    %124 = vector.broadcast %cst_25 : f32 to vector<4x32xf32>
    %125 = arith.subf %124, %120 : vector<4x32xf32>
    %126 = arith.mulf %125, %123 : vector<4x32xf32>
    %127 = arith.mulf %120, %98 : vector<4x32xf32>
    %128 = arith.addf %126, %127 : vector<4x32xf32>
    %129 = vector.extract_strided_slice %7 {offsets = [16, 0], sizes = [4, 96], strides = [1, 1]} : vector<28x96xf32> to vector<4x96xf32>
    %cst_26 = arith.constant dense<0.000000e+00> : vector<4x96xf32>
    %130 = tpu.matmul %128, %0, %cst_26 {dimension_numbers = #tpu.dot_dimension_numbers<[1], [0], [0], [1], [0, 0, 1, 1], [], []>} : vector<4x32xf32>, vector<32x96xf32>, vector<4x96xf32> -> vector<4x96xf32>
    %131 = vector.broadcast %1 : vector<1x96xf32> to vector<4x96xf32>
    %132 = arith.addf %130, %131 : vector<4x96xf32>
    %133 = vector.extract_strided_slice %129 {offsets = [0, 0], sizes = [4, 32], strides = [1, 1]} : vector<4x96xf32> to vector<4x32xf32>
    %134 = vector.extract_strided_slice %129 {offsets = [0, 32], sizes = [4, 32], strides = [1, 1]} : vector<4x96xf32> to vector<4x32xf32>
    %135 = vector.extract_strided_slice %129 {offsets = [0, 64], sizes = [4, 32], strides = [1, 1]} : vector<4x96xf32> to vector<4x32xf32>
    %136 = vector.extract_strided_slice %132 {offsets = [0, 0], sizes = [4, 32], strides = [1, 1]} : vector<4x96xf32> to vector<4x32xf32>
    %137 = vector.extract_strided_slice %132 {offsets = [0, 32], sizes = [4, 32], strides = [1, 1]} : vector<4x96xf32> to vector<4x32xf32>
    %138 = vector.extract_strided_slice %132 {offsets = [0, 64], sizes = [4, 32], strides = [1, 1]} : vector<4x96xf32> to vector<4x32xf32>
    %139 = arith.addf %133, %136 : vector<4x32xf32>
    %140 = arith.negf %139 : vector<4x32xf32>
    %141 = math.exp %140 : vector<4x32xf32>
    %cst_27 = arith.constant 1.000000e+00 : f32
    %142 = vector.broadcast %cst_27 : f32 to vector<4x32xf32>
    %143 = arith.addf %142, %141 : vector<4x32xf32>
    %144 = arith.divf %142, %143 : vector<4x32xf32>
    %145 = arith.addf %134, %137 : vector<4x32xf32>
    %146 = arith.negf %145 : vector<4x32xf32>
    %147 = math.exp %146 : vector<4x32xf32>
    %cst_28 = arith.constant 1.000000e+00 : f32
    %148 = vector.broadcast %cst_28 : f32 to vector<4x32xf32>
    %149 = arith.addf %148, %147 : vector<4x32xf32>
    %150 = arith.divf %148, %149 : vector<4x32xf32>
    %151 = arith.mulf %144, %138 : vector<4x32xf32>
    %152 = arith.addf %135, %151 : vector<4x32xf32>
    %153 = math.tanh %152 : vector<4x32xf32>
    %cst_29 = arith.constant 1.000000e+00 : f32
    %154 = vector.broadcast %cst_29 : f32 to vector<4x32xf32>
    %155 = arith.subf %154, %150 : vector<4x32xf32>
    %156 = arith.mulf %155, %153 : vector<4x32xf32>
    %157 = arith.mulf %150, %128 : vector<4x32xf32>
    %158 = arith.addf %156, %157 : vector<4x32xf32>
    %159 = vector.extract_strided_slice %7 {offsets = [20, 0], sizes = [4, 96], strides = [1, 1]} : vector<28x96xf32> to vector<4x96xf32>
    %cst_30 = arith.constant dense<0.000000e+00> : vector<4x96xf32>
    %160 = tpu.matmul %158, %0, %cst_30 {dimension_numbers = #tpu.dot_dimension_numbers<[1], [0], [0], [1], [0, 0, 1, 1], [], []>} : vector<4x32xf32>, vector<32x96xf32>, vector<4x96xf32> -> vector<4x96xf32>
    %161 = vector.broadcast %1 : vector<1x96xf32> to vector<4x96xf32>
    %162 = arith.addf %160, %161 : vector<4x96xf32>
    %163 = vector.extract_strided_slice %159 {offsets = [0, 0], sizes = [4, 32], strides = [1, 1]} : vector<4x96xf32> to vector<4x32xf32>
    %164 = vector.extract_strided_slice %159 {offsets = [0, 32], sizes = [4, 32], strides = [1, 1]} : vector<4x96xf32> to vector<4x32xf32>
    %165 = vector.extract_strided_slice %159 {offsets = [0, 64], sizes = [4, 32], strides = [1, 1]} : vector<4x96xf32> to vector<4x32xf32>
    %166 = vector.extract_strided_slice %162 {offsets = [0, 0], sizes = [4, 32], strides = [1, 1]} : vector<4x96xf32> to vector<4x32xf32>
    %167 = vector.extract_strided_slice %162 {offsets = [0, 32], sizes = [4, 32], strides = [1, 1]} : vector<4x96xf32> to vector<4x32xf32>
    %168 = vector.extract_strided_slice %162 {offsets = [0, 64], sizes = [4, 32], strides = [1, 1]} : vector<4x96xf32> to vector<4x32xf32>
    %169 = arith.addf %163, %166 : vector<4x32xf32>
    %170 = arith.negf %169 : vector<4x32xf32>
    %171 = math.exp %170 : vector<4x32xf32>
    %cst_31 = arith.constant 1.000000e+00 : f32
    %172 = vector.broadcast %cst_31 : f32 to vector<4x32xf32>
    %173 = arith.addf %172, %171 : vector<4x32xf32>
    %174 = arith.divf %172, %173 : vector<4x32xf32>
    %175 = arith.addf %164, %167 : vector<4x32xf32>
    %176 = arith.negf %175 : vector<4x32xf32>
    %177 = math.exp %176 : vector<4x32xf32>
    %cst_32 = arith.constant 1.000000e+00 : f32
    %178 = vector.broadcast %cst_32 : f32 to vector<4x32xf32>
    %179 = arith.addf %178, %177 : vector<4x32xf32>
    %180 = arith.divf %178, %179 : vector<4x32xf32>
    %181 = arith.mulf %174, %168 : vector<4x32xf32>
    %182 = arith.addf %165, %181 : vector<4x32xf32>
    %183 = math.tanh %182 : vector<4x32xf32>
    %cst_33 = arith.constant 1.000000e+00 : f32
    %184 = vector.broadcast %cst_33 : f32 to vector<4x32xf32>
    %185 = arith.subf %184, %180 : vector<4x32xf32>
    %186 = arith.mulf %185, %183 : vector<4x32xf32>
    %187 = arith.mulf %180, %158 : vector<4x32xf32>
    %188 = arith.addf %186, %187 : vector<4x32xf32>
    %189 = vector.extract_strided_slice %7 {offsets = [24, 0], sizes = [4, 96], strides = [1, 1]} : vector<28x96xf32> to vector<4x96xf32>
    %cst_34 = arith.constant dense<0.000000e+00> : vector<4x96xf32>
    %190 = tpu.matmul %188, %0, %cst_34 {dimension_numbers = #tpu.dot_dimension_numbers<[1], [0], [0], [1], [0, 0, 1, 1], [], []>} : vector<4x32xf32>, vector<32x96xf32>, vector<4x96xf32> -> vector<4x96xf32>
    %191 = vector.broadcast %1 : vector<1x96xf32> to vector<4x96xf32>
    %192 = arith.addf %190, %191 : vector<4x96xf32>
    %193 = vector.extract_strided_slice %189 {offsets = [0, 0], sizes = [4, 32], strides = [1, 1]} : vector<4x96xf32> to vector<4x32xf32>
    %194 = vector.extract_strided_slice %189 {offsets = [0, 32], sizes = [4, 32], strides = [1, 1]} : vector<4x96xf32> to vector<4x32xf32>
    %195 = vector.extract_strided_slice %189 {offsets = [0, 64], sizes = [4, 32], strides = [1, 1]} : vector<4x96xf32> to vector<4x32xf32>
    %196 = vector.extract_strided_slice %192 {offsets = [0, 0], sizes = [4, 32], strides = [1, 1]} : vector<4x96xf32> to vector<4x32xf32>
    %197 = vector.extract_strided_slice %192 {offsets = [0, 32], sizes = [4, 32], strides = [1, 1]} : vector<4x96xf32> to vector<4x32xf32>
    %198 = vector.extract_strided_slice %192 {offsets = [0, 64], sizes = [4, 32], strides = [1, 1]} : vector<4x96xf32> to vector<4x32xf32>
    %199 = arith.addf %193, %196 : vector<4x32xf32>
    %200 = arith.negf %199 : vector<4x32xf32>
    %201 = math.exp %200 : vector<4x32xf32>
    %cst_35 = arith.constant 1.000000e+00 : f32
    %202 = vector.broadcast %cst_35 : f32 to vector<4x32xf32>
    %203 = arith.addf %202, %201 : vector<4x32xf32>
    %204 = arith.divf %202, %203 : vector<4x32xf32>
    %205 = arith.addf %194, %197 : vector<4x32xf32>
    %206 = arith.negf %205 : vector<4x32xf32>
    %207 = math.exp %206 : vector<4x32xf32>
    %cst_36 = arith.constant 1.000000e+00 : f32
    %208 = vector.broadcast %cst_36 : f32 to vector<4x32xf32>
    %209 = arith.addf %208, %207 : vector<4x32xf32>
    %210 = arith.divf %208, %209 : vector<4x32xf32>
    %211 = arith.mulf %204, %198 : vector<4x32xf32>
    %212 = arith.addf %195, %211 : vector<4x32xf32>
    %213 = math.tanh %212 : vector<4x32xf32>
    %cst_37 = arith.constant 1.000000e+00 : f32
    %214 = vector.broadcast %cst_37 : f32 to vector<4x32xf32>
    %215 = arith.subf %214, %210 : vector<4x32xf32>
    %216 = arith.mulf %215, %213 : vector<4x32xf32>
    %217 = arith.mulf %210, %188 : vector<4x32xf32>
    %218 = arith.addf %216, %217 : vector<4x32xf32>
    %c0_38 = arith.constant 0 : index
    %c0_39 = arith.constant 0 : index
    %219 = vector.load %arg8[%c0_38, %c0_39] : memref<32x32xf32, #tpu.memory_space<vmem>>, vector<32x32xf32>
    %220 = tpu.concatenate %38, %68, %98, %128, %158, %188, %218 in 1 : vector<4x32xf32>, vector<4x32xf32>, vector<4x32xf32>, vector<4x32xf32>, vector<4x32xf32>, vector<4x32xf32>, vector<4x32xf32> -> vector<4x224xf32>
    %cst_40 = arith.constant dense<0.000000e+00> : vector<4x32xf32>
    %221 = tpu.matmul %38, %219, %cst_40 {dimension_numbers = #tpu.dot_dimension_numbers<[1], [0], [0], [1], [0, 0, 1, 1], [], []>} : vector<4x32xf32>, vector<32x32xf32>, vector<4x32xf32> -> vector<4x32xf32>
    %cst_41 = arith.constant dense<0.000000e+00> : vector<4x32xf32>
    %222 = tpu.matmul %68, %219, %cst_41 {dimension_numbers = #tpu.dot_dimension_numbers<[1], [0], [0], [1], [0, 0, 1, 1], [], []>} : vector<4x32xf32>, vector<32x32xf32>, vector<4x32xf32> -> vector<4x32xf32>
    %cst_42 = arith.constant dense<0.000000e+00> : vector<4x32xf32>
    %223 = tpu.matmul %98, %219, %cst_42 {dimension_numbers = #tpu.dot_dimension_numbers<[1], [0], [0], [1], [0, 0, 1, 1], [], []>} : vector<4x32xf32>, vector<32x32xf32>, vector<4x32xf32> -> vector<4x32xf32>
    %cst_43 = arith.constant dense<0.000000e+00> : vector<4x32xf32>
    %224 = tpu.matmul %128, %219, %cst_43 {dimension_numbers = #tpu.dot_dimension_numbers<[1], [0], [0], [1], [0, 0, 1, 1], [], []>} : vector<4x32xf32>, vector<32x32xf32>, vector<4x32xf32> -> vector<4x32xf32>
    %cst_44 = arith.constant dense<0.000000e+00> : vector<4x32xf32>
    %225 = tpu.matmul %158, %219, %cst_44 {dimension_numbers = #tpu.dot_dimension_numbers<[1], [0], [0], [1], [0, 0, 1, 1], [], []>} : vector<4x32xf32>, vector<32x32xf32>, vector<4x32xf32> -> vector<4x32xf32>
    %cst_45 = arith.constant dense<0.000000e+00> : vector<4x32xf32>
    %226 = tpu.matmul %188, %219, %cst_45 {dimension_numbers = #tpu.dot_dimension_numbers<[1], [0], [0], [1], [0, 0, 1, 1], [], []>} : vector<4x32xf32>, vector<32x32xf32>, vector<4x32xf32> -> vector<4x32xf32>
    %cst_46 = arith.constant dense<0.000000e+00> : vector<4x32xf32>
    %227 = tpu.matmul %218, %219, %cst_46 {dimension_numbers = #tpu.dot_dimension_numbers<[1], [0], [0], [1], [0, 0, 1, 1], [], []>} : vector<4x32xf32>, vector<32x32xf32>, vector<4x32xf32> -> vector<4x32xf32>
    %228 = tpu.concatenate %221, %222, %223, %224, %225, %226, %227 in 1 : vector<4x32xf32>, vector<4x32xf32>, vector<4x32xf32>, vector<4x32xf32>, vector<4x32xf32>, vector<4x32xf32>, vector<4x32xf32> -> vector<4x224xf32>
    %c0_47 = arith.constant 0 : index
    %c0_48 = arith.constant 0 : index
    %229 = vector.load %arg10[%c0_47, %c0_48] : memref<1x224xf32, #tpu.memory_space<vmem>>, vector<1x224xf32>
    %230 = vector.broadcast %229 : vector<1x224xf32> to vector<4x224xf32>
    %231 = arith.addf %228, %230 : vector<4x224xf32>
    %c0_49 = arith.constant 0 : index
    %c0_50 = arith.constant 0 : index
    %232 = vector.load %arg14[%c0_49, %c0_50] : memref<48x96xf32, #tpu.memory_space<vmem>>, vector<48x96xf32>
    %c0_51 = arith.constant 0 : index
    %c0_52 = arith.constant 0 : index
    %233 = vector.load %arg15[%c0_51, %c0_52] : memref<32x96xf32, #tpu.memory_space<vmem>>, vector<32x96xf32>
    %c0_53 = arith.constant 0 : index
    %c0_54 = arith.constant 0 : index
    %234 = vector.load %arg16[%c0_53, %c0_54] : memref<1x96xf32, #tpu.memory_space<vmem>>, vector<1x96xf32>
    %c0_55 = arith.constant 0 : index
    %c0_56 = arith.constant 0 : index
    %235 = vector.load %arg17[%c0_55, %c0_56] : memref<1x96xf32, #tpu.memory_space<vmem>>, vector<1x96xf32>
    %c0_57 = arith.constant 0 : index
    %c0_58 = arith.constant 0 : index
    %236 = vector.load %arg19[%c0_57, %c0_58] : memref<32x128xf32, #tpu.memory_space<vmem>>, vector<32x128xf32>
    %c0_59 = arith.constant 0 : index
    %c0_60 = arith.constant 0 : index
    %237 = vector.load %arg20[%c0_59, %c0_60] : memref<1x128xf32, #tpu.memory_space<vmem>>, vector<1x128xf32>
    %238 = tpu.iota {dimensions = array<i32: 1>} : vector<4x128xi32>
    %cst_61 = arith.constant 0.000000e+00 : f32
    %239 = vector.broadcast %cst_61 : f32 to vector<4x128xf32>
    %c0_62 = arith.constant 0 : index
    %c0_63 = arith.constant 0 : index
    %240 = vector.load %arg21[%c0_62, %c0_63] : memref<32x128xf32, #tpu.memory_space<vmem>>, vector<4x128xf32>
    tpu.vector_store %arg21[%c0_62, %c0_63], %239 {strides = array<i32>} : memref<32x128xf32, #tpu.memory_space<vmem>>, vector<4x128xf32>,
    %c0_64 = arith.constant 0 : index
    %c0_65 = arith.constant 0 : index
    %241 = vector.load %arg2[%c0_64, %c0_65] : memref<32x16xf32, #tpu.memory_space<vmem>>, vector<4x16xf32>
    %c0_66 = arith.constant 0 : index
    %c0_67 = arith.constant 0 : index
    %242 = vector.load %arg9[%c0_66, %c0_67] : memref<32x224xf32, #tpu.memory_space<vmem>>, vector<32x224xf32>
    %cst_68 = arith.constant dense<0.000000e+00> : vector<4x224xf32>
    %243 = tpu.matmul %218, %242, %cst_68 {dimension_numbers = #tpu.dot_dimension_numbers<[1], [0], [0], [1], [0, 0, 1, 1], [], []>} : vector<4x32xf32>, vector<32x224xf32>, vector<4x224xf32> -> vector<4x224xf32>
    %244 = arith.addf %231, %243 : vector<4x224xf32>
    %245 = math.tanh %244 : vector<4x224xf32>
    %c0_69 = arith.constant 0 : index
    %c0_70 = arith.constant 0 : index
    %246 = vector.load %arg11[%c0_69, %c0_70] : memref<224x7xf32, #tpu.memory_space<vmem>>, vector<224x7xf32>
    %cst_71 = arith.constant dense<0.000000e+00> : vector<4x7xf32>
    %247 = tpu.matmul %245, %246, %cst_71 {dimension_numbers = #tpu.dot_dimension_numbers<[1], [0], [0], [1], [0, 0, 1, 1], [], []>} : vector<4x224xf32>, vector<224x7xf32>, vector<4x7xf32> -> vector<4x7xf32>
    %cst_72 = arith.constant dense<0xFF800000> : vector<4xf32>
    %248 = vector.multi_reduction <maximumf>, %247, %cst_72 [1] : vector<4x7xf32> to vector<4xf32>
    %249 = vector.shape_cast %248 : vector<4xf32> to vector<4x1xf32>
    %250 = vector.broadcast %249 : vector<4x1xf32> to vector<4x7xf32>
    %251 = arith.subf %247, %250 : vector<4x7xf32>
    %252 = math.exp %251 : vector<4x7xf32>
    %cst_73 = arith.constant dense<0.000000e+00> : vector<4xf32>
    %253 = vector.multi_reduction <add>, %252, %cst_73 [1] : vector<4x7xf32> to vector<4xf32>
    %254 = vector.shape_cast %253 : vector<4xf32> to vector<4x1xf32>
    %255 = vector.broadcast %254 : vector<4x1xf32> to vector<4x7xf32>
    %256 = arith.divf %252, %255 : vector<4x7xf32>
    %c0_74 = arith.constant 0 : index
    %c0_75 = arith.constant 0 : index
    %257 = vector.load %arg12[%c0_74, %c0_75] : memref<7x224xf32, #tpu.memory_space<vmem>>, vector<7x224xf32>
    %cst_76 = arith.constant dense<0.000000e+00> : vector<4x224xf32>
    %258 = tpu.matmul %256, %257, %cst_76 {dimension_numbers = #tpu.dot_dimension_numbers<[1], [0], [0], [1], [0, 0, 1, 1], [], []>} : vector<4x7xf32>, vector<7x224xf32>, vector<4x224xf32> -> vector<4x224xf32>
    %259 = arith.mulf %258, %220 : vector<4x224xf32>
    %c0_77 = arith.constant 0 : index
    %c0_78 = arith.constant 0 : index
    %260 = vector.load %arg13[%c0_77, %c0_78] : memref<224x32xf32, #tpu.memory_space<vmem>>, vector<224x32xf32>
    %cst_79 = arith.constant dense<0.000000e+00> : vector<4x32xf32>
    %261 = tpu.matmul %259, %260, %cst_79 {dimension_numbers = #tpu.dot_dimension_numbers<[1], [0], [0], [1], [0, 0, 1, 1], [], []>} : vector<4x224xf32>, vector<224x32xf32>, vector<4x32xf32> -> vector<4x32xf32>
    %262 = tpu.concatenate %241, %261 in 1 : vector<4x16xf32>, vector<4x32xf32> -> vector<4x48xf32>
    %cst_80 = arith.constant dense<0.000000e+00> : vector<4x96xf32>
    %263 = tpu.matmul %262, %232, %cst_80 {dimension_numbers = #tpu.dot_dimension_numbers<[1], [0], [0], [1], [0, 0, 1, 1], [], []>} : vector<4x48xf32>, vector<48x96xf32>, vector<4x96xf32> -> vector<4x96xf32>
    %264 = vector.broadcast %234 : vector<1x96xf32> to vector<4x96xf32>
    %265 = arith.addf %263, %264 : vector<4x96xf32>
    %cst_81 = arith.constant dense<0.000000e+00> : vector<4x96xf32>
    %266 = tpu.matmul %218, %233, %cst_81 {dimension_numbers = #tpu.dot_dimension_numbers<[1], [0], [0], [1], [0, 0, 1, 1], [], []>} : vector<4x32xf32>, vector<32x96xf32>, vector<4x96xf32> -> vector<4x96xf32>
    %267 = vector.broadcast %235 : vector<1x96xf32> to vector<4x96xf32>
    %268 = arith.addf %266, %267 : vector<4x96xf32>
    %269 = vector.extract_strided_slice %265 {offsets = [0, 0], sizes = [4, 32], strides = [1, 1]} : vector<4x96xf32> to vector<4x32xf32>
    %270 = vector.extract_strided_slice %265 {offsets = [0, 32], sizes = [4, 32], strides = [1, 1]} : vector<4x96xf32> to vector<4x32xf32>
    %271 = vector.extract_strided_slice %265 {offsets = [0, 64], sizes = [4, 32], strides = [1, 1]} : vector<4x96xf32> to vector<4x32xf32>
    %272 = vector.extract_strided_slice %268 {offsets = [0, 0], sizes = [4, 32], strides = [1, 1]} : vector<4x96xf32> to vector<4x32xf32>
    %273 = vector.extract_strided_slice %268 {offsets = [0, 32], sizes = [4, 32], strides = [1, 1]} : vector<4x96xf32> to vector<4x32xf32>
    %274 = vector.extract_strided_slice %268 {offsets = [0, 64], sizes = [4, 32], strides = [1, 1]} : vector<4x96xf32> to vector<4x32xf32>
    %275 = arith.addf %269, %272 : vector<4x32xf32>
    %276 = arith.negf %275 : vector<4x32xf32>
    %277 = math.exp %276 : vector<4x32xf32>
    %cst_82 = arith.constant 1.000000e+00 : f32
    %278 = vector.broadcast %cst_82 : f32 to vector<4x32xf32>
    %279 = arith.addf %278, %277 : vector<4x32xf32>
    %280 = arith.divf %278, %279 : vector<4x32xf32>
    %281 = arith.addf %270, %273 : vector<4x32xf32>
    %282 = arith.negf %281 : vector<4x32xf32>
    %283 = math.exp %282 : vector<4x32xf32>
    %cst_83 = arith.constant 1.000000e+00 : f32
    %284 = vector.broadcast %cst_83 : f32 to vector<4x32xf32>
    %285 = arith.addf %284, %283 : vector<4x32xf32>
    %286 = arith.divf %284, %285 : vector<4x32xf32>
    %287 = arith.mulf %280, %274 : vector<4x32xf32>
    %288 = arith.addf %271, %287 : vector<4x32xf32>
    %289 = math.tanh %288 : vector<4x32xf32>
    %cst_84 = arith.constant 1.000000e+00 : f32
    %290 = vector.broadcast %cst_84 : f32 to vector<4x32xf32>
    %291 = arith.subf %290, %286 : vector<4x32xf32>
    %292 = arith.mulf %291, %289 : vector<4x32xf32>
    %293 = arith.mulf %286, %218 : vector<4x32xf32>
    %294 = arith.addf %292, %293 : vector<4x32xf32>
    %c0_85 = arith.constant 0 : index
    %c0_86 = arith.constant 0 : index
    %295 = vector.load %arg18[%c0_85, %c0_86] : memref<48x128xf32, #tpu.memory_space<vmem>>, vector<48x128xf32>
    %cst_87 = arith.constant dense<0.000000e+00> : vector<4x128xf32>
    %296 = tpu.matmul %262, %295, %cst_87 {dimension_numbers = #tpu.dot_dimension_numbers<[1], [0], [0], [1], [0, 0, 1, 1], [], []>} : vector<4x48xf32>, vector<48x128xf32>, vector<4x128xf32> -> vector<4x128xf32>
    %cst_88 = arith.constant dense<0.000000e+00> : vector<4x128xf32>
    %297 = tpu.matmul %294, %236, %cst_88 {dimension_numbers = #tpu.dot_dimension_numbers<[1], [0], [0], [1], [0, 0, 1, 1], [], []>} : vector<4x32xf32>, vector<32x128xf32>, vector<4x128xf32> -> vector<4x128xf32>
    %298 = arith.addf %296, %297 : vector<4x128xf32>
    %299 = vector.broadcast %237 : vector<1x128xf32> to vector<4x128xf32>
    %300 = arith.addf %298, %299 : vector<4x128xf32>
    %c4 = arith.constant 4 : index
    %c0_89 = arith.constant 0 : index
    %301 = vector.load %arg21[%c4, %c0_89] : memref<32x128xf32, #tpu.memory_space<vmem>>, vector<4x128xf32>
    tpu.vector_store %arg21[%c4, %c0_89], %300 {strides = array<i32>} : memref<32x128xf32, #tpu.memory_space<vmem>>, vector<4x128xf32>,
    %c1 = arith.constant 1 : index
    %302 = memref.load %arg0[%c1] : memref<8xi32, #tpu.memory_space<smem>>
    %c0_i32 = arith.constant 0 : i32
    %303 = arith.cmpi eq, %302, %c0_i32 : i32
    %304 = arith.extui %303 : i1 to i32
    %c0_i32_90 = arith.constant 0 : i32
    %305 = arith.cmpi ne, %304, %c0_i32_90 : i32
    scf.if %305 {
      %cst_270 = arith.constant dense<0xFF800000> : vector<4xf32>
      %710 = vector.multi_reduction <maximumf>, %300, %cst_270 [1] : vector<4x128xf32> to vector<4xf32>
      %711 = vector.shape_cast %710 : vector<4xf32> to vector<4x1xf32>
      %712 = vector.broadcast %711 : vector<4x1xf32> to vector<4x128xf32>
      %713 = arith.cmpf oeq, %300, %712 : vector<4x128xf32>
      %c128_i32 = arith.constant 128 : i32
      %714 = vector.broadcast %c128_i32 : i32 to vector<4x128xi32>
      %715 = arith.select %713, %238, %714 : vector<4x128xi1>, vector<4x128xi32>
      %cst_271 = arith.constant dense<2147483647> : vector<4xi32>
      %716 = vector.multi_reduction <minsi>, %715, %cst_271 [1] : vector<4x128xi32> to vector<4xi32>
      %717 = vector.shape_cast %716 : vector<4xi32> to vector<4x1xi32>
      %718 = vector.broadcast %717 : vector<4x1xi32> to vector<4x128xi32>
      %719 = arith.cmpi eq, %238, %718 : vector<4x128xi32>
      %720 = arith.extui %719 : vector<4x128xi1> to vector<4x128xi32>
      %721 = arith.sitofp %720 : vector<4x128xi32> to vector<4x128xf32>
      %c0_272 = arith.constant 0 : index
      %c0_273 = arith.constant 0 : index
      %722 = vector.load %arg3[%c0_272, %c0_273] : memref<128x16xf32, #tpu.memory_space<vmem>>, vector<128x16xf32>
      %cst_274 = arith.constant dense<0.000000e+00> : vector<4x16xf32>
      %723 = tpu.matmul %721, %722, %cst_274 {dimension_numbers = #tpu.dot_dimension_numbers<[1], [0], [0], [1], [0, 0, 1, 1], [], []>} : vector<4x128xf32>, vector<128x16xf32>, vector<4x16xf32> -> vector<4x16xf32>
      %c0_275 = arith.constant 0 : index
      %c0_276 = arith.constant 0 : index
      %724 = vector.load %arg22[%c0_275, %c0_276] : memref<4x16xf32, #tpu.memory_space<vmem>>, vector<4x16xf32>
      tpu.vector_store %arg22[%c0_275, %c0_276], %723 {strides = array<i32>} : memref<4x16xf32, #tpu.memory_space<vmem>>, vector<4x16xf32>,
    } else {
    }
    %c0_i32_91 = arith.constant 0 : i32
    %306 = arith.cmpi ne, %302, %c0_i32_91 : i32
    %307 = arith.extui %306 : i1 to i32
    %c0_i32_92 = arith.constant 0 : i32
    %308 = arith.cmpi ne, %307, %c0_i32_92 : i32
    scf.if %308 {
      %c4_270 = arith.constant 4 : index
      %c0_271 = arith.constant 0 : index
      %710 = vector.load %arg2[%c4_270, %c0_271] : memref<32x16xf32, #tpu.memory_space<vmem>>, vector<4x16xf32>
      %c0_272 = arith.constant 0 : index
      %c0_273 = arith.constant 0 : index
      %711 = vector.load %arg22[%c0_272, %c0_273] : memref<4x16xf32, #tpu.memory_space<vmem>>, vector<4x16xf32>
      tpu.vector_store %arg22[%c0_272, %c0_273], %710 {strides = array<i32>} : memref<4x16xf32, #tpu.memory_space<vmem>>, vector<4x16xf32>,
    } else {
    }
    %c0_93 = arith.constant 0 : index
    %c0_94 = arith.constant 0 : index
    %309 = vector.load %arg22[%c0_93, %c0_94] : memref<4x16xf32, #tpu.memory_space<vmem>>, vector<4x16xf32>
    %c0_95 = arith.constant 0 : index
    %c0_96 = arith.constant 0 : index
    %310 = vector.load %arg9[%c0_95, %c0_96] : memref<32x224xf32, #tpu.memory_space<vmem>>, vector<32x224xf32>
    %cst_97 = arith.constant dense<0.000000e+00> : vector<4x224xf32>
    %311 = tpu.matmul %294, %310, %cst_97 {dimension_numbers = #tpu.dot_dimension_numbers<[1], [0], [0], [1], [0, 0, 1, 1], [], []>} : vector<4x32xf32>, vector<32x224xf32>, vector<4x224xf32> -> vector<4x224xf32>
    %312 = arith.addf %231, %311 : vector<4x224xf32>
    %313 = math.tanh %312 : vector<4x224xf32>
    %c0_98 = arith.constant 0 : index
    %c0_99 = arith.constant 0 : index
    %314 = vector.load %arg11[%c0_98, %c0_99] : memref<224x7xf32, #tpu.memory_space<vmem>>, vector<224x7xf32>
    %cst_100 = arith.constant dense<0.000000e+00> : vector<4x7xf32>
    %315 = tpu.matmul %313, %314, %cst_100 {dimension_numbers = #tpu.dot_dimension_numbers<[1], [0], [0], [1], [0, 0, 1, 1], [], []>} : vector<4x224xf32>, vector<224x7xf32>, vector<4x7xf32> -> vector<4x7xf32>
    %cst_101 = arith.constant dense<0xFF800000> : vector<4xf32>
    %316 = vector.multi_reduction <maximumf>, %315, %cst_101 [1] : vector<4x7xf32> to vector<4xf32>
    %317 = vector.shape_cast %316 : vector<4xf32> to vector<4x1xf32>
    %318 = vector.broadcast %317 : vector<4x1xf32> to vector<4x7xf32>
    %319 = arith.subf %315, %318 : vector<4x7xf32>
    %320 = math.exp %319 : vector<4x7xf32>
    %cst_102 = arith.constant dense<0.000000e+00> : vector<4xf32>
    %321 = vector.multi_reduction <add>, %320, %cst_102 [1] : vector<4x7xf32> to vector<4xf32>
    %322 = vector.shape_cast %321 : vector<4xf32> to vector<4x1xf32>
    %323 = vector.broadcast %322 : vector<4x1xf32> to vector<4x7xf32>
    %324 = arith.divf %320, %323 : vector<4x7xf32>
    %c0_103 = arith.constant 0 : index
    %c0_104 = arith.constant 0 : index
    %325 = vector.load %arg12[%c0_103, %c0_104] : memref<7x224xf32, #tpu.memory_space<vmem>>, vector<7x224xf32>
    %cst_105 = arith.constant dense<0.000000e+00> : vector<4x224xf32>
    %326 = tpu.matmul %324, %325, %cst_105 {dimension_numbers = #tpu.dot_dimension_numbers<[1], [0], [0], [1], [0, 0, 1, 1], [], []>} : vector<4x7xf32>, vector<7x224xf32>, vector<4x224xf32> -> vector<4x224xf32>
    %327 = arith.mulf %326, %220 : vector<4x224xf32>
    %c0_106 = arith.constant 0 : index
    %c0_107 = arith.constant 0 : index
    %328 = vector.load %arg13[%c0_106, %c0_107] : memref<224x32xf32, #tpu.memory_space<vmem>>, vector<224x32xf32>
    %cst_108 = arith.constant dense<0.000000e+00> : vector<4x32xf32>
    %329 = tpu.matmul %327, %328, %cst_108 {dimension_numbers = #tpu.dot_dimension_numbers<[1], [0], [0], [1], [0, 0, 1, 1], [], []>} : vector<4x224xf32>, vector<224x32xf32>, vector<4x32xf32> -> vector<4x32xf32>
    %330 = tpu.concatenate %309, %329 in 1 : vector<4x16xf32>, vector<4x32xf32> -> vector<4x48xf32>
    %cst_109 = arith.constant dense<0.000000e+00> : vector<4x96xf32>
    %331 = tpu.matmul %330, %232, %cst_109 {dimension_numbers = #tpu.dot_dimension_numbers<[1], [0], [0], [1], [0, 0, 1, 1], [], []>} : vector<4x48xf32>, vector<48x96xf32>, vector<4x96xf32> -> vector<4x96xf32>
    %332 = vector.broadcast %234 : vector<1x96xf32> to vector<4x96xf32>
    %333 = arith.addf %331, %332 : vector<4x96xf32>
    %cst_110 = arith.constant dense<0.000000e+00> : vector<4x96xf32>
    %334 = tpu.matmul %294, %233, %cst_110 {dimension_numbers = #tpu.dot_dimension_numbers<[1], [0], [0], [1], [0, 0, 1, 1], [], []>} : vector<4x32xf32>, vector<32x96xf32>, vector<4x96xf32> -> vector<4x96xf32>
    %335 = vector.broadcast %235 : vector<1x96xf32> to vector<4x96xf32>
    %336 = arith.addf %334, %335 : vector<4x96xf32>
    %337 = vector.extract_strided_slice %333 {offsets = [0, 0], sizes = [4, 32], strides = [1, 1]} : vector<4x96xf32> to vector<4x32xf32>
    %338 = vector.extract_strided_slice %333 {offsets = [0, 32], sizes = [4, 32], strides = [1, 1]} : vector<4x96xf32> to vector<4x32xf32>
    %339 = vector.extract_strided_slice %333 {offsets = [0, 64], sizes = [4, 32], strides = [1, 1]} : vector<4x96xf32> to vector<4x32xf32>
    %340 = vector.extract_strided_slice %336 {offsets = [0, 0], sizes = [4, 32], strides = [1, 1]} : vector<4x96xf32> to vector<4x32xf32>
    %341 = vector.extract_strided_slice %336 {offsets = [0, 32], sizes = [4, 32], strides = [1, 1]} : vector<4x96xf32> to vector<4x32xf32>
    %342 = vector.extract_strided_slice %336 {offsets = [0, 64], sizes = [4, 32], strides = [1, 1]} : vector<4x96xf32> to vector<4x32xf32>
    %343 = arith.addf %337, %340 : vector<4x32xf32>
    %344 = arith.negf %343 : vector<4x32xf32>
    %345 = math.exp %344 : vector<4x32xf32>
    %cst_111 = arith.constant 1.000000e+00 : f32
    %346 = vector.broadcast %cst_111 : f32 to vector<4x32xf32>
    %347 = arith.addf %346, %345 : vector<4x32xf32>
    %348 = arith.divf %346, %347 : vector<4x32xf32>
    %349 = arith.addf %338, %341 : vector<4x32xf32>
    %350 = arith.negf %349 : vector<4x32xf32>
    %351 = math.exp %350 : vector<4x32xf32>
    %cst_112 = arith.constant 1.000000e+00 : f32
    %352 = vector.broadcast %cst_112 : f32 to vector<4x32xf32>
    %353 = arith.addf %352, %351 : vector<4x32xf32>
    %354 = arith.divf %352, %353 : vector<4x32xf32>
    %355 = arith.mulf %348, %342 : vector<4x32xf32>
    %356 = arith.addf %339, %355 : vector<4x32xf32>
    %357 = math.tanh %356 : vector<4x32xf32>
    %cst_113 = arith.constant 1.000000e+00 : f32
    %358 = vector.broadcast %cst_113 : f32 to vector<4x32xf32>
    %359 = arith.subf %358, %354 : vector<4x32xf32>
    %360 = arith.mulf %359, %357 : vector<4x32xf32>
    %361 = arith.mulf %354, %294 : vector<4x32xf32>
    %362 = arith.addf %360, %361 : vector<4x32xf32>
    %c0_114 = arith.constant 0 : index
    %c0_115 = arith.constant 0 : index
    %363 = vector.load %arg18[%c0_114, %c0_115] : memref<48x128xf32, #tpu.memory_space<vmem>>, vector<48x128xf32>
    %cst_116 = arith.constant dense<0.000000e+00> : vector<4x128xf32>
    %364 = tpu.matmul %330, %363, %cst_116 {dimension_numbers = #tpu.dot_dimension_numbers<[1], [0], [0], [1], [0, 0, 1, 1], [], []>} : vector<4x48xf32>, vector<48x128xf32>, vector<4x128xf32> -> vector<4x128xf32>
    %cst_117 = arith.constant dense<0.000000e+00> : vector<4x128xf32>
    %365 = tpu.matmul %362, %236, %cst_117 {dimension_numbers = #tpu.dot_dimension_numbers<[1], [0], [0], [1], [0, 0, 1, 1], [], []>} : vector<4x32xf32>, vector<32x128xf32>, vector<4x128xf32> -> vector<4x128xf32>
    %366 = arith.addf %364, %365 : vector<4x128xf32>
    %367 = vector.broadcast %237 : vector<1x128xf32> to vector<4x128xf32>
    %368 = arith.addf %366, %367 : vector<4x128xf32>
    %c8 = arith.constant 8 : index
    %c0_118 = arith.constant 0 : index
    %369 = vector.load %arg21[%c8, %c0_118] : memref<32x128xf32, #tpu.memory_space<vmem>>, vector<4x128xf32>
    tpu.vector_store %arg21[%c8, %c0_118], %368 {strides = array<i32>} : memref<32x128xf32, #tpu.memory_space<vmem>>, vector<4x128xf32>,
    %c2 = arith.constant 2 : index
    %370 = memref.load %arg0[%c2] : memref<8xi32, #tpu.memory_space<smem>>
    %c0_i32_119 = arith.constant 0 : i32
    %371 = arith.cmpi eq, %370, %c0_i32_119 : i32
    %372 = arith.extui %371 : i1 to i32
    %c0_i32_120 = arith.constant 0 : i32
    %373 = arith.cmpi ne, %372, %c0_i32_120 : i32
    scf.if %373 {
      %cst_270 = arith.constant dense<0xFF800000> : vector<4xf32>
      %710 = vector.multi_reduction <maximumf>, %368, %cst_270 [1] : vector<4x128xf32> to vector<4xf32>
      %711 = vector.shape_cast %710 : vector<4xf32> to vector<4x1xf32>
      %712 = vector.broadcast %711 : vector<4x1xf32> to vector<4x128xf32>
      %713 = arith.cmpf oeq, %368, %712 : vector<4x128xf32>
      %c128_i32 = arith.constant 128 : i32
      %714 = vector.broadcast %c128_i32 : i32 to vector<4x128xi32>
      %715 = arith.select %713, %238, %714 : vector<4x128xi1>, vector<4x128xi32>
      %cst_271 = arith.constant dense<2147483647> : vector<4xi32>
      %716 = vector.multi_reduction <minsi>, %715, %cst_271 [1] : vector<4x128xi32> to vector<4xi32>
      %717 = vector.shape_cast %716 : vector<4xi32> to vector<4x1xi32>
      %718 = vector.broadcast %717 : vector<4x1xi32> to vector<4x128xi32>
      %719 = arith.cmpi eq, %238, %718 : vector<4x128xi32>
      %720 = arith.extui %719 : vector<4x128xi1> to vector<4x128xi32>
      %721 = arith.sitofp %720 : vector<4x128xi32> to vector<4x128xf32>
      %c0_272 = arith.constant 0 : index
      %c0_273 = arith.constant 0 : index
      %722 = vector.load %arg3[%c0_272, %c0_273] : memref<128x16xf32, #tpu.memory_space<vmem>>, vector<128x16xf32>
      %cst_274 = arith.constant dense<0.000000e+00> : vector<4x16xf32>
      %723 = tpu.matmul %721, %722, %cst_274 {dimension_numbers = #tpu.dot_dimension_numbers<[1], [0], [0], [1], [0, 0, 1, 1], [], []>} : vector<4x128xf32>, vector<128x16xf32>, vector<4x16xf32> -> vector<4x16xf32>
      %c0_275 = arith.constant 0 : index
      %c0_276 = arith.constant 0 : index
      %724 = vector.load %arg22[%c0_275, %c0_276] : memref<4x16xf32, #tpu.memory_space<vmem>>, vector<4x16xf32>
      tpu.vector_store %arg22[%c0_275, %c0_276], %723 {strides = array<i32>} : memref<4x16xf32, #tpu.memory_space<vmem>>, vector<4x16xf32>,
    } else {
    }
    %c0_i32_121 = arith.constant 0 : i32
    %374 = arith.cmpi ne, %370, %c0_i32_121 : i32
    %375 = arith.extui %374 : i1 to i32
    %c0_i32_122 = arith.constant 0 : i32
    %376 = arith.cmpi ne, %375, %c0_i32_122 : i32
    scf.if %376 {
      %c8_270 = arith.constant 8 : index
      %c0_271 = arith.constant 0 : index
      %710 = vector.load %arg2[%c8_270, %c0_271] : memref<32x16xf32, #tpu.memory_space<vmem>>, vector<4x16xf32>
      %c0_272 = arith.constant 0 : index
      %c0_273 = arith.constant 0 : index
      %711 = vector.load %arg22[%c0_272, %c0_273] : memref<4x16xf32, #tpu.memory_space<vmem>>, vector<4x16xf32>
      tpu.vector_store %arg22[%c0_272, %c0_273], %710 {strides = array<i32>} : memref<4x16xf32, #tpu.memory_space<vmem>>, vector<4x16xf32>,
    } else {
    }
    %c0_123 = arith.constant 0 : index
    %c0_124 = arith.constant 0 : index
    %377 = vector.load %arg22[%c0_123, %c0_124] : memref<4x16xf32, #tpu.memory_space<vmem>>, vector<4x16xf32>
    %c0_125 = arith.constant 0 : index
    %c0_126 = arith.constant 0 : index
    %378 = vector.load %arg9[%c0_125, %c0_126] : memref<32x224xf32, #tpu.memory_space<vmem>>, vector<32x224xf32>
    %cst_127 = arith.constant dense<0.000000e+00> : vector<4x224xf32>
    %379 = tpu.matmul %362, %378, %cst_127 {dimension_numbers = #tpu.dot_dimension_numbers<[1], [0], [0], [1], [0, 0, 1, 1], [], []>} : vector<4x32xf32>, vector<32x224xf32>, vector<4x224xf32> -> vector<4x224xf32>
    %380 = arith.addf %231, %379 : vector<4x224xf32>
    %381 = math.tanh %380 : vector<4x224xf32>
    %c0_128 = arith.constant 0 : index
    %c0_129 = arith.constant 0 : index
    %382 = vector.load %arg11[%c0_128, %c0_129] : memref<224x7xf32, #tpu.memory_space<vmem>>, vector<224x7xf32>
    %cst_130 = arith.constant dense<0.000000e+00> : vector<4x7xf32>
    %383 = tpu.matmul %381, %382, %cst_130 {dimension_numbers = #tpu.dot_dimension_numbers<[1], [0], [0], [1], [0, 0, 1, 1], [], []>} : vector<4x224xf32>, vector<224x7xf32>, vector<4x7xf32> -> vector<4x7xf32>
    %cst_131 = arith.constant dense<0xFF800000> : vector<4xf32>
    %384 = vector.multi_reduction <maximumf>, %383, %cst_131 [1] : vector<4x7xf32> to vector<4xf32>
    %385 = vector.shape_cast %384 : vector<4xf32> to vector<4x1xf32>
    %386 = vector.broadcast %385 : vector<4x1xf32> to vector<4x7xf32>
    %387 = arith.subf %383, %386 : vector<4x7xf32>
    %388 = math.exp %387 : vector<4x7xf32>
    %cst_132 = arith.constant dense<0.000000e+00> : vector<4xf32>
    %389 = vector.multi_reduction <add>, %388, %cst_132 [1] : vector<4x7xf32> to vector<4xf32>
    %390 = vector.shape_cast %389 : vector<4xf32> to vector<4x1xf32>
    %391 = vector.broadcast %390 : vector<4x1xf32> to vector<4x7xf32>
    %392 = arith.divf %388, %391 : vector<4x7xf32>
    %c0_133 = arith.constant 0 : index
    %c0_134 = arith.constant 0 : index
    %393 = vector.load %arg12[%c0_133, %c0_134] : memref<7x224xf32, #tpu.memory_space<vmem>>, vector<7x224xf32>
    %cst_135 = arith.constant dense<0.000000e+00> : vector<4x224xf32>
    %394 = tpu.matmul %392, %393, %cst_135 {dimension_numbers = #tpu.dot_dimension_numbers<[1], [0], [0], [1], [0, 0, 1, 1], [], []>} : vector<4x7xf32>, vector<7x224xf32>, vector<4x224xf32> -> vector<4x224xf32>
    %395 = arith.mulf %394, %220 : vector<4x224xf32>
    %c0_136 = arith.constant 0 : index
    %c0_137 = arith.constant 0 : index
    %396 = vector.load %arg13[%c0_136, %c0_137] : memref<224x32xf32, #tpu.memory_space<vmem>>, vector<224x32xf32>
    %cst_138 = arith.constant dense<0.000000e+00> : vector<4x32xf32>
    %397 = tpu.matmul %395, %396, %cst_138 {dimension_numbers = #tpu.dot_dimension_numbers<[1], [0], [0], [1], [0, 0, 1, 1], [], []>} : vector<4x224xf32>, vector<224x32xf32>, vector<4x32xf32> -> vector<4x32xf32>
    %398 = tpu.concatenate %377, %397 in 1 : vector<4x16xf32>, vector<4x32xf32> -> vector<4x48xf32>
    %cst_139 = arith.constant dense<0.000000e+00> : vector<4x96xf32>
    %399 = tpu.matmul %398, %232, %cst_139 {dimension_numbers = #tpu.dot_dimension_numbers<[1], [0], [0], [1], [0, 0, 1, 1], [], []>} : vector<4x48xf32>, vector<48x96xf32>, vector<4x96xf32> -> vector<4x96xf32>
    %400 = vector.broadcast %234 : vector<1x96xf32> to vector<4x96xf32>
    %401 = arith.addf %399, %400 : vector<4x96xf32>
    %cst_140 = arith.constant dense<0.000000e+00> : vector<4x96xf32>
    %402 = tpu.matmul %362, %233, %cst_140 {dimension_numbers = #tpu.dot_dimension_numbers<[1], [0], [0], [1], [0, 0, 1, 1], [], []>} : vector<4x32xf32>, vector<32x96xf32>, vector<4x96xf32> -> vector<4x96xf32>
    %403 = vector.broadcast %235 : vector<1x96xf32> to vector<4x96xf32>
    %404 = arith.addf %402, %403 : vector<4x96xf32>
    %405 = vector.extract_strided_slice %401 {offsets = [0, 0], sizes = [4, 32], strides = [1, 1]} : vector<4x96xf32> to vector<4x32xf32>
    %406 = vector.extract_strided_slice %401 {offsets = [0, 32], sizes = [4, 32], strides = [1, 1]} : vector<4x96xf32> to vector<4x32xf32>
    %407 = vector.extract_strided_slice %401 {offsets = [0, 64], sizes = [4, 32], strides = [1, 1]} : vector<4x96xf32> to vector<4x32xf32>
    %408 = vector.extract_strided_slice %404 {offsets = [0, 0], sizes = [4, 32], strides = [1, 1]} : vector<4x96xf32> to vector<4x32xf32>
    %409 = vector.extract_strided_slice %404 {offsets = [0, 32], sizes = [4, 32], strides = [1, 1]} : vector<4x96xf32> to vector<4x32xf32>
    %410 = vector.extract_strided_slice %404 {offsets = [0, 64], sizes = [4, 32], strides = [1, 1]} : vector<4x96xf32> to vector<4x32xf32>
    %411 = arith.addf %405, %408 : vector<4x32xf32>
    %412 = arith.negf %411 : vector<4x32xf32>
    %413 = math.exp %412 : vector<4x32xf32>
    %cst_141 = arith.constant 1.000000e+00 : f32
    %414 = vector.broadcast %cst_141 : f32 to vector<4x32xf32>
    %415 = arith.addf %414, %413 : vector<4x32xf32>
    %416 = arith.divf %414, %415 : vector<4x32xf32>
    %417 = arith.addf %406, %409 : vector<4x32xf32>
    %418 = arith.negf %417 : vector<4x32xf32>
    %419 = math.exp %418 : vector<4x32xf32>
    %cst_142 = arith.constant 1.000000e+00 : f32
    %420 = vector.broadcast %cst_142 : f32 to vector<4x32xf32>
    %421 = arith.addf %420, %419 : vector<4x32xf32>
    %422 = arith.divf %420, %421 : vector<4x32xf32>
    %423 = arith.mulf %416, %410 : vector<4x32xf32>
    %424 = arith.addf %407, %423 : vector<4x32xf32>
    %425 = math.tanh %424 : vector<4x32xf32>
    %cst_143 = arith.constant 1.000000e+00 : f32
    %426 = vector.broadcast %cst_143 : f32 to vector<4x32xf32>
    %427 = arith.subf %426, %422 : vector<4x32xf32>
    %428 = arith.mulf %427, %425 : vector<4x32xf32>
    %429 = arith.mulf %422, %362 : vector<4x32xf32>
    %430 = arith.addf %428, %429 : vector<4x32xf32>
    %c0_144 = arith.constant 0 : index
    %c0_145 = arith.constant 0 : index
    %431 = vector.load %arg18[%c0_144, %c0_145] : memref<48x128xf32, #tpu.memory_space<vmem>>, vector<48x128xf32>
    %cst_146 = arith.constant dense<0.000000e+00> : vector<4x128xf32>
    %432 = tpu.matmul %398, %431, %cst_146 {dimension_numbers = #tpu.dot_dimension_numbers<[1], [0], [0], [1], [0, 0, 1, 1], [], []>} : vector<4x48xf32>, vector<48x128xf32>, vector<4x128xf32> -> vector<4x128xf32>
    %cst_147 = arith.constant dense<0.000000e+00> : vector<4x128xf32>
    %433 = tpu.matmul %430, %236, %cst_147 {dimension_numbers = #tpu.dot_dimension_numbers<[1], [0], [0], [1], [0, 0, 1, 1], [], []>} : vector<4x32xf32>, vector<32x128xf32>, vector<4x128xf32> -> vector<4x128xf32>
    %434 = arith.addf %432, %433 : vector<4x128xf32>
    %435 = vector.broadcast %237 : vector<1x128xf32> to vector<4x128xf32>
    %436 = arith.addf %434, %435 : vector<4x128xf32>
    %c12 = arith.constant 12 : index
    %c0_148 = arith.constant 0 : index
    %437 = vector.load %arg21[%c12, %c0_148] : memref<32x128xf32, #tpu.memory_space<vmem>>, vector<4x128xf32>
    tpu.vector_store %arg21[%c12, %c0_148], %436 {strides = array<i32>} : memref<32x128xf32, #tpu.memory_space<vmem>>, vector<4x128xf32>,
    %c3 = arith.constant 3 : index
    %438 = memref.load %arg0[%c3] : memref<8xi32, #tpu.memory_space<smem>>
    %c0_i32_149 = arith.constant 0 : i32
    %439 = arith.cmpi eq, %438, %c0_i32_149 : i32
    %440 = arith.extui %439 : i1 to i32
    %c0_i32_150 = arith.constant 0 : i32
    %441 = arith.cmpi ne, %440, %c0_i32_150 : i32
    scf.if %441 {
      %cst_270 = arith.constant dense<0xFF800000> : vector<4xf32>
      %710 = vector.multi_reduction <maximumf>, %436, %cst_270 [1] : vector<4x128xf32> to vector<4xf32>
      %711 = vector.shape_cast %710 : vector<4xf32> to vector<4x1xf32>
      %712 = vector.broadcast %711 : vector<4x1xf32> to vector<4x128xf32>
      %713 = arith.cmpf oeq, %436, %712 : vector<4x128xf32>
      %c128_i32 = arith.constant 128 : i32
      %714 = vector.broadcast %c128_i32 : i32 to vector<4x128xi32>
      %715 = arith.select %713, %238, %714 : vector<4x128xi1>, vector<4x128xi32>
      %cst_271 = arith.constant dense<2147483647> : vector<4xi32>
      %716 = vector.multi_reduction <minsi>, %715, %cst_271 [1] : vector<4x128xi32> to vector<4xi32>
      %717 = vector.shape_cast %716 : vector<4xi32> to vector<4x1xi32>
      %718 = vector.broadcast %717 : vector<4x1xi32> to vector<4x128xi32>
      %719 = arith.cmpi eq, %238, %718 : vector<4x128xi32>
      %720 = arith.extui %719 : vector<4x128xi1> to vector<4x128xi32>
      %721 = arith.sitofp %720 : vector<4x128xi32> to vector<4x128xf32>
      %c0_272 = arith.constant 0 : index
      %c0_273 = arith.constant 0 : index
      %722 = vector.load %arg3[%c0_272, %c0_273] : memref<128x16xf32, #tpu.memory_space<vmem>>, vector<128x16xf32>
      %cst_274 = arith.constant dense<0.000000e+00> : vector<4x16xf32>
      %723 = tpu.matmul %721, %722, %cst_274 {dimension_numbers = #tpu.dot_dimension_numbers<[1], [0], [0], [1], [0, 0, 1, 1], [], []>} : vector<4x128xf32>, vector<128x16xf32>, vector<4x16xf32> -> vector<4x16xf32>
      %c0_275 = arith.constant 0 : index
      %c0_276 = arith.constant 0 : index
      %724 = vector.load %arg22[%c0_275, %c0_276] : memref<4x16xf32, #tpu.memory_space<vmem>>, vector<4x16xf32>
      tpu.vector_store %arg22[%c0_275, %c0_276], %723 {strides = array<i32>} : memref<4x16xf32, #tpu.memory_space<vmem>>, vector<4x16xf32>,
    } else {
    }
    %c0_i32_151 = arith.constant 0 : i32
    %442 = arith.cmpi ne, %438, %c0_i32_151 : i32
    %443 = arith.extui %442 : i1 to i32
    %c0_i32_152 = arith.constant 0 : i32
    %444 = arith.cmpi ne, %443, %c0_i32_152 : i32
    scf.if %444 {
      %c12_270 = arith.constant 12 : index
      %c0_271 = arith.constant 0 : index
      %710 = vector.load %arg2[%c12_270, %c0_271] : memref<32x16xf32, #tpu.memory_space<vmem>>, vector<4x16xf32>
      %c0_272 = arith.constant 0 : index
      %c0_273 = arith.constant 0 : index
      %711 = vector.load %arg22[%c0_272, %c0_273] : memref<4x16xf32, #tpu.memory_space<vmem>>, vector<4x16xf32>
      tpu.vector_store %arg22[%c0_272, %c0_273], %710 {strides = array<i32>} : memref<4x16xf32, #tpu.memory_space<vmem>>, vector<4x16xf32>,
    } else {
    }
    %c0_153 = arith.constant 0 : index
    %c0_154 = arith.constant 0 : index
    %445 = vector.load %arg22[%c0_153, %c0_154] : memref<4x16xf32, #tpu.memory_space<vmem>>, vector<4x16xf32>
    %c0_155 = arith.constant 0 : index
    %c0_156 = arith.constant 0 : index
    %446 = vector.load %arg9[%c0_155, %c0_156] : memref<32x224xf32, #tpu.memory_space<vmem>>, vector<32x224xf32>
    %cst_157 = arith.constant dense<0.000000e+00> : vector<4x224xf32>
    %447 = tpu.matmul %430, %446, %cst_157 {dimension_numbers = #tpu.dot_dimension_numbers<[1], [0], [0], [1], [0, 0, 1, 1], [], []>} : vector<4x32xf32>, vector<32x224xf32>, vector<4x224xf32> -> vector<4x224xf32>
    %448 = arith.addf %231, %447 : vector<4x224xf32>
    %449 = math.tanh %448 : vector<4x224xf32>
    %c0_158 = arith.constant 0 : index
    %c0_159 = arith.constant 0 : index
    %450 = vector.load %arg11[%c0_158, %c0_159] : memref<224x7xf32, #tpu.memory_space<vmem>>, vector<224x7xf32>
    %cst_160 = arith.constant dense<0.000000e+00> : vector<4x7xf32>
    %451 = tpu.matmul %449, %450, %cst_160 {dimension_numbers = #tpu.dot_dimension_numbers<[1], [0], [0], [1], [0, 0, 1, 1], [], []>} : vector<4x224xf32>, vector<224x7xf32>, vector<4x7xf32> -> vector<4x7xf32>
    %cst_161 = arith.constant dense<0xFF800000> : vector<4xf32>
    %452 = vector.multi_reduction <maximumf>, %451, %cst_161 [1] : vector<4x7xf32> to vector<4xf32>
    %453 = vector.shape_cast %452 : vector<4xf32> to vector<4x1xf32>
    %454 = vector.broadcast %453 : vector<4x1xf32> to vector<4x7xf32>
    %455 = arith.subf %451, %454 : vector<4x7xf32>
    %456 = math.exp %455 : vector<4x7xf32>
    %cst_162 = arith.constant dense<0.000000e+00> : vector<4xf32>
    %457 = vector.multi_reduction <add>, %456, %cst_162 [1] : vector<4x7xf32> to vector<4xf32>
    %458 = vector.shape_cast %457 : vector<4xf32> to vector<4x1xf32>
    %459 = vector.broadcast %458 : vector<4x1xf32> to vector<4x7xf32>
    %460 = arith.divf %456, %459 : vector<4x7xf32>
    %c0_163 = arith.constant 0 : index
    %c0_164 = arith.constant 0 : index
    %461 = vector.load %arg12[%c0_163, %c0_164] : memref<7x224xf32, #tpu.memory_space<vmem>>, vector<7x224xf32>
    %cst_165 = arith.constant dense<0.000000e+00> : vector<4x224xf32>
    %462 = tpu.matmul %460, %461, %cst_165 {dimension_numbers = #tpu.dot_dimension_numbers<[1], [0], [0], [1], [0, 0, 1, 1], [], []>} : vector<4x7xf32>, vector<7x224xf32>, vector<4x224xf32> -> vector<4x224xf32>
    %463 = arith.mulf %462, %220 : vector<4x224xf32>
    %c0_166 = arith.constant 0 : index
    %c0_167 = arith.constant 0 : index
    %464 = vector.load %arg13[%c0_166, %c0_167] : memref<224x32xf32, #tpu.memory_space<vmem>>, vector<224x32xf32>
    %cst_168 = arith.constant dense<0.000000e+00> : vector<4x32xf32>
    %465 = tpu.matmul %463, %464, %cst_168 {dimension_numbers = #tpu.dot_dimension_numbers<[1], [0], [0], [1], [0, 0, 1, 1], [], []>} : vector<4x224xf32>, vector<224x32xf32>, vector<4x32xf32> -> vector<4x32xf32>
    %466 = tpu.concatenate %445, %465 in 1 : vector<4x16xf32>, vector<4x32xf32> -> vector<4x48xf32>
    %cst_169 = arith.constant dense<0.000000e+00> : vector<4x96xf32>
    %467 = tpu.matmul %466, %232, %cst_169 {dimension_numbers = #tpu.dot_dimension_numbers<[1], [0], [0], [1], [0, 0, 1, 1], [], []>} : vector<4x48xf32>, vector<48x96xf32>, vector<4x96xf32> -> vector<4x96xf32>
    %468 = vector.broadcast %234 : vector<1x96xf32> to vector<4x96xf32>
    %469 = arith.addf %467, %468 : vector<4x96xf32>
    %cst_170 = arith.constant dense<0.000000e+00> : vector<4x96xf32>
    %470 = tpu.matmul %430, %233, %cst_170 {dimension_numbers = #tpu.dot_dimension_numbers<[1], [0], [0], [1], [0, 0, 1, 1], [], []>} : vector<4x32xf32>, vector<32x96xf32>, vector<4x96xf32> -> vector<4x96xf32>
    %471 = vector.broadcast %235 : vector<1x96xf32> to vector<4x96xf32>
    %472 = arith.addf %470, %471 : vector<4x96xf32>
    %473 = vector.extract_strided_slice %469 {offsets = [0, 0], sizes = [4, 32], strides = [1, 1]} : vector<4x96xf32> to vector<4x32xf32>
    %474 = vector.extract_strided_slice %469 {offsets = [0, 32], sizes = [4, 32], strides = [1, 1]} : vector<4x96xf32> to vector<4x32xf32>
    %475 = vector.extract_strided_slice %469 {offsets = [0, 64], sizes = [4, 32], strides = [1, 1]} : vector<4x96xf32> to vector<4x32xf32>
    %476 = vector.extract_strided_slice %472 {offsets = [0, 0], sizes = [4, 32], strides = [1, 1]} : vector<4x96xf32> to vector<4x32xf32>
    %477 = vector.extract_strided_slice %472 {offsets = [0, 32], sizes = [4, 32], strides = [1, 1]} : vector<4x96xf32> to vector<4x32xf32>
    %478 = vector.extract_strided_slice %472 {offsets = [0, 64], sizes = [4, 32], strides = [1, 1]} : vector<4x96xf32> to vector<4x32xf32>
    %479 = arith.addf %473, %476 : vector<4x32xf32>
    %480 = arith.negf %479 : vector<4x32xf32>
    %481 = math.exp %480 : vector<4x32xf32>
    %cst_171 = arith.constant 1.000000e+00 : f32
    %482 = vector.broadcast %cst_171 : f32 to vector<4x32xf32>
    %483 = arith.addf %482, %481 : vector<4x32xf32>
    %484 = arith.divf %482, %483 : vector<4x32xf32>
    %485 = arith.addf %474, %477 : vector<4x32xf32>
    %486 = arith.negf %485 : vector<4x32xf32>
    %487 = math.exp %486 : vector<4x32xf32>
    %cst_172 = arith.constant 1.000000e+00 : f32
    %488 = vector.broadcast %cst_172 : f32 to vector<4x32xf32>
    %489 = arith.addf %488, %487 : vector<4x32xf32>
    %490 = arith.divf %488, %489 : vector<4x32xf32>
    %491 = arith.mulf %484, %478 : vector<4x32xf32>
    %492 = arith.addf %475, %491 : vector<4x32xf32>
    %493 = math.tanh %492 : vector<4x32xf32>
    %cst_173 = arith.constant 1.000000e+00 : f32
    %494 = vector.broadcast %cst_173 : f32 to vector<4x32xf32>
    %495 = arith.subf %494, %490 : vector<4x32xf32>
    %496 = arith.mulf %495, %493 : vector<4x32xf32>
    %497 = arith.mulf %490, %430 : vector<4x32xf32>
    %498 = arith.addf %496, %497 : vector<4x32xf32>
    %c0_174 = arith.constant 0 : index
    %c0_175 = arith.constant 0 : index
    %499 = vector.load %arg18[%c0_174, %c0_175] : memref<48x128xf32, #tpu.memory_space<vmem>>, vector<48x128xf32>
    %cst_176 = arith.constant dense<0.000000e+00> : vector<4x128xf32>
    %500 = tpu.matmul %466, %499, %cst_176 {dimension_numbers = #tpu.dot_dimension_numbers<[1], [0], [0], [1], [0, 0, 1, 1], [], []>} : vector<4x48xf32>, vector<48x128xf32>, vector<4x128xf32> -> vector<4x128xf32>
    %cst_177 = arith.constant dense<0.000000e+00> : vector<4x128xf32>
    %501 = tpu.matmul %498, %236, %cst_177 {dimension_numbers = #tpu.dot_dimension_numbers<[1], [0], [0], [1], [0, 0, 1, 1], [], []>} : vector<4x32xf32>, vector<32x128xf32>, vector<4x128xf32> -> vector<4x128xf32>
    %502 = arith.addf %500, %501 : vector<4x128xf32>
    %503 = vector.broadcast %237 : vector<1x128xf32> to vector<4x128xf32>
    %504 = arith.addf %502, %503 : vector<4x128xf32>
    %c16 = arith.constant 16 : index
    %c0_178 = arith.constant 0 : index
    %505 = vector.load %arg21[%c16, %c0_178] : memref<32x128xf32, #tpu.memory_space<vmem>>, vector<4x128xf32>
    tpu.vector_store %arg21[%c16, %c0_178], %504 {strides = array<i32>} : memref<32x128xf32, #tpu.memory_space<vmem>>, vector<4x128xf32>,
    %c4_179 = arith.constant 4 : index
    %506 = memref.load %arg0[%c4_179] : memref<8xi32, #tpu.memory_space<smem>>
    %c0_i32_180 = arith.constant 0 : i32
    %507 = arith.cmpi eq, %506, %c0_i32_180 : i32
    %508 = arith.extui %507 : i1 to i32
    %c0_i32_181 = arith.constant 0 : i32
    %509 = arith.cmpi ne, %508, %c0_i32_181 : i32
    scf.if %509 {
      %cst_270 = arith.constant dense<0xFF800000> : vector<4xf32>
      %710 = vector.multi_reduction <maximumf>, %504, %cst_270 [1] : vector<4x128xf32> to vector<4xf32>
      %711 = vector.shape_cast %710 : vector<4xf32> to vector<4x1xf32>
      %712 = vector.broadcast %711 : vector<4x1xf32> to vector<4x128xf32>
      %713 = arith.cmpf oeq, %504, %712 : vector<4x128xf32>
      %c128_i32 = arith.constant 128 : i32
      %714 = vector.broadcast %c128_i32 : i32 to vector<4x128xi32>
      %715 = arith.select %713, %238, %714 : vector<4x128xi1>, vector<4x128xi32>
      %cst_271 = arith.constant dense<2147483647> : vector<4xi32>
      %716 = vector.multi_reduction <minsi>, %715, %cst_271 [1] : vector<4x128xi32> to vector<4xi32>
      %717 = vector.shape_cast %716 : vector<4xi32> to vector<4x1xi32>
      %718 = vector.broadcast %717 : vector<4x1xi32> to vector<4x128xi32>
      %719 = arith.cmpi eq, %238, %718 : vector<4x128xi32>
      %720 = arith.extui %719 : vector<4x128xi1> to vector<4x128xi32>
      %721 = arith.sitofp %720 : vector<4x128xi32> to vector<4x128xf32>
      %c0_272 = arith.constant 0 : index
      %c0_273 = arith.constant 0 : index
      %722 = vector.load %arg3[%c0_272, %c0_273] : memref<128x16xf32, #tpu.memory_space<vmem>>, vector<128x16xf32>
      %cst_274 = arith.constant dense<0.000000e+00> : vector<4x16xf32>
      %723 = tpu.matmul %721, %722, %cst_274 {dimension_numbers = #tpu.dot_dimension_numbers<[1], [0], [0], [1], [0, 0, 1, 1], [], []>} : vector<4x128xf32>, vector<128x16xf32>, vector<4x16xf32> -> vector<4x16xf32>
      %c0_275 = arith.constant 0 : index
      %c0_276 = arith.constant 0 : index
      %724 = vector.load %arg22[%c0_275, %c0_276] : memref<4x16xf32, #tpu.memory_space<vmem>>, vector<4x16xf32>
      tpu.vector_store %arg22[%c0_275, %c0_276], %723 {strides = array<i32>} : memref<4x16xf32, #tpu.memory_space<vmem>>, vector<4x16xf32>,
    } else {
    }
    %c0_i32_182 = arith.constant 0 : i32
    %510 = arith.cmpi ne, %506, %c0_i32_182 : i32
    %511 = arith.extui %510 : i1 to i32
    %c0_i32_183 = arith.constant 0 : i32
    %512 = arith.cmpi ne, %511, %c0_i32_183 : i32
    scf.if %512 {
      %c16_270 = arith.constant 16 : index
      %c0_271 = arith.constant 0 : index
      %710 = vector.load %arg2[%c16_270, %c0_271] : memref<32x16xf32, #tpu.memory_space<vmem>>, vector<4x16xf32>
      %c0_272 = arith.constant 0 : index
      %c0_273 = arith.constant 0 : index
      %711 = vector.load %arg22[%c0_272, %c0_273] : memref<4x16xf32, #tpu.memory_space<vmem>>, vector<4x16xf32>
      tpu.vector_store %arg22[%c0_272, %c0_273], %710 {strides = array<i32>} : memref<4x16xf32, #tpu.memory_space<vmem>>, vector<4x16xf32>,
    } else {
    }
    %c0_184 = arith.constant 0 : index
    %c0_185 = arith.constant 0 : index
    %513 = vector.load %arg22[%c0_184, %c0_185] : memref<4x16xf32, #tpu.memory_space<vmem>>, vector<4x16xf32>
    %c0_186 = arith.constant 0 : index
    %c0_187 = arith.constant 0 : index
    %514 = vector.load %arg9[%c0_186, %c0_187] : memref<32x224xf32, #tpu.memory_space<vmem>>, vector<32x224xf32>
    %cst_188 = arith.constant dense<0.000000e+00> : vector<4x224xf32>
    %515 = tpu.matmul %498, %514, %cst_188 {dimension_numbers = #tpu.dot_dimension_numbers<[1], [0], [0], [1], [0, 0, 1, 1], [], []>} : vector<4x32xf32>, vector<32x224xf32>, vector<4x224xf32> -> vector<4x224xf32>
    %516 = arith.addf %231, %515 : vector<4x224xf32>
    %517 = math.tanh %516 : vector<4x224xf32>
    %c0_189 = arith.constant 0 : index
    %c0_190 = arith.constant 0 : index
    %518 = vector.load %arg11[%c0_189, %c0_190] : memref<224x7xf32, #tpu.memory_space<vmem>>, vector<224x7xf32>
    %cst_191 = arith.constant dense<0.000000e+00> : vector<4x7xf32>
    %519 = tpu.matmul %517, %518, %cst_191 {dimension_numbers = #tpu.dot_dimension_numbers<[1], [0], [0], [1], [0, 0, 1, 1], [], []>} : vector<4x224xf32>, vector<224x7xf32>, vector<4x7xf32> -> vector<4x7xf32>
    %cst_192 = arith.constant dense<0xFF800000> : vector<4xf32>
    %520 = vector.multi_reduction <maximumf>, %519, %cst_192 [1] : vector<4x7xf32> to vector<4xf32>
    %521 = vector.shape_cast %520 : vector<4xf32> to vector<4x1xf32>
    %522 = vector.broadcast %521 : vector<4x1xf32> to vector<4x7xf32>
    %523 = arith.subf %519, %522 : vector<4x7xf32>
    %524 = math.exp %523 : vector<4x7xf32>
    %cst_193 = arith.constant dense<0.000000e+00> : vector<4xf32>
    %525 = vector.multi_reduction <add>, %524, %cst_193 [1] : vector<4x7xf32> to vector<4xf32>
    %526 = vector.shape_cast %525 : vector<4xf32> to vector<4x1xf32>
    %527 = vector.broadcast %526 : vector<4x1xf32> to vector<4x7xf32>
    %528 = arith.divf %524, %527 : vector<4x7xf32>
    %c0_194 = arith.constant 0 : index
    %c0_195 = arith.constant 0 : index
    %529 = vector.load %arg12[%c0_194, %c0_195] : memref<7x224xf32, #tpu.memory_space<vmem>>, vector<7x224xf32>
    %cst_196 = arith.constant dense<0.000000e+00> : vector<4x224xf32>
    %530 = tpu.matmul %528, %529, %cst_196 {dimension_numbers = #tpu.dot_dimension_numbers<[1], [0], [0], [1], [0, 0, 1, 1], [], []>} : vector<4x7xf32>, vector<7x224xf32>, vector<4x224xf32> -> vector<4x224xf32>
    %531 = arith.mulf %530, %220 : vector<4x224xf32>
    %c0_197 = arith.constant 0 : index
    %c0_198 = arith.constant 0 : index
    %532 = vector.load %arg13[%c0_197, %c0_198] : memref<224x32xf32, #tpu.memory_space<vmem>>, vector<224x32xf32>
    %cst_199 = arith.constant dense<0.000000e+00> : vector<4x32xf32>
    %533 = tpu.matmul %531, %532, %cst_199 {dimension_numbers = #tpu.dot_dimension_numbers<[1], [0], [0], [1], [0, 0, 1, 1], [], []>} : vector<4x224xf32>, vector<224x32xf32>, vector<4x32xf32> -> vector<4x32xf32>
    %534 = tpu.concatenate %513, %533 in 1 : vector<4x16xf32>, vector<4x32xf32> -> vector<4x48xf32>
    %cst_200 = arith.constant dense<0.000000e+00> : vector<4x96xf32>
    %535 = tpu.matmul %534, %232, %cst_200 {dimension_numbers = #tpu.dot_dimension_numbers<[1], [0], [0], [1], [0, 0, 1, 1], [], []>} : vector<4x48xf32>, vector<48x96xf32>, vector<4x96xf32> -> vector<4x96xf32>
    %536 = vector.broadcast %234 : vector<1x96xf32> to vector<4x96xf32>
    %537 = arith.addf %535, %536 : vector<4x96xf32>
    %cst_201 = arith.constant dense<0.000000e+00> : vector<4x96xf32>
    %538 = tpu.matmul %498, %233, %cst_201 {dimension_numbers = #tpu.dot_dimension_numbers<[1], [0], [0], [1], [0, 0, 1, 1], [], []>} : vector<4x32xf32>, vector<32x96xf32>, vector<4x96xf32> -> vector<4x96xf32>
    %539 = vector.broadcast %235 : vector<1x96xf32> to vector<4x96xf32>
    %540 = arith.addf %538, %539 : vector<4x96xf32>
    %541 = vector.extract_strided_slice %537 {offsets = [0, 0], sizes = [4, 32], strides = [1, 1]} : vector<4x96xf32> to vector<4x32xf32>
    %542 = vector.extract_strided_slice %537 {offsets = [0, 32], sizes = [4, 32], strides = [1, 1]} : vector<4x96xf32> to vector<4x32xf32>
    %543 = vector.extract_strided_slice %537 {offsets = [0, 64], sizes = [4, 32], strides = [1, 1]} : vector<4x96xf32> to vector<4x32xf32>
    %544 = vector.extract_strided_slice %540 {offsets = [0, 0], sizes = [4, 32], strides = [1, 1]} : vector<4x96xf32> to vector<4x32xf32>
    %545 = vector.extract_strided_slice %540 {offsets = [0, 32], sizes = [4, 32], strides = [1, 1]} : vector<4x96xf32> to vector<4x32xf32>
    %546 = vector.extract_strided_slice %540 {offsets = [0, 64], sizes = [4, 32], strides = [1, 1]} : vector<4x96xf32> to vector<4x32xf32>
    %547 = arith.addf %541, %544 : vector<4x32xf32>
    %548 = arith.negf %547 : vector<4x32xf32>
    %549 = math.exp %548 : vector<4x32xf32>
    %cst_202 = arith.constant 1.000000e+00 : f32
    %550 = vector.broadcast %cst_202 : f32 to vector<4x32xf32>
    %551 = arith.addf %550, %549 : vector<4x32xf32>
    %552 = arith.divf %550, %551 : vector<4x32xf32>
    %553 = arith.addf %542, %545 : vector<4x32xf32>
    %554 = arith.negf %553 : vector<4x32xf32>
    %555 = math.exp %554 : vector<4x32xf32>
    %cst_203 = arith.constant 1.000000e+00 : f32
    %556 = vector.broadcast %cst_203 : f32 to vector<4x32xf32>
    %557 = arith.addf %556, %555 : vector<4x32xf32>
    %558 = arith.divf %556, %557 : vector<4x32xf32>
    %559 = arith.mulf %552, %546 : vector<4x32xf32>
    %560 = arith.addf %543, %559 : vector<4x32xf32>
    %561 = math.tanh %560 : vector<4x32xf32>
    %cst_204 = arith.constant 1.000000e+00 : f32
    %562 = vector.broadcast %cst_204 : f32 to vector<4x32xf32>
    %563 = arith.subf %562, %558 : vector<4x32xf32>
    %564 = arith.mulf %563, %561 : vector<4x32xf32>
    %565 = arith.mulf %558, %498 : vector<4x32xf32>
    %566 = arith.addf %564, %565 : vector<4x32xf32>
    %c0_205 = arith.constant 0 : index
    %c0_206 = arith.constant 0 : index
    %567 = vector.load %arg18[%c0_205, %c0_206] : memref<48x128xf32, #tpu.memory_space<vmem>>, vector<48x128xf32>
    %cst_207 = arith.constant dense<0.000000e+00> : vector<4x128xf32>
    %568 = tpu.matmul %534, %567, %cst_207 {dimension_numbers = #tpu.dot_dimension_numbers<[1], [0], [0], [1], [0, 0, 1, 1], [], []>} : vector<4x48xf32>, vector<48x128xf32>, vector<4x128xf32> -> vector<4x128xf32>
    %cst_208 = arith.constant dense<0.000000e+00> : vector<4x128xf32>
    %569 = tpu.matmul %566, %236, %cst_208 {dimension_numbers = #tpu.dot_dimension_numbers<[1], [0], [0], [1], [0, 0, 1, 1], [], []>} : vector<4x32xf32>, vector<32x128xf32>, vector<4x128xf32> -> vector<4x128xf32>
    %570 = arith.addf %568, %569 : vector<4x128xf32>
    %571 = vector.broadcast %237 : vector<1x128xf32> to vector<4x128xf32>
    %572 = arith.addf %570, %571 : vector<4x128xf32>
    %c20 = arith.constant 20 : index
    %c0_209 = arith.constant 0 : index
    %573 = vector.load %arg21[%c20, %c0_209] : memref<32x128xf32, #tpu.memory_space<vmem>>, vector<4x128xf32>
    tpu.vector_store %arg21[%c20, %c0_209], %572 {strides = array<i32>} : memref<32x128xf32, #tpu.memory_space<vmem>>, vector<4x128xf32>,
    %c5 = arith.constant 5 : index
    %574 = memref.load %arg0[%c5] : memref<8xi32, #tpu.memory_space<smem>>
    %c0_i32_210 = arith.constant 0 : i32
    %575 = arith.cmpi eq, %574, %c0_i32_210 : i32
    %576 = arith.extui %575 : i1 to i32
    %c0_i32_211 = arith.constant 0 : i32
    %577 = arith.cmpi ne, %576, %c0_i32_211 : i32
    scf.if %577 {
      %cst_270 = arith.constant dense<0xFF800000> : vector<4xf32>
      %710 = vector.multi_reduction <maximumf>, %572, %cst_270 [1] : vector<4x128xf32> to vector<4xf32>
      %711 = vector.shape_cast %710 : vector<4xf32> to vector<4x1xf32>
      %712 = vector.broadcast %711 : vector<4x1xf32> to vector<4x128xf32>
      %713 = arith.cmpf oeq, %572, %712 : vector<4x128xf32>
      %c128_i32 = arith.constant 128 : i32
      %714 = vector.broadcast %c128_i32 : i32 to vector<4x128xi32>
      %715 = arith.select %713, %238, %714 : vector<4x128xi1>, vector<4x128xi32>
      %cst_271 = arith.constant dense<2147483647> : vector<4xi32>
      %716 = vector.multi_reduction <minsi>, %715, %cst_271 [1] : vector<4x128xi32> to vector<4xi32>
      %717 = vector.shape_cast %716 : vector<4xi32> to vector<4x1xi32>
      %718 = vector.broadcast %717 : vector<4x1xi32> to vector<4x128xi32>
      %719 = arith.cmpi eq, %238, %718 : vector<4x128xi32>
      %720 = arith.extui %719 : vector<4x128xi1> to vector<4x128xi32>
      %721 = arith.sitofp %720 : vector<4x128xi32> to vector<4x128xf32>
      %c0_272 = arith.constant 0 : index
      %c0_273 = arith.constant 0 : index
      %722 = vector.load %arg3[%c0_272, %c0_273] : memref<128x16xf32, #tpu.memory_space<vmem>>, vector<128x16xf32>
      %cst_274 = arith.constant dense<0.000000e+00> : vector<4x16xf32>
      %723 = tpu.matmul %721, %722, %cst_274 {dimension_numbers = #tpu.dot_dimension_numbers<[1], [0], [0], [1], [0, 0, 1, 1], [], []>} : vector<4x128xf32>, vector<128x16xf32>, vector<4x16xf32> -> vector<4x16xf32>
      %c0_275 = arith.constant 0 : index
      %c0_276 = arith.constant 0 : index
      %724 = vector.load %arg22[%c0_275, %c0_276] : memref<4x16xf32, #tpu.memory_space<vmem>>, vector<4x16xf32>
      tpu.vector_store %arg22[%c0_275, %c0_276], %723 {strides = array<i32>} : memref<4x16xf32, #tpu.memory_space<vmem>>, vector<4x16xf32>,
    } else {
    }
    %c0_i32_212 = arith.constant 0 : i32
    %578 = arith.cmpi ne, %574, %c0_i32_212 : i32
    %579 = arith.extui %578 : i1 to i32
    %c0_i32_213 = arith.constant 0 : i32
    %580 = arith.cmpi ne, %579, %c0_i32_213 : i32
    scf.if %580 {
      %c20_270 = arith.constant 20 : index
      %c0_271 = arith.constant 0 : index
      %710 = vector.load %arg2[%c20_270, %c0_271] : memref<32x16xf32, #tpu.memory_space<vmem>>, vector<4x16xf32>
      %c0_272 = arith.constant 0 : index
      %c0_273 = arith.constant 0 : index
      %711 = vector.load %arg22[%c0_272, %c0_273] : memref<4x16xf32, #tpu.memory_space<vmem>>, vector<4x16xf32>
      tpu.vector_store %arg22[%c0_272, %c0_273], %710 {strides = array<i32>} : memref<4x16xf32, #tpu.memory_space<vmem>>, vector<4x16xf32>,
    } else {
    }
    %c0_214 = arith.constant 0 : index
    %c0_215 = arith.constant 0 : index
    %581 = vector.load %arg22[%c0_214, %c0_215] : memref<4x16xf32, #tpu.memory_space<vmem>>, vector<4x16xf32>
    %c0_216 = arith.constant 0 : index
    %c0_217 = arith.constant 0 : index
    %582 = vector.load %arg9[%c0_216, %c0_217] : memref<32x224xf32, #tpu.memory_space<vmem>>, vector<32x224xf32>
    %cst_218 = arith.constant dense<0.000000e+00> : vector<4x224xf32>
    %583 = tpu.matmul %566, %582, %cst_218 {dimension_numbers = #tpu.dot_dimension_numbers<[1], [0], [0], [1], [0, 0, 1, 1], [], []>} : vector<4x32xf32>, vector<32x224xf32>, vector<4x224xf32> -> vector<4x224xf32>
    %584 = arith.addf %231, %583 : vector<4x224xf32>
    %585 = math.tanh %584 : vector<4x224xf32>
    %c0_219 = arith.constant 0 : index
    %c0_220 = arith.constant 0 : index
    %586 = vector.load %arg11[%c0_219, %c0_220] : memref<224x7xf32, #tpu.memory_space<vmem>>, vector<224x7xf32>
    %cst_221 = arith.constant dense<0.000000e+00> : vector<4x7xf32>
    %587 = tpu.matmul %585, %586, %cst_221 {dimension_numbers = #tpu.dot_dimension_numbers<[1], [0], [0], [1], [0, 0, 1, 1], [], []>} : vector<4x224xf32>, vector<224x7xf32>, vector<4x7xf32> -> vector<4x7xf32>
    %cst_222 = arith.constant dense<0xFF800000> : vector<4xf32>
    %588 = vector.multi_reduction <maximumf>, %587, %cst_222 [1] : vector<4x7xf32> to vector<4xf32>
    %589 = vector.shape_cast %588 : vector<4xf32> to vector<4x1xf32>
    %590 = vector.broadcast %589 : vector<4x1xf32> to vector<4x7xf32>
    %591 = arith.subf %587, %590 : vector<4x7xf32>
    %592 = math.exp %591 : vector<4x7xf32>
    %cst_223 = arith.constant dense<0.000000e+00> : vector<4xf32>
    %593 = vector.multi_reduction <add>, %592, %cst_223 [1] : vector<4x7xf32> to vector<4xf32>
    %594 = vector.shape_cast %593 : vector<4xf32> to vector<4x1xf32>
    %595 = vector.broadcast %594 : vector<4x1xf32> to vector<4x7xf32>
    %596 = arith.divf %592, %595 : vector<4x7xf32>
    %c0_224 = arith.constant 0 : index
    %c0_225 = arith.constant 0 : index
    %597 = vector.load %arg12[%c0_224, %c0_225] : memref<7x224xf32, #tpu.memory_space<vmem>>, vector<7x224xf32>
    %cst_226 = arith.constant dense<0.000000e+00> : vector<4x224xf32>
    %598 = tpu.matmul %596, %597, %cst_226 {dimension_numbers = #tpu.dot_dimension_numbers<[1], [0], [0], [1], [0, 0, 1, 1], [], []>} : vector<4x7xf32>, vector<7x224xf32>, vector<4x224xf32> -> vector<4x224xf32>
    %599 = arith.mulf %598, %220 : vector<4x224xf32>
    %c0_227 = arith.constant 0 : index
    %c0_228 = arith.constant 0 : index
    %600 = vector.load %arg13[%c0_227, %c0_228] : memref<224x32xf32, #tpu.memory_space<vmem>>, vector<224x32xf32>
    %cst_229 = arith.constant dense<0.000000e+00> : vector<4x32xf32>
    %601 = tpu.matmul %599, %600, %cst_229 {dimension_numbers = #tpu.dot_dimension_numbers<[1], [0], [0], [1], [0, 0, 1, 1], [], []>} : vector<4x224xf32>, vector<224x32xf32>, vector<4x32xf32> -> vector<4x32xf32>
    %602 = tpu.concatenate %581, %601 in 1 : vector<4x16xf32>, vector<4x32xf32> -> vector<4x48xf32>
    %cst_230 = arith.constant dense<0.000000e+00> : vector<4x96xf32>
    %603 = tpu.matmul %602, %232, %cst_230 {dimension_numbers = #tpu.dot_dimension_numbers<[1], [0], [0], [1], [0, 0, 1, 1], [], []>} : vector<4x48xf32>, vector<48x96xf32>, vector<4x96xf32> -> vector<4x96xf32>
    %604 = vector.broadcast %234 : vector<1x96xf32> to vector<4x96xf32>
    %605 = arith.addf %603, %604 : vector<4x96xf32>
    %cst_231 = arith.constant dense<0.000000e+00> : vector<4x96xf32>
    %606 = tpu.matmul %566, %233, %cst_231 {dimension_numbers = #tpu.dot_dimension_numbers<[1], [0], [0], [1], [0, 0, 1, 1], [], []>} : vector<4x32xf32>, vector<32x96xf32>, vector<4x96xf32> -> vector<4x96xf32>
    %607 = vector.broadcast %235 : vector<1x96xf32> to vector<4x96xf32>
    %608 = arith.addf %606, %607 : vector<4x96xf32>
    %609 = vector.extract_strided_slice %605 {offsets = [0, 0], sizes = [4, 32], strides = [1, 1]} : vector<4x96xf32> to vector<4x32xf32>
    %610 = vector.extract_strided_slice %605 {offsets = [0, 32], sizes = [4, 32], strides = [1, 1]} : vector<4x96xf32> to vector<4x32xf32>
    %611 = vector.extract_strided_slice %605 {offsets = [0, 64], sizes = [4, 32], strides = [1, 1]} : vector<4x96xf32> to vector<4x32xf32>
    %612 = vector.extract_strided_slice %608 {offsets = [0, 0], sizes = [4, 32], strides = [1, 1]} : vector<4x96xf32> to vector<4x32xf32>
    %613 = vector.extract_strided_slice %608 {offsets = [0, 32], sizes = [4, 32], strides = [1, 1]} : vector<4x96xf32> to vector<4x32xf32>
    %614 = vector.extract_strided_slice %608 {offsets = [0, 64], sizes = [4, 32], strides = [1, 1]} : vector<4x96xf32> to vector<4x32xf32>
    %615 = arith.addf %609, %612 : vector<4x32xf32>
    %616 = arith.negf %615 : vector<4x32xf32>
    %617 = math.exp %616 : vector<4x32xf32>
    %cst_232 = arith.constant 1.000000e+00 : f32
    %618 = vector.broadcast %cst_232 : f32 to vector<4x32xf32>
    %619 = arith.addf %618, %617 : vector<4x32xf32>
    %620 = arith.divf %618, %619 : vector<4x32xf32>
    %621 = arith.addf %610, %613 : vector<4x32xf32>
    %622 = arith.negf %621 : vector<4x32xf32>
    %623 = math.exp %622 : vector<4x32xf32>
    %cst_233 = arith.constant 1.000000e+00 : f32
    %624 = vector.broadcast %cst_233 : f32 to vector<4x32xf32>
    %625 = arith.addf %624, %623 : vector<4x32xf32>
    %626 = arith.divf %624, %625 : vector<4x32xf32>
    %627 = arith.mulf %620, %614 : vector<4x32xf32>
    %628 = arith.addf %611, %627 : vector<4x32xf32>
    %629 = math.tanh %628 : vector<4x32xf32>
    %cst_234 = arith.constant 1.000000e+00 : f32
    %630 = vector.broadcast %cst_234 : f32 to vector<4x32xf32>
    %631 = arith.subf %630, %626 : vector<4x32xf32>
    %632 = arith.mulf %631, %629 : vector<4x32xf32>
    %633 = arith.mulf %626, %566 : vector<4x32xf32>
    %634 = arith.addf %632, %633 : vector<4x32xf32>
    %c0_235 = arith.constant 0 : index
    %c0_236 = arith.constant 0 : index
    %635 = vector.load %arg18[%c0_235, %c0_236] : memref<48x128xf32, #tpu.memory_space<vmem>>, vector<48x128xf32>
    %cst_237 = arith.constant dense<0.000000e+00> : vector<4x128xf32>
    %636 = tpu.matmul %602, %635, %cst_237 {dimension_numbers = #tpu.dot_dimension_numbers<[1], [0], [0], [1], [0, 0, 1, 1], [], []>} : vector<4x48xf32>, vector<48x128xf32>, vector<4x128xf32> -> vector<4x128xf32>
    %cst_238 = arith.constant dense<0.000000e+00> : vector<4x128xf32>
    %637 = tpu.matmul %634, %236, %cst_238 {dimension_numbers = #tpu.dot_dimension_numbers<[1], [0], [0], [1], [0, 0, 1, 1], [], []>} : vector<4x32xf32>, vector<32x128xf32>, vector<4x128xf32> -> vector<4x128xf32>
    %638 = arith.addf %636, %637 : vector<4x128xf32>
    %639 = vector.broadcast %237 : vector<1x128xf32> to vector<4x128xf32>
    %640 = arith.addf %638, %639 : vector<4x128xf32>
    %c24 = arith.constant 24 : index
    %c0_239 = arith.constant 0 : index
    %641 = vector.load %arg21[%c24, %c0_239] : memref<32x128xf32, #tpu.memory_space<vmem>>, vector<4x128xf32>
    tpu.vector_store %arg21[%c24, %c0_239], %640 {strides = array<i32>} : memref<32x128xf32, #tpu.memory_space<vmem>>, vector<4x128xf32>,
    %c6 = arith.constant 6 : index
    %642 = memref.load %arg0[%c6] : memref<8xi32, #tpu.memory_space<smem>>
    %c0_i32_240 = arith.constant 0 : i32
    %643 = arith.cmpi eq, %642, %c0_i32_240 : i32
    %644 = arith.extui %643 : i1 to i32
    %c0_i32_241 = arith.constant 0 : i32
    %645 = arith.cmpi ne, %644, %c0_i32_241 : i32
    scf.if %645 {
      %cst_270 = arith.constant dense<0xFF800000> : vector<4xf32>
      %710 = vector.multi_reduction <maximumf>, %640, %cst_270 [1] : vector<4x128xf32> to vector<4xf32>
      %711 = vector.shape_cast %710 : vector<4xf32> to vector<4x1xf32>
      %712 = vector.broadcast %711 : vector<4x1xf32> to vector<4x128xf32>
      %713 = arith.cmpf oeq, %640, %712 : vector<4x128xf32>
      %c128_i32 = arith.constant 128 : i32
      %714 = vector.broadcast %c128_i32 : i32 to vector<4x128xi32>
      %715 = arith.select %713, %238, %714 : vector<4x128xi1>, vector<4x128xi32>
      %cst_271 = arith.constant dense<2147483647> : vector<4xi32>
      %716 = vector.multi_reduction <minsi>, %715, %cst_271 [1] : vector<4x128xi32> to vector<4xi32>
      %717 = vector.shape_cast %716 : vector<4xi32> to vector<4x1xi32>
      %718 = vector.broadcast %717 : vector<4x1xi32> to vector<4x128xi32>
      %719 = arith.cmpi eq, %238, %718 : vector<4x128xi32>
      %720 = arith.extui %719 : vector<4x128xi1> to vector<4x128xi32>
      %721 = arith.sitofp %720 : vector<4x128xi32> to vector<4x128xf32>
      %c0_272 = arith.constant 0 : index
      %c0_273 = arith.constant 0 : index
      %722 = vector.load %arg3[%c0_272, %c0_273] : memref<128x16xf32, #tpu.memory_space<vmem>>, vector<128x16xf32>
      %cst_274 = arith.constant dense<0.000000e+00> : vector<4x16xf32>
      %723 = tpu.matmul %721, %722, %cst_274 {dimension_numbers = #tpu.dot_dimension_numbers<[1], [0], [0], [1], [0, 0, 1, 1], [], []>} : vector<4x128xf32>, vector<128x16xf32>, vector<4x16xf32> -> vector<4x16xf32>
      %c0_275 = arith.constant 0 : index
      %c0_276 = arith.constant 0 : index
      %724 = vector.load %arg22[%c0_275, %c0_276] : memref<4x16xf32, #tpu.memory_space<vmem>>, vector<4x16xf32>
      tpu.vector_store %arg22[%c0_275, %c0_276], %723 {strides = array<i32>} : memref<4x16xf32, #tpu.memory_space<vmem>>, vector<4x16xf32>,
    } else {
    }
    %c0_i32_242 = arith.constant 0 : i32
    %646 = arith.cmpi ne, %642, %c0_i32_242 : i32
    %647 = arith.extui %646 : i1 to i32
    %c0_i32_243 = arith.constant 0 : i32
    %648 = arith.cmpi ne, %647, %c0_i32_243 : i32
    scf.if %648 {
      %c24_270 = arith.constant 24 : index
      %c0_271 = arith.constant 0 : index
      %710 = vector.load %arg2[%c24_270, %c0_271] : memref<32x16xf32, #tpu.memory_space<vmem>>, vector<4x16xf32>
      %c0_272 = arith.constant 0 : index
      %c0_273 = arith.constant 0 : index
      %711 = vector.load %arg22[%c0_272, %c0_273] : memref<4x16xf32, #tpu.memory_space<vmem>>, vector<4x16xf32>
      tpu.vector_store %arg22[%c0_272, %c0_273], %710 {strides = array<i32>} : memref<4x16xf32, #tpu.memory_space<vmem>>, vector<4x16xf32>,
    } else {
    }
    %c0_244 = arith.constant 0 : index
    %c0_245 = arith.constant 0 : index
    %649 = vector.load %arg22[%c0_244, %c0_245] : memref<4x16xf32, #tpu.memory_space<vmem>>, vector<4x16xf32>
    %c0_246 = arith.constant 0 : index
    %c0_247 = arith.constant 0 : index
    %650 = vector.load %arg9[%c0_246, %c0_247] : memref<32x224xf32, #tpu.memory_space<vmem>>, vector<32x224xf32>
    %cst_248 = arith.constant dense<0.000000e+00> : vector<4x224xf32>
    %651 = tpu.matmul %634, %650, %cst_248 {dimension_numbers = #tpu.dot_dimension_numbers<[1], [0], [0], [1], [0, 0, 1, 1], [], []>} : vector<4x32xf32>, vector<32x224xf32>, vector<4x224xf32> -> vector<4x224xf32>
    %652 = arith.addf %231, %651 : vector<4x224xf32>
    %653 = math.tanh %652 : vector<4x224xf32>
    %c0_249 = arith.constant 0 : index
    %c0_250 = arith.constant 0 : index
    %654 = vector.load %arg11[%c0_249, %c0_250] : memref<224x7xf32, #tpu.memory_space<vmem>>, vector<224x7xf32>
    %cst_251 = arith.constant dense<0.000000e+00> : vector<4x7xf32>
    %655 = tpu.matmul %653, %654, %cst_251 {dimension_numbers = #tpu.dot_dimension_numbers<[1], [0], [0], [1], [0, 0, 1, 1], [], []>} : vector<4x224xf32>, vector<224x7xf32>, vector<4x7xf32> -> vector<4x7xf32>
    %cst_252 = arith.constant dense<0xFF800000> : vector<4xf32>
    %656 = vector.multi_reduction <maximumf>, %655, %cst_252 [1] : vector<4x7xf32> to vector<4xf32>
    %657 = vector.shape_cast %656 : vector<4xf32> to vector<4x1xf32>
    %658 = vector.broadcast %657 : vector<4x1xf32> to vector<4x7xf32>
    %659 = arith.subf %655, %658 : vector<4x7xf32>
    %660 = math.exp %659 : vector<4x7xf32>
    %cst_253 = arith.constant dense<0.000000e+00> : vector<4xf32>
    %661 = vector.multi_reduction <add>, %660, %cst_253 [1] : vector<4x7xf32> to vector<4xf32>
    %662 = vector.shape_cast %661 : vector<4xf32> to vector<4x1xf32>
    %663 = vector.broadcast %662 : vector<4x1xf32> to vector<4x7xf32>
    %664 = arith.divf %660, %663 : vector<4x7xf32>
    %c0_254 = arith.constant 0 : index
    %c0_255 = arith.constant 0 : index
    %665 = vector.load %arg12[%c0_254, %c0_255] : memref<7x224xf32, #tpu.memory_space<vmem>>, vector<7x224xf32>
    %cst_256 = arith.constant dense<0.000000e+00> : vector<4x224xf32>
    %666 = tpu.matmul %664, %665, %cst_256 {dimension_numbers = #tpu.dot_dimension_numbers<[1], [0], [0], [1], [0, 0, 1, 1], [], []>} : vector<4x7xf32>, vector<7x224xf32>, vector<4x224xf32> -> vector<4x224xf32>
    %667 = arith.mulf %666, %220 : vector<4x224xf32>
    %c0_257 = arith.constant 0 : index
    %c0_258 = arith.constant 0 : index
    %668 = vector.load %arg13[%c0_257, %c0_258] : memref<224x32xf32, #tpu.memory_space<vmem>>, vector<224x32xf32>
    %cst_259 = arith.constant dense<0.000000e+00> : vector<4x32xf32>
    %669 = tpu.matmul %667, %668, %cst_259 {dimension_numbers = #tpu.dot_dimension_numbers<[1], [0], [0], [1], [0, 0, 1, 1], [], []>} : vector<4x224xf32>, vector<224x32xf32>, vector<4x32xf32> -> vector<4x32xf32>
    %670 = tpu.concatenate %649, %669 in 1 : vector<4x16xf32>, vector<4x32xf32> -> vector<4x48xf32>
    %cst_260 = arith.constant dense<0.000000e+00> : vector<4x96xf32>
    %671 = tpu.matmul %670, %232, %cst_260 {dimension_numbers = #tpu.dot_dimension_numbers<[1], [0], [0], [1], [0, 0, 1, 1], [], []>} : vector<4x48xf32>, vector<48x96xf32>, vector<4x96xf32> -> vector<4x96xf32>
    %672 = vector.broadcast %234 : vector<1x96xf32> to vector<4x96xf32>
    %673 = arith.addf %671, %672 : vector<4x96xf32>
    %cst_261 = arith.constant dense<0.000000e+00> : vector<4x96xf32>
    %674 = tpu.matmul %634, %233, %cst_261 {dimension_numbers = #tpu.dot_dimension_numbers<[1], [0], [0], [1], [0, 0, 1, 1], [], []>} : vector<4x32xf32>, vector<32x96xf32>, vector<4x96xf32> -> vector<4x96xf32>
    %675 = vector.broadcast %235 : vector<1x96xf32> to vector<4x96xf32>
    %676 = arith.addf %674, %675 : vector<4x96xf32>
    %677 = vector.extract_strided_slice %673 {offsets = [0, 0], sizes = [4, 32], strides = [1, 1]} : vector<4x96xf32> to vector<4x32xf32>
    %678 = vector.extract_strided_slice %673 {offsets = [0, 32], sizes = [4, 32], strides = [1, 1]} : vector<4x96xf32> to vector<4x32xf32>
    %679 = vector.extract_strided_slice %673 {offsets = [0, 64], sizes = [4, 32], strides = [1, 1]} : vector<4x96xf32> to vector<4x32xf32>
    %680 = vector.extract_strided_slice %676 {offsets = [0, 0], sizes = [4, 32], strides = [1, 1]} : vector<4x96xf32> to vector<4x32xf32>
    %681 = vector.extract_strided_slice %676 {offsets = [0, 32], sizes = [4, 32], strides = [1, 1]} : vector<4x96xf32> to vector<4x32xf32>
    %682 = vector.extract_strided_slice %676 {offsets = [0, 64], sizes = [4, 32], strides = [1, 1]} : vector<4x96xf32> to vector<4x32xf32>
    %683 = arith.addf %677, %680 : vector<4x32xf32>
    %684 = arith.negf %683 : vector<4x32xf32>
    %685 = math.exp %684 : vector<4x32xf32>
    %cst_262 = arith.constant 1.000000e+00 : f32
    %686 = vector.broadcast %cst_262 : f32 to vector<4x32xf32>
    %687 = arith.addf %686, %685 : vector<4x32xf32>
    %688 = arith.divf %686, %687 : vector<4x32xf32>
    %689 = arith.addf %678, %681 : vector<4x32xf32>
    %690 = arith.negf %689 : vector<4x32xf32>
    %691 = math.exp %690 : vector<4x32xf32>
    %cst_263 = arith.constant 1.000000e+00 : f32
    %692 = vector.broadcast %cst_263 : f32 to vector<4x32xf32>
    %693 = arith.addf %692, %691 : vector<4x32xf32>
    %694 = arith.divf %692, %693 : vector<4x32xf32>
    %695 = arith.mulf %688, %682 : vector<4x32xf32>
    %696 = arith.addf %679, %695 : vector<4x32xf32>
    %697 = math.tanh %696 : vector<4x32xf32>
    %cst_264 = arith.constant 1.000000e+00 : f32
    %698 = vector.broadcast %cst_264 : f32 to vector<4x32xf32>
    %699 = arith.subf %698, %694 : vector<4x32xf32>
    %700 = arith.mulf %699, %697 : vector<4x32xf32>
    %701 = arith.mulf %694, %634 : vector<4x32xf32>
    %702 = arith.addf %700, %701 : vector<4x32xf32>
    %c0_265 = arith.constant 0 : index
    %c0_266 = arith.constant 0 : index
    %703 = vector.load %arg18[%c0_265, %c0_266] : memref<48x128xf32, #tpu.memory_space<vmem>>, vector<48x128xf32>
    %cst_267 = arith.constant dense<0.000000e+00> : vector<4x128xf32>
    %704 = tpu.matmul %670, %703, %cst_267 {dimension_numbers = #tpu.dot_dimension_numbers<[1], [0], [0], [1], [0, 0, 1, 1], [], []>} : vector<4x48xf32>, vector<48x128xf32>, vector<4x128xf32> -> vector<4x128xf32>
    %cst_268 = arith.constant dense<0.000000e+00> : vector<4x128xf32>
    %705 = tpu.matmul %702, %236, %cst_268 {dimension_numbers = #tpu.dot_dimension_numbers<[1], [0], [0], [1], [0, 0, 1, 1], [], []>} : vector<4x32xf32>, vector<32x128xf32>, vector<4x128xf32> -> vector<4x128xf32>
    %706 = arith.addf %704, %705 : vector<4x128xf32>
    %707 = vector.broadcast %237 : vector<1x128xf32> to vector<4x128xf32>
    %708 = arith.addf %706, %707 : vector<4x128xf32>
    %c28 = arith.constant 28 : index
    %c0_269 = arith.constant 0 : index
    %709 = vector.load %arg21[%c28, %c0_269] : memref<32x128xf32, #tpu.memory_space<vmem>>, vector<4x128xf32>
    tpu.vector_store %arg21[%c28, %c0_269], %708 {strides = array<i32>} : memref<32x128xf32, #tpu.memory_space<vmem>>, vector<4x128xf32>,
    return
  }
}

</mosaic_0001>

<llo_original>
// kernel: seq2seq_forward.1
$region0: #{seq2seq_forward.1}
  #allocation0 [shape = 'u32[]', space=smem, size = 0x4, offset = 0x4, fixed_abs, tag = 'smem constant byte address 0x4 - core index']
  #allocation1 [shape = 'u32[144,128]{1,0:T(1,128)}', space=vmem, size = 0x12000, scoped, tag = 'internal scratch']
  #allocation2 [shape = 'f32[4,16]{1,0:T(4,128)}', space=vmem, size = 0x800, scoped, tag = 'scratch operand']
  %s0 = inlined_call_operand.vmem [shape: s32[8], index: 0, kind: input, shape index: {}]
  %s1 = inlined_call_operand.vmem [shape: f32[28,16], index: 1, kind: input, shape index: {}]
  %s2 = inlined_call_operand.vmem [shape: f32[32,16], index: 2, kind: input, shape index: {}]
  %s3 = inlined_call_operand.vmem [shape: f32[128,16], index: 3, kind: input, shape index: {}]
  %s4 = inlined_call_operand.vmem [shape: f32[16,96], index: 4, kind: input, shape index: {}]
  %s5 = inlined_call_operand.vmem [shape: f32[32,96], index: 5, kind: input, shape index: {}]
  %s6 = inlined_call_operand.vmem [shape: f32[1,96], index: 6, kind: input, shape index: {}]
  %s7 = inlined_call_operand.vmem [shape: f32[1,96], index: 7, kind: input, shape index: {}]
  %s8 = inlined_call_operand.vmem [shape: f32[32,32], index: 8, kind: input, shape index: {}]
  %s9 = inlined_call_operand.vmem [shape: f32[32,224], index: 9, kind: input, shape index: {}]
  %s10 = inlined_call_operand.vmem [shape: f32[1,224], index: 10, kind: input, shape index: {}]
  %s11 = inlined_call_operand.vmem [shape: f32[224,7], index: 11, kind: input, shape index: {}]
  %s12 = inlined_call_operand.vmem [shape: f32[7,224], index: 12, kind: input, shape index: {}]
  %s13 = inlined_call_operand.vmem [shape: f32[224,32], index: 13, kind: input, shape index: {}]
  %s14 = inlined_call_operand.vmem [shape: f32[48,96], index: 14, kind: input, shape index: {}]
  %s15 = inlined_call_operand.vmem [shape: f32[32,96], index: 15, kind: input, shape index: {}]
  %s16 = inlined_call_operand.vmem [shape: f32[1,96], index: 16, kind: input, shape index: {}]
  %s17 = inlined_call_operand.vmem [shape: f32[1,96], index: 17, kind: input, shape index: {}]
  %s18 = inlined_call_operand.vmem [shape: f32[48,128], index: 18, kind: input, shape index: {}]
  %s19 = inlined_call_operand.vmem [shape: f32[32,128], index: 19, kind: input, shape index: {}]
  %s20 = inlined_call_operand.vmem [shape: f32[1,128], index: 20, kind: input, shape index: {}]
  %s21 = inlined_call_operand.hbm [shape: f32[32,128], index: 21, kind: output, shape index: {}]
  %s22 = sld [smem:[#allocation0]]
  $region146: #{seq2seq_forward.1} parent=0
    _
  %s24 = ssub.s32 1, %s22
  %s25 = scalar_select 0, %s24, %s22
  $region1: #{seq2seq_forward.1} parent=0
    #allocation3 [shape = 'u8[512]{0}', space=smem, size = 0x200, scoped, tag = 'input window, operand 0, single buffered']
    #allocation4 [shape = 's32[1]{0}', space=sflag, size = 0x4, scoped, tag = 'scoped memory for seq2seq_forward.1']
    #allocation5 [shape = 's32[1]{0}', space=sflag, size = 0x4, scoped, tag = 'scoped memory for seq2seq_forward.1']
    #allocation6 [shape = 'u8[16384]{0}', space=vmem, size = 0x4000, scoped, tag = 'output window, operand 0, single buffered']
    %26 = vsyncpa [#allocation5], 0
    %27 = vsyncpa [#allocation4], 0
    // Predicated region
    $region2: #{seq2seq_forward.1} parent=1 // pred_check
      _
    $region3: #{seq2seq_forward.1} parent=1 // pred_check_branch
      %29 = sbr.rel (0) target = $region5
    $region4: #{seq2seq_forward.1} parent=1 // pred_region
      %s31 = ssub.s32 16, 16
      %32 = vsyncadd [#allocation5], %s31
      %s34 = sshll.u32 %s0, 4
      %s35 = int_to_ptr.vmem [resolvable:$true] %s34
      %37 = dma.vmem_to_smem %s35, 16, [#allocation3], [#allocation5]
    $region5: #{seq2seq_forward.1} parent=1 // pred_fallthru
      _
    // Predicated region
    $region6: #{seq2seq_forward.1} parent=1 // pred_check
      _
    $region7: #{seq2seq_forward.1} parent=1 // pred_check_branch
      %39 = sbr.rel (0) target = $region9
    $region8: #{seq2seq_forward.1} parent=1 // pred_region
      _
    $region9: #{seq2seq_forward.1} parent=1 // pred_fallthru
      _
    // Predicated region
    $region10: #{seq2seq_forward.1} parent=1 // pred_check
      _
    $region11: #{seq2seq_forward.1} parent=1 // pred_check_branch
      %41 = sbr.rel (0) target = $region13
    $region12: #{seq2seq_forward.1} parent=1 // pred_region
      _
    $region13: #{seq2seq_forward.1} parent=1 // pred_fallthru
      _
    // Predicated region
    $region14: #{seq2seq_forward.1} parent=1 // pred_check
      _
    $region15: #{seq2seq_forward.1} parent=1 // pred_check_branch
      %43 = sbr.rel (0) target = $region17
    $region16: #{seq2seq_forward.1} parent=1 // pred_region
      _
    $region17: #{seq2seq_forward.1} parent=1 // pred_fallthru
      _
    // Predicated region
    $region18: #{seq2seq_forward.1} parent=1 // pred_check
      _
    $region19: #{seq2seq_forward.1} parent=1 // pred_check_branch
      %45 = sbr.rel (0) target = $region21
    $region20: #{seq2seq_forward.1} parent=1 // pred_region
      _
    $region21: #{seq2seq_forward.1} parent=1 // pred_fallthru
      _
    // Predicated region
    $region22: #{seq2seq_forward.1} parent=1 // pred_check
      _
    $region23: #{seq2seq_forward.1} parent=1 // pred_check_branch
      %47 = sbr.rel (0) target = $region25
    $region24: #{seq2seq_forward.1} parent=1 // pred_region
      _
    $region25: #{seq2seq_forward.1} parent=1 // pred_fallthru
      _
    // Predicated region
    $region26: #{seq2seq_forward.1} parent=1 // pred_check
      _
    $region27: #{seq2seq_forward.1} parent=1 // pred_check_branch
      %49 = sbr.rel (0) target = $region29
    $region28: #{seq2seq_forward.1} parent=1 // pred_region
      _
    $region29: #{seq2seq_forward.1} parent=1 // pred_fallthru
      _
    // Predicated region
    $region30: #{seq2seq_forward.1} parent=1 // pred_check
      _
    $region31: #{seq2seq_forward.1} parent=1 // pred_check_branch
      %51 = sbr.rel (0) target = $region33
    $region32: #{seq2seq_forward.1} parent=1 // pred_region
      _
    $region33: #{seq2seq_forward.1} parent=1 // pred_fallthru
      _
    // Predicated region
    $region34: #{seq2seq_forward.1} parent=1 // pred_check
      _
    $region35: #{seq2seq_forward.1} parent=1 // pred_check_branch
      %53 = sbr.rel (0) target = $region37
    $region36: #{seq2seq_forward.1} parent=1 // pred_region
      _
    $region37: #{seq2seq_forward.1} parent=1 // pred_fallthru
      _
    // Predicated region
    $region38: #{seq2seq_forward.1} parent=1 // pred_check
      _
    $region39: #{seq2seq_forward.1} parent=1 // pred_check_branch
      %55 = sbr.rel (0) target = $region41
    $region40: #{seq2seq_forward.1} parent=1 // pred_region
      _
    $region41: #{seq2seq_forward.1} parent=1 // pred_fallthru
      _
    // Predicated region
    $region42: #{seq2seq_forward.1} parent=1 // pred_check
      _
    $region43: #{seq2seq_forward.1} parent=1 // pred_check_branch
      %57 = sbr.rel (0) target = $region45
    $region44: #{seq2seq_forward.1} parent=1 // pred_region
      _
    $region45: #{seq2seq_forward.1} parent=1 // pred_fallthru
      _
    // Predicated region
    $region46: #{seq2seq_forward.1} parent=1 // pred_check
      _
    $region47: #{seq2seq_forward.1} parent=1 // pred_check_branch
      %59 = sbr.rel (0) target = $region49
    $region48: #{seq2seq_forward.1} parent=1 // pred_region
      _
    $region49: #{seq2seq_forward.1} parent=1 // pred_fallthru
      _
    // Predicated region
    $region50: #{seq2seq_forward.1} parent=1 // pred_check
      _
    $region51: #{seq2seq_forward.1} parent=1 // pred_check_branch
      %61 = sbr.rel (0) target = $region53
    $region52: #{seq2seq_forward.1} parent=1 // pred_region
      _
    $region53: #{seq2seq_forward.1} parent=1 // pred_fallthru
      _
    // Predicated region
    $region54: #{seq2seq_forward.1} parent=1 // pred_check
      _
    $region55: #{seq2seq_forward.1} parent=1 // pred_check_branch
      %63 = sbr.rel (0) target = $region57
    $region56: #{seq2seq_forward.1} parent=1 // pred_region
      _
    $region57: #{seq2seq_forward.1} parent=1 // pred_fallthru
      _
    // Predicated region
    $region58: #{seq2seq_forward.1} parent=1 // pred_check
      _
    $region59: #{seq2seq_forward.1} parent=1 // pred_check_branch
      %65 = sbr.rel (0) target = $region61
    $region60: #{seq2seq_forward.1} parent=1 // pred_region
      _
    $region61: #{seq2seq_forward.1} parent=1 // pred_fallthru
      _
    // Predicated region
    $region62: #{seq2seq_forward.1} parent=1 // pred_check
      _
    $region63: #{seq2seq_forward.1} parent=1 // pred_check_branch
      %67 = sbr.rel (0) target = $region65
    $region64: #{seq2seq_forward.1} parent=1 // pred_region
      _
    $region65: #{seq2seq_forward.1} parent=1 // pred_fallthru
      _
    // Predicated region
    $region66: #{seq2seq_forward.1} parent=1 // pred_check
      _
    $region67: #{seq2seq_forward.1} parent=1 // pred_check_branch
      %69 = sbr.rel (0) target = $region69
    $region68: #{seq2seq_forward.1} parent=1 // pred_region
      _
    $region69: #{seq2seq_forward.1} parent=1 // pred_fallthru
      _
    // Predicated region
    $region70: #{seq2seq_forward.1} parent=1 // pred_check
      _
    $region71: #{seq2seq_forward.1} parent=1 // pred_check_branch
      %71 = sbr.rel (0) target = $region73
    $region72: #{seq2seq_forward.1} parent=1 // pred_region
      _
    $region73: #{seq2seq_forward.1} parent=1 // pred_fallthru
      _
    // Predicated region
    $region74: #{seq2seq_forward.1} parent=1 // pred_check
      _
    $region75: #{seq2seq_forward.1} parent=1 // pred_check_branch
      %73 = sbr.rel (0) target = $region77
    $region76: #{seq2seq_forward.1} parent=1 // pred_region
      _
    $region77: #{seq2seq_forward.1} parent=1 // pred_fallthru
      _
    // Predicated region
    $region78: #{seq2seq_forward.1} parent=1 // pred_check
      _
    $region79: #{seq2seq_forward.1} parent=1 // pred_check_branch
      %75 = sbr.rel (0) target = $region81
    $region80: #{seq2seq_forward.1} parent=1 // pred_region
      _
    $region81: #{seq2seq_forward.1} parent=1 // pred_fallthru
      _
    // Predicated region
    $region82: #{seq2seq_forward.1} parent=1 // pred_check
      _
    $region83: #{seq2seq_forward.1} parent=1 // pred_check_branch
      %77 = sbr.rel (0) target = $region85
    $region84: #{seq2seq_forward.1} parent=1 // pred_region
      _
    $region85: #{seq2seq_forward.1} parent=1 // pred_fallthru
      _
    // Predicated region
    $region86: #{seq2seq_forward.1} parent=1 // pred_check
      _
    $region87: #{seq2seq_forward.1} parent=1 // pred_check_branch
      %79 = sbr.rel (0) target = $region89
    $region88: #{seq2seq_forward.1} parent=1 // pred_region
      %80 = dma.done [#allocation5], 16
    $region89: #{seq2seq_forward.1} parent=1 // pred_fallthru
      _
    %81 = sfence
    %v82 = vld [vmem:[%s5] sm:$0xff]
    %v83 = vld [vmem:[%s5 + $0x8] sm:$0xff]
    %v84 = vld [vmem:[%s5 + $0x10] sm:$0xff]
    %v85 = vld [vmem:[%s5 + $0x18] sm:$0xff]
    %v86 = vld [vmem:[%s7] sm:$0x1]
    %v87 = vld [vmem:[%s1] sm:$0xff]
    %v88 = vld [vmem:[%s1 + $0x8] sm:$0xff]
    %v89 = vld [vmem:[%s1 + $0x10] sm:$0xff]
    %v90 = vld [vmem:[%s1 + $0x18] sm:$0xf]
    %v91 = vld [vmem:[%s4] sm:$0xff]
    %v92 = vld [vmem:[%s4 + $0x8] sm:$0xff]
    %v93 = vld [vmem:[%s6] sm:$0x1]
    %v95 = vlaneseq
    %v96 = vshrl.u32 %v95, 7
    %v97 = vsub.s32 0, %v96
    %v98 = vrot.slane %v93, %v97
    %vm100 = vcmask 130048
    %v102 = vsel %vm100, %v87, 0
    %v105 = vsel %vm100, %v88, 0
    %v108 = vsel %vm100, %v89, 0
    %v111 = vsel %vm100, %v90, 0
    %113 = vmatprep.subr.mxu0 0.0
    %114 = vmatpush1.msra.mxu0 %v91
    %115 = vmatprep.subr.mxu0 0.0
    %116 = vmatpush1.msra.mxu0 %v92
    %117 = vmatprep.subr.mxu0 0.0
    %118 = vmatpush1.msra.mxu0 0.0
    %119 = vmatprep.subr.mxu0 0.0
    %120 = vmatpush1.msra.mxu0 0.0
    %121 = vmatprep.subr.mxu0 0.0
    %122 = vmatpush1.msra.mxu0 0.0
    %123 = vmatprep.subr.mxu0 0.0
    %124 = vmatpush1.msra.mxu0 0.0
    %125 = vmatprep.subr.mxu0 0.0
    %126 = vmatpush1.msra.mxu0 0.0
    %127 = vmatprep.subr.mxu0 0.0
    %128 = vmatpush1.msra.mxu0 0.0
    %129 = vmatprep.subr.mxu0 0.0
    %130 = vmatpush1.msra.mxu0 0.0
    %131 = vmatprep.subr.mxu0 0.0
    %132 = vmatpush1.msra.mxu0 0.0
    %133 = vmatprep.subr.mxu0 0.0
    %134 = vmatpush1.msra.mxu0 0.0
    %135 = vmatprep.subr.mxu0 0.0
    %136 = vmatpush1.msra.mxu0 0.0
    %137 = vmatprep.subr.mxu0 0.0
    %138 = vmatpush1.msra.mxu0 0.0
    %139 = vmatprep.subr.mxu0 0.0
    %140 = vmatpush1.msra.mxu0 0.0
    %141 = vmatprep.subr.mxu0 0.0
    %142 = vmatpush1.msra.mxu0 0.0
    %143 = vmatprep.subr.mxu0 0.0
    %144 = vmatpush1.msra.mxu0 0.0
    %145 = vmatprep.subr.mxu0 0.0
    %146 = vmatpush1.msra.mxu0 0.0
    %147 = vmatprep.subr.mxu0 0.0
    %148 = vmatpush1.msra.mxu0 0.0
    %149 = vmatprep.subr.mxu0 0.0
    %150 = vmatpush1.msra.mxu0 0.0
    %151 = vmatprep.subr.mxu0 0.0
    %152 = vmatpush1.msra.mxu0 0.0
    %153 = vmatprep.subr.mxu0 0.0
    %154 = vmatpush1.msra.mxu0 0.0
    %155 = vmatprep.subr.mxu0 0.0
    %156 = vmatpush1.msra.mxu0 0.0
    %157 = vmatprep.subr.mxu0 0.0
    %158 = vmatpush1.msra.mxu0 0.0
    %159 = vmatprep.subr.mxu0 0.0
    %160 = vmatpush1.msra.mxu0 0.0
    %161 = vmatprep.subr.mxu0 0.0
    %162 = vmatpush1.msra.mxu0 0.0
    %163 = vmatprep.subr.mxu0 0.0
    %164 = vmatpush1.msra.mxu0 0.0
    %165 = vmatprep.subr.mxu0 0.0
    %166 = vmatpush1.msra.mxu0 0.0
    %167 = vmatprep.subr.mxu0 0.0
    %168 = vmatpush1.msra.mxu0 0.0
    %169 = vmatprep.subr.mxu0 0.0
    %170 = vmatpush1.msra.mxu0 0.0
    %171 = vmatprep.subr.mxu0 0.0
    %172 = vmatpush1.msra.mxu0 0.0
    %173 = vmatprep.subr.mxu0 0.0
    %174 = vmatpush1.msra.mxu0 0.0
    %175 = vmatprep.subr.mxu0 0.0
    %176 = vmatpush1.msra.mxu0 0.0
    %177 = vmatprep.mubr.f32.mxu0 0.0
    %178 = vmatmul.mubr.f32.gmra.mrb[0].mxu0 %v102
    %v179 = vpop.f32.mrb[0].mxu0
    %v180 = vadd.f32 %v98, %v179
    %v181 = vpop.f32.mrb[0].mxu0
    %182 = vmatprep.mubr.f32.mxu0 0.0
    %183 = vmatmul.mubr.f32.gmra.mrb[0].mxu0 %v105
    %v184 = vpop.f32.mrb[0].mxu0
    %v185 = vadd.f32 %v98, %v184
    %v186 = vpop.f32.mrb[0].mxu0
    %187 = vmatprep.mubr.f32.mxu0 0.0
    %188 = vmatmul.mubr.f32.gmra.mrb[0].mxu0 %v108
    %v189 = vpop.f32.mrb[0].mxu0
    %v190 = vadd.f32 %v98, %v189
    %v191 = vpop.f32.mrb[0].mxu0
    %192 = vmatprep.mubr.f32.mxu0 0.0
    %193 = vmatmul.mubr.f32.gmra.mrb[0].mxu0 %v111
    %v194 = vpop.f32.mrb[0].mxu0
    %v195 = vadd.f32 %v98, %v194
    %v196 = vpop.f32.mrb[0].mxu0
    %197 = vdwg.mxu0
    %v199 = vlaneseq
    %v200 = vshrl.u32 %v199, 7
    %v201 = vsub.s32 0, %v200
    %v202 = vrot.slane %v86, %v201
    %vm204 = vcmask 261120
    %v206 = vsel %vm204, 0.0, 0
    %208 = vmatprep.subr.mxu0 0.0
    %209 = vmatpush1.msra.mxu0 %v82
    %210 = vmatprep.subr.mxu0 0.0
    %211 = vmatpush1.msra.mxu0 %v83
    %212 = vmatprep.subr.mxu0 0.0
    %213 = vmatpush1.msra.mxu0 %v84
    %214 = vmatprep.subr.mxu0 0.0
    %215 = vmatpush1.msra.mxu0 %v85
    %216 = vmatprep.subr.mxu0 0.0
    %217 = vmatpush1.msra.mxu0 0.0
    %218 = vmatprep.subr.mxu0 0.0
    %219 = vmatpush1.msra.mxu0 0.0
    %220 = vmatprep.subr.mxu0 0.0
    %221 = vmatpush1.msra.mxu0 0.0
    %222 = vmatprep.subr.mxu0 0.0
    %223 = vmatpush1.msra.mxu0 0.0
    %224 = vmatprep.subr.mxu0 0.0
    %225 = vmatpush1.msra.mxu0 0.0
    %226 = vmatprep.subr.mxu0 0.0
    %227 = vmatpush1.msra.mxu0 0.0
    %228 = vmatprep.subr.mxu0 0.0
    %229 = vmatpush1.msra.mxu0 0.0
    %230 = vmatprep.subr.mxu0 0.0
    %231 = vmatpush1.msra.mxu0 0.0
    %232 = vmatprep.subr.mxu0 0.0
    %233 = vmatpush1.msra.mxu0 0.0
    %234 = vmatprep.subr.mxu0 0.0
    %235 = vmatpush1.msra.mxu0 0.0
    %236 = vmatprep.subr.mxu0 0.0
    %237 = vmatpush1.msra.mxu0 0.0
    %238 = vmatprep.subr.mxu0 0.0
    %239 = vmatpush1.msra.mxu0 0.0
    %240 = vmatprep.subr.mxu0 0.0
    %241 = vmatpush1.msra.mxu0 0.0
    %242 = vmatprep.subr.mxu0 0.0
    %243 = vmatpush1.msra.mxu0 0.0
    %244 = vmatprep.subr.mxu0 0.0
    %245 = vmatpush1.msra.mxu0 0.0
    %246 = vmatprep.subr.mxu0 0.0
    %247 = vmatpush1.msra.mxu0 0.0
    %248 = vmatprep.subr.mxu0 0.0
    %249 = vmatpush1.msra.mxu0 0.0
    %250 = vmatprep.subr.mxu0 0.0
    %251 = vmatpush1.msra.mxu0 0.0
    %252 = vmatprep.subr.mxu0 0.0
    %253 = vmatpush1.msra.mxu0 0.0
    %254 = vmatprep.subr.mxu0 0.0
    %255 = vmatpush1.msra.mxu0 0.0
    %256 = vmatprep.subr.mxu0 0.0
    %257 = vmatpush1.msra.mxu0 0.0
    %258 = vmatprep.subr.mxu0 0.0
    %259 = vmatpush1.msra.mxu0 0.0
    %260 = vmatprep.subr.mxu0 0.0
    %261 = vmatpush1.msra.mxu0 0.0
    %262 = vmatprep.subr.mxu0 0.0
    %263 = vmatpush1.msra.mxu0 0.0
    %264 = vmatprep.subr.mxu0 0.0
    %265 = vmatpush1.msra.mxu0 0.0
    %266 = vmatprep.subr.mxu0 0.0
    %267 = vmatpush1.msra.mxu0 0.0
    %268 = vmatprep.subr.mxu0 0.0
    %269 = vmatpush1.msra.mxu0 0.0
    %270 = vmatprep.subr.mxu0 0.0
    %271 = vmatpush1.msra.mxu0 0.0
    %272 = vmatprep.mubr.f32.mxu0 0.0
    %273 = vmatmul.mubr.f32.gmra.mrb[0].mxu0 %v206
    %v274 = vpop.f32.mrb[0].mxu0
    %v275 = vadd.f32 %v202, %v274
    %v276 = vpop.f32.mrb[0].mxu0
    %277 = vdwg.mxu0
    %v278 = vadd.f32 %v180, %v275
    %v279 = vxor.u32 %v278, 2147483648
    %v280 = vmul.f32 %v279, 1.442695
    %v281 = vpow.pop %v280
    %v282 = vadd.f32 %v281, 1.0
    %v283 = vrcp.pop %v282
    %v284 = vmul.f32 1.0, %v283
    %286 = vrot.lane.b32.xlu0 %v275, 64
    %v287 = vpop.permute.xlu0 %286
    %v289 = vmul.f32 %v284, %v287
    %291 = vrot.lane.b32.xlu0 %v289, 64
    %v292 = vpop.permute.xlu0 %291
    %v294 = vadd.f32 %v180, %v292
    %v295 = vtanh.pop %v294
    %v296 = vsub.f32 1.0, %v284
    %298 = vrot.lane.b32.xlu0 %v295, 96
    %v299 = vpop.permute.xlu0 %298
    %v301 = vmul.f32 %v296, %v299
    %v302 = vmul.f32 %v284, 0.0
    %v303 = vadd.f32 %v301, %v302
    %305 = vrot.lane.b32.xlu0 %v303, 96
    %v306 = vpop.permute.xlu0 %305
    %v307 = vsel %vm204, %v306, 0
    %309 = vmatprep.subr.mxu0 0.0
    %310 = vmatpush1.msra.mxu0 %v82
    %311 = vmatprep.subr.mxu0 0.0
    %312 = vmatpush1.msra.mxu0 %v83
    %313 = vmatprep.subr.mxu0 0.0
    %314 = vmatpush1.msra.mxu0 %v84
    %315 = vmatprep.subr.mxu0 0.0
    %316 = vmatpush1.msra.mxu0 %v85
    %317 = vmatprep.subr.mxu0 0.0
    %318 = vmatpush1.msra.mxu0 0.0
    %319 = vmatprep.subr.mxu0 0.0
    %320 = vmatpush1.msra.mxu0 0.0
    %321 = vmatprep.subr.mxu0 0.0
    %322 = vmatpush1.msra.mxu0 0.0
    %323 = vmatprep.subr.mxu0 0.0
    %324 = vmatpush1.msra.mxu0 0.0
    %325 = vmatprep.subr.mxu0 0.0
    %326 = vmatpush1.msra.mxu0 0.0
    %327 = vmatprep.subr.mxu0 0.0
    %328 = vmatpush1.msra.mxu0 0.0
    %329 = vmatprep.subr.mxu0 0.0
    %330 = vmatpush1.msra.mxu0 0.0
    %331 = vmatprep.subr.mxu0 0.0
    %332 = vmatpush1.msra.mxu0 0.0
    %333 = vmatprep.subr.mxu0 0.0
    %334 = vmatpush1.msra.mxu0 0.0
    %335 = vmatprep.subr.mxu0 0.0
    %336 = vmatpush1.msra.mxu0 0.0
    %337 = vmatprep.subr.mxu0 0.0
    %338 = vmatpush1.msra.mxu0 0.0
    %339 = vmatprep.subr.mxu0 0.0
    %340 = vmatpush1.msra.mxu0 0.0
    %341 = vmatprep.subr.mxu0 0.0
    %342 = vmatpush1.msra.mxu0 0.0
    %343 = vmatprep.subr.mxu0 0.0
    %344 = vmatpush1.msra.mxu0 0.0
    %345 = vmatprep.subr.mxu0 0.0
    %346 = vmatpush1.msra.mxu0 0.0
    %347 = vmatprep.subr.mxu0 0.0
    %348 = vmatpush1.msra.mxu0 0.0
    %349 = vmatprep.subr.mxu0 0.0
    %350 = vmatpush1.msra.mxu0 0.0
    %351 = vmatprep.subr.mxu0 0.0
    %352 = vmatpush1.msra.mxu0 0.0
    %353 = vmatprep.subr.mxu0 0.0
    %354 = vmatpush1.msra.mxu0 0.0
    %355 = vmatprep.subr.mxu0 0.0
    %356 = vmatpush1.msra.mxu0 0.0
    %357 = vmatprep.subr.mxu0 0.0
    %358 = vmatpush1.msra.mxu0 0.0
    %359 = vmatprep.subr.mxu0 0.0
    %360 = vmatpush1.msra.mxu0 0.0
    %361 = vmatprep.subr.mxu0 0.0
    %362 = vmatpush1.msra.mxu0 0.0
    %363 = vmatprep.subr.mxu0 0.0
    %364 = vmatpush1.msra.mxu0 0.0
    %365 = vmatprep.subr.mxu0 0.0
    %366 = vmatpush1.msra.mxu0 0.0
    %367 = vmatprep.subr.mxu0 0.0
    %368 = vmatpush1.msra.mxu0 0.0
    %369 = vmatprep.subr.mxu0 0.0
    %370 = vmatpush1.msra.mxu0 0.0
    %371 = vmatprep.subr.mxu0 0.0
    %372 = vmatpush1.msra.mxu0 0.0
    %373 = vmatprep.mubr.f32.mxu0 0.0
    %374 = vmatmul.mubr.f32.gmra.mrb[0].mxu0 %v307
    %v375 = vpop.f32.mrb[0].mxu0
    %v376 = vadd.f32 %v202, %v375
    %v377 = vpop.f32.mrb[0].mxu0
    %378 = vdwg.mxu0
    %v380 = vrot.slane %v376, 4
    %v382 = vadd.f32 %v180, %v380
    %v383 = vxor.u32 %v382, 2147483648
    %v384 = vmul.f32 %v383, 1.442695
    %v385 = vpow.pop %v384
    %v386 = vadd.f32 %v385, 1.0
    %v387 = vrcp.pop %v386
    %v388 = vmul.f32 1.0, %v387
    %389 = vrot.lane.b32.xlu0 %v380, 64
    %v390 = vpop.permute.xlu0 %389
    %v392 = vmul.f32 %v388, %v390
    %394 = vrot.lane.b32.xlu0 %v392, 64
    %v395 = vpop.permute.xlu0 %394
    %v397 = vadd.f32 %v180, %v395
    %v398 = vtanh.pop %v397
    %v399 = vsub.f32 1.0, %v388
    %401 = vrot.lane.b32.xlu0 %v398, 96
    %v402 = vpop.permute.xlu0 %401
    %v404 = vmul.f32 %v399, %v402
    %v405 = vrot.slane %v303, 4
    %v407 = vmul.f32 %v388, %v405
    %v408 = vadd.f32 %v404, %v407
    %v410 = vrot.slane %v408, 4
    %411 = vrot.lane.b32.xlu0 %v410, 96
    %v412 = vpop.permute.xlu0 %411
    %v413 = vsel %vm204, %v412, 0
    %415 = vmatprep.subr.mxu0 0.0
    %416 = vmatpush1.msra.mxu0 %v82
    %417 = vmatprep.subr.mxu0 0.0
    %418 = vmatpush1.msra.mxu0 %v83
    %419 = vmatprep.subr.mxu0 0.0
    %420 = vmatpush1.msra.mxu0 %v84
    %421 = vmatprep.subr.mxu0 0.0
    %422 = vmatpush1.msra.mxu0 %v85
    %423 = vmatprep.subr.mxu0 0.0
    %424 = vmatpush1.msra.mxu0 0.0
    %425 = vmatprep.subr.mxu0 0.0
    %426 = vmatpush1.msra.mxu0 0.0
    %427 = vmatprep.subr.mxu0 0.0
    %428 = vmatpush1.msra.mxu0 0.0
    %429 = vmatprep.subr.mxu0 0.0
    %430 = vmatpush1.msra.mxu0 0.0
    %431 = vmatprep.subr.mxu0 0.0
    %432 = vmatpush1.msra.mxu0 0.0
    %433 = vmatprep.subr.mxu0 0.0
    %434 = vmatpush1.msra.mxu0 0.0
    %435 = vmatprep.subr.mxu0 0.0
    %436 = vmatpush1.msra.mxu0 0.0
    %437 = vmatprep.subr.mxu0 0.0
    %438 = vmatpush1.msra.mxu0 0.0
    %439 = vmatprep.subr.mxu0 0.0
    %440 = vmatpush1.msra.mxu0 0.0
    %441 = vmatprep.subr.mxu0 0.0
    %442 = vmatpush1.msra.mxu0 0.0
    %443 = vmatprep.subr.mxu0 0.0
    %444 = vmatpush1.msra.mxu0 0.0
    %445 = vmatprep.subr.mxu0 0.0
    %446 = vmatpush1.msra.mxu0 0.0
    %447 = vmatprep.subr.mxu0 0.0
    %448 = vmatpush1.msra.mxu0 0.0
    %449 = vmatprep.subr.mxu0 0.0
    %450 = vmatpush1.msra.mxu0 0.0
    %451 = vmatprep.subr.mxu0 0.0
    %452 = vmatpush1.msra.mxu0 0.0
    %453 = vmatprep.subr.mxu0 0.0
    %454 = vmatpush1.msra.mxu0 0.0
    %455 = vmatprep.subr.mxu0 0.0
    %456 = vmatpush1.msra.mxu0 0.0
    %457 = vmatprep.subr.mxu0 0.0
    %458 = vmatpush1.msra.mxu0 0.0
    %459 = vmatprep.subr.mxu0 0.0
    %460 = vmatpush1.msra.mxu0 0.0
    %461 = vmatprep.subr.mxu0 0.0
    %462 = vmatpush1.msra.mxu0 0.0
    %463 = vmatprep.subr.mxu0 0.0
    %464 = vmatpush1.msra.mxu0 0.0
    %465 = vmatprep.subr.mxu0 0.0
    %466 = vmatpush1.msra.mxu0 0.0
    %467 = vmatprep.subr.mxu0 0.0
    %468 = vmatpush1.msra.mxu0 0.0
    %469 = vmatprep.subr.mxu0 0.0
    %470 = vmatpush1.msra.mxu0 0.0
    %471 = vmatprep.subr.mxu0 0.0
    %472 = vmatpush1.msra.mxu0 0.0
    %473 = vmatprep.subr.mxu0 0.0
    %474 = vmatpush1.msra.mxu0 0.0
    %475 = vmatprep.subr.mxu0 0.0
    %476 = vmatpush1.msra.mxu0 0.0
    %477 = vmatprep.subr.mxu0 0.0
    %478 = vmatpush1.msra.mxu0 0.0
    %479 = vmatprep.mubr.f32.mxu0 0.0
    %480 = vmatmul.mubr.f32.gmra.mrb[0].mxu0 %v413
    %v481 = vpop.f32.mrb[0].mxu0
    %v482 = vadd.f32 %v202, %v481
    %v483 = vpop.f32.mrb[0].mxu0
    %484 = vdwg.mxu0
    %v485 = vadd.f32 %v185, %v482
    %v486 = vxor.u32 %v485, 2147483648
    %v487 = vmul.f32 %v486, 1.442695
    %v488 = vpow.pop %v487
    %v489 = vadd.f32 %v488, 1.0
    %v490 = vrcp.pop %v489
    %v491 = vmul.f32 1.0, %v490
    %493 = vrot.lane.b32.xlu0 %v482, 64
    %v494 = vpop.permute.xlu0 %493
    %v496 = vmul.f32 %v491, %v494
    %498 = vrot.lane.b32.xlu0 %v496, 64
    %v499 = vpop.permute.xlu0 %498
    %v501 = vadd.f32 %v185, %v499
    %v502 = vtanh.pop %v501
    %v503 = vsub.f32 1.0, %v491
    %505 = vrot.lane.b32.xlu0 %v502, 96
    %v506 = vpop.permute.xlu0 %505
    %v508 = vmul.f32 %v503, %v506
    %v510 = vmul.f32 %v491, %v410
    %v511 = vadd.f32 %v508, %v510
    %513 = vrot.lane.b32.xlu0 %v511, 96
    %v514 = vpop.permute.xlu0 %513
    %v515 = vsel %vm204, %v514, 0
    %517 = vmatprep.subr.mxu0 0.0
    %518 = vmatpush1.msra.mxu0 %v82
    %519 = vmatprep.subr.mxu0 0.0
    %520 = vmatpush1.msra.mxu0 %v83
    %521 = vmatprep.subr.mxu0 0.0
    %522 = vmatpush1.msra.mxu0 %v84
    %523 = vmatprep.subr.mxu0 0.0
    %524 = vmatpush1.msra.mxu0 %v85
    %525 = vmatprep.subr.mxu0 0.0
    %526 = vmatpush1.msra.mxu0 0.0
    %527 = vmatprep.subr.mxu0 0.0
    %528 = vmatpush1.msra.mxu0 0.0
    %529 = vmatprep.subr.mxu0 0.0
    %530 = vmatpush1.msra.mxu0 0.0
    %531 = vmatprep.subr.mxu0 0.0
    %532 = vmatpush1.msra.mxu0 0.0
    %533 = vmatprep.subr.mxu0 0.0
    %534 = vmatpush1.msra.mxu0 0.0
    %535 = vmatprep.subr.mxu0 0.0
    %536 = vmatpush1.msra.mxu0 0.0
    %537 = vmatprep.subr.mxu0 0.0
    %538 = vmatpush1.msra.mxu0 0.0
    %539 = vmatprep.subr.mxu0 0.0
    %540 = vmatpush1.msra.mxu0 0.0
    %541 = vmatprep.subr.mxu0 0.0
    %542 = vmatpush1.msra.mxu0 0.0
    %543 = vmatprep.subr.mxu0 0.0
    %544 = vmatpush1.msra.mxu0 0.0
    %545 = vmatprep.subr.mxu0 0.0
    %546 = vmatpush1.msra.mxu0 0.0
    %547 = vmatprep.subr.mxu0 0.0
    %548 = vmatpush1.msra.mxu0 0.0
    %549 = vmatprep.subr.mxu0 0.0
    %550 = vmatpush1.msra.mxu0 0.0
    %551 = vmatprep.subr.mxu0 0.0
    %552 = vmatpush1.msra.mxu0 0.0
    %553 = vmatprep.subr.mxu0 0.0
    %554 = vmatpush1.msra.mxu0 0.0
    %555 = vmatprep.subr.mxu0 0.0
    %556 = vmatpush1.msra.mxu0 0.0
    %557 = vmatprep.subr.mxu0 0.0
    %558 = vmatpush1.msra.mxu0 0.0
    %559 = vmatprep.subr.mxu0 0.0
    %560 = vmatpush1.msra.mxu0 0.0
    %561 = vmatprep.subr.mxu0 0.0
    %562 = vmatpush1.msra.mxu0 0.0
    %563 = vmatprep.subr.mxu0 0.0
    %564 = vmatpush1.msra.mxu0 0.0
    %565 = vmatprep.subr.mxu0 0.0
    %566 = vmatpush1.msra.mxu0 0.0
    %567 = vmatprep.subr.mxu0 0.0
    %568 = vmatpush1.msra.mxu0 0.0
    %569 = vmatprep.subr.mxu0 0.0
    %570 = vmatpush1.msra.mxu0 0.0
    %571 = vmatprep.subr.mxu0 0.0
    %572 = vmatpush1.msra.mxu0 0.0
    %573 = vmatprep.subr.mxu0 0.0
    %574 = vmatpush1.msra.mxu0 0.0
    %575 = vmatprep.subr.mxu0 0.0
    %576 = vmatpush1.msra.mxu0 0.0
    %577 = vmatprep.subr.mxu0 0.0
    %578 = vmatpush1.msra.mxu0 0.0
    %579 = vmatprep.subr.mxu0 0.0
    %580 = vmatpush1.msra.mxu0 0.0
    %581 = vmatprep.mubr.f32.mxu0 0.0
    %582 = vmatmul.mubr.f32.gmra.mrb[0].mxu0 %v515
    %v583 = vpop.f32.mrb[0].mxu0
    %v584 = vadd.f32 %v202, %v583
    %v585 = vpop.f32.mrb[0].mxu0
    %586 = vdwg.mxu0
    %v588 = vrot.slane %v584, 4
    %v590 = vadd.f32 %v185, %v588
    %v591 = vxor.u32 %v590, 2147483648
    %v592 = vmul.f32 %v591, 1.442695
    %v593 = vpow.pop %v592
    %v594 = vadd.f32 %v593, 1.0
    %v595 = vrcp.pop %v594
    %v596 = vmul.f32 1.0, %v595
    %597 = vrot.lane.b32.xlu0 %v588, 64
    %v598 = vpop.permute.xlu0 %597
    %v600 = vmul.f32 %v596, %v598
    %602 = vrot.lane.b32.xlu0 %v600, 64
    %v603 = vpop.permute.xlu0 %602
    %v605 = vadd.f32 %v185, %v603
    %v606 = vtanh.pop %v605
    %v607 = vsub.f32 1.0, %v596
    %609 = vrot.lane.b32.xlu0 %v606, 96
    %v610 = vpop.permute.xlu0 %609
    %v612 = vmul.f32 %v607, %v610
    %v613 = vrot.slane %v511, 4
    %v615 = vmul.f32 %v596, %v613
    %v616 = vadd.f32 %v612, %v615
    %v618 = vrot.slane %v616, 4
    %619 = vrot.lane.b32.xlu0 %v618, 96
    %v620 = vpop.permute.xlu0 %619
    %v621 = vsel %vm204, %v620, 0
    %623 = vmatprep.subr.mxu0 0.0
    %624 = vmatpush1.msra.mxu0 %v82
    %625 = vmatprep.subr.mxu0 0.0
    %626 = vmatpush1.msra.mxu0 %v83
    %627 = vmatprep.subr.mxu0 0.0
    %628 = vmatpush1.msra.mxu0 %v84
    %629 = vmatprep.subr.mxu0 0.0
    %630 = vmatpush1.msra.mxu0 %v85
    %631 = vmatprep.subr.mxu0 0.0
    %632 = vmatpush1.msra.mxu0 0.0
    %633 = vmatprep.subr.mxu0 0.0
    %634 = vmatpush1.msra.mxu0 0.0
    %635 = vmatprep.subr.mxu0 0.0
    %636 = vmatpush1.msra.mxu0 0.0
    %637 = vmatprep.subr.mxu0 0.0
    %638 = vmatpush1.msra.mxu0 0.0
    %639 = vmatprep.subr.mxu0 0.0
    %640 = vmatpush1.msra.mxu0 0.0
    %641 = vmatprep.subr.mxu0 0.0
    %642 = vmatpush1.msra.mxu0 0.0
    %643 = vmatprep.subr.mxu0 0.0
    %644 = vmatpush1.msra.mxu0 0.0
    %645 = vmatprep.subr.mxu0 0.0
    %646 = vmatpush1.msra.mxu0 0.0
    %647 = vmatprep.subr.mxu0 0.0
    %648 = vmatpush1.msra.mxu0 0.0
    %649 = vmatprep.subr.mxu0 0.0
    %650 = vmatpush1.msra.mxu0 0.0
    %651 = vmatprep.subr.mxu0 0.0
    %652 = vmatpush1.msra.mxu0 0.0
    %653 = vmatprep.subr.mxu0 0.0
    %654 = vmatpush1.msra.mxu0 0.0
    %655 = vmatprep.subr.mxu0 0.0
    %656 = vmatpush1.msra.mxu0 0.0
    %657 = vmatprep.subr.mxu0 0.0
    %658 = vmatpush1.msra.mxu0 0.0
    %659 = vmatprep.subr.mxu0 0.0
    %660 = vmatpush1.msra.mxu0 0.0
    %661 = vmatprep.subr.mxu0 0.0
    %662 = vmatpush1.msra.mxu0 0.0
    %663 = vmatprep.subr.mxu0 0.0
    %664 = vmatpush1.msra.mxu0 0.0
    %665 = vmatprep.subr.mxu0 0.0
    %666 = vmatpush1.msra.mxu0 0.0
    %667 = vmatprep.subr.mxu0 0.0
    %668 = vmatpush1.msra.mxu0 0.0
    %669 = vmatprep.subr.mxu0 0.0
    %670 = vmatpush1.msra.mxu0 0.0
    %671 = vmatprep.subr.mxu0 0.0
    %672 = vmatpush1.msra.mxu0 0.0
    %673 = vmatprep.subr.mxu0 0.0
    %674 = vmatpush1.msra.mxu0 0.0
    %675 = vmatprep.subr.mxu0 0.0
    %676 = vmatpush1.msra.mxu0 0.0
    %677 = vmatprep.subr.mxu0 0.0
    %678 = vmatpush1.msra.mxu0 0.0
    %679 = vmatprep.subr.mxu0 0.0
    %680 = vmatpush1.msra.mxu0 0.0
    %681 = vmatprep.subr.mxu0 0.0
    %682 = vmatpush1.msra.mxu0 0.0
    %683 = vmatprep.subr.mxu0 0.0
    %684 = vmatpush1.msra.mxu0 0.0
    %685 = vmatprep.subr.mxu0 0.0
    %686 = vmatpush1.msra.mxu0 0.0
    %687 = vmatprep.mubr.f32.mxu0 0.0
    %688 = vmatmul.mubr.f32.gmra.mrb[0].mxu0 %v621
    %v689 = vpop.f32.mrb[0].mxu0
    %v690 = vadd.f32 %v202, %v689
    %v691 = vpop.f32.mrb[0].mxu0
    %692 = vdwg.mxu0
    %v693 = vadd.f32 %v190, %v690
    %v694 = vxor.u32 %v693, 2147483648
    %v695 = vmul.f32 %v694, 1.442695
    %v696 = vpow.pop %v695
    %v697 = vadd.f32 %v696, 1.0
    %v698 = vrcp.pop %v697
    %v699 = vmul.f32 1.0, %v698
    %701 = vrot.lane.b32.xlu0 %v690, 64
    %v702 = vpop.permute.xlu0 %701
    %v704 = vmul.f32 %v699, %v702
    %706 = vrot.lane.b32.xlu0 %v704, 64
    %v707 = vpop.permute.xlu0 %706
    %v709 = vadd.f32 %v190, %v707
    %v710 = vtanh.pop %v709
    %v711 = vsub.f32 1.0, %v699
    %713 = vrot.lane.b32.xlu0 %v710, 96
    %v714 = vpop.permute.xlu0 %713
    %v716 = vmul.f32 %v711, %v714
    %v718 = vmul.f32 %v699, %v618
    %v719 = vadd.f32 %v716, %v718
    %721 = vrot.lane.b32.xlu0 %v719, 96
    %v722 = vpop.permute.xlu0 %721
    %v723 = vsel %vm204, %v722, 0
    %725 = vmatprep.subr.mxu0 0.0
    %726 = vmatpush1.msra.mxu0 %v82
    %727 = vmatprep.subr.mxu0 0.0
    %728 = vmatpush1.msra.mxu0 %v83
    %729 = vmatprep.subr.mxu0 0.0
    %730 = vmatpush1.msra.mxu0 %v84
    %731 = vmatprep.subr.mxu0 0.0
    %732 = vmatpush1.msra.mxu0 %v85
    %733 = vmatprep.subr.mxu0 0.0
    %734 = vmatpush1.msra.mxu0 0.0
    %735 = vmatprep.subr.mxu0 0.0
    %736 = vmatpush1.msra.mxu0 0.0
    %737 = vmatprep.subr.mxu0 0.0
    %738 = vmatpush1.msra.mxu0 0.0
    %739 = vmatprep.subr.mxu0 0.0
    %740 = vmatpush1.msra.mxu0 0.0
    %741 = vmatprep.subr.mxu0 0.0
    %742 = vmatpush1.msra.mxu0 0.0
    %743 = vmatprep.subr.mxu0 0.0
    %744 = vmatpush1.msra.mxu0 0.0
    %745 = vmatprep.subr.mxu0 0.0
    %746 = vmatpush1.msra.mxu0 0.0
    %747 = vmatprep.subr.mxu0 0.0
    %748 = vmatpush1.msra.mxu0 0.0
    %749 = vmatprep.subr.mxu0 0.0
    %750 = vmatpush1.msra.mxu0 0.0
    %751 = vmatprep.subr.mxu0 0.0
    %752 = vmatpush1.msra.mxu0 0.0
    %753 = vmatprep.subr.mxu0 0.0
    %754 = vmatpush1.msra.mxu0 0.0
    %755 = vmatprep.subr.mxu0 0.0
    %756 = vmatpush1.msra.mxu0 0.0
    %757 = vmatprep.subr.mxu0 0.0
    %758 = vmatpush1.msra.mxu0 0.0
    %759 = vmatprep.subr.mxu0 0.0
    %760 = vmatpush1.msra.mxu0 0.0
    %761 = vmatprep.subr.mxu0 0.0
    %762 = vmatpush1.msra.mxu0 0.0
    %763 = vmatprep.subr.mxu0 0.0
    %764 = vmatpush1.msra.mxu0 0.0
    %765 = vmatprep.subr.mxu0 0.0
    %766 = vmatpush1.msra.mxu0 0.0
    %767 = vmatprep.subr.mxu0 0.0
    %768 = vmatpush1.msra.mxu0 0.0
    %769 = vmatprep.subr.mxu0 0.0
    %770 = vmatpush1.msra.mxu0 0.0
    %771 = vmatprep.subr.mxu0 0.0
    %772 = vmatpush1.msra.mxu0 0.0
    %773 = vmatprep.subr.mxu0 0.0
    %774 = vmatpush1.msra.mxu0 0.0
    %775 = vmatprep.subr.mxu0 0.0
    %776 = vmatpush1.msra.mxu0 0.0
    %777 = vmatprep.subr.mxu0 0.0
    %778 = vmatpush1.msra.mxu0 0.0
    %779 = vmatprep.subr.mxu0 0.0
    %780 = vmatpush1.msra.mxu0 0.0
    %781 = vmatprep.subr.mxu0 0.0
    %782 = vmatpush1.msra.mxu0 0.0
    %783 = vmatprep.subr.mxu0 0.0
    %784 = vmatpush1.msra.mxu0 0.0
    %785 = vmatprep.subr.mxu0 0.0
    %786 = vmatpush1.msra.mxu0 0.0
    %787 = vmatprep.subr.mxu0 0.0
    %788 = vmatpush1.msra.mxu0 0.0
    %789 = vmatprep.mubr.f32.mxu0 0.0
    %790 = vmatmul.mubr.f32.gmra.mrb[0].mxu0 %v723
    %v791 = vpop.f32.mrb[0].mxu0
    %v792 = vadd.f32 %v202, %v791
    %v793 = vpop.f32.mrb[0].mxu0
    %794 = vdwg.mxu0
    %v796 = vrot.slane %v792, 4
    %v798 = vadd.f32 %v190, %v796
    %v799 = vxor.u32 %v798, 2147483648
    %v800 = vmul.f32 %v799, 1.442695
    %v801 = vpow.pop %v800
    %v802 = vadd.f32 %v801, 1.0
    %v803 = vrcp.pop %v802
    %v804 = vmul.f32 1.0, %v803
    %805 = vrot.lane.b32.xlu0 %v796, 64
    %v806 = vpop.permute.xlu0 %805
    %v808 = vmul.f32 %v804, %v806
    %810 = vrot.lane.b32.xlu0 %v808, 64
    %v811 = vpop.permute.xlu0 %810
    %v813 = vadd.f32 %v190, %v811
    %v814 = vtanh.pop %v813
    %v815 = vsub.f32 1.0, %v804
    %817 = vrot.lane.b32.xlu0 %v814, 96
    %v818 = vpop.permute.xlu0 %817
    %v820 = vmul.f32 %v815, %v818
    %v821 = vrot.slane %v719, 4
    %v823 = vmul.f32 %v804, %v821
    %v824 = vadd.f32 %v820, %v823
    %v826 = vrot.slane %v824, 4
    %827 = vrot.lane.b32.xlu0 %v826, 96
    %v828 = vpop.permute.xlu0 %827
    %v829 = vsel %vm204, %v828, 0
    %831 = vmatprep.subr.mxu0 0.0
    %832 = vmatpush1.msra.mxu0 %v82
    %833 = vmatprep.subr.mxu0 0.0
    %834 = vmatpush1.msra.mxu0 %v83
    %835 = vmatprep.subr.mxu0 0.0
    %836 = vmatpush1.msra.mxu0 %v84
    %837 = vmatprep.subr.mxu0 0.0
    %838 = vmatpush1.msra.mxu0 %v85
    %839 = vmatprep.subr.mxu0 0.0
    %840 = vmatpush1.msra.mxu0 0.0
    %841 = vmatprep.subr.mxu0 0.0
    %842 = vmatpush1.msra.mxu0 0.0
    %843 = vmatprep.subr.mxu0 0.0
    %844 = vmatpush1.msra.mxu0 0.0
    %845 = vmatprep.subr.mxu0 0.0
    %846 = vmatpush1.msra.mxu0 0.0
    %847 = vmatprep.subr.mxu0 0.0
    %848 = vmatpush1.msra.mxu0 0.0
    %849 = vmatprep.subr.mxu0 0.0
    %850 = vmatpush1.msra.mxu0 0.0
    %851 = vmatprep.subr.mxu0 0.0
    %852 = vmatpush1.msra.mxu0 0.0
    %853 = vmatprep.subr.mxu0 0.0
    %854 = vmatpush1.msra.mxu0 0.0
    %855 = vmatprep.subr.mxu0 0.0
    %856 = vmatpush1.msra.mxu0 0.0
    %857 = vmatprep.subr.mxu0 0.0
    %858 = vmatpush1.msra.mxu0 0.0
    %859 = vmatprep.subr.mxu0 0.0
    %860 = vmatpush1.msra.mxu0 0.0
    %861 = vmatprep.subr.mxu0 0.0
    %862 = vmatpush1.msra.mxu0 0.0
    %863 = vmatprep.subr.mxu0 0.0
    %864 = vmatpush1.msra.mxu0 0.0
    %865 = vmatprep.subr.mxu0 0.0
    %866 = vmatpush1.msra.mxu0 0.0
    %867 = vmatprep.subr.mxu0 0.0
    %868 = vmatpush1.msra.mxu0 0.0
    %869 = vmatprep.subr.mxu0 0.0
    %870 = vmatpush1.msra.mxu0 0.0
    %871 = vmatprep.subr.mxu0 0.0
    %872 = vmatpush1.msra.mxu0 0.0
    %873 = vmatprep.subr.mxu0 0.0
    %874 = vmatpush1.msra.mxu0 0.0
    %875 = vmatprep.subr.mxu0 0.0
    %876 = vmatpush1.msra.mxu0 0.0
    %877 = vmatprep.subr.mxu0 0.0
    %878 = vmatpush1.msra.mxu0 0.0
    %879 = vmatprep.subr.mxu0 0.0
    %880 = vmatpush1.msra.mxu0 0.0
    %881 = vmatprep.subr.mxu0 0.0
    %882 = vmatpush1.msra.mxu0 0.0
    %883 = vmatprep.subr.mxu0 0.0
    %884 = vmatpush1.msra.mxu0 0.0
    %885 = vmatprep.subr.mxu0 0.0
    %886 = vmatpush1.msra.mxu0 0.0
    %887 = vmatprep.subr.mxu0 0.0
    %888 = vmatpush1.msra.mxu0 0.0
    %889 = vmatprep.subr.mxu0 0.0
    %890 = vmatpush1.msra.mxu0 0.0
    %891 = vmatprep.subr.mxu0 0.0
    %892 = vmatpush1.msra.mxu0 0.0
    %893 = vmatprep.subr.mxu0 0.0
    %894 = vmatpush1.msra.mxu0 0.0
    %895 = vmatprep.mubr.f32.mxu0 0.0
    %896 = vmatmul.mubr.f32.gmra.mrb[0].mxu0 %v829
    %v897 = vpop.f32.mrb[0].mxu0
    %v898 = vadd.f32 %v202, %v897
    %v899 = vpop.f32.mrb[0].mxu0
    %900 = vdwg.mxu0
    %v901 = vadd.f32 %v195, %v898
    %v902 = vxor.u32 %v901, 2147483648
    %v903 = vmul.f32 %v902, 1.442695
    %v904 = vpow.pop %v903
    %v905 = vadd.f32 %v904, 1.0
    %v906 = vrcp.pop %v905
    %v907 = vmul.f32 1.0, %v906
    %909 = vrot.lane.b32.xlu0 %v898, 64
    %v910 = vpop.permute.xlu0 %909
    %v912 = vmul.f32 %v907, %v910
    %914 = vrot.lane.b32.xlu0 %v912, 64
    %v915 = vpop.permute.xlu0 %914
    %v917 = vadd.f32 %v195, %v915
    %v918 = vtanh.pop %v917
    %v919 = vsub.f32 1.0, %v907
    %921 = vrot.lane.b32.xlu0 %v918, 96
    %v922 = vpop.permute.xlu0 %921
    %v924 = vmul.f32 %v919, %v922
    %v926 = vmul.f32 %v907, %v826
    %v927 = vadd.f32 %v924, %v926
    %v928 = vld [vmem:[%s8] sm:$0xff]
    %v929 = vld [vmem:[%s8 + $0x8] sm:$0xff]
    %v930 = vld [vmem:[%s8 + $0x10] sm:$0xff]
    %v931 = vld [vmem:[%s8 + $0x18] sm:$0xff]
    %933 = vrot.lane.b32.xlu0 %v511, 32
    %v934 = vpop.permute.xlu0 %933
    %936 = vrot.lane.b32.xlu0 %v618, 64
    %v937 = vpop.permute.xlu0 %936
    %941 = vrot.lane.b32.xlu0 %v927, 32
    %v942 = vpop.permute.xlu0 %941
    %v944 = vsel %vm204, %v306, %v410
    %vm945 = vcmask 523264
    %v946 = vsel %vm945, %v944, %v934
    %vm947 = vcmask 785408
    %v948 = vsel %vm947, %v946, %v937
    %v949 = vsel %vm204, %v722, %v826
    %v950 = vsel %vm945, %v949, %v942
    %951 = vmatprep.subr.mxu0 0.0
    %952 = vmatpush1.msra.mxu0 %v928
    %953 = vmatprep.subr.mxu0 0.0
    %954 = vmatpush1.msra.mxu0 %v929
    %955 = vmatprep.subr.mxu0 0.0
    %956 = vmatpush1.msra.mxu0 %v930
    %957 = vmatprep.subr.mxu0 0.0
    %958 = vmatpush1.msra.mxu0 %v931
    %959 = vmatprep.subr.mxu0 0.0
    %960 = vmatpush1.msra.mxu0 0.0
    %961 = vmatprep.subr.mxu0 0.0
    %962 = vmatpush1.msra.mxu0 0.0
    %963 = vmatprep.subr.mxu0 0.0
    %964 = vmatpush1.msra.mxu0 0.0
    %965 = vmatprep.subr.mxu0 0.0
    %966 = vmatpush1.msra.mxu0 0.0
    %967 = vmatprep.subr.mxu0 0.0
    %968 = vmatpush1.msra.mxu0 0.0
    %969 = vmatprep.subr.mxu0 0.0
    %970 = vmatpush1.msra.mxu0 0.0
    %971 = vmatprep.subr.mxu0 0.0
    %972 = vmatpush1.msra.mxu0 0.0
    %973 = vmatprep.subr.mxu0 0.0
    %974 = vmatpush1.msra.mxu0 0.0
    %975 = vmatprep.subr.mxu0 0.0
    %976 = vmatpush1.msra.mxu0 0.0
    %977 = vmatprep.subr.mxu0 0.0
    %978 = vmatpush1.msra.mxu0 0.0
    %979 = vmatprep.subr.mxu0 0.0
    %980 = vmatpush1.msra.mxu0 0.0
    %981 = vmatprep.subr.mxu0 0.0
    %982 = vmatpush1.msra.mxu0 0.0
    %983 = vmatprep.subr.mxu0 0.0
    %984 = vmatpush1.msra.mxu0 0.0
    %985 = vmatprep.subr.mxu0 0.0
    %986 = vmatpush1.msra.mxu0 0.0
    %987 = vmatprep.subr.mxu0 0.0
    %988 = vmatpush1.msra.mxu0 0.0
    %989 = vmatprep.subr.mxu0 0.0
    %990 = vmatpush1.msra.mxu0 0.0
    %991 = vmatprep.subr.mxu0 0.0
    %992 = vmatpush1.msra.mxu0 0.0
    %993 = vmatprep.subr.mxu0 0.0
    %994 = vmatpush1.msra.mxu0 0.0
    %995 = vmatprep.subr.mxu0 0.0
    %996 = vmatpush1.msra.mxu0 0.0
    %997 = vmatprep.subr.mxu0 0.0
    %998 = vmatpush1.msra.mxu0 0.0
    %999 = vmatprep.subr.mxu0 0.0
    %1000 = vmatpush1.msra.mxu0 0.0
    %1001 = vmatprep.subr.mxu0 0.0
    %1002 = vmatpush1.msra.mxu0 0.0
    %1003 = vmatprep.subr.mxu0 0.0
    %1004 = vmatpush1.msra.mxu0 0.0
    %1005 = vmatprep.subr.mxu0 0.0
    %1006 = vmatpush1.msra.mxu0 0.0
    %1007 = vmatprep.subr.mxu0 0.0
    %1008 = vmatpush1.msra.mxu0 0.0
    %1009 = vmatprep.subr.mxu0 0.0
    %1010 = vmatpush1.msra.mxu0 0.0
    %1011 = vmatprep.subr.mxu0 0.0
    %1012 = vmatpush1.msra.mxu0 0.0
    %1013 = vmatprep.subr.mxu0 0.0
    %1014 = vmatpush1.msra.mxu0 0.0
    %1015 = vmatprep.mubr.f32.mxu0 0.0
    %1016 = vmatmul.mubr.f32.gmra.mrb[0].mxu0 %v307
    %v1017 = vpop.f32.mrb[0].mxu0
    %v1018 = vadd.f32 0.0, %v1017
    %v1019 = vpop.f32.mrb[0].mxu0
    %1020 = vdwg.mxu0
    %1021 = vmatprep.subr.mxu0 0.0
    %1022 = vmatpush1.msra.mxu0 %v928
    %1023 = vmatprep.subr.mxu0 0.0
    %1024 = vmatpush1.msra.mxu0 %v929
    %1025 = vmatprep.subr.mxu0 0.0
    %1026 = vmatpush1.msra.mxu0 %v930
    %1027 = vmatprep.subr.mxu0 0.0
    %1028 = vmatpush1.msra.mxu0 %v931
    %1029 = vmatprep.subr.mxu0 0.0
    %1030 = vmatpush1.msra.mxu0 0.0
    %1031 = vmatprep.subr.mxu0 0.0
    %1032 = vmatpush1.msra.mxu0 0.0
    %1033 = vmatprep.subr.mxu0 0.0
    %1034 = vmatpush1.msra.mxu0 0.0
    %1035 = vmatprep.subr.mxu0 0.0
    %1036 = vmatpush1.msra.mxu0 0.0
    %1037 = vmatprep.subr.mxu0 0.0
    %1038 = vmatpush1.msra.mxu0 0.0
    %1039 = vmatprep.subr.mxu0 0.0
    %1040 = vmatpush1.msra.mxu0 0.0
    %1041 = vmatprep.subr.mxu0 0.0
    %1042 = vmatpush1.msra.mxu0 0.0
    %1043 = vmatprep.subr.mxu0 0.0
    %1044 = vmatpush1.msra.mxu0 0.0
    %1045 = vmatprep.subr.mxu0 0.0
    %1046 = vmatpush1.msra.mxu0 0.0
    %1047 = vmatprep.subr.mxu0 0.0
    %1048 = vmatpush1.msra.mxu0 0.0
    %1049 = vmatprep.subr.mxu0 0.0
    %1050 = vmatpush1.msra.mxu0 0.0
    %1051 = vmatprep.subr.mxu0 0.0
    %1052 = vmatpush1.msra.mxu0 0.0
    %1053 = vmatprep.subr.mxu0 0.0
    %1054 = vmatpush1.msra.mxu0 0.0
    %1055 = vmatprep.subr.mxu0 0.0
    %1056 = vmatpush1.msra.mxu0 0.0
    %1057 = vmatprep.subr.mxu0 0.0
    %1058 = vmatpush1.msra.mxu0 0.0
    %1059 = vmatprep.subr.mxu0 0.0
    %1060 = vmatpush1.msra.mxu0 0.0
    %1061 = vmatprep.subr.mxu0 0.0
    %1062 = vmatpush1.msra.mxu0 0.0
    %1063 = vmatprep.subr.mxu0 0.0
    %1064 = vmatpush1.msra.mxu0 0.0
    %1065 = vmatprep.subr.mxu0 0.0
    %1066 = vmatpush1.msra.mxu0 0.0
    %1067 = vmatprep.subr.mxu0 0.0
    %1068 = vmatpush1.msra.mxu0 0.0
    %1069 = vmatprep.subr.mxu0 0.0
    %1070 = vmatpush1.msra.mxu0 0.0
    %1071 = vmatprep.subr.mxu0 0.0
    %1072 = vmatpush1.msra.mxu0 0.0
    %1073 = vmatprep.subr.mxu0 0.0
    %1074 = vmatpush1.msra.mxu0 0.0
    %1075 = vmatprep.subr.mxu0 0.0
    %1076 = vmatpush1.msra.mxu0 0.0
    %1077 = vmatprep.subr.mxu0 0.0
    %1078 = vmatpush1.msra.mxu0 0.0
    %1079 = vmatprep.subr.mxu0 0.0
    %1080 = vmatpush1.msra.mxu0 0.0
    %1081 = vmatprep.subr.mxu0 0.0
    %1082 = vmatpush1.msra.mxu0 0.0
    %1083 = vmatprep.subr.mxu0 0.0
    %1084 = vmatpush1.msra.mxu0 0.0
    %1085 = vmatprep.mubr.f32.mxu0 0.0
    %1086 = vmatmul.mubr.f32.gmra.mrb[0].mxu0 %v413
    %v1087 = vpop.f32.mrb[0].mxu0
    %v1088 = vadd.f32 0.0, %v1087
    %v1089 = vpop.f32.mrb[0].mxu0
    %1090 = vdwg.mxu0
    %1091 = vmatprep.subr.mxu0 0.0
    %1092 = vmatpush1.msra.mxu0 %v928
    %1093 = vmatprep.subr.mxu0 0.0
    %1094 = vmatpush1.msra.mxu0 %v929
    %1095 = vmatprep.subr.mxu0 0.0
    %1096 = vmatpush1.msra.mxu0 %v930
    %1097 = vmatprep.subr.mxu0 0.0
    %1098 = vmatpush1.msra.mxu0 %v931
    %1099 = vmatprep.subr.mxu0 0.0
    %1100 = vmatpush1.msra.mxu0 0.0
    %1101 = vmatprep.subr.mxu0 0.0
    %1102 = vmatpush1.msra.mxu0 0.0
    %1103 = vmatprep.subr.mxu0 0.0
    %1104 = vmatpush1.msra.mxu0 0.0
    %1105 = vmatprep.subr.mxu0 0.0
    %1106 = vmatpush1.msra.mxu0 0.0
    %1107 = vmatprep.subr.mxu0 0.0
    %1108 = vmatpush1.msra.mxu0 0.0
    %1109 = vmatprep.subr.mxu0 0.0
    %1110 = vmatpush1.msra.mxu0 0.0
    %1111 = vmatprep.subr.mxu0 0.0
    %1112 = vmatpush1.msra.mxu0 0.0
    %1113 = vmatprep.subr.mxu0 0.0
    %1114 = vmatpush1.msra.mxu0 0.0
    %1115 = vmatprep.subr.mxu0 0.0
    %1116 = vmatpush1.msra.mxu0 0.0
    %1117 = vmatprep.subr.mxu0 0.0
    %1118 = vmatpush1.msra.mxu0 0.0
    %1119 = vmatprep.subr.mxu0 0.0
    %1120 = vmatpush1.msra.mxu0 0.0
    %1121 = vmatprep.subr.mxu0 0.0
    %1122 = vmatpush1.msra.mxu0 0.0
    %1123 = vmatprep.subr.mxu0 0.0
    %1124 = vmatpush1.msra.mxu0 0.0
    %1125 = vmatprep.subr.mxu0 0.0
    %1126 = vmatpush1.msra.mxu0 0.0
    %1127 = vmatprep.subr.mxu0 0.0
    %1128 = vmatpush1.msra.mxu0 0.0
    %1129 = vmatprep.subr.mxu0 0.0
    %1130 = vmatpush1.msra.mxu0 0.0
    %1131 = vmatprep.subr.mxu0 0.0
    %1132 = vmatpush1.msra.mxu0 0.0
    %1133 = vmatprep.subr.mxu0 0.0
    %1134 = vmatpush1.msra.mxu0 0.0
    %1135 = vmatprep.subr.mxu0 0.0
    %1136 = vmatpush1.msra.mxu0 0.0
    %1137 = vmatprep.subr.mxu0 0.0
    %1138 = vmatpush1.msra.mxu0 0.0
    %1139 = vmatprep.subr.mxu0 0.0
    %1140 = vmatpush1.msra.mxu0 0.0
    %1141 = vmatprep.subr.mxu0 0.0
    %1142 = vmatpush1.msra.mxu0 0.0
    %1143 = vmatprep.subr.mxu0 0.0
    %1144 = vmatpush1.msra.mxu0 0.0
    %1145 = vmatprep.subr.mxu0 0.0
    %1146 = vmatpush1.msra.mxu0 0.0
    %1147 = vmatprep.subr.mxu0 0.0
    %1148 = vmatpush1.msra.mxu0 0.0
    %1149 = vmatprep.subr.mxu0 0.0
    %1150 = vmatpush1.msra.mxu0 0.0
    %1151 = vmatprep.subr.mxu0 0.0
    %1152 = vmatpush1.msra.mxu0 0.0
    %1153 = vmatprep.subr.mxu0 0.0
    %1154 = vmatpush1.msra.mxu0 0.0
    %1155 = vmatprep.mubr.f32.mxu0 0.0
    %1156 = vmatmul.mubr.f32.gmra.mrb[0].mxu0 %v515
    %v1157 = vpop.f32.mrb[0].mxu0
    %v1158 = vadd.f32 0.0, %v1157
    %v1159 = vpop.f32.mrb[0].mxu0
    %1160 = vdwg.mxu0
    %1161 = vmatprep.subr.mxu0 0.0
    %1162 = vmatpush1.msra.mxu0 %v928
    %1163 = vmatprep.subr.mxu0 0.0
    %1164 = vmatpush1.msra.mxu0 %v929
    %1165 = vmatprep.subr.mxu0 0.0
    %1166 = vmatpush1.msra.mxu0 %v930
    %1167 = vmatprep.subr.mxu0 0.0
    %1168 = vmatpush1.msra.mxu0 %v931
    %1169 = vmatprep.subr.mxu0 0.0
    %1170 = vmatpush1.msra.mxu0 0.0
    %1171 = vmatprep.subr.mxu0 0.0
    %1172 = vmatpush1.msra.mxu0 0.0
    %1173 = vmatprep.subr.mxu0 0.0
    %1174 = vmatpush1.msra.mxu0 0.0
    %1175 = vmatprep.subr.mxu0 0.0
    %1176 = vmatpush1.msra.mxu0 0.0
    %1177 = vmatprep.subr.mxu0 0.0
    %1178 = vmatpush1.msra.mxu0 0.0
    %1179 = vmatprep.subr.mxu0 0.0
    %1180 = vmatpush1.msra.mxu0 0.0
    %1181 = vmatprep.subr.mxu0 0.0
    %1182 = vmatpush1.msra.mxu0 0.0
    %1183 = vmatprep.subr.mxu0 0.0
    %1184 = vmatpush1.msra.mxu0 0.0
    %1185 = vmatprep.subr.mxu0 0.0
    %1186 = vmatpush1.msra.mxu0 0.0
    %1187 = vmatprep.subr.mxu0 0.0
    %1188 = vmatpush1.msra.mxu0 0.0
    %1189 = vmatprep.subr.mxu0 0.0
    %1190 = vmatpush1.msra.mxu0 0.0
    %1191 = vmatprep.subr.mxu0 0.0
    %1192 = vmatpush1.msra.mxu0 0.0
    %1193 = vmatprep.subr.mxu0 0.0
    %1194 = vmatpush1.msra.mxu0 0.0
    %1195 = vmatprep.subr.mxu0 0.0
    %1196 = vmatpush1.msra.mxu0 0.0
    %1197 = vmatprep.subr.mxu0 0.0
    %1198 = vmatpush1.msra.mxu0 0.0
    %1199 = vmatprep.subr.mxu0 0.0
    %1200 = vmatpush1.msra.mxu0 0.0
    %1201 = vmatprep.subr.mxu0 0.0
    %1202 = vmatpush1.msra.mxu0 0.0
    %1203 = vmatprep.subr.mxu0 0.0
    %1204 = vmatpush1.msra.mxu0 0.0
    %1205 = vmatprep.subr.mxu0 0.0
    %1206 = vmatpush1.msra.mxu0 0.0
    %1207 = vmatprep.subr.mxu0 0.0
    %1208 = vmatpush1.msra.mxu0 0.0
    %1209 = vmatprep.subr.mxu0 0.0
    %1210 = vmatpush1.msra.mxu0 0.0
    %1211 = vmatprep.subr.mxu0 0.0
    %1212 = vmatpush1.msra.mxu0 0.0
    %1213 = vmatprep.subr.mxu0 0.0
    %1214 = vmatpush1.msra.mxu0 0.0
    %1215 = vmatprep.subr.mxu0 0.0
    %1216 = vmatpush1.msra.mxu0 0.0
    %1217 = vmatprep.subr.mxu0 0.0
    %1218 = vmatpush1.msra.mxu0 0.0
    %1219 = vmatprep.subr.mxu0 0.0
    %1220 = vmatpush1.msra.mxu0 0.0
    %1221 = vmatprep.subr.mxu0 0.0
    %1222 = vmatpush1.msra.mxu0 0.0
    %1223 = vmatprep.subr.mxu0 0.0
    %1224 = vmatpush1.msra.mxu0 0.0
    %1225 = vmatprep.mubr.f32.mxu0 0.0
    %1226 = vmatmul.mubr.f32.gmra.mrb[0].mxu0 %v621
    %v1227 = vpop.f32.mrb[0].mxu0
    %v1228 = vadd.f32 0.0, %v1227
    %v1229 = vpop.f32.mrb[0].mxu0
    %1230 = vdwg.mxu0
    %1231 = vmatprep.subr.mxu0 0.0
    %1232 = vmatpush1.msra.mxu0 %v928
    %1233 = vmatprep.subr.mxu0 0.0
    %1234 = vmatpush1.msra.mxu0 %v929
    %1235 = vmatprep.subr.mxu0 0.0
    %1236 = vmatpush1.msra.mxu0 %v930
    %1237 = vmatprep.subr.mxu0 0.0
    %1238 = vmatpush1.msra.mxu0 %v931
    %1239 = vmatprep.subr.mxu0 0.0
    %1240 = vmatpush1.msra.mxu0 0.0
    %1241 = vmatprep.subr.mxu0 0.0
    %1242 = vmatpush1.msra.mxu0 0.0
    %1243 = vmatprep.subr.mxu0 0.0
    %1244 = vmatpush1.msra.mxu0 0.0
    %1245 = vmatprep.subr.mxu0 0.0
    %1246 = vmatpush1.msra.mxu0 0.0
    %1247 = vmatprep.subr.mxu0 0.0
    %1248 = vmatpush1.msra.mxu0 0.0
    %1249 = vmatprep.subr.mxu0 0.0
    %1250 = vmatpush1.msra.mxu0 0.0
    %1251 = vmatprep.subr.mxu0 0.0
    %1252 = vmatpush1.msra.mxu0 0.0
    %1253 = vmatprep.subr.mxu0 0.0
    %1254 = vmatpush1.msra.mxu0 0.0
    %1255 = vmatprep.subr.mxu0 0.0
    %1256 = vmatpush1.msra.mxu0 0.0
    %1257 = vmatprep.subr.mxu0 0.0
    %1258 = vmatpush1.msra.mxu0 0.0
    %1259 = vmatprep.subr.mxu0 0.0
    %1260 = vmatpush1.msra.mxu0 0.0
    %1261 = vmatprep.subr.mxu0 0.0
    %1262 = vmatpush1.msra.mxu0 0.0
    %1263 = vmatprep.subr.mxu0 0.0
    %1264 = vmatpush1.msra.mxu0 0.0
    %1265 = vmatprep.subr.mxu0 0.0
    %1266 = vmatpush1.msra.mxu0 0.0
    %1267 = vmatprep.subr.mxu0 0.0
    %1268 = vmatpush1.msra.mxu0 0.0
    %1269 = vmatprep.subr.mxu0 0.0
    %1270 = vmatpush1.msra.mxu0 0.0
    %1271 = vmatprep.subr.mxu0 0.0
    %1272 = vmatpush1.msra.mxu0 0.0
    %1273 = vmatprep.subr.mxu0 0.0
    %1274 = vmatpush1.msra.mxu0 0.0
    %1275 = vmatprep.subr.mxu0 0.0
    %1276 = vmatpush1.msra.mxu0 0.0
    %1277 = vmatprep.subr.mxu0 0.0
    %1278 = vmatpush1.msra.mxu0 0.0
    %1279 = vmatprep.subr.mxu0 0.0
    %1280 = vmatpush1.msra.mxu0 0.0
    %1281 = vmatprep.subr.mxu0 0.0
    %1282 = vmatpush1.msra.mxu0 0.0
    %1283 = vmatprep.subr.mxu0 0.0
    %1284 = vmatpush1.msra.mxu0 0.0
    %1285 = vmatprep.subr.mxu0 0.0
    %1286 = vmatpush1.msra.mxu0 0.0
    %1287 = vmatprep.subr.mxu0 0.0
    %1288 = vmatpush1.msra.mxu0 0.0
    %1289 = vmatprep.subr.mxu0 0.0
    %1290 = vmatpush1.msra.mxu0 0.0
    %1291 = vmatprep.subr.mxu0 0.0
    %1292 = vmatpush1.msra.mxu0 0.0
    %1293 = vmatprep.subr.mxu0 0.0
    %1294 = vmatpush1.msra.mxu0 0.0
    %1295 = vmatprep.mubr.f32.mxu0 0.0
    %1296 = vmatmul.mubr.f32.gmra.mrb[0].mxu0 %v723
    %v1297 = vpop.f32.mrb[0].mxu0
    %v1298 = vadd.f32 0.0, %v1297
    %v1299 = vpop.f32.mrb[0].mxu0
    %1300 = vdwg.mxu0
    %1301 = vmatprep.subr.mxu0 0.0
    %1302 = vmatpush1.msra.mxu0 %v928
    %1303 = vmatprep.subr.mxu0 0.0
    %1304 = vmatpush1.msra.mxu0 %v929
    %1305 = vmatprep.subr.mxu0 0.0
    %1306 = vmatpush1.msra.mxu0 %v930
    %1307 = vmatprep.subr.mxu0 0.0
    %1308 = vmatpush1.msra.mxu0 %v931
    %1309 = vmatprep.subr.mxu0 0.0
    %1310 = vmatpush1.msra.mxu0 0.0
    %1311 = vmatprep.subr.mxu0 0.0
    %1312 = vmatpush1.msra.mxu0 0.0
    %1313 = vmatprep.subr.mxu0 0.0
    %1314 = vmatpush1.msra.mxu0 0.0
    %1315 = vmatprep.subr.mxu0 0.0
    %1316 = vmatpush1.msra.mxu0 0.0
    %1317 = vmatprep.subr.mxu0 0.0
    %1318 = vmatpush1.msra.mxu0 0.0
    %1319 = vmatprep.subr.mxu0 0.0
    %1320 = vmatpush1.msra.mxu0 0.0
    %1321 = vmatprep.subr.mxu0 0.0
    %1322 = vmatpush1.msra.mxu0 0.0
    %1323 = vmatprep.subr.mxu0 0.0
    %1324 = vmatpush1.msra.mxu0 0.0
    %1325 = vmatprep.subr.mxu0 0.0
    %1326 = vmatpush1.msra.mxu0 0.0
    %1327 = vmatprep.subr.mxu0 0.0
    %1328 = vmatpush1.msra.mxu0 0.0
    %1329 = vmatprep.subr.mxu0 0.0
    %1330 = vmatpush1.msra.mxu0 0.0
    %1331 = vmatprep.subr.mxu0 0.0
    %1332 = vmatpush1.msra.mxu0 0.0
    %1333 = vmatprep.subr.mxu0 0.0
    %1334 = vmatpush1.msra.mxu0 0.0
    %1335 = vmatprep.subr.mxu0 0.0
    %1336 = vmatpush1.msra.mxu0 0.0
    %1337 = vmatprep.subr.mxu0 0.0
    %1338 = vmatpush1.msra.mxu0 0.0
    %1339 = vmatprep.subr.mxu0 0.0
    %1340 = vmatpush1.msra.mxu0 0.0
    %1341 = vmatprep.subr.mxu0 0.0
    %1342 = vmatpush1.msra.mxu0 0.0
    %1343 = vmatprep.subr.mxu0 0.0
    %1344 = vmatpush1.msra.mxu0 0.0
    %1345 = vmatprep.subr.mxu0 0.0
    %1346 = vmatpush1.msra.mxu0 0.0
    %1347 = vmatprep.subr.mxu0 0.0
    %1348 = vmatpush1.msra.mxu0 0.0
    %1349 = vmatprep.subr.mxu0 0.0
    %1350 = vmatpush1.msra.mxu0 0.0
    %1351 = vmatprep.subr.mxu0 0.0
    %1352 = vmatpush1.msra.mxu0 0.0
    %1353 = vmatprep.subr.mxu0 0.0
    %1354 = vmatpush1.msra.mxu0 0.0
    %1355 = vmatprep.subr.mxu0 0.0
    %1356 = vmatpush1.msra.mxu0 0.0
    %1357 = vmatprep.subr.mxu0 0.0
    %1358 = vmatpush1.msra.mxu0 0.0
    %1359 = vmatprep.subr.mxu0 0.0
    %1360 = vmatpush1.msra.mxu0 0.0
    %1361 = vmatprep.subr.mxu0 0.0
    %1362 = vmatpush1.msra.mxu0 0.0
    %1363 = vmatprep.subr.mxu0 0.0
    %1364 = vmatpush1.msra.mxu0 0.0
    %1365 = vmatprep.mubr.f32.mxu0 0.0
    %1366 = vmatmul.mubr.f32.gmra.mrb[0].mxu0 %v829
    %v1367 = vpop.f32.mrb[0].mxu0
    %v1368 = vadd.f32 0.0, %v1367
    %v1369 = vpop.f32.mrb[0].mxu0
    %1370 = vdwg.mxu0
    %1371 = vrot.lane.b32.xlu0 %v927, 96
    %v1372 = vpop.permute.xlu0 %1371
    %v1373 = vsel %vm204, %v1372, 0
    %1375 = vmatprep.subr.mxu0 0.0
    %1376 = vmatpush1.msra.mxu0 %v928
    %1377 = vmatprep.subr.mxu0 0.0
    %1378 = vmatpush1.msra.mxu0 %v929
    %1379 = vmatprep.subr.mxu0 0.0
    %1380 = vmatpush1.msra.mxu0 %v930
    %1381 = vmatprep.subr.mxu0 0.0
    %1382 = vmatpush1.msra.mxu0 %v931
    %1383 = vmatprep.subr.mxu0 0.0
    %1384 = vmatpush1.msra.mxu0 0.0
    %1385 = vmatprep.subr.mxu0 0.0
    %1386 = vmatpush1.msra.mxu0 0.0
    %1387 = vmatprep.subr.mxu0 0.0
    %1388 = vmatpush1.msra.mxu0 0.0
    %1389 = vmatprep.subr.mxu0 0.0
    %1390 = vmatpush1.msra.mxu0 0.0
    %1391 = vmatprep.subr.mxu0 0.0
    %1392 = vmatpush1.msra.mxu0 0.0
    %1393 = vmatprep.subr.mxu0 0.0
    %1394 = vmatpush1.msra.mxu0 0.0
    %1395 = vmatprep.subr.mxu0 0.0
    %1396 = vmatpush1.msra.mxu0 0.0
    %1397 = vmatprep.subr.mxu0 0.0
    %1398 = vmatpush1.msra.mxu0 0.0
    %1399 = vmatprep.subr.mxu0 0.0
    %1400 = vmatpush1.msra.mxu0 0.0
    %1401 = vmatprep.subr.mxu0 0.0
    %1402 = vmatpush1.msra.mxu0 0.0
    %1403 = vmatprep.subr.mxu0 0.0
    %1404 = vmatpush1.msra.mxu0 0.0
    %1405 = vmatprep.subr.mxu0 0.0
    %1406 = vmatpush1.msra.mxu0 0.0
    %1407 = vmatprep.subr.mxu0 0.0
    %1408 = vmatpush1.msra.mxu0 0.0
    %1409 = vmatprep.subr.mxu0 0.0
    %1410 = vmatpush1.msra.mxu0 0.0
    %1411 = vmatprep.subr.mxu0 0.0
    %1412 = vmatpush1.msra.mxu0 0.0
    %1413 = vmatprep.subr.mxu0 0.0
    %1414 = vmatpush1.msra.mxu0 0.0
    %1415 = vmatprep.subr.mxu0 0.0
    %1416 = vmatpush1.msra.mxu0 0.0
    %1417 = vmatprep.subr.mxu0 0.0
    %1418 = vmatpush1.msra.mxu0 0.0
    %1419 = vmatprep.subr.mxu0 0.0
    %1420 = vmatpush1.msra.mxu0 0.0
    %1421 = vmatprep.subr.mxu0 0.0
    %1422 = vmatpush1.msra.mxu0 0.0
    %1423 = vmatprep.subr.mxu0 0.0
    %1424 = vmatpush1.msra.mxu0 0.0
    %1425 = vmatprep.subr.mxu0 0.0
    %1426 = vmatpush1.msra.mxu0 0.0
    %1427 = vmatprep.subr.mxu0 0.0
    %1428 = vmatpush1.msra.mxu0 0.0
    %1429 = vmatprep.subr.mxu0 0.0
    %1430 = vmatpush1.msra.mxu0 0.0
    %1431 = vmatprep.subr.mxu0 0.0
    %1432 = vmatpush1.msra.mxu0 0.0
    %1433 = vmatprep.subr.mxu0 0.0
    %1434 = vmatpush1.msra.mxu0 0.0
    %1435 = vmatprep.subr.mxu0 0.0
    %1436 = vmatpush1.msra.mxu0 0.0
    %1437 = vmatprep.subr.mxu0 0.0
    %1438 = vmatpush1.msra.mxu0 0.0
    %1439 = vmatprep.mubr.f32.mxu0 0.0
    %1440 = vmatmul.mubr.f32.gmra.mrb[0].mxu0 %v1373
    %v1441 = vpop.f32.mrb[0].mxu0
    %v1442 = vadd.f32 0.0, %v1441
    %v1443 = vpop.f32.mrb[0].mxu0
    %1444 = vdwg.mxu0
    %1446 = vrot.lane.b32.xlu0 %v1088, 32
    %v1447 = vpop.permute.xlu0 %1446
    %1450 = vrot.lane.b32.xlu0 %v1158, 64
    %v1451 = vpop.permute.xlu0 %1450
    %1454 = vrot.lane.b32.xlu0 %v1228, 96
    %v1455 = vpop.permute.xlu0 %1454
    %1458 = vrot.lane.b32.xlu0 %v1368, 32
    %v1459 = vpop.permute.xlu0 %1458
    %1462 = vrot.lane.b32.xlu0 %v1442, 64
    %v1463 = vpop.permute.xlu0 %1462
    %v1465 = vsel %vm204, %v1018, %v1447
    %v1466 = vsel %vm945, %v1465, %v1451
    %v1467 = vsel %vm947, %v1466, %v1455
    %v1468 = vsel %vm204, %v1298, %v1459
    %v1469 = vsel %vm945, %v1468, %v1463
    %v1470 = vld [vmem:[%s10] sm:$0x3]
    %v1472 = vlaneseq
    %v1473 = vshrl.u32 %v1472, 7
    %v1474 = vsub.s32 0, %v1473
    %v1475 = vrot.slane %v1470, %v1474
    %v1476 = vlaneseq
    %v1477 = vshrl.u32 %v1476, 7
    %v1478 = vsub.s32 1, %v1477
    %v1479 = vrot.slane %v1470, %v1478
    %v1482 = vadd.f32 %v1467, %v1475
    %v1483 = vadd.f32 %v1469, %v1479
    %v1484 = vld [vmem:[%s14] sm:$0xff]
    %v1485 = vld [vmem:[%s14 + $0x8] sm:$0xff]
    %v1486 = vld [vmem:[%s14 + $0x10] sm:$0xff]
    %v1487 = vld [vmem:[%s14 + $0x18] sm:$0xff]
    %v1488 = vld [vmem:[%s14 + $0x20] sm:$0xff]
    %v1489 = vld [vmem:[%s14 + $0x28] sm:$0xff]
    %v1490 = vld [vmem:[%s15] sm:$0xff]
    %v1491 = vld [vmem:[%s15 + $0x8] sm:$0xff]
    %v1492 = vld [vmem:[%s15 + $0x10] sm:$0xff]
    %v1493 = vld [vmem:[%s15 + $0x18] sm:$0xff]
    %v1494 = vld [vmem:[%s16] sm:$0x1]
    %v1495 = vld [vmem:[%s17] sm:$0x1]
    %v1496 = vld [vmem:[%s19] sm:$0xff]
    %v1497 = vld [vmem:[%s19 + $0x8] sm:$0xff]
    %v1498 = vld [vmem:[%s19 + $0x10] sm:$0xff]
    %v1499 = vld [vmem:[%s19 + $0x18] sm:$0xff]
    %v1500 = vld [vmem:[%s20] sm:$0x1]
    %v1501 = vlaneseq
    %v1502 = vand.u32 %v1501, 127
    %1503 = vst [vmem:[#allocation6] sm:$0xf] 0.0
    %v1504 = vld [vmem:[%s2] sm:$0xf]
    %v1505 = vld [vmem:[%s9] sm:$0xff]
    %v1506 = vld [vmem:[%s9 + $0x8] sm:$0xff]
    %v1507 = vld [vmem:[%s9 + $0x10] sm:$0xff]
    %v1508 = vld [vmem:[%s9 + $0x18] sm:$0xff]
    %v1509 = vld [vmem:[%s9 + $0x20] sm:$0xff]
    %v1510 = vld [vmem:[%s9 + $0x28] sm:$0xff]
    %v1511 = vld [vmem:[%s9 + $0x30] sm:$0xff]
    %v1512 = vld [vmem:[%s9 + $0x38] sm:$0xff]
    %1513 = vmatprep.subr.mxu0 %v1506
    %1514 = vmatpush1.msra.mxu0 %v1505
    %1515 = vmatprep.subr.mxu0 %v1508
    %1516 = vmatpush1.msra.mxu0 %v1507
    %1517 = vmatprep.subr.mxu0 %v1510
    %1518 = vmatpush1.msra.mxu0 %v1509
    %1519 = vmatprep.subr.mxu0 %v1512
    %1520 = vmatpush1.msra.mxu0 %v1511
    %1521 = vmatprep.subr.mxu0 0.0
    %1522 = vmatpush1.msra.mxu0 0.0
    %1523 = vmatprep.subr.mxu0 0.0
    %1524 = vmatpush1.msra.mxu0 0.0
    %1525 = vmatprep.subr.mxu0 0.0
    %1526 = vmatpush1.msra.mxu0 0.0
    %1527 = vmatprep.subr.mxu0 0.0
    %1528 = vmatpush1.msra.mxu0 0.0
    %1529 = vmatprep.subr.mxu0 0.0
    %1530 = vmatpush1.msra.mxu0 0.0
    %1531 = vmatprep.subr.mxu0 0.0
    %1532 = vmatpush1.msra.mxu0 0.0
    %1533 = vmatprep.subr.mxu0 0.0
    %1534 = vmatpush1.msra.mxu0 0.0
    %1535 = vmatprep.subr.mxu0 0.0
    %1536 = vmatpush1.msra.mxu0 0.0
    %1537 = vmatprep.subr.mxu0 0.0
    %1538 = vmatpush1.msra.mxu0 0.0
    %1539 = vmatprep.subr.mxu0 0.0
    %1540 = vmatpush1.msra.mxu0 0.0
    %1541 = vmatprep.subr.mxu0 0.0
    %1542 = vmatpush1.msra.mxu0 0.0
    %1543 = vmatprep.subr.mxu0 0.0
    %1544 = vmatpush1.msra.mxu0 0.0
    %1545 = vmatprep.subr.mxu0 0.0
    %1546 = vmatpush1.msra.mxu0 0.0
    %1547 = vmatprep.subr.mxu0 0.0
    %1548 = vmatpush1.msra.mxu0 0.0
    %1549 = vmatprep.subr.mxu0 0.0
    %1550 = vmatpush1.msra.mxu0 0.0
    %1551 = vmatprep.subr.mxu0 0.0
    %1552 = vmatpush1.msra.mxu0 0.0
    %1553 = vmatprep.subr.mxu0 0.0
    %1554 = vmatpush1.msra.mxu0 0.0
    %1555 = vmatprep.subr.mxu0 0.0
    %1556 = vmatpush1.msra.mxu0 0.0
    %1557 = vmatprep.subr.mxu0 0.0
    %1558 = vmatpush1.msra.mxu0 0.0
    %1559 = vmatprep.subr.mxu0 0.0
    %1560 = vmatpush1.msra.mxu0 0.0
    %1561 = vmatprep.subr.mxu0 0.0
    %1562 = vmatpush1.msra.mxu0 0.0
    %1563 = vmatprep.subr.mxu0 0.0
    %1564 = vmatpush1.msra.mxu0 0.0
    %1565 = vmatprep.subr.mxu0 0.0
    %1566 = vmatpush1.msra.mxu0 0.0
    %1567 = vmatprep.subr.mxu0 0.0
    %1568 = vmatpush1.msra.mxu0 0.0
    %1569 = vmatprep.subr.mxu0 0.0
    %1570 = vmatpush1.msra.mxu0 0.0
    %1571 = vmatprep.subr.mxu0 0.0
    %1572 = vmatpush1.msra.mxu0 0.0
    %1573 = vmatprep.subr.mxu0 0.0
    %1574 = vmatpush1.msra.mxu0 0.0
    %1575 = vmatprep.subr.mxu0 0.0
    %1576 = vmatpush1.msra.mxu0 0.0
    %1577 = vmatprep.mubr.f32.mxu0 0.0
    %1578 = vmatmul.mubr.f32.gmra.mrb[0].mxu0 %v1373
    %v1579 = vpop.f32.mrb[0].mxu0
    %v1580 = vadd.f32 0.0, %v1579
    %v1581 = vpop.f32.mrb[0].mxu0
    %v1582 = vadd.f32 0.0, %v1581
    %1583 = vdwg.mxu0
    %v1584 = vadd.f32 %v1482, %v1580
    %v1585 = vadd.f32 %v1483, %v1582
    %v1586 = vtanh.pop %v1584
    %v1587 = vtanh.pop %v1585
    %v1588 = vld [vmem:[%s11] sm:$0xff]
    %v1589 = vld [vmem:[%s11 + $0x8] sm:$0xff]
    %v1590 = vld [vmem:[%s11 + $0x10] sm:$0xff]
    %v1591 = vld [vmem:[%s11 + $0x18] sm:$0xff]
    %v1592 = vld [vmem:[%s11 + $0x20] sm:$0xff]
    %v1593 = vld [vmem:[%s11 + $0x28] sm:$0xff]
    %v1594 = vld [vmem:[%s11 + $0x30] sm:$0xff]
    %v1595 = vld [vmem:[%s11 + $0x38] sm:$0xff]
    %v1596 = vld [vmem:[%s11 + $0x40] sm:$0xff]
    %v1597 = vld [vmem:[%s11 + $0x48] sm:$0xff]
    %v1598 = vld [vmem:[%s11 + $0x50] sm:$0xff]
    %v1599 = vld [vmem:[%s11 + $0x58] sm:$0xff]
    %v1600 = vld [vmem:[%s11 + $0x60] sm:$0xff]
    %v1601 = vld [vmem:[%s11 + $0x68] sm:$0xff]
    %v1602 = vld [vmem:[%s11 + $0x70] sm:$0xff]
    %v1603 = vld [vmem:[%s11 + $0x78] sm:$0xff]
    %v1604 = vld [vmem:[%s11 + $0x80] sm:$0xff]
    %v1605 = vld [vmem:[%s11 + $0x88] sm:$0xff]
    %v1606 = vld [vmem:[%s11 + $0x90] sm:$0xff]
    %v1607 = vld [vmem:[%s11 + $0x98] sm:$0xff]
    %v1608 = vld [vmem:[%s11 + $0xa0] sm:$0xff]
    %v1609 = vld [vmem:[%s11 + $0xa8] sm:$0xff]
    %v1610 = vld [vmem:[%s11 + $0xb0] sm:$0xff]
    %v1611 = vld [vmem:[%s11 + $0xb8] sm:$0xff]
    %v1612 = vld [vmem:[%s11 + $0xc0] sm:$0xff]
    %v1613 = vld [vmem:[%s11 + $0xc8] sm:$0xff]
    %v1614 = vld [vmem:[%s11 + $0xd0] sm:$0xff]
    %v1615 = vld [vmem:[%s11 + $0xd8] sm:$0xff]
    %v1617 = vsel %vm947, %v1587, 0
    %1619 = vmatprep.subr.mxu0 0.0
    %1620 = vmatpush1.msra.mxu0 %v1588
    %1621 = vmatprep.subr.mxu0 0.0
    %1622 = vmatpush1.msra.mxu0 %v1589
    %1623 = vmatprep.subr.mxu0 0.0
    %1624 = vmatpush1.msra.mxu0 %v1590
    %1625 = vmatprep.subr.mxu0 0.0
    %1626 = vmatpush1.msra.mxu0 %v1591
    %1627 = vmatprep.subr.mxu0 0.0
    %1628 = vmatpush1.msra.mxu0 %v1592
    %1629 = vmatprep.subr.mxu0 0.0
    %1630 = vmatpush1.msra.mxu0 %v1593
    %1631 = vmatprep.subr.mxu0 0.0
    %1632 = vmatpush1.msra.mxu0 %v1594
    %1633 = vmatprep.subr.mxu0 0.0
    %1634 = vmatpush1.msra.mxu0 %v1595
    %1635 = vmatprep.subr.mxu0 0.0
    %1636 = vmatpush1.msra.mxu0 %v1596
    %1637 = vmatprep.subr.mxu0 0.0
    %1638 = vmatpush1.msra.mxu0 %v1597
    %1639 = vmatprep.subr.mxu0 0.0
    %1640 = vmatpush1.msra.mxu0 %v1598
    %1641 = vmatprep.subr.mxu0 0.0
    %1642 = vmatpush1.msra.mxu0 %v1599
    %1643 = vmatprep.subr.mxu0 0.0
    %1644 = vmatpush1.msra.mxu0 %v1600
    %1645 = vmatprep.subr.mxu0 0.0
    %1646 = vmatpush1.msra.mxu0 %v1601
    %1647 = vmatprep.subr.mxu0 0.0
    %1648 = vmatpush1.msra.mxu0 %v1602
    %1649 = vmatprep.subr.mxu0 0.0
    %1650 = vmatpush1.msra.mxu0 %v1603
    %1651 = vmatprep.subr.mxu0 0.0
    %1652 = vmatpush1.msra.mxu0 %v1604
    %1653 = vmatprep.subr.mxu0 0.0
    %1654 = vmatpush1.msra.mxu0 %v1605
    %1655 = vmatprep.subr.mxu0 0.0
    %1656 = vmatpush1.msra.mxu0 %v1606
    %1657 = vmatprep.subr.mxu0 0.0
    %1658 = vmatpush1.msra.mxu0 %v1607
    %1659 = vmatprep.subr.mxu0 0.0
    %1660 = vmatpush1.msra.mxu0 %v1608
    %1661 = vmatprep.subr.mxu0 0.0
    %1662 = vmatpush1.msra.mxu0 %v1609
    %1663 = vmatprep.subr.mxu0 0.0
    %1664 = vmatpush1.msra.mxu0 %v1610
    %1665 = vmatprep.subr.mxu0 0.0
    %1666 = vmatpush1.msra.mxu0 %v1611
    %1667 = vmatprep.subr.mxu0 0.0
    %1668 = vmatpush1.msra.mxu0 %v1612
    %1669 = vmatprep.subr.mxu0 0.0
    %1670 = vmatpush1.msra.mxu0 %v1613
    %1671 = vmatprep.subr.mxu0 0.0
    %1672 = vmatpush1.msra.mxu0 %v1614
    %1673 = vmatprep.subr.mxu0 0.0
    %1674 = vmatpush1.msra.mxu0 %v1615
    %1675 = vmatprep.subr.mxu0 0.0
    %1676 = vmatpush1.msra.mxu0 0.0
    %1677 = vmatprep.subr.mxu0 0.0
    %1678 = vmatpush1.msra.mxu0 0.0
    %1679 = vmatprep.subr.mxu0 0.0
    %1680 = vmatpush1.msra.mxu0 0.0
    %1681 = vmatprep.subr.mxu0 0.0
    %1682 = vmatpush1.msra.mxu0 0.0
    %1683 = vmatprep.mubr.f32.mxu0 %v1617
    %1684 = vmatmul.mubr.f32.gmra.mrb[0].mxu0 %v1586
    %v1685 = vpop.f32.mrb[0].mxu0
    %v1686 = vadd.f32 0.0, %v1685
    %v1687 = vpop.f32.mrb[0].mxu0
    %1688 = vdwg.mxu0
    %vm1689 = vcmask 52224
    %v1690 = vsel %vm1689, %v1686, -inf
    %1691 = vmax.xlane.f32.xlu0 %v1690
    %v1692 = vpop.xlane.xlu0 %1691
    %v1693 = vsub.f32 %v1686, %v1692
    %v1694 = vmul.f32 %v1693, 1.442695
    %v1695 = vpow.pop %v1694
    %v1696 = vsel %vm1689, %v1695, 0.0
    %1697 = vadd.xlane.f32.xlu0 %v1696
    %v1698 = vpop.xlane.xlu0 %1697
    %v1699 = vrcp.pop %v1698
    %v1700 = vmul.f32 %v1695, %v1699
    %v1701 = vld [vmem:[%s12] sm:$0x7f]
    %v1702 = vld [vmem:[%s12 + $0x8] sm:$0x7f]
    %vm1703 = vcmask 56320
    %v1705 = vsel %vm1703, %v1700, 0
    %vm1707 = vcmask 1046528
    %v1709 = vsel %vm1707, %v1701, 0
    %v1712 = vsel %vm1707, %v1702, 0
    %1714 = vmatprep.subr.mxu0 %v1712
    %1715 = vmatpush1.msra.mxu0 %v1709
    %1716 = vmatprep.subr.mxu0 0.0
    %1717 = vmatpush1.msra.mxu0 0.0
    %1718 = vmatprep.subr.mxu0 0.0
    %1719 = vmatpush1.msra.mxu0 0.0
    %1720 = vmatprep.subr.mxu0 0.0
    %1721 = vmatpush1.msra.mxu0 0.0
    %1722 = vmatprep.subr.mxu0 0.0
    %1723 = vmatpush1.msra.mxu0 0.0
    %1724 = vmatprep.subr.mxu0 0.0
    %1725 = vmatpush1.msra.mxu0 0.0
    %1726 = vmatprep.subr.mxu0 0.0
    %1727 = vmatpush1.msra.mxu0 0.0
    %1728 = vmatprep.subr.mxu0 0.0
    %1729 = vmatpush1.msra.mxu0 0.0
    %1730 = vmatprep.subr.mxu0 0.0
    %1731 = vmatpush1.msra.mxu0 0.0
    %1732 = vmatprep.subr.mxu0 0.0
    %1733 = vmatpush1.msra.mxu0 0.0
    %1734 = vmatprep.subr.mxu0 0.0
    %1735 = vmatpush1.msra.mxu0 0.0
    %1736 = vmatprep.subr.mxu0 0.0
    %1737 = vmatpush1.msra.mxu0 0.0
    %1738 = vmatprep.subr.mxu0 0.0
    %1739 = vmatpush1.msra.mxu0 0.0
    %1740 = vmatprep.subr.mxu0 0.0
    %1741 = vmatpush1.msra.mxu0 0.0
    %1742 = vmatprep.subr.mxu0 0.0
    %1743 = vmatpush1.msra.mxu0 0.0
    %1744 = vmatprep.subr.mxu0 0.0
    %1745 = vmatpush1.msra.mxu0 0.0
    %1746 = vmatprep.subr.mxu0 0.0
    %1747 = vmatpush1.msra.mxu0 0.0
    %1748 = vmatprep.subr.mxu0 0.0
    %1749 = vmatpush1.msra.mxu0 0.0
    %1750 = vmatprep.subr.mxu0 0.0
    %1751 = vmatpush1.msra.mxu0 0.0
    %1752 = vmatprep.subr.mxu0 0.0
    %1753 = vmatpush1.msra.mxu0 0.0
    %1754 = vmatprep.subr.mxu0 0.0
    %1755 = vmatpush1.msra.mxu0 0.0
    %1756 = vmatprep.subr.mxu0 0.0
    %1757 = vmatpush1.msra.mxu0 0.0
    %1758 = vmatprep.subr.mxu0 0.0
    %1759 = vmatpush1.msra.mxu0 0.0
    %1760 = vmatprep.subr.mxu0 0.0
    %1761 = vmatpush1.msra.mxu0 0.0
    %1762 = vmatprep.subr.mxu0 0.0
    %1763 = vmatpush1.msra.mxu0 0.0
    %1764 = vmatprep.subr.mxu0 0.0
    %1765 = vmatpush1.msra.mxu0 0.0
    %1766 = vmatprep.subr.mxu0 0.0
    %1767 = vmatpush1.msra.mxu0 0.0
    %1768 = vmatprep.subr.mxu0 0.0
    %1769 = vmatpush1.msra.mxu0 0.0
    %1770 = vmatprep.subr.mxu0 0.0
    %1771 = vmatpush1.msra.mxu0 0.0
    %1772 = vmatprep.subr.mxu0 0.0
    %1773 = vmatpush1.msra.mxu0 0.0
    %1774 = vmatprep.subr.mxu0 0.0
    %1775 = vmatpush1.msra.mxu0 0.0
    %1776 = vmatprep.subr.mxu0 0.0
    %1777 = vmatpush1.msra.mxu0 0.0
    %1778 = vmatprep.mubr.f32.mxu0 0.0
    %1779 = vmatmul.mubr.f32.gmra.mrb[0].mxu0 %v1705
    %v1780 = vpop.f32.mrb[0].mxu0
    %v1781 = vadd.f32 0.0, %v1780
    %v1782 = vpop.f32.mrb[0].mxu0
    %v1783 = vadd.f32 0.0, %v1782
    %1784 = vdwg.mxu0
    %v1785 = vmul.f32 %v1781, %v948
    %v1786 = vmul.f32 %v1783, %v950
    %v1787 = vld [vmem:[%s13] sm:$0xff]
    %v1788 = vld [vmem:[%s13 + $0x8] sm:$0xff]
    %v1789 = vld [vmem:[%s13 + $0x10] sm:$0xff]
    %v1790 = vld [vmem:[%s13 + $0x18] sm:$0xff]
    %v1791 = vld [vmem:[%s13 + $0x20] sm:$0xff]
    %v1792 = vld [vmem:[%s13 + $0x28] sm:$0xff]
    %v1793 = vld [vmem:[%s13 + $0x30] sm:$0xff]
    %v1794 = vld [vmem:[%s13 + $0x38] sm:$0xff]
    %v1795 = vld [vmem:[%s13 + $0x40] sm:$0xff]
    %v1796 = vld [vmem:[%s13 + $0x48] sm:$0xff]
    %v1797 = vld [vmem:[%s13 + $0x50] sm:$0xff]
    %v1798 = vld [vmem:[%s13 + $0x58] sm:$0xff]
    %v1799 = vld [vmem:[%s13 + $0x60] sm:$0xff]
    %v1800 = vld [vmem:[%s13 + $0x68] sm:$0xff]
    %v1801 = vld [vmem:[%s13 + $0x70] sm:$0xff]
    %v1802 = vld [vmem:[%s13 + $0x78] sm:$0xff]
    %v1803 = vld [vmem:[%s13 + $0x80] sm:$0xff]
    %v1804 = vld [vmem:[%s13 + $0x88] sm:$0xff]
    %v1805 = vld [vmem:[%s13 + $0x90] sm:$0xff]
    %v1806 = vld [vmem:[%s13 + $0x98] sm:$0xff]
    %v1807 = vld [vmem:[%s13 + $0xa0] sm:$0xff]
    %v1808 = vld [vmem:[%s13 + $0xa8] sm:$0xff]
    %v1809 = vld [vmem:[%s13 + $0xb0] sm:$0xff]
    %v1810 = vld [vmem:[%s13 + $0xb8] sm:$0xff]
    %v1811 = vld [vmem:[%s13 + $0xc0] sm:$0xff]
    %v1812 = vld [vmem:[%s13 + $0xc8] sm:$0xff]
    %v1813 = vld [vmem:[%s13 + $0xd0] sm:$0xff]
    %v1814 = vld [vmem:[%s13 + $0xd8] sm:$0xff]
    %v1816 = vsel %vm947, %v1786, 0
    %1818 = vmatprep.subr.mxu0 0.0
    %1819 = vmatpush1.msra.mxu0 %v1787
    %1820 = vmatprep.subr.mxu0 0.0
    %1821 = vmatpush1.msra.mxu0 %v1788
    %1822 = vmatprep.subr.mxu0 0.0
    %1823 = vmatpush1.msra.mxu0 %v1789
    %1824 = vmatprep.subr.mxu0 0.0
    %1825 = vmatpush1.msra.mxu0 %v1790
    %1826 = vmatprep.subr.mxu0 0.0
    %1827 = vmatpush1.msra.mxu0 %v1791
    %1828 = vmatprep.subr.mxu0 0.0
    %1829 = vmatpush1.msra.mxu0 %v1792
    %1830 = vmatprep.subr.mxu0 0.0
    %1831 = vmatpush1.msra.mxu0 %v1793
    %1832 = vmatprep.subr.mxu0 0.0
    %1833 = vmatpush1.msra.mxu0 %v1794
    %1834 = vmatprep.subr.mxu0 0.0
    %1835 = vmatpush1.msra.mxu0 %v1795
    %1836 = vmatprep.subr.mxu0 0.0
    %1837 = vmatpush1.msra.mxu0 %v1796
    %1838 = vmatprep.subr.mxu0 0.0
    %1839 = vmatpush1.msra.mxu0 %v1797
    %1840 = vmatprep.subr.mxu0 0.0
    %1841 = vmatpush1.msra.mxu0 %v1798
    %1842 = vmatprep.subr.mxu0 0.0
    %1843 = vmatpush1.msra.mxu0 %v1799
    %1844 = vmatprep.subr.mxu0 0.0
    %1845 = vmatpush1.msra.mxu0 %v1800
    %1846 = vmatprep.subr.mxu0 0.0
    %1847 = vmatpush1.msra.mxu0 %v1801
    %1848 = vmatprep.subr.mxu0 0.0
    %1849 = vmatpush1.msra.mxu0 %v1802
    %1850 = vmatprep.subr.mxu0 0.0
    %1851 = vmatpush1.msra.mxu0 %v1803
    %1852 = vmatprep.subr.mxu0 0.0
    %1853 = vmatpush1.msra.mxu0 %v1804
    %1854 = vmatprep.subr.mxu0 0.0
    %1855 = vmatpush1.msra.mxu0 %v1805
    %1856 = vmatprep.subr.mxu0 0.0
    %1857 = vmatpush1.msra.mxu0 %v1806
    %1858 = vmatprep.subr.mxu0 0.0
    %1859 = vmatpush1.msra.mxu0 %v1807
    %1860 = vmatprep.subr.mxu0 0.0
    %1861 = vmatpush1.msra.mxu0 %v1808
    %1862 = vmatprep.subr.mxu0 0.0
    %1863 = vmatpush1.msra.mxu0 %v1809
    %1864 = vmatprep.subr.mxu0 0.0
    %1865 = vmatpush1.msra.mxu0 %v1810
    %1866 = vmatprep.subr.mxu0 0.0
    %1867 = vmatpush1.msra.mxu0 %v1811
    %1868 = vmatprep.subr.mxu0 0.0
    %1869 = vmatpush1.msra.mxu0 %v1812
    %1870 = vmatprep.subr.mxu0 0.0
    %1871 = vmatpush1.msra.mxu0 %v1813
    %1872 = vmatprep.subr.mxu0 0.0
    %1873 = vmatpush1.msra.mxu0 %v1814
    %1874 = vmatprep.subr.mxu0 0.0
    %1875 = vmatpush1.msra.mxu0 0.0
    %1876 = vmatprep.subr.mxu0 0.0
    %1877 = vmatpush1.msra.mxu0 0.0
    %1878 = vmatprep.subr.mxu0 0.0
    %1879 = vmatpush1.msra.mxu0 0.0
    %1880 = vmatprep.subr.mxu0 0.0
    %1881 = vmatpush1.msra.mxu0 0.0
    %1882 = vmatprep.mubr.f32.mxu0 %v1816
    %1883 = vmatmul.mubr.f32.gmra.mrb[0].mxu0 %v1785
    %v1884 = vpop.f32.mrb[0].mxu0
    %v1885 = vadd.f32 0.0, %v1884
    %v1886 = vpop.f32.mrb[0].mxu0
    %1887 = vdwg.mxu0
    %1889 = vrot.lane.b32.xlu0 %v1885, 16
    %v1890 = vpop.permute.xlu0 %1889
    %v1892 = vsel %vm100, %v1504, %v1890
    %v1894 = vlaneseq
    %v1895 = vshrl.u32 %v1894, 7
    %v1896 = vsub.s32 0, %v1895
    %v1897 = vrot.slane %v1494, %v1896
    %vm1899 = vcmask 392192
    %v1901 = vsel %vm1899, %v1892, 0
    %1903 = vmatprep.subr.mxu0 0.0
    %1904 = vmatpush1.msra.mxu0 %v1484
    %1905 = vmatprep.subr.mxu0 0.0
    %1906 = vmatpush1.msra.mxu0 %v1485
    %1907 = vmatprep.subr.mxu0 0.0
    %1908 = vmatpush1.msra.mxu0 %v1486
    %1909 = vmatprep.subr.mxu0 0.0
    %1910 = vmatpush1.msra.mxu0 %v1487
    %1911 = vmatprep.subr.mxu0 0.0
    %1912 = vmatpush1.msra.mxu0 %v1488
    %1913 = vmatprep.subr.mxu0 0.0
    %1914 = vmatpush1.msra.mxu0 %v1489
    %1915 = vmatprep.subr.mxu0 0.0
    %1916 = vmatpush1.msra.mxu0 0.0
    %1917 = vmatprep.subr.mxu0 0.0
    %1918 = vmatpush1.msra.mxu0 0.0
    %1919 = vmatprep.subr.mxu0 0.0
    %1920 = vmatpush1.msra.mxu0 0.0
    %1921 = vmatprep.subr.mxu0 0.0
    %1922 = vmatpush1.msra.mxu0 0.0
    %1923 = vmatprep.subr.mxu0 0.0
    %1924 = vmatpush1.msra.mxu0 0.0
    %1925 = vmatprep.subr.mxu0 0.0
    %1926 = vmatpush1.msra.mxu0 0.0
    %1927 = vmatprep.subr.mxu0 0.0
    %1928 = vmatpush1.msra.mxu0 0.0
    %1929 = vmatprep.subr.mxu0 0.0
    %1930 = vmatpush1.msra.mxu0 0.0
    %1931 = vmatprep.subr.mxu0 0.0
    %1932 = vmatpush1.msra.mxu0 0.0
    %1933 = vmatprep.subr.mxu0 0.0
    %1934 = vmatpush1.msra.mxu0 0.0
    %1935 = vmatprep.subr.mxu0 0.0
    %1936 = vmatpush1.msra.mxu0 0.0
    %1937 = vmatprep.subr.mxu0 0.0
    %1938 = vmatpush1.msra.mxu0 0.0
    %1939 = vmatprep.subr.mxu0 0.0
    %1940 = vmatpush1.msra.mxu0 0.0
    %1941 = vmatprep.subr.mxu0 0.0
    %1942 = vmatpush1.msra.mxu0 0.0
    %1943 = vmatprep.subr.mxu0 0.0
    %1944 = vmatpush1.msra.mxu0 0.0
    %1945 = vmatprep.subr.mxu0 0.0
    %1946 = vmatpush1.msra.mxu0 0.0
    %1947 = vmatprep.subr.mxu0 0.0
    %1948 = vmatpush1.msra.mxu0 0.0
    %1949 = vmatprep.subr.mxu0 0.0
    %1950 = vmatpush1.msra.mxu0 0.0
    %1951 = vmatprep.subr.mxu0 0.0
    %1952 = vmatpush1.msra.mxu0 0.0
    %1953 = vmatprep.subr.mxu0 0.0
    %1954 = vmatpush1.msra.mxu0 0.0
    %1955 = vmatprep.subr.mxu0 0.0
    %1956 = vmatpush1.msra.mxu0 0.0
    %1957 = vmatprep.subr.mxu0 0.0
    %1958 = vmatpush1.msra.mxu0 0.0
    %1959 = vmatprep.subr.mxu0 0.0
    %1960 = vmatpush1.msra.mxu0 0.0
    %1961 = vmatprep.subr.mxu0 0.0
    %1962 = vmatpush1.msra.mxu0 0.0
    %1963 = vmatprep.subr.mxu0 0.0
    %1964 = vmatpush1.msra.mxu0 0.0
    %1965 = vmatprep.subr.mxu0 0.0
    %1966 = vmatpush1.msra.mxu0 0.0
    %1967 = vmatprep.mubr.f32.mxu0 0.0
    %1968 = vmatmul.mubr.f32.gmra.mrb[0].mxu0 %v1901
    %v1969 = vpop.f32.mrb[0].mxu0
    %v1970 = vadd.f32 %v1897, %v1969
    %v1971 = vpop.f32.mrb[0].mxu0
    %1972 = vdwg.mxu0
    %v1974 = vlaneseq
    %v1975 = vshrl.u32 %v1974, 7
    %v1976 = vsub.s32 0, %v1975
    %v1977 = vrot.slane %v1495, %v1976
    %1979 = vmatprep.subr.mxu0 0.0
    %1980 = vmatpush1.msra.mxu0 %v1490
    %1981 = vmatprep.subr.mxu0 0.0
    %1982 = vmatpush1.msra.mxu0 %v1491
    %1983 = vmatprep.subr.mxu0 0.0
    %1984 = vmatpush1.msra.mxu0 %v1492
    %1985 = vmatprep.subr.mxu0 0.0
    %1986 = vmatpush1.msra.mxu0 %v1493
    %1987 = vmatprep.subr.mxu0 0.0
    %1988 = vmatpush1.msra.mxu0 0.0
    %1989 = vmatprep.subr.mxu0 0.0
    %1990 = vmatpush1.msra.mxu0 0.0
    %1991 = vmatprep.subr.mxu0 0.0
    %1992 = vmatpush1.msra.mxu0 0.0
    %1993 = vmatprep.subr.mxu0 0.0
    %1994 = vmatpush1.msra.mxu0 0.0
    %1995 = vmatprep.subr.mxu0 0.0
    %1996 = vmatpush1.msra.mxu0 0.0
    %1997 = vmatprep.subr.mxu0 0.0
    %1998 = vmatpush1.msra.mxu0 0.0
    %1999 = vmatprep.subr.mxu0 0.0
    %2000 = vmatpush1.msra.mxu0 0.0
    %2001 = vmatprep.subr.mxu0 0.0
    %2002 = vmatpush1.msra.mxu0 0.0
    %2003 = vmatprep.subr.mxu0 0.0
    %2004 = vmatpush1.msra.mxu0 0.0
    %2005 = vmatprep.subr.mxu0 0.0
    %2006 = vmatpush1.msra.mxu0 0.0
    %2007 = vmatprep.subr.mxu0 0.0
    %2008 = vmatpush1.msra.mxu0 0.0
    %2009 = vmatprep.subr.mxu0 0.0
    %2010 = vmatpush1.msra.mxu0 0.0
    %2011 = vmatprep.subr.mxu0 0.0
    %2012 = vmatpush1.msra.mxu0 0.0
    %2013 = vmatprep.subr.mxu0 0.0
    %2014 = vmatpush1.msra.mxu0 0.0
    %2015 = vmatprep.subr.mxu0 0.0
    %2016 = vmatpush1.msra.mxu0 0.0
    %2017 = vmatprep.subr.mxu0 0.0
    %2018 = vmatpush1.msra.mxu0 0.0
    %2019 = vmatprep.subr.mxu0 0.0
    %2020 = vmatpush1.msra.mxu0 0.0
    %2021 = vmatprep.subr.mxu0 0.0
    %2022 = vmatpush1.msra.mxu0 0.0
    %2023 = vmatprep.subr.mxu0 0.0
    %2024 = vmatpush1.msra.mxu0 0.0
    %2025 = vmatprep.subr.mxu0 0.0
    %2026 = vmatpush1.msra.mxu0 0.0
    %2027 = vmatprep.subr.mxu0 0.0
    %2028 = vmatpush1.msra.mxu0 0.0
    %2029 = vmatprep.subr.mxu0 0.0
    %2030 = vmatpush1.msra.mxu0 0.0
    %2031 = vmatprep.subr.mxu0 0.0
    %2032 = vmatpush1.msra.mxu0 0.0
    %2033 = vmatprep.subr.mxu0 0.0
    %2034 = vmatpush1.msra.mxu0 0.0
    %2035 = vmatprep.subr.mxu0 0.0
    %2036 = vmatpush1.msra.mxu0 0.0
    %2037 = vmatprep.subr.mxu0 0.0
    %2038 = vmatpush1.msra.mxu0 0.0
    %2039 = vmatprep.subr.mxu0 0.0
    %2040 = vmatpush1.msra.mxu0 0.0
    %2041 = vmatprep.subr.mxu0 0.0
    %2042 = vmatpush1.msra.mxu0 0.0
    %2043 = vmatprep.mubr.f32.mxu0 0.0
    %2044 = vmatmul.mubr.f32.gmra.mrb[0].mxu0 %v1373
    %v2045 = vpop.f32.mrb[0].mxu0
    %v2046 = vadd.f32 %v1977, %v2045
    %v2047 = vpop.f32.mrb[0].mxu0
    %2048 = vdwg.mxu0
    %v2049 = vadd.f32 %v1970, %v2046
    %v2050 = vxor.u32 %v2049, 2147483648
    %v2051 = vmul.f32 %v2050, 1.442695
    %v2052 = vpow.pop %v2051
    %v2053 = vadd.f32 %v2052, 1.0
    %v2054 = vrcp.pop %v2053
    %v2055 = vmul.f32 1.0, %v2054
    %2057 = vrot.lane.b32.xlu0 %v2046, 64
    %v2058 = vpop.permute.xlu0 %2057
    %v2060 = vmul.f32 %v2055, %v2058
    %2062 = vrot.lane.b32.xlu0 %v2060, 64
    %v2063 = vpop.permute.xlu0 %2062
    %v2065 = vadd.f32 %v1970, %v2063
    %v2066 = vtanh.pop %v2065
    %v2067 = vsub.f32 1.0, %v2055
    %2069 = vrot.lane.b32.xlu0 %v2066, 96
    %v2070 = vpop.permute.xlu0 %2069
    %v2072 = vmul.f32 %v2067, %v2070
    %v2073 = vmul.f32 %v2055, %v927
    %v2074 = vadd.f32 %v2072, %v2073
    %v2075 = vld [vmem:[%s18] sm:$0xff]
    %v2076 = vld [vmem:[%s18 + $0x8] sm:$0xff]
    %v2077 = vld [vmem:[%s18 + $0x10] sm:$0xff]
    %v2078 = vld [vmem:[%s18 + $0x18] sm:$0xff]
    %v2079 = vld [vmem:[%s18 + $0x20] sm:$0xff]
    %v2080 = vld [vmem:[%s18 + $0x28] sm:$0xff]
    %2082 = vrot.lane.b32.xlu0 %v2074, 96
    %v2083 = vpop.permute.xlu0 %2082
    %v2084 = vsel %vm204, %v2083, 0
    %2086 = vmatprep.subr.mxu0 0.0
    %2087 = vmatpush1.msra.mxu0 %v1496
    %2088 = vmatprep.subr.mxu0 0.0
    %2089 = vmatpush1.msra.mxu0 %v1497
    %2090 = vmatprep.subr.mxu0 0.0
    %2091 = vmatpush1.msra.mxu0 %v1498
    %2092 = vmatprep.subr.mxu0 0.0
    %2093 = vmatpush1.msra.mxu0 %v1499
    %2094 = vmatprep.subr.mxu0 0.0
    %2095 = vmatpush1.msra.mxu0 0.0
    %2096 = vmatprep.subr.mxu0 0.0
    %2097 = vmatpush1.msra.mxu0 0.0
    %2098 = vmatprep.subr.mxu0 0.0
    %2099 = vmatpush1.msra.mxu0 0.0
    %2100 = vmatprep.subr.mxu0 0.0
    %2101 = vmatpush1.msra.mxu0 0.0
    %2102 = vmatprep.subr.mxu0 0.0
    %2103 = vmatpush1.msra.mxu0 0.0
    %2104 = vmatprep.subr.mxu0 0.0
    %2105 = vmatpush1.msra.mxu0 0.0
    %2106 = vmatprep.subr.mxu0 0.0
    %2107 = vmatpush1.msra.mxu0 0.0
    %2108 = vmatprep.subr.mxu0 0.0
    %2109 = vmatpush1.msra.mxu0 0.0
    %2110 = vmatprep.subr.mxu0 0.0
    %2111 = vmatpush1.msra.mxu0 0.0
    %2112 = vmatprep.subr.mxu0 0.0
    %2113 = vmatpush1.msra.mxu0 0.0
    %2114 = vmatprep.subr.mxu0 0.0
    %2115 = vmatpush1.msra.mxu0 0.0
    %2116 = vmatprep.subr.mxu0 0.0
    %2117 = vmatpush1.msra.mxu0 0.0
    %2118 = vmatprep.subr.mxu0 0.0
    %2119 = vmatpush1.msra.mxu0 0.0
    %2120 = vmatprep.subr.mxu0 0.0
    %2121 = vmatpush1.msra.mxu0 0.0
    %2122 = vmatprep.subr.mxu0 0.0
    %2123 = vmatpush1.msra.mxu0 0.0
    %2124 = vmatprep.subr.mxu0 0.0
    %2125 = vmatpush1.msra.mxu0 0.0
    %2126 = vmatprep.subr.mxu0 0.0
    %2127 = vmatpush1.msra.mxu0 0.0
    %2128 = vmatprep.subr.mxu0 0.0
    %2129 = vmatpush1.msra.mxu0 0.0
    %2130 = vmatprep.subr.mxu0 0.0
    %2131 = vmatpush1.msra.mxu0 0.0
    %2132 = vmatprep.subr.mxu0 0.0
    %2133 = vmatpush1.msra.mxu0 0.0
    %2134 = vmatprep.subr.mxu0 0.0
    %2135 = vmatpush1.msra.mxu0 0.0
    %2136 = vmatprep.subr.mxu0 0.0
    %2137 = vmatpush1.msra.mxu0 0.0
    %2138 = vmatprep.subr.mxu0 0.0
    %2139 = vmatpush1.msra.mxu0 0.0
    %2140 = vmatprep.subr.mxu0 0.0
    %2141 = vmatpush1.msra.mxu0 0.0
    %2142 = vmatprep.subr.mxu0 0.0
    %2143 = vmatpush1.msra.mxu0 0.0
    %2144 = vmatprep.subr.mxu0 0.0
    %2145 = vmatpush1.msra.mxu0 0.0
    %2146 = vmatprep.subr.mxu0 0.0
    %2147 = vmatpush1.msra.mxu0 0.0
    %2148 = vmatprep.subr.mxu0 0.0
    %2149 = vmatpush1.msra.mxu0 0.0
    %2150 = vmatprep.mubr.f32.mxu0 0.0
    %2151 = vmatmul.mubr.f32.gmra.mrb[0].mxu0 %v2084
    %v2152 = vpop.f32.mrb[0].mxu0
    %v2153 = vadd.f32 0.0, %v2152
    %v2154 = vpop.f32.mrb[0].mxu0
    %2155 = vdwg.mxu0
    %2156 = vmatprep.subr.mxu0 0.0
    %2157 = vmatpush1.msra.mxu0 %v2075
    %2158 = vmatprep.subr.mxu0 0.0
    %2159 = vmatpush1.msra.mxu0 %v2076
    %2160 = vmatprep.subr.mxu0 0.0
    %2161 = vmatpush1.msra.mxu0 %v2077
    %2162 = vmatprep.subr.mxu0 0.0
    %2163 = vmatpush1.msra.mxu0 %v2078
    %2164 = vmatprep.subr.mxu0 0.0
    %2165 = vmatpush1.msra.mxu0 %v2079
    %2166 = vmatprep.subr.mxu0 0.0
    %2167 = vmatpush1.msra.mxu0 %v2080
    %2168 = vmatprep.subr.mxu0 0.0
    %2169 = vmatpush1.msra.mxu0 0.0
    %2170 = vmatprep.subr.mxu0 0.0
    %2171 = vmatpush1.msra.mxu0 0.0
    %2172 = vmatprep.subr.mxu0 0.0
    %2173 = vmatpush1.msra.mxu0 0.0
    %2174 = vmatprep.subr.mxu0 0.0
    %2175 = vmatpush1.msra.mxu0 0.0
    %2176 = vmatprep.subr.mxu0 0.0
    %2177 = vmatpush1.msra.mxu0 0.0
    %2178 = vmatprep.subr.mxu0 0.0
    %2179 = vmatpush1.msra.mxu0 0.0
    %2180 = vmatprep.subr.mxu0 0.0
    %2181 = vmatpush1.msra.mxu0 0.0
    %2182 = vmatprep.subr.mxu0 0.0
    %2183 = vmatpush1.msra.mxu0 0.0
    %2184 = vmatprep.subr.mxu0 0.0
    %2185 = vmatpush1.msra.mxu0 0.0
    %2186 = vmatprep.subr.mxu0 0.0
    %2187 = vmatpush1.msra.mxu0 0.0
    %2188 = vmatprep.subr.mxu0 0.0
    %2189 = vmatpush1.msra.mxu0 0.0
    %2190 = vmatprep.subr.mxu0 0.0
    %2191 = vmatpush1.msra.mxu0 0.0
    %2192 = vmatprep.subr.mxu0 0.0
    %2193 = vmatpush1.msra.mxu0 0.0
    %2194 = vmatprep.subr.mxu0 0.0
    %2195 = vmatpush1.msra.mxu0 0.0
    %2196 = vmatprep.subr.mxu0 0.0
    %2197 = vmatpush1.msra.mxu0 0.0
    %2198 = vmatprep.subr.mxu0 0.0
    %2199 = vmatpush1.msra.mxu0 0.0
    %2200 = vmatprep.subr.mxu0 0.0
    %2201 = vmatpush1.msra.mxu0 0.0
    %2202 = vmatprep.subr.mxu0 0.0
    %2203 = vmatpush1.msra.mxu0 0.0
    %2204 = vmatprep.subr.mxu0 0.0
    %2205 = vmatpush1.msra.mxu0 0.0
    %2206 = vmatprep.subr.mxu0 0.0
    %2207 = vmatpush1.msra.mxu0 0.0
    %2208 = vmatprep.subr.mxu0 0.0
    %2209 = vmatpush1.msra.mxu0 0.0
    %2210 = vmatprep.subr.mxu0 0.0
    %2211 = vmatpush1.msra.mxu0 0.0
    %2212 = vmatprep.subr.mxu0 0.0
    %2213 = vmatpush1.msra.mxu0 0.0
    %2214 = vmatprep.subr.mxu0 0.0
    %2215 = vmatpush1.msra.mxu0 0.0
    %2216 = vmatprep.subr.mxu0 0.0
    %2217 = vmatpush1.msra.mxu0 0.0
    %2218 = vmatprep.subr.mxu0 0.0
    %2219 = vmatpush1.msra.mxu0 0.0
    %2220 = vmatprep.mubr.f32.mxu0 0.0
    %2221 = vmatmul.mubr.f32.gmra.mrb[0].mxu0 %v1901
    %v2222 = vpop.f32.mrb[0].mxu0
    %v2223 = vadd.f32 %v2153, %v2222
    %v2224 = vpop.f32.mrb[0].mxu0
    %2225 = vdwg.mxu0
    %v2227 = vlaneseq
    %v2228 = vshrl.u32 %v2227, 7
    %v2229 = vsub.s32 0, %v2228
    %v2230 = vrot.slane %v1500, %v2229
    %v2232 = vadd.f32 %v2223, %v2230
    %2233 = vst [vmem:[#allocation6 + $0x4] sm:$0xf] %v2232
    %s2234 = sld [smem:[#allocation3 + $0x1]]
    %p2235 = scmp.eq.s32.totalorder %s2234, 0
    // Predicated region
    $region90: #{seq2seq_forward.1} parent=1 // pred_check
      %p2236 = pneg %p2235
    $region91: #{seq2seq_forward.1} parent=1 // pred_check_branch
      %2238 = sbr.rel (%p2236) target = $region93
    $region92: #{seq2seq_forward.1} parent=1 // pred_region
      %vm2239 = vcmask 1043456
      %v2240 = vsel %vm2239, %v2232, -inf
      %2241 = vmax.xlane.f32.xlu0 %v2240
      %v2242 = vpop.xlane.xlu0 %2241
      %vm2243 = vcmp.eq.f32.partialorder %v2232, %v2242
      %v2244 = vsel %vm2243, %v1502, 128
      %v2245 = vsel %vm2239, %v2244, 2147483647
      %v2246 = vand.u32 %v2245, 65535
      %v2247 = vshra.s32 %v2245, 16
      %v2248 = vcvt.s32.f32 %v2246
      %v2249 = vcvt.s32.f32 %v2247
      %2250 = vmin.xlane.f32.xlu0 %v2249
      %v2251 = vpop.xlane.xlu0 %2250
      %vm2252 = vcmp.eq.f32.partialorder %v2249, %v2251
      %v2253 = vsel %vm2252, %v2248, inf
      %2254 = vmin.xlane.f32.xlu0 %v2253
      %v2255 = vpop.xlane.xlu0 %2254
      %v2256 = vcvt.f32.s32 %v2255
      %v2257 = vcvt.f32.s32 %v2251
      %v2258 = vshll.u32 %v2257, 16
      %v2259 = vadd.s32 %v2258, %v2256
      %vm2260 = vcmp.eq.s32.totalorder %v1502, %v2259
      %v2261 = vsel %vm2260, 1, 0
      %v2262 = vcvt.s32.f32 %v2261
      %v2263 = vld [vmem:[%s3] sm:$0xff]
      %v2264 = vld [vmem:[%s3 + $0x8] sm:$0xff]
      %v2265 = vld [vmem:[%s3 + $0x10] sm:$0xff]
      %v2266 = vld [vmem:[%s3 + $0x18] sm:$0xff]
      %v2267 = vld [vmem:[%s3 + $0x20] sm:$0xff]
      %v2268 = vld [vmem:[%s3 + $0x28] sm:$0xff]
      %v2269 = vld [vmem:[%s3 + $0x30] sm:$0xff]
      %v2270 = vld [vmem:[%s3 + $0x38] sm:$0xff]
      %v2271 = vld [vmem:[%s3 + $0x40] sm:$0xff]
      %v2272 = vld [vmem:[%s3 + $0x48] sm:$0xff]
      %v2273 = vld [vmem:[%s3 + $0x50] sm:$0xff]
      %v2274 = vld [vmem:[%s3 + $0x58] sm:$0xff]
      %v2275 = vld [vmem:[%s3 + $0x60] sm:$0xff]
      %v2276 = vld [vmem:[%s3 + $0x68] sm:$0xff]
      %v2277 = vld [vmem:[%s3 + $0x70] sm:$0xff]
      %v2278 = vld [vmem:[%s3 + $0x78] sm:$0xff]
      %2279 = vmatprep.subr.mxu0 0.0
      %2280 = vmatpush1.msra.mxu0 %v2263
      %2281 = vmatprep.subr.mxu0 0.0
      %2282 = vmatpush1.msra.mxu0 %v2264
      %2283 = vmatprep.subr.mxu0 0.0
      %2284 = vmatpush1.msra.mxu0 %v2265
      %2285 = vmatprep.subr.mxu0 0.0
      %2286 = vmatpush1.msra.mxu0 %v2266
      %2287 = vmatprep.subr.mxu0 0.0
      %2288 = vmatpush1.msra.mxu0 %v2267
      %2289 = vmatprep.subr.mxu0 0.0
      %2290 = vmatpush1.msra.mxu0 %v2268
      %2291 = vmatprep.subr.mxu0 0.0
      %2292 = vmatpush1.msra.mxu0 %v2269
      %2293 = vmatprep.subr.mxu0 0.0
      %2294 = vmatpush1.msra.mxu0 %v2270
      %2295 = vmatprep.subr.mxu0 0.0
      %2296 = vmatpush1.msra.mxu0 %v2271
      %2297 = vmatprep.subr.mxu0 0.0
      %2298 = vmatpush1.msra.mxu0 %v2272
      %2299 = vmatprep.subr.mxu0 0.0
      %2300 = vmatpush1.msra.mxu0 %v2273
      %2301 = vmatprep.subr.mxu0 0.0
      %2302 = vmatpush1.msra.mxu0 %v2274
      %2303 = vmatprep.subr.mxu0 0.0
      %2304 = vmatpush1.msra.mxu0 %v2275
      %2305 = vmatprep.subr.mxu0 0.0
      %2306 = vmatpush1.msra.mxu0 %v2276
      %2307 = vmatprep.subr.mxu0 0.0
      %2308 = vmatpush1.msra.mxu0 %v2277
      %2309 = vmatprep.subr.mxu0 0.0
      %2310 = vmatpush1.msra.mxu0 %v2278
      %2311 = vmatprep.subr.mxu0 0.0
      %2312 = vmatpush1.msra.mxu0 0.0
      %2313 = vmatprep.subr.mxu0 0.0
      %2314 = vmatpush1.msra.mxu0 0.0
      %2315 = vmatprep.subr.mxu0 0.0
      %2316 = vmatpush1.msra.mxu0 0.0
      %2317 = vmatprep.subr.mxu0 0.0
      %2318 = vmatpush1.msra.mxu0 0.0
      %2319 = vmatprep.subr.mxu0 0.0
      %2320 = vmatpush1.msra.mxu0 0.0
      %2321 = vmatprep.subr.mxu0 0.0
      %2322 = vmatpush1.msra.mxu0 0.0
      %2323 = vmatprep.subr.mxu0 0.0
      %2324 = vmatpush1.msra.mxu0 0.0
      %2325 = vmatprep.subr.mxu0 0.0
      %2326 = vmatpush1.msra.mxu0 0.0
      %2327 = vmatprep.subr.mxu0 0.0
      %2328 = vmatpush1.msra.mxu0 0.0
      %2329 = vmatprep.subr.mxu0 0.0
      %2330 = vmatpush1.msra.mxu0 0.0
      %2331 = vmatprep.subr.mxu0 0.0
      %2332 = vmatpush1.msra.mxu0 0.0
      %2333 = vmatprep.subr.mxu0 0.0
      %2334 = vmatpush1.msra.mxu0 0.0
      %2335 = vmatprep.subr.mxu0 0.0
      %2336 = vmatpush1.msra.mxu0 0.0
      %2337 = vmatprep.subr.mxu0 0.0
      %2338 = vmatpush1.msra.mxu0 0.0
      %2339 = vmatprep.subr.mxu0 0.0
      %2340 = vmatpush1.msra.mxu0 0.0
      %2341 = vmatprep.subr.mxu0 0.0
      %2342 = vmatpush1.msra.mxu0 0.0
      %2343 = vmatprep.mubr.f32.mxu0 0.0
      %2344 = vmatmul.mubr.f32.gmra.mrb[0].mxu0 %v2262
      %v2345 = vpop.f32.mrb[0].mxu0
      %v2346 = vadd.f32 0.0, %v2345
      %v2347 = vpop.f32.mrb[0].mxu0
      %2348 = vdwg.mxu0
      %vm2349 = vcmask 125952
      %2350 = vst.msk [vmem:[#allocation2] sm:$0xf] %vm2349, %v2346
    $region93: #{seq2seq_forward.1} parent=1 // pred_fallthru
      _
    %p2351 = scmp.ne.s32.totalorder %s2234, 0
    // Predicated region
    $region94: #{seq2seq_forward.1} parent=1 // pred_check
      %p2352 = pneg %p2351
    $region95: #{seq2seq_forward.1} parent=1 // pred_check_branch
      %2354 = sbr.rel (%p2352) target = $region97
    $region96: #{seq2seq_forward.1} parent=1 // pred_region
      %v2355 = vld [vmem:[%s2 + $0x4] sm:$0xf]
      %vm2356 = vcmask 125952
      %2357 = vst.msk [vmem:[#allocation2] sm:$0xf] %vm2356, %v2355
    $region97: #{seq2seq_forward.1} parent=1 // pred_fallthru
      _
    %v2358 = vld [vmem:[#allocation2] sm:$0xf]
    %v2359 = vld [vmem:[%s9] sm:$0xff]
    %v2360 = vld [vmem:[%s9 + $0x8] sm:$0xff]
    %v2361 = vld [vmem:[%s9 + $0x10] sm:$0xff]
    %v2362 = vld [vmem:[%s9 + $0x18] sm:$0xff]
    %v2363 = vld [vmem:[%s9 + $0x20] sm:$0xff]
    %v2364 = vld [vmem:[%s9 + $0x28] sm:$0xff]
    %v2365 = vld [vmem:[%s9 + $0x30] sm:$0xff]
    %v2366 = vld [vmem:[%s9 + $0x38] sm:$0xff]
    %2367 = vmatprep.subr.mxu0 %v2360
    %2368 = vmatpush1.msra.mxu0 %v2359
    %2369 = vmatprep.subr.mxu0 %v2362
    %2370 = vmatpush1.msra.mxu0 %v2361
    %2371 = vmatprep.subr.mxu0 %v2364
    %2372 = vmatpush1.msra.mxu0 %v2363
    %2373 = vmatprep.subr.mxu0 %v2366
    %2374 = vmatpush1.msra.mxu0 %v2365
    %2375 = vmatprep.subr.mxu0 0.0
    %2376 = vmatpush1.msra.mxu0 0.0
    %2377 = vmatprep.subr.mxu0 0.0
    %2378 = vmatpush1.msra.mxu0 0.0
    %2379 = vmatprep.subr.mxu0 0.0
    %2380 = vmatpush1.msra.mxu0 0.0
    %2381 = vmatprep.subr.mxu0 0.0
    %2382 = vmatpush1.msra.mxu0 0.0
    %2383 = vmatprep.subr.mxu0 0.0
    %2384 = vmatpush1.msra.mxu0 0.0
    %2385 = vmatprep.subr.mxu0 0.0
    %2386 = vmatpush1.msra.mxu0 0.0
    %2387 = vmatprep.subr.mxu0 0.0
    %2388 = vmatpush1.msra.mxu0 0.0
    %2389 = vmatprep.subr.mxu0 0.0
    %2390 = vmatpush1.msra.mxu0 0.0
    %2391 = vmatprep.subr.mxu0 0.0
    %2392 = vmatpush1.msra.mxu0 0.0
    %2393 = vmatprep.subr.mxu0 0.0
    %2394 = vmatpush1.msra.mxu0 0.0
    %2395 = vmatprep.subr.mxu0 0.0
    %2396 = vmatpush1.msra.mxu0 0.0
    %2397 = vmatprep.subr.mxu0 0.0
    %2398 = vmatpush1.msra.mxu0 0.0
    %2399 = vmatprep.subr.mxu0 0.0
    %2400 = vmatpush1.msra.mxu0 0.0
    %2401 = vmatprep.subr.mxu0 0.0
    %2402 = vmatpush1.msra.mxu0 0.0
    %2403 = vmatprep.subr.mxu0 0.0
    %2404 = vmatpush1.msra.mxu0 0.0
    %2405 = vmatprep.subr.mxu0 0.0
    %2406 = vmatpush1.msra.mxu0 0.0
    %2407 = vmatprep.subr.mxu0 0.0
    %2408 = vmatpush1.msra.mxu0 0.0
    %2409 = vmatprep.subr.mxu0 0.0
    %2410 = vmatpush1.msra.mxu0 0.0
    %2411 = vmatprep.subr.mxu0 0.0
    %2412 = vmatpush1.msra.mxu0 0.0
    %2413 = vmatprep.subr.mxu0 0.0
    %2414 = vmatpush1.msra.mxu0 0.0
    %2415 = vmatprep.subr.mxu0 0.0
    %2416 = vmatpush1.msra.mxu0 0.0
    %2417 = vmatprep.subr.mxu0 0.0
    %2418 = vmatpush1.msra.mxu0 0.0
    %2419 = vmatprep.subr.mxu0 0.0
    %2420 = vmatpush1.msra.mxu0 0.0
    %2421 = vmatprep.subr.mxu0 0.0
    %2422 = vmatpush1.msra.mxu0 0.0
    %2423 = vmatprep.subr.mxu0 0.0
    %2424 = vmatpush1.msra.mxu0 0.0
    %2425 = vmatprep.subr.mxu0 0.0
    %2426 = vmatpush1.msra.mxu0 0.0
    %2427 = vmatprep.subr.mxu0 0.0
    %2428 = vmatpush1.msra.mxu0 0.0
    %2429 = vmatprep.subr.mxu0 0.0
    %2430 = vmatpush1.msra.mxu0 0.0
    %2431 = vmatprep.mubr.f32.mxu0 0.0
    %2432 = vmatmul.mubr.f32.gmra.mrb[0].mxu0 %v2084
    %v2433 = vpop.f32.mrb[0].mxu0
    %v2434 = vadd.f32 0.0, %v2433
    %v2435 = vpop.f32.mrb[0].mxu0
    %v2436 = vadd.f32 0.0, %v2435
    %2437 = vdwg.mxu0
    %v2438 = vadd.f32 %v1482, %v2434
    %v2439 = vadd.f32 %v1483, %v2436
    %v2440 = vtanh.pop %v2438
    %v2441 = vtanh.pop %v2439
    %v2442 = vld [vmem:[%s11] sm:$0xff]
    %v2443 = vld [vmem:[%s11 + $0x8] sm:$0xff]
    %v2444 = vld [vmem:[%s11 + $0x10] sm:$0xff]
    %v2445 = vld [vmem:[%s11 + $0x18] sm:$0xff]
    %v2446 = vld [vmem:[%s11 + $0x20] sm:$0xff]
    %v2447 = vld [vmem:[%s11 + $0x28] sm:$0xff]
    %v2448 = vld [vmem:[%s11 + $0x30] sm:$0xff]
    %v2449 = vld [vmem:[%s11 + $0x38] sm:$0xff]
    %v2450 = vld [vmem:[%s11 + $0x40] sm:$0xff]
    %v2451 = vld [vmem:[%s11 + $0x48] sm:$0xff]
    %v2452 = vld [vmem:[%s11 + $0x50] sm:$0xff]
    %v2453 = vld [vmem:[%s11 + $0x58] sm:$0xff]
    %v2454 = vld [vmem:[%s11 + $0x60] sm:$0xff]
    %v2455 = vld [vmem:[%s11 + $0x68] sm:$0xff]
    %v2456 = vld [vmem:[%s11 + $0x70] sm:$0xff]
    %v2457 = vld [vmem:[%s11 + $0x78] sm:$0xff]
    %v2458 = vld [vmem:[%s11 + $0x80] sm:$0xff]
    %v2459 = vld [vmem:[%s11 + $0x88] sm:$0xff]
    %v2460 = vld [vmem:[%s11 + $0x90] sm:$0xff]
    %v2461 = vld [vmem:[%s11 + $0x98] sm:$0xff]
    %v2462 = vld [vmem:[%s11 + $0xa0] sm:$0xff]
    %v2463 = vld [vmem:[%s11 + $0xa8] sm:$0xff]
    %v2464 = vld [vmem:[%s11 + $0xb0] sm:$0xff]
    %v2465 = vld [vmem:[%s11 + $0xb8] sm:$0xff]
    %v2466 = vld [vmem:[%s11 + $0xc0] sm:$0xff]
    %v2467 = vld [vmem:[%s11 + $0xc8] sm:$0xff]
    %v2468 = vld [vmem:[%s11 + $0xd0] sm:$0xff]
    %v2469 = vld [vmem:[%s11 + $0xd8] sm:$0xff]
    %v2471 = vsel %vm947, %v2441, 0
    %2473 = vmatprep.subr.mxu0 0.0
    %2474 = vmatpush1.msra.mxu0 %v2442
    %2475 = vmatprep.subr.mxu0 0.0
    %2476 = vmatpush1.msra.mxu0 %v2443
    %2477 = vmatprep.subr.mxu0 0.0
    %2478 = vmatpush1.msra.mxu0 %v2444
    %2479 = vmatprep.subr.mxu0 0.0
    %2480 = vmatpush1.msra.mxu0 %v2445
    %2481 = vmatprep.subr.mxu0 0.0
    %2482 = vmatpush1.msra.mxu0 %v2446
    %2483 = vmatprep.subr.mxu0 0.0
    %2484 = vmatpush1.msra.mxu0 %v2447
    %2485 = vmatprep.subr.mxu0 0.0
    %2486 = vmatpush1.msra.mxu0 %v2448
    %2487 = vmatprep.subr.mxu0 0.0
    %2488 = vmatpush1.msra.mxu0 %v2449
    %2489 = vmatprep.subr.mxu0 0.0
    %2490 = vmatpush1.msra.mxu0 %v2450
    %2491 = vmatprep.subr.mxu0 0.0
    %2492 = vmatpush1.msra.mxu0 %v2451
    %2493 = vmatprep.subr.mxu0 0.0
    %2494 = vmatpush1.msra.mxu0 %v2452
    %2495 = vmatprep.subr.mxu0 0.0
    %2496 = vmatpush1.msra.mxu0 %v2453
    %2497 = vmatprep.subr.mxu0 0.0
    %2498 = vmatpush1.msra.mxu0 %v2454
    %2499 = vmatprep.subr.mxu0 0.0
    %2500 = vmatpush1.msra.mxu0 %v2455
    %2501 = vmatprep.subr.mxu0 0.0
    %2502 = vmatpush1.msra.mxu0 %v2456
    %2503 = vmatprep.subr.mxu0 0.0
    %2504 = vmatpush1.msra.mxu0 %v2457
    %2505 = vmatprep.subr.mxu0 0.0
    %2506 = vmatpush1.msra.mxu0 %v2458
    %2507 = vmatprep.subr.mxu0 0.0
    %2508 = vmatpush1.msra.mxu0 %v2459
    %2509 = vmatprep.subr.mxu0 0.0
    %2510 = vmatpush1.msra.mxu0 %v2460
    %2511 = vmatprep.subr.mxu0 0.0
    %2512 = vmatpush1.msra.mxu0 %v2461
    %2513 = vmatprep.subr.mxu0 0.0
    %2514 = vmatpush1.msra.mxu0 %v2462
    %2515 = vmatprep.subr.mxu0 0.0
    %2516 = vmatpush1.msra.mxu0 %v2463
    %2517 = vmatprep.subr.mxu0 0.0
    %2518 = vmatpush1.msra.mxu0 %v2464
    %2519 = vmatprep.subr.mxu0 0.0
    %2520 = vmatpush1.msra.mxu0 %v2465
    %2521 = vmatprep.subr.mxu0 0.0
    %2522 = vmatpush1.msra.mxu0 %v2466
    %2523 = vmatprep.subr.mxu0 0.0
    %2524 = vmatpush1.msra.mxu0 %v2467
    %2525 = vmatprep.subr.mxu0 0.0
    %2526 = vmatpush1.msra.mxu0 %v2468
    %2527 = vmatprep.subr.mxu0 0.0
    %2528 = vmatpush1.msra.mxu0 %v2469
    %2529 = vmatprep.subr.mxu0 0.0
    %2530 = vmatpush1.msra.mxu0 0.0
    %2531 = vmatprep.subr.mxu0 0.0
    %2532 = vmatpush1.msra.mxu0 0.0
    %2533 = vmatprep.subr.mxu0 0.0
    %2534 = vmatpush1.msra.mxu0 0.0
    %2535 = vmatprep.subr.mxu0 0.0
    %2536 = vmatpush1.msra.mxu0 0.0
    %2537 = vmatprep.mubr.f32.mxu0 %v2471
    %2538 = vmatmul.mubr.f32.gmra.mrb[0].mxu0 %v2440
    %v2539 = vpop.f32.mrb[0].mxu0
    %v2540 = vadd.f32 0.0, %v2539
    %v2541 = vpop.f32.mrb[0].mxu0
    %2542 = vdwg.mxu0
    %v2543 = vsel %vm1689, %v2540, -inf
    %2544 = vmax.xlane.f32.xlu0 %v2543
    %v2545 = vpop.xlane.xlu0 %2544
    %v2546 = vsub.f32 %v2540, %v2545
    %v2547 = vmul.f32 %v2546, 1.442695
    %v2548 = vpow.pop %v2547
    %v2549 = vsel %vm1689, %v2548, 0.0
    %2550 = vadd.xlane.f32.xlu0 %v2549
    %v2551 = vpop.xlane.xlu0 %2550
    %v2552 = vrcp.pop %v2551
    %v2553 = vmul.f32 %v2548, %v2552
    %v2554 = vld [vmem:[%s12] sm:$0x7f]
    %v2555 = vld [vmem:[%s12 + $0x8] sm:$0x7f]
    %v2557 = vsel %vm1703, %v2553, 0
    %v2560 = vsel %vm1707, %v2554, 0
    %v2563 = vsel %vm1707, %v2555, 0
    %2565 = vmatprep.subr.mxu0 %v2563
    %2566 = vmatpush1.msra.mxu0 %v2560
    %2567 = vmatprep.subr.mxu0 0.0
    %2568 = vmatpush1.msra.mxu0 0.0
    %2569 = vmatprep.subr.mxu0 0.0
    %2570 = vmatpush1.msra.mxu0 0.0
    %2571 = vmatprep.subr.mxu0 0.0
    %2572 = vmatpush1.msra.mxu0 0.0
    %2573 = vmatprep.subr.mxu0 0.0
    %2574 = vmatpush1.msra.mxu0 0.0
    %2575 = vmatprep.subr.mxu0 0.0
    %2576 = vmatpush1.msra.mxu0 0.0
    %2577 = vmatprep.subr.mxu0 0.0
    %2578 = vmatpush1.msra.mxu0 0.0
    %2579 = vmatprep.subr.mxu0 0.0
    %2580 = vmatpush1.msra.mxu0 0.0
    %2581 = vmatprep.subr.mxu0 0.0
    %2582 = vmatpush1.msra.mxu0 0.0
    %2583 = vmatprep.subr.mxu0 0.0
    %2584 = vmatpush1.msra.mxu0 0.0
    %2585 = vmatprep.subr.mxu0 0.0
    %2586 = vmatpush1.msra.mxu0 0.0
    %2587 = vmatprep.subr.mxu0 0.0
    %2588 = vmatpush1.msra.mxu0 0.0
    %2589 = vmatprep.subr.mxu0 0.0
    %2590 = vmatpush1.msra.mxu0 0.0
    %2591 = vmatprep.subr.mxu0 0.0
    %2592 = vmatpush1.msra.mxu0 0.0
    %2593 = vmatprep.subr.mxu0 0.0
    %2594 = vmatpush1.msra.mxu0 0.0
    %2595 = vmatprep.subr.mxu0 0.0
    %2596 = vmatpush1.msra.mxu0 0.0
    %2597 = vmatprep.subr.mxu0 0.0
    %2598 = vmatpush1.msra.mxu0 0.0
    %2599 = vmatprep.subr.mxu0 0.0
    %2600 = vmatpush1.msra.mxu0 0.0
    %2601 = vmatprep.subr.mxu0 0.0
    %2602 = vmatpush1.msra.mxu0 0.0
    %2603 = vmatprep.subr.mxu0 0.0
    %2604 = vmatpush1.msra.mxu0 0.0
    %2605 = vmatprep.subr.mxu0 0.0
    %2606 = vmatpush1.msra.mxu0 0.0
    %2607 = vmatprep.subr.mxu0 0.0
    %2608 = vmatpush1.msra.mxu0 0.0
    %2609 = vmatprep.subr.mxu0 0.0
    %2610 = vmatpush1.msra.mxu0 0.0
    %2611 = vmatprep.subr.mxu0 0.0
    %2612 = vmatpush1.msra.mxu0 0.0
    %2613 = vmatprep.subr.mxu0 0.0
    %2614 = vmatpush1.msra.mxu0 0.0
    %2615 = vmatprep.subr.mxu0 0.0
    %2616 = vmatpush1.msra.mxu0 0.0
    %2617 = vmatprep.subr.mxu0 0.0
    %2618 = vmatpush1.msra.mxu0 0.0
    %2619 = vmatprep.subr.mxu0 0.0
    %2620 = vmatpush1.msra.mxu0 0.0
    %2621 = vmatprep.subr.mxu0 0.0
    %2622 = vmatpush1.msra.mxu0 0.0
    %2623 = vmatprep.subr.mxu0 0.0
    %2624 = vmatpush1.msra.mxu0 0.0
    %2625 = vmatprep.subr.mxu0 0.0
    %2626 = vmatpush1.msra.mxu0 0.0
    %2627 = vmatprep.subr.mxu0 0.0
    %2628 = vmatpush1.msra.mxu0 0.0
    %2629 = vmatprep.mubr.f32.mxu0 0.0
    %2630 = vmatmul.mubr.f32.gmra.mrb[0].mxu0 %v2557
    %v2631 = vpop.f32.mrb[0].mxu0
    %v2632 = vadd.f32 0.0, %v2631
    %v2633 = vpop.f32.mrb[0].mxu0
    %v2634 = vadd.f32 0.0, %v2633
    %2635 = vdwg.mxu0
    %v2636 = vmul.f32 %v2632, %v948
    %v2637 = vmul.f32 %v2634, %v950
    %v2638 = vld [vmem:[%s13] sm:$0xff]
    %v2639 = vld [vmem:[%s13 + $0x8] sm:$0xff]
    %v2640 = vld [vmem:[%s13 + $0x10] sm:$0xff]
    %v2641 = vld [vmem:[%s13 + $0x18] sm:$0xff]
    %v2642 = vld [vmem:[%s13 + $0x20] sm:$0xff]
    %v2643 = vld [vmem:[%s13 + $0x28] sm:$0xff]
    %v2644 = vld [vmem:[%s13 + $0x30] sm:$0xff]
    %v2645 = vld [vmem:[%s13 + $0x38] sm:$0xff]
    %v2646 = vld [vmem:[%s13 + $0x40] sm:$0xff]
    %v2647 = vld [vmem:[%s13 + $0x48] sm:$0xff]
    %v2648 = vld [vmem:[%s13 + $0x50] sm:$0xff]
    %v2649 = vld [vmem:[%s13 + $0x58] sm:$0xff]
    %v2650 = vld [vmem:[%s13 + $0x60] sm:$0xff]
    %v2651 = vld [vmem:[%s13 + $0x68] sm:$0xff]
    %v2652 = vld [vmem:[%s13 + $0x70] sm:$0xff]
    %v2653 = vld [vmem:[%s13 + $0x78] sm:$0xff]
    %v2654 = vld [vmem:[%s13 + $0x80] sm:$0xff]
    %v2655 = vld [vmem:[%s13 + $0x88] sm:$0xff]
    %v2656 = vld [vmem:[%s13 + $0x90] sm:$0xff]
    %v2657 = vld [vmem:[%s13 + $0x98] sm:$0xff]
    %v2658 = vld [vmem:[%s13 + $0xa0] sm:$0xff]
    %v2659 = vld [vmem:[%s13 + $0xa8] sm:$0xff]
    %v2660 = vld [vmem:[%s13 + $0xb0] sm:$0xff]
    %v2661 = vld [vmem:[%s13 + $0xb8] sm:$0xff]
    %v2662 = vld [vmem:[%s13 + $0xc0] sm:$0xff]
    %v2663 = vld [vmem:[%s13 + $0xc8] sm:$0xff]
    %v2664 = vld [vmem:[%s13 + $0xd0] sm:$0xff]
    %v2665 = vld [vmem:[%s13 + $0xd8] sm:$0xff]
    %v2667 = vsel %vm947, %v2637, 0
    %2669 = vmatprep.subr.mxu0 0.0
    %2670 = vmatpush1.msra.mxu0 %v2638
    %2671 = vmatprep.subr.mxu0 0.0
    %2672 = vmatpush1.msra.mxu0 %v2639
    %2673 = vmatprep.subr.mxu0 0.0
    %2674 = vmatpush1.msra.mxu0 %v2640
    %2675 = vmatprep.subr.mxu0 0.0
    %2676 = vmatpush1.msra.mxu0 %v2641
    %2677 = vmatprep.subr.mxu0 0.0
    %2678 = vmatpush1.msra.mxu0 %v2642
    %2679 = vmatprep.subr.mxu0 0.0
    %2680 = vmatpush1.msra.mxu0 %v2643
    %2681 = vmatprep.subr.mxu0 0.0
    %2682 = vmatpush1.msra.mxu0 %v2644
    %2683 = vmatprep.subr.mxu0 0.0
    %2684 = vmatpush1.msra.mxu0 %v2645
    %2685 = vmatprep.subr.mxu0 0.0
    %2686 = vmatpush1.msra.mxu0 %v2646
    %2687 = vmatprep.subr.mxu0 0.0
    %2688 = vmatpush1.msra.mxu0 %v2647
    %2689 = vmatprep.subr.mxu0 0.0
    %2690 = vmatpush1.msra.mxu0 %v2648
    %2691 = vmatprep.subr.mxu0 0.0
    %2692 = vmatpush1.msra.mxu0 %v2649
    %2693 = vmatprep.subr.mxu0 0.0
    %2694 = vmatpush1.msra.mxu0 %v2650
    %2695 = vmatprep.subr.mxu0 0.0
    %2696 = vmatpush1.msra.mxu0 %v2651
    %2697 = vmatprep.subr.mxu0 0.0
    %2698 = vmatpush1.msra.mxu0 %v2652
    %2699 = vmatprep.subr.mxu0 0.0
    %2700 = vmatpush1.msra.mxu0 %v2653
    %2701 = vmatprep.subr.mxu0 0.0
    %2702 = vmatpush1.msra.mxu0 %v2654
    %2703 = vmatprep.subr.mxu0 0.0
    %2704 = vmatpush1.msra.mxu0 %v2655
    %2705 = vmatprep.subr.mxu0 0.0
    %2706 = vmatpush1.msra.mxu0 %v2656
    %2707 = vmatprep.subr.mxu0 0.0
    %2708 = vmatpush1.msra.mxu0 %v2657
    %2709 = vmatprep.subr.mxu0 0.0
    %2710 = vmatpush1.msra.mxu0 %v2658
    %2711 = vmatprep.subr.mxu0 0.0
    %2712 = vmatpush1.msra.mxu0 %v2659
    %2713 = vmatprep.subr.mxu0 0.0
    %2714 = vmatpush1.msra.mxu0 %v2660
    %2715 = vmatprep.subr.mxu0 0.0
    %2716 = vmatpush1.msra.mxu0 %v2661
    %2717 = vmatprep.subr.mxu0 0.0
    %2718 = vmatpush1.msra.mxu0 %v2662
    %2719 = vmatprep.subr.mxu0 0.0
    %2720 = vmatpush1.msra.mxu0 %v2663
    %2721 = vmatprep.subr.mxu0 0.0
    %2722 = vmatpush1.msra.mxu0 %v2664
    %2723 = vmatprep.subr.mxu0 0.0
    %2724 = vmatpush1.msra.mxu0 %v2665
    %2725 = vmatprep.subr.mxu0 0.0
    %2726 = vmatpush1.msra.mxu0 0.0
    %2727 = vmatprep.subr.mxu0 0.0
    %2728 = vmatpush1.msra.mxu0 0.0
    %2729 = vmatprep.subr.mxu0 0.0
    %2730 = vmatpush1.msra.mxu0 0.0
    %2731 = vmatprep.subr.mxu0 0.0
    %2732 = vmatpush1.msra.mxu0 0.0
    %2733 = vmatprep.mubr.f32.mxu0 %v2667
    %2734 = vmatmul.mubr.f32.gmra.mrb[0].mxu0 %v2636
    %v2735 = vpop.f32.mrb[0].mxu0
    %v2736 = vadd.f32 0.0, %v2735
    %v2737 = vpop.f32.mrb[0].mxu0
    %2738 = vdwg.mxu0
    %2740 = vrot.lane.b32.xlu0 %v2736, 16
    %v2741 = vpop.permute.xlu0 %2740
    %v2743 = vsel %vm100, %v2358, %v2741
    %v2745 = vsel %vm1899, %v2743, 0
    %2747 = vmatprep.subr.mxu0 0.0
    %2748 = vmatpush1.msra.mxu0 %v1484
    %2749 = vmatprep.subr.mxu0 0.0
    %2750 = vmatpush1.msra.mxu0 %v1485
    %2751 = vmatprep.subr.mxu0 0.0
    %2752 = vmatpush1.msra.mxu0 %v1486
    %2753 = vmatprep.subr.mxu0 0.0
    %2754 = vmatpush1.msra.mxu0 %v1487
    %2755 = vmatprep.subr.mxu0 0.0
    %2756 = vmatpush1.msra.mxu0 %v1488
    %2757 = vmatprep.subr.mxu0 0.0
    %2758 = vmatpush1.msra.mxu0 %v1489
    %2759 = vmatprep.subr.mxu0 0.0
    %2760 = vmatpush1.msra.mxu0 0.0
    %2761 = vmatprep.subr.mxu0 0.0
    %2762 = vmatpush1.msra.mxu0 0.0
    %2763 = vmatprep.subr.mxu0 0.0
    %2764 = vmatpush1.msra.mxu0 0.0
    %2765 = vmatprep.subr.mxu0 0.0
    %2766 = vmatpush1.msra.mxu0 0.0
    %2767 = vmatprep.subr.mxu0 0.0
    %2768 = vmatpush1.msra.mxu0 0.0
    %2769 = vmatprep.subr.mxu0 0.0
    %2770 = vmatpush1.msra.mxu0 0.0
    %2771 = vmatprep.subr.mxu0 0.0
    %2772 = vmatpush1.msra.mxu0 0.0
    %2773 = vmatprep.subr.mxu0 0.0
    %2774 = vmatpush1.msra.mxu0 0.0
    %2775 = vmatprep.subr.mxu0 0.0
    %2776 = vmatpush1.msra.mxu0 0.0
    %2777 = vmatprep.subr.mxu0 0.0
    %2778 = vmatpush1.msra.mxu0 0.0
    %2779 = vmatprep.subr.mxu0 0.0
    %2780 = vmatpush1.msra.mxu0 0.0
    %2781 = vmatprep.subr.mxu0 0.0
    %2782 = vmatpush1.msra.mxu0 0.0
    %2783 = vmatprep.subr.mxu0 0.0
    %2784 = vmatpush1.msra.mxu0 0.0
    %2785 = vmatprep.subr.mxu0 0.0
    %2786 = vmatpush1.msra.mxu0 0.0
    %2787 = vmatprep.subr.mxu0 0.0
    %2788 = vmatpush1.msra.mxu0 0.0
    %2789 = vmatprep.subr.mxu0 0.0
    %2790 = vmatpush1.msra.mxu0 0.0
    %2791 = vmatprep.subr.mxu0 0.0
    %2792 = vmatpush1.msra.mxu0 0.0
    %2793 = vmatprep.subr.mxu0 0.0
    %2794 = vmatpush1.msra.mxu0 0.0
    %2795 = vmatprep.subr.mxu0 0.0
    %2796 = vmatpush1.msra.mxu0 0.0
    %2797 = vmatprep.subr.mxu0 0.0
    %2798 = vmatpush1.msra.mxu0 0.0
    %2799 = vmatprep.subr.mxu0 0.0
    %2800 = vmatpush1.msra.mxu0 0.0
    %2801 = vmatprep.subr.mxu0 0.0
    %2802 = vmatpush1.msra.mxu0 0.0
    %2803 = vmatprep.subr.mxu0 0.0
    %2804 = vmatpush1.msra.mxu0 0.0
    %2805 = vmatprep.subr.mxu0 0.0
    %2806 = vmatpush1.msra.mxu0 0.0
    %2807 = vmatprep.subr.mxu0 0.0
    %2808 = vmatpush1.msra.mxu0 0.0
    %2809 = vmatprep.subr.mxu0 0.0
    %2810 = vmatpush1.msra.mxu0 0.0
    %2811 = vmatprep.mubr.f32.mxu0 0.0
    %2812 = vmatmul.mubr.f32.gmra.mrb[0].mxu0 %v2745
    %v2813 = vpop.f32.mrb[0].mxu0
    %v2814 = vadd.f32 %v1897, %v2813
    %v2815 = vpop.f32.mrb[0].mxu0
    %2816 = vdwg.mxu0
    %2817 = vmatprep.subr.mxu0 0.0
    %2818 = vmatpush1.msra.mxu0 %v1490
    %2819 = vmatprep.subr.mxu0 0.0
    %2820 = vmatpush1.msra.mxu0 %v1491
    %2821 = vmatprep.subr.mxu0 0.0
    %2822 = vmatpush1.msra.mxu0 %v1492
    %2823 = vmatprep.subr.mxu0 0.0
    %2824 = vmatpush1.msra.mxu0 %v1493
    %2825 = vmatprep.subr.mxu0 0.0
    %2826 = vmatpush1.msra.mxu0 0.0
    %2827 = vmatprep.subr.mxu0 0.0
    %2828 = vmatpush1.msra.mxu0 0.0
    %2829 = vmatprep.subr.mxu0 0.0
    %2830 = vmatpush1.msra.mxu0 0.0
    %2831 = vmatprep.subr.mxu0 0.0
    %2832 = vmatpush1.msra.mxu0 0.0
    %2833 = vmatprep.subr.mxu0 0.0
    %2834 = vmatpush1.msra.mxu0 0.0
    %2835 = vmatprep.subr.mxu0 0.0
    %2836 = vmatpush1.msra.mxu0 0.0
    %2837 = vmatprep.subr.mxu0 0.0
    %2838 = vmatpush1.msra.mxu0 0.0
    %2839 = vmatprep.subr.mxu0 0.0
    %2840 = vmatpush1.msra.mxu0 0.0
    %2841 = vmatprep.subr.mxu0 0.0
    %2842 = vmatpush1.msra.mxu0 0.0
    %2843 = vmatprep.subr.mxu0 0.0
    %2844 = vmatpush1.msra.mxu0 0.0
    %2845 = vmatprep.subr.mxu0 0.0
    %2846 = vmatpush1.msra.mxu0 0.0
    %2847 = vmatprep.subr.mxu0 0.0
    %2848 = vmatpush1.msra.mxu0 0.0
    %2849 = vmatprep.subr.mxu0 0.0
    %2850 = vmatpush1.msra.mxu0 0.0
    %2851 = vmatprep.subr.mxu0 0.0
    %2852 = vmatpush1.msra.mxu0 0.0
    %2853 = vmatprep.subr.mxu0 0.0
    %2854 = vmatpush1.msra.mxu0 0.0
    %2855 = vmatprep.subr.mxu0 0.0
    %2856 = vmatpush1.msra.mxu0 0.0
    %2857 = vmatprep.subr.mxu0 0.0
    %2858 = vmatpush1.msra.mxu0 0.0
    %2859 = vmatprep.subr.mxu0 0.0
    %2860 = vmatpush1.msra.mxu0 0.0
    %2861 = vmatprep.subr.mxu0 0.0
    %2862 = vmatpush1.msra.mxu0 0.0
    %2863 = vmatprep.subr.mxu0 0.0
    %2864 = vmatpush1.msra.mxu0 0.0
    %2865 = vmatprep.subr.mxu0 0.0
    %2866 = vmatpush1.msra.mxu0 0.0
    %2867 = vmatprep.subr.mxu0 0.0
    %2868 = vmatpush1.msra.mxu0 0.0
    %2869 = vmatprep.subr.mxu0 0.0
    %2870 = vmatpush1.msra.mxu0 0.0
    %2871 = vmatprep.subr.mxu0 0.0
    %2872 = vmatpush1.msra.mxu0 0.0
    %2873 = vmatprep.subr.mxu0 0.0
    %2874 = vmatpush1.msra.mxu0 0.0
    %2875 = vmatprep.subr.mxu0 0.0
    %2876 = vmatpush1.msra.mxu0 0.0
    %2877 = vmatprep.subr.mxu0 0.0
    %2878 = vmatpush1.msra.mxu0 0.0
    %2879 = vmatprep.subr.mxu0 0.0
    %2880 = vmatpush1.msra.mxu0 0.0
    %2881 = vmatprep.mubr.f32.mxu0 0.0
    %2882 = vmatmul.mubr.f32.gmra.mrb[0].mxu0 %v2084
    %v2883 = vpop.f32.mrb[0].mxu0
    %v2884 = vadd.f32 %v1977, %v2883
    %v2885 = vpop.f32.mrb[0].mxu0
    %2886 = vdwg.mxu0
    %v2887 = vadd.f32 %v2814, %v2884
    %v2888 = vxor.u32 %v2887, 2147483648
    %v2889 = vmul.f32 %v2888, 1.442695
    %v2890 = vpow.pop %v2889
    %v2891 = vadd.f32 %v2890, 1.0
    %v2892 = vrcp.pop %v2891
    %v2893 = vmul.f32 1.0, %v2892
    %2895 = vrot.lane.b32.xlu0 %v2884, 64
    %v2896 = vpop.permute.xlu0 %2895
    %v2898 = vmul.f32 %v2893, %v2896
    %2900 = vrot.lane.b32.xlu0 %v2898, 64
    %v2901 = vpop.permute.xlu0 %2900
    %v2903 = vadd.f32 %v2814, %v2901
    %v2904 = vtanh.pop %v2903
    %v2905 = vsub.f32 1.0, %v2893
    %2907 = vrot.lane.b32.xlu0 %v2904, 96
    %v2908 = vpop.permute.xlu0 %2907
    %v2910 = vmul.f32 %v2905, %v2908
    %v2911 = vmul.f32 %v2893, %v2074
    %v2912 = vadd.f32 %v2910, %v2911
    %v2913 = vld [vmem:[%s18] sm:$0xff]
    %v2914 = vld [vmem:[%s18 + $0x8] sm:$0xff]
    %v2915 = vld [vmem:[%s18 + $0x10] sm:$0xff]
    %v2916 = vld [vmem:[%s18 + $0x18] sm:$0xff]
    %v2917 = vld [vmem:[%s18 + $0x20] sm:$0xff]
    %v2918 = vld [vmem:[%s18 + $0x28] sm:$0xff]
    %2920 = vrot.lane.b32.xlu0 %v2912, 96
    %v2921 = vpop.permute.xlu0 %2920
    %v2922 = vsel %vm204, %v2921, 0
    %2924 = vmatprep.subr.mxu0 0.0
    %2925 = vmatpush1.msra.mxu0 %v1496
    %2926 = vmatprep.subr.mxu0 0.0
    %2927 = vmatpush1.msra.mxu0 %v1497
    %2928 = vmatprep.subr.mxu0 0.0
    %2929 = vmatpush1.msra.mxu0 %v1498
    %2930 = vmatprep.subr.mxu0 0.0
    %2931 = vmatpush1.msra.mxu0 %v1499
    %2932 = vmatprep.subr.mxu0 0.0
    %2933 = vmatpush1.msra.mxu0 0.0
    %2934 = vmatprep.subr.mxu0 0.0
    %2935 = vmatpush1.msra.mxu0 0.0
    %2936 = vmatprep.subr.mxu0 0.0
    %2937 = vmatpush1.msra.mxu0 0.0
    %2938 = vmatprep.subr.mxu0 0.0
    %2939 = vmatpush1.msra.mxu0 0.0
    %2940 = vmatprep.subr.mxu0 0.0
    %2941 = vmatpush1.msra.mxu0 0.0
    %2942 = vmatprep.subr.mxu0 0.0
    %2943 = vmatpush1.msra.mxu0 0.0
    %2944 = vmatprep.subr.mxu0 0.0
    %2945 = vmatpush1.msra.mxu0 0.0
    %2946 = vmatprep.subr.mxu0 0.0
    %2947 = vmatpush1.msra.mxu0 0.0
    %2948 = vmatprep.subr.mxu0 0.0
    %2949 = vmatpush1.msra.mxu0 0.0
    %2950 = vmatprep.subr.mxu0 0.0
    %2951 = vmatpush1.msra.mxu0 0.0
    %2952 = vmatprep.subr.mxu0 0.0
    %2953 = vmatpush1.msra.mxu0 0.0
    %2954 = vmatprep.subr.mxu0 0.0
    %2955 = vmatpush1.msra.mxu0 0.0
    %2956 = vmatprep.subr.mxu0 0.0
    %2957 = vmatpush1.msra.mxu0 0.0
    %2958 = vmatprep.subr.mxu0 0.0
    %2959 = vmatpush1.msra.mxu0 0.0
    %2960 = vmatprep.subr.mxu0 0.0
    %2961 = vmatpush1.msra.mxu0 0.0
    %2962 = vmatprep.subr.mxu0 0.0
    %2963 = vmatpush1.msra.mxu0 0.0
    %2964 = vmatprep.subr.mxu0 0.0
    %2965 = vmatpush1.msra.mxu0 0.0
    %2966 = vmatprep.subr.mxu0 0.0
    %2967 = vmatpush1.msra.mxu0 0.0
    %2968 = vmatprep.subr.mxu0 0.0
    %2969 = vmatpush1.msra.mxu0 0.0
    %2970 = vmatprep.subr.mxu0 0.0
    %2971 = vmatpush1.msra.mxu0 0.0
    %2972 = vmatprep.subr.mxu0 0.0
    %2973 = vmatpush1.msra.mxu0 0.0
    %2974 = vmatprep.subr.mxu0 0.0
    %2975 = vmatpush1.msra.mxu0 0.0
    %2976 = vmatprep.subr.mxu0 0.0
    %2977 = vmatpush1.msra.mxu0 0.0
    %2978 = vmatprep.subr.mxu0 0.0
    %2979 = vmatpush1.msra.mxu0 0.0
    %2980 = vmatprep.subr.mxu0 0.0
    %2981 = vmatpush1.msra.mxu0 0.0
    %2982 = vmatprep.subr.mxu0 0.0
    %2983 = vmatpush1.msra.mxu0 0.0
    %2984 = vmatprep.subr.mxu0 0.0
    %2985 = vmatpush1.msra.mxu0 0.0
    %2986 = vmatprep.subr.mxu0 0.0
    %2987 = vmatpush1.msra.mxu0 0.0
    %2988 = vmatprep.mubr.f32.mxu0 0.0
    %2989 = vmatmul.mubr.f32.gmra.mrb[0].mxu0 %v2922
    %v2990 = vpop.f32.mrb[0].mxu0
    %v2991 = vadd.f32 0.0, %v2990
    %v2992 = vpop.f32.mrb[0].mxu0
    %2993 = vdwg.mxu0
    %2994 = vmatprep.subr.mxu0 0.0
    %2995 = vmatpush1.msra.mxu0 %v2913
    %2996 = vmatprep.subr.mxu0 0.0
    %2997 = vmatpush1.msra.mxu0 %v2914
    %2998 = vmatprep.subr.mxu0 0.0
    %2999 = vmatpush1.msra.mxu0 %v2915
    %3000 = vmatprep.subr.mxu0 0.0
    %3001 = vmatpush1.msra.mxu0 %v2916
    %3002 = vmatprep.subr.mxu0 0.0
    %3003 = vmatpush1.msra.mxu0 %v2917
    %3004 = vmatprep.subr.mxu0 0.0
    %3005 = vmatpush1.msra.mxu0 %v2918
    %3006 = vmatprep.subr.mxu0 0.0
    %3007 = vmatpush1.msra.mxu0 0.0
    %3008 = vmatprep.subr.mxu0 0.0
    %3009 = vmatpush1.msra.mxu0 0.0
    %3010 = vmatprep.subr.mxu0 0.0
    %3011 = vmatpush1.msra.mxu0 0.0
    %3012 = vmatprep.subr.mxu0 0.0
    %3013 = vmatpush1.msra.mxu0 0.0
    %3014 = vmatprep.subr.mxu0 0.0
    %3015 = vmatpush1.msra.mxu0 0.0
    %3016 = vmatprep.subr.mxu0 0.0
    %3017 = vmatpush1.msra.mxu0 0.0
    %3018 = vmatprep.subr.mxu0 0.0
    %3019 = vmatpush1.msra.mxu0 0.0
    %3020 = vmatprep.subr.mxu0 0.0
    %3021 = vmatpush1.msra.mxu0 0.0
    %3022 = vmatprep.subr.mxu0 0.0
    %3023 = vmatpush1.msra.mxu0 0.0
    %3024 = vmatprep.subr.mxu0 0.0
    %3025 = vmatpush1.msra.mxu0 0.0
    %3026 = vmatprep.subr.mxu0 0.0
    %3027 = vmatpush1.msra.mxu0 0.0
    %3028 = vmatprep.subr.mxu0 0.0
    %3029 = vmatpush1.msra.mxu0 0.0
    %3030 = vmatprep.subr.mxu0 0.0
    %3031 = vmatpush1.msra.mxu0 0.0
    %3032 = vmatprep.subr.mxu0 0.0
    %3033 = vmatpush1.msra.mxu0 0.0
    %3034 = vmatprep.subr.mxu0 0.0
    %3035 = vmatpush1.msra.mxu0 0.0
    %3036 = vmatprep.subr.mxu0 0.0
    %3037 = vmatpush1.msra.mxu0 0.0
    %3038 = vmatprep.subr.mxu0 0.0
    %3039 = vmatpush1.msra.mxu0 0.0
    %3040 = vmatprep.subr.mxu0 0.0
    %3041 = vmatpush1.msra.mxu0 0.0
    %3042 = vmatprep.subr.mxu0 0.0
    %3043 = vmatpush1.msra.mxu0 0.0
    %3044 = vmatprep.subr.mxu0 0.0
    %3045 = vmatpush1.msra.mxu0 0.0
    %3046 = vmatprep.subr.mxu0 0.0
    %3047 = vmatpush1.msra.mxu0 0.0
    %3048 = vmatprep.subr.mxu0 0.0
    %3049 = vmatpush1.msra.mxu0 0.0
    %3050 = vmatprep.subr.mxu0 0.0
    %3051 = vmatpush1.msra.mxu0 0.0
    %3052 = vmatprep.subr.mxu0 0.0
    %3053 = vmatpush1.msra.mxu0 0.0
    %3054 = vmatprep.subr.mxu0 0.0
    %3055 = vmatpush1.msra.mxu0 0.0
    %3056 = vmatprep.subr.mxu0 0.0
    %3057 = vmatpush1.msra.mxu0 0.0
    %3058 = vmatprep.mubr.f32.mxu0 0.0
    %3059 = vmatmul.mubr.f32.gmra.mrb[0].mxu0 %v2745
    %v3060 = vpop.f32.mrb[0].mxu0
    %v3061 = vadd.f32 %v2991, %v3060
    %v3062 = vpop.f32.mrb[0].mxu0
    %3063 = vdwg.mxu0
    %v3064 = vadd.f32 %v3061, %v2230
    %3065 = vst [vmem:[#allocation6 + $0x8] sm:$0xf] %v3064
    %s3066 = sld [smem:[#allocation3 + $0x2]]
    %p3067 = scmp.eq.s32.totalorder %s3066, 0
    // Predicated region
    $region98: #{seq2seq_forward.1} parent=1 // pred_check
      %p3068 = pneg %p3067
    $region99: #{seq2seq_forward.1} parent=1 // pred_check_branch
      %3070 = sbr.rel (%p3068) target = $region101
    $region100: #{seq2seq_forward.1} parent=1 // pred_region
      %vm3071 = vcmask 1043456
      %v3072 = vsel %vm3071, %v3064, -inf
      %3073 = vmax.xlane.f32.xlu0 %v3072
      %v3074 = vpop.xlane.xlu0 %3073
      %vm3075 = vcmp.eq.f32.partialorder %v3064, %v3074
      %v3076 = vsel %vm3075, %v1502, 128
      %v3077 = vsel %vm3071, %v3076, 2147483647
      %v3078 = vand.u32 %v3077, 65535
      %v3079 = vshra.s32 %v3077, 16
      %v3080 = vcvt.s32.f32 %v3078
      %v3081 = vcvt.s32.f32 %v3079
      %3082 = vmin.xlane.f32.xlu0 %v3081
      %v3083 = vpop.xlane.xlu0 %3082
      %vm3084 = vcmp.eq.f32.partialorder %v3081, %v3083
      %v3085 = vsel %vm3084, %v3080, inf
      %3086 = vmin.xlane.f32.xlu0 %v3085
      %v3087 = vpop.xlane.xlu0 %3086
      %v3088 = vcvt.f32.s32 %v3087
      %v3089 = vcvt.f32.s32 %v3083
      %v3090 = vshll.u32 %v3089, 16
      %v3091 = vadd.s32 %v3090, %v3088
      %vm3092 = vcmp.eq.s32.totalorder %v1502, %v3091
      %v3093 = vsel %vm3092, 1, 0
      %v3094 = vcvt.s32.f32 %v3093
      %v3095 = vld [vmem:[%s3] sm:$0xff]
      %v3096 = vld [vmem:[%s3 + $0x8] sm:$0xff]
      %v3097 = vld [vmem:[%s3 + $0x10] sm:$0xff]
      %v3098 = vld [vmem:[%s3 + $0x18] sm:$0xff]
      %v3099 = vld [vmem:[%s3 + $0x20] sm:$0xff]
      %v3100 = vld [vmem:[%s3 + $0x28] sm:$0xff]
      %v3101 = vld [vmem:[%s3 + $0x30] sm:$0xff]
      %v3102 = vld [vmem:[%s3 + $0x38] sm:$0xff]
      %v3103 = vld [vmem:[%s3 + $0x40] sm:$0xff]
      %v3104 = vld [vmem:[%s3 + $0x48] sm:$0xff]
      %v3105 = vld [vmem:[%s3 + $0x50] sm:$0xff]
      %v3106 = vld [vmem:[%s3 + $0x58] sm:$0xff]
      %v3107 = vld [vmem:[%s3 + $0x60] sm:$0xff]
      %v3108 = vld [vmem:[%s3 + $0x68] sm:$0xff]
      %v3109 = vld [vmem:[%s3 + $0x70] sm:$0xff]
      %v3110 = vld [vmem:[%s3 + $0x78] sm:$0xff]
      %3111 = vmatprep.subr.mxu0 0.0
      %3112 = vmatpush1.msra.mxu0 %v3095
      %3113 = vmatprep.subr.mxu0 0.0
      %3114 = vmatpush1.msra.mxu0 %v3096
      %3115 = vmatprep.subr.mxu0 0.0
      %3116 = vmatpush1.msra.mxu0 %v3097
      %3117 = vmatprep.subr.mxu0 0.0
      %3118 = vmatpush1.msra.mxu0 %v3098
      %3119 = vmatprep.subr.mxu0 0.0
      %3120 = vmatpush1.msra.mxu0 %v3099
      %3121 = vmatprep.subr.mxu0 0.0
      %3122 = vmatpush1.msra.mxu0 %v3100
      %3123 = vmatprep.subr.mxu0 0.0
      %3124 = vmatpush1.msra.mxu0 %v3101
      %3125 = vmatprep.subr.mxu0 0.0
      %3126 = vmatpush1.msra.mxu0 %v3102
      %3127 = vmatprep.subr.mxu0 0.0
      %3128 = vmatpush1.msra.mxu0 %v3103
      %3129 = vmatprep.subr.mxu0 0.0
      %3130 = vmatpush1.msra.mxu0 %v3104
      %3131 = vmatprep.subr.mxu0 0.0
      %3132 = vmatpush1.msra.mxu0 %v3105
      %3133 = vmatprep.subr.mxu0 0.0
      %3134 = vmatpush1.msra.mxu0 %v3106
      %3135 = vmatprep.subr.mxu0 0.0
      %3136 = vmatpush1.msra.mxu0 %v3107
      %3137 = vmatprep.subr.mxu0 0.0
      %3138 = vmatpush1.msra.mxu0 %v3108
      %3139 = vmatprep.subr.mxu0 0.0
      %3140 = vmatpush1.msra.mxu0 %v3109
      %3141 = vmatprep.subr.mxu0 0.0
      %3142 = vmatpush1.msra.mxu0 %v3110
      %3143 = vmatprep.subr.mxu0 0.0
      %3144 = vmatpush1.msra.mxu0 0.0
      %3145 = vmatprep.subr.mxu0 0.0
      %3146 = vmatpush1.msra.mxu0 0.0
      %3147 = vmatprep.subr.mxu0 0.0
      %3148 = vmatpush1.msra.mxu0 0.0
      %3149 = vmatprep.subr.mxu0 0.0
      %3150 = vmatpush1.msra.mxu0 0.0
      %3151 = vmatprep.subr.mxu0 0.0
      %3152 = vmatpush1.msra.mxu0 0.0
      %3153 = vmatprep.subr.mxu0 0.0
      %3154 = vmatpush1.msra.mxu0 0.0
      %3155 = vmatprep.subr.mxu0 0.0
      %3156 = vmatpush1.msra.mxu0 0.0
      %3157 = vmatprep.subr.mxu0 0.0
      %3158 = vmatpush1.msra.mxu0 0.0
      %3159 = vmatprep.subr.mxu0 0.0
      %3160 = vmatpush1.msra.mxu0 0.0
      %3161 = vmatprep.subr.mxu0 0.0
      %3162 = vmatpush1.msra.mxu0 0.0
      %3163 = vmatprep.subr.mxu0 0.0
      %3164 = vmatpush1.msra.mxu0 0.0
      %3165 = vmatprep.subr.mxu0 0.0
      %3166 = vmatpush1.msra.mxu0 0.0
      %3167 = vmatprep.subr.mxu0 0.0
      %3168 = vmatpush1.msra.mxu0 0.0
      %3169 = vmatprep.subr.mxu0 0.0
      %3170 = vmatpush1.msra.mxu0 0.0
      %3171 = vmatprep.subr.mxu0 0.0
      %3172 = vmatpush1.msra.mxu0 0.0
      %3173 = vmatprep.subr.mxu0 0.0
      %3174 = vmatpush1.msra.mxu0 0.0
      %3175 = vmatprep.mubr.f32.mxu0 0.0
      %3176 = vmatmul.mubr.f32.gmra.mrb[0].mxu0 %v3094
      %v3177 = vpop.f32.mrb[0].mxu0
      %v3178 = vadd.f32 0.0, %v3177
      %v3179 = vpop.f32.mrb[0].mxu0
      %3180 = vdwg.mxu0
      %vm3181 = vcmask 125952
      %3182 = vst.msk [vmem:[#allocation2] sm:$0xf] %vm3181, %v3178
    $region101: #{seq2seq_forward.1} parent=1 // pred_fallthru
      _
    %p3183 = scmp.ne.s32.totalorder %s3066, 0
    // Predicated region
    $region102: #{seq2seq_forward.1} parent=1 // pred_check
      %p3184 = pneg %p3183
    $region103: #{seq2seq_forward.1} parent=1 // pred_check_branch
      %3186 = sbr.rel (%p3184) target = $region105
    $region104: #{seq2seq_forward.1} parent=1 // pred_region
      %v3187 = vld [vmem:[%s2 + $0x8] sm:$0xf]
      %vm3188 = vcmask 125952
      %3189 = vst.msk [vmem:[#allocation2] sm:$0xf] %vm3188, %v3187
    $region105: #{seq2seq_forward.1} parent=1 // pred_fallthru
      _
    %v3190 = vld [vmem:[#allocation2] sm:$0xf]
    %v3191 = vld [vmem:[%s9] sm:$0xff]
    %v3192 = vld [vmem:[%s9 + $0x8] sm:$0xff]
    %v3193 = vld [vmem:[%s9 + $0x10] sm:$0xff]
    %v3194 = vld [vmem:[%s9 + $0x18] sm:$0xff]
    %v3195 = vld [vmem:[%s9 + $0x20] sm:$0xff]
    %v3196 = vld [vmem:[%s9 + $0x28] sm:$0xff]
    %v3197 = vld [vmem:[%s9 + $0x30] sm:$0xff]
    %v3198 = vld [vmem:[%s9 + $0x38] sm:$0xff]
    %3199 = vmatprep.subr.mxu0 %v3192
    %3200 = vmatpush1.msra.mxu0 %v3191
    %3201 = vmatprep.subr.mxu0 %v3194
    %3202 = vmatpush1.msra.mxu0 %v3193
    %3203 = vmatprep.subr.mxu0 %v3196
    %3204 = vmatpush1.msra.mxu0 %v3195
    %3205 = vmatprep.subr.mxu0 %v3198
    %3206 = vmatpush1.msra.mxu0 %v3197
    %3207 = vmatprep.subr.mxu0 0.0
    %3208 = vmatpush1.msra.mxu0 0.0
    %3209 = vmatprep.subr.mxu0 0.0
    %3210 = vmatpush1.msra.mxu0 0.0
    %3211 = vmatprep.subr.mxu0 0.0
    %3212 = vmatpush1.msra.mxu0 0.0
    %3213 = vmatprep.subr.mxu0 0.0
    %3214 = vmatpush1.msra.mxu0 0.0
    %3215 = vmatprep.subr.mxu0 0.0
    %3216 = vmatpush1.msra.mxu0 0.0
    %3217 = vmatprep.subr.mxu0 0.0
    %3218 = vmatpush1.msra.mxu0 0.0
    %3219 = vmatprep.subr.mxu0 0.0
    %3220 = vmatpush1.msra.mxu0 0.0
    %3221 = vmatprep.subr.mxu0 0.0
    %3222 = vmatpush1.msra.mxu0 0.0
    %3223 = vmatprep.subr.mxu0 0.0
    %3224 = vmatpush1.msra.mxu0 0.0
    %3225 = vmatprep.subr.mxu0 0.0
    %3226 = vmatpush1.msra.mxu0 0.0
    %3227 = vmatprep.subr.mxu0 0.0
    %3228 = vmatpush1.msra.mxu0 0.0
    %3229 = vmatprep.subr.mxu0 0.0
    %3230 = vmatpush1.msra.mxu0 0.0
    %3231 = vmatprep.subr.mxu0 0.0
    %3232 = vmatpush1.msra.mxu0 0.0
    %3233 = vmatprep.subr.mxu0 0.0
    %3234 = vmatpush1.msra.mxu0 0.0
    %3235 = vmatprep.subr.mxu0 0.0
    %3236 = vmatpush1.msra.mxu0 0.0
    %3237 = vmatprep.subr.mxu0 0.0
    %3238 = vmatpush1.msra.mxu0 0.0
    %3239 = vmatprep.subr.mxu0 0.0
    %3240 = vmatpush1.msra.mxu0 0.0
    %3241 = vmatprep.subr.mxu0 0.0
    %3242 = vmatpush1.msra.mxu0 0.0
    %3243 = vmatprep.subr.mxu0 0.0
    %3244 = vmatpush1.msra.mxu0 0.0
    %3245 = vmatprep.subr.mxu0 0.0
    %3246 = vmatpush1.msra.mxu0 0.0
    %3247 = vmatprep.subr.mxu0 0.0
    %3248 = vmatpush1.msra.mxu0 0.0
    %3249 = vmatprep.subr.mxu0 0.0
    %3250 = vmatpush1.msra.mxu0 0.0
    %3251 = vmatprep.subr.mxu0 0.0
    %3252 = vmatpush1.msra.mxu0 0.0
    %3253 = vmatprep.subr.mxu0 0.0
    %3254 = vmatpush1.msra.mxu0 0.0
    %3255 = vmatprep.subr.mxu0 0.0
    %3256 = vmatpush1.msra.mxu0 0.0
    %3257 = vmatprep.subr.mxu0 0.0
    %3258 = vmatpush1.msra.mxu0 0.0
    %3259 = vmatprep.subr.mxu0 0.0
    %3260 = vmatpush1.msra.mxu0 0.0
    %3261 = vmatprep.subr.mxu0 0.0
    %3262 = vmatpush1.msra.mxu0 0.0
    %3263 = vmatprep.mubr.f32.mxu0 0.0
    %3264 = vmatmul.mubr.f32.gmra.mrb[0].mxu0 %v2922
    %v3265 = vpop.f32.mrb[0].mxu0
    %v3266 = vadd.f32 0.0, %v3265
    %v3267 = vpop.f32.mrb[0].mxu0
    %v3268 = vadd.f32 0.0, %v3267
    %3269 = vdwg.mxu0
    %v3270 = vadd.f32 %v1482, %v3266
    %v3271 = vadd.f32 %v1483, %v3268
    %v3272 = vtanh.pop %v3270
    %v3273 = vtanh.pop %v3271
    %v3274 = vld [vmem:[%s11] sm:$0xff]
    %v3275 = vld [vmem:[%s11 + $0x8] sm:$0xff]
    %v3276 = vld [vmem:[%s11 + $0x10] sm:$0xff]
    %v3277 = vld [vmem:[%s11 + $0x18] sm:$0xff]
    %v3278 = vld [vmem:[%s11 + $0x20] sm:$0xff]
    %v3279 = vld [vmem:[%s11 + $0x28] sm:$0xff]
    %v3280 = vld [vmem:[%s11 + $0x30] sm:$0xff]
    %v3281 = vld [vmem:[%s11 + $0x38] sm:$0xff]
    %v3282 = vld [vmem:[%s11 + $0x40] sm:$0xff]
    %v3283 = vld [vmem:[%s11 + $0x48] sm:$0xff]
    %v3284 = vld [vmem:[%s11 + $0x50] sm:$0xff]
    %v3285 = vld [vmem:[%s11 + $0x58] sm:$0xff]
    %v3286 = vld [vmem:[%s11 + $0x60] sm:$0xff]
    %v3287 = vld [vmem:[%s11 + $0x68] sm:$0xff]
    %v3288 = vld [vmem:[%s11 + $0x70] sm:$0xff]
    %v3289 = vld [vmem:[%s11 + $0x78] sm:$0xff]
    %v3290 = vld [vmem:[%s11 + $0x80] sm:$0xff]
    %v3291 = vld [vmem:[%s11 + $0x88] sm:$0xff]
    %v3292 = vld [vmem:[%s11 + $0x90] sm:$0xff]
    %v3293 = vld [vmem:[%s11 + $0x98] sm:$0xff]
    %v3294 = vld [vmem:[%s11 + $0xa0] sm:$0xff]
    %v3295 = vld [vmem:[%s11 + $0xa8] sm:$0xff]
    %v3296 = vld [vmem:[%s11 + $0xb0] sm:$0xff]
    %v3297 = vld [vmem:[%s11 + $0xb8] sm:$0xff]
    %v3298 = vld [vmem:[%s11 + $0xc0] sm:$0xff]
    %v3299 = vld [vmem:[%s11 + $0xc8] sm:$0xff]
    %v3300 = vld [vmem:[%s11 + $0xd0] sm:$0xff]
    %v3301 = vld [vmem:[%s11 + $0xd8] sm:$0xff]
    %v3303 = vsel %vm947, %v3273, 0
    %3305 = vmatprep.subr.mxu0 0.0
    %3306 = vmatpush1.msra.mxu0 %v3274
    %3307 = vmatprep.subr.mxu0 0.0
    %3308 = vmatpush1.msra.mxu0 %v3275
    %3309 = vmatprep.subr.mxu0 0.0
    %3310 = vmatpush1.msra.mxu0 %v3276
    %3311 = vmatprep.subr.mxu0 0.0
    %3312 = vmatpush1.msra.mxu0 %v3277
    %3313 = vmatprep.subr.mxu0 0.0
    %3314 = vmatpush1.msra.mxu0 %v3278
    %3315 = vmatprep.subr.mxu0 0.0
    %3316 = vmatpush1.msra.mxu0 %v3279
    %3317 = vmatprep.subr.mxu0 0.0
    %3318 = vmatpush1.msra.mxu0 %v3280
    %3319 = vmatprep.subr.mxu0 0.0
    %3320 = vmatpush1.msra.mxu0 %v3281
    %3321 = vmatprep.subr.mxu0 0.0
    %3322 = vmatpush1.msra.mxu0 %v3282
    %3323 = vmatprep.subr.mxu0 0.0
    %3324 = vmatpush1.msra.mxu0 %v3283
    %3325 = vmatprep.subr.mxu0 0.0
    %3326 = vmatpush1.msra.mxu0 %v3284
    %3327 = vmatprep.subr.mxu0 0.0
    %3328 = vmatpush1.msra.mxu0 %v3285
    %3329 = vmatprep.subr.mxu0 0.0
    %3330 = vmatpush1.msra.mxu0 %v3286
    %3331 = vmatprep.subr.mxu0 0.0
    %3332 = vmatpush1.msra.mxu0 %v3287
    %3333 = vmatprep.subr.mxu0 0.0
    %3334 = vmatpush1.msra.mxu0 %v3288
    %3335 = vmatprep.subr.mxu0 0.0
    %3336 = vmatpush1.msra.mxu0 %v3289
    %3337 = vmatprep.subr.mxu0 0.0
    %3338 = vmatpush1.msra.mxu0 %v3290
    %3339 = vmatprep.subr.mxu0 0.0
    %3340 = vmatpush1.msra.mxu0 %v3291
    %3341 = vmatprep.subr.mxu0 0.0
    %3342 = vmatpush1.msra.mxu0 %v3292
    %3343 = vmatprep.subr.mxu0 0.0
    %3344 = vmatpush1.msra.mxu0 %v3293
    %3345 = vmatprep.subr.mxu0 0.0
    %3346 = vmatpush1.msra.mxu0 %v3294
    %3347 = vmatprep.subr.mxu0 0.0
    %3348 = vmatpush1.msra.mxu0 %v3295
    %3349 = vmatprep.subr.mxu0 0.0
    %3350 = vmatpush1.msra.mxu0 %v3296
    %3351 = vmatprep.subr.mxu0 0.0
    %3352 = vmatpush1.msra.mxu0 %v3297
    %3353 = vmatprep.subr.mxu0 0.0
    %3354 = vmatpush1.msra.mxu0 %v3298
    %3355 = vmatprep.subr.mxu0 0.0
    %3356 = vmatpush1.msra.mxu0 %v3299
    %3357 = vmatprep.subr.mxu0 0.0
    %3358 = vmatpush1.msra.mxu0 %v3300
    %3359 = vmatprep.subr.mxu0 0.0
    %3360 = vmatpush1.msra.mxu0 %v3301
    %3361 = vmatprep.subr.mxu0 0.0
    %3362 = vmatpush1.msra.mxu0 0.0
    %3363 = vmatprep.subr.mxu0 0.0
    %3364 = vmatpush1.msra.mxu0 0.0
    %3365 = vmatprep.subr.mxu0 0.0
    %3366 = vmatpush1.msra.mxu0 0.0
    %3367 = vmatprep.subr.mxu0 0.0
    %3368 = vmatpush1.msra.mxu0 0.0
    %3369 = vmatprep.mubr.f32.mxu0 %v3303
    %3370 = vmatmul.mubr.f32.gmra.mrb[0].mxu0 %v3272
    %v3371 = vpop.f32.mrb[0].mxu0
    %v3372 = vadd.f32 0.0, %v3371
    %v3373 = vpop.f32.mrb[0].mxu0
    %3374 = vdwg.mxu0
    %v3375 = vsel %vm1689, %v3372, -inf
    %3376 = vmax.xlane.f32.xlu0 %v3375
    %v3377 = vpop.xlane.xlu0 %3376
    %v3378 = vsub.f32 %v3372, %v3377
    %v3379 = vmul.f32 %v3378, 1.442695
    %v3380 = vpow.pop %v3379
    %v3381 = vsel %vm1689, %v3380, 0.0
    %3382 = vadd.xlane.f32.xlu0 %v3381
    %v3383 = vpop.xlane.xlu0 %3382
    %v3384 = vrcp.pop %v3383
    %v3385 = vmul.f32 %v3380, %v3384
    %v3386 = vld [vmem:[%s12] sm:$0x7f]
    %v3387 = vld [vmem:[%s12 + $0x8] sm:$0x7f]
    %v3389 = vsel %vm1703, %v3385, 0
    %v3392 = vsel %vm1707, %v3386, 0
    %v3395 = vsel %vm1707, %v3387, 0
    %3397 = vmatprep.subr.mxu0 %v3395
    %3398 = vmatpush1.msra.mxu0 %v3392
    %3399 = vmatprep.subr.mxu0 0.0
    %3400 = vmatpush1.msra.mxu0 0.0
    %3401 = vmatprep.subr.mxu0 0.0
    %3402 = vmatpush1.msra.mxu0 0.0
    %3403 = vmatprep.subr.mxu0 0.0
    %3404 = vmatpush1.msra.mxu0 0.0
    %3405 = vmatprep.subr.mxu0 0.0
    %3406 = vmatpush1.msra.mxu0 0.0
    %3407 = vmatprep.subr.mxu0 0.0
    %3408 = vmatpush1.msra.mxu0 0.0
    %3409 = vmatprep.subr.mxu0 0.0
    %3410 = vmatpush1.msra.mxu0 0.0
    %3411 = vmatprep.subr.mxu0 0.0
    %3412 = vmatpush1.msra.mxu0 0.0
    %3413 = vmatprep.subr.mxu0 0.0
    %3414 = vmatpush1.msra.mxu0 0.0
    %3415 = vmatprep.subr.mxu0 0.0
    %3416 = vmatpush1.msra.mxu0 0.0
    %3417 = vmatprep.subr.mxu0 0.0
    %3418 = vmatpush1.msra.mxu0 0.0
    %3419 = vmatprep.subr.mxu0 0.0
    %3420 = vmatpush1.msra.mxu0 0.0
    %3421 = vmatprep.subr.mxu0 0.0
    %3422 = vmatpush1.msra.mxu0 0.0
    %3423 = vmatprep.subr.mxu0 0.0
    %3424 = vmatpush1.msra.mxu0 0.0
    %3425 = vmatprep.subr.mxu0 0.0
    %3426 = vmatpush1.msra.mxu0 0.0
    %3427 = vmatprep.subr.mxu0 0.0
    %3428 = vmatpush1.msra.mxu0 0.0
    %3429 = vmatprep.subr.mxu0 0.0
    %3430 = vmatpush1.msra.mxu0 0.0
    %3431 = vmatprep.subr.mxu0 0.0
    %3432 = vmatpush1.msra.mxu0 0.0
    %3433 = vmatprep.subr.mxu0 0.0
    %3434 = vmatpush1.msra.mxu0 0.0
    %3435 = vmatprep.subr.mxu0 0.0
    %3436 = vmatpush1.msra.mxu0 0.0
    %3437 = vmatprep.subr.mxu0 0.0
    %3438 = vmatpush1.msra.mxu0 0.0
    %3439 = vmatprep.subr.mxu0 0.0
    %3440 = vmatpush1.msra.mxu0 0.0
    %3441 = vmatprep.subr.mxu0 0.0
    %3442 = vmatpush1.msra.mxu0 0.0
    %3443 = vmatprep.subr.mxu0 0.0
    %3444 = vmatpush1.msra.mxu0 0.0
    %3445 = vmatprep.subr.mxu0 0.0
    %3446 = vmatpush1.msra.mxu0 0.0
    %3447 = vmatprep.subr.mxu0 0.0
    %3448 = vmatpush1.msra.mxu0 0.0
    %3449 = vmatprep.subr.mxu0 0.0
    %3450 = vmatpush1.msra.mxu0 0.0
    %3451 = vmatprep.subr.mxu0 0.0
    %3452 = vmatpush1.msra.mxu0 0.0
    %3453 = vmatprep.subr.mxu0 0.0
    %3454 = vmatpush1.msra.mxu0 0.0
    %3455 = vmatprep.subr.mxu0 0.0
    %3456 = vmatpush1.msra.mxu0 0.0
    %3457 = vmatprep.subr.mxu0 0.0
    %3458 = vmatpush1.msra.mxu0 0.0
    %3459 = vmatprep.subr.mxu0 0.0
    %3460 = vmatpush1.msra.mxu0 0.0
    %3461 = vmatprep.mubr.f32.mxu0 0.0
    %3462 = vmatmul.mubr.f32.gmra.mrb[0].mxu0 %v3389
    %v3463 = vpop.f32.mrb[0].mxu0
    %v3464 = vadd.f32 0.0, %v3463
    %v3465 = vpop.f32.mrb[0].mxu0
    %v3466 = vadd.f32 0.0, %v3465
    %3467 = vdwg.mxu0
    %v3468 = vmul.f32 %v3464, %v948
    %v3469 = vmul.f32 %v3466, %v950
    %v3470 = vld [vmem:[%s13] sm:$0xff]
    %v3471 = vld [vmem:[%s13 + $0x8] sm:$0xff]
    %v3472 = vld [vmem:[%s13 + $0x10] sm:$0xff]
    %v3473 = vld [vmem:[%s13 + $0x18] sm:$0xff]
    %v3474 = vld [vmem:[%s13 + $0x20] sm:$0xff]
    %v3475 = vld [vmem:[%s13 + $0x28] sm:$0xff]
    %v3476 = vld [vmem:[%s13 + $0x30] sm:$0xff]
    %v3477 = vld [vmem:[%s13 + $0x38] sm:$0xff]
    %v3478 = vld [vmem:[%s13 + $0x40] sm:$0xff]
    %v3479 = vld [vmem:[%s13 + $0x48] sm:$0xff]
    %v3480 = vld [vmem:[%s13 + $0x50] sm:$0xff]
    %v3481 = vld [vmem:[%s13 + $0x58] sm:$0xff]
    %v3482 = vld [vmem:[%s13 + $0x60] sm:$0xff]
    %v3483 = vld [vmem:[%s13 + $0x68] sm:$0xff]
    %v3484 = vld [vmem:[%s13 + $0x70] sm:$0xff]
    %v3485 = vld [vmem:[%s13 + $0x78] sm:$0xff]
    %v3486 = vld [vmem:[%s13 + $0x80] sm:$0xff]
    %v3487 = vld [vmem:[%s13 + $0x88] sm:$0xff]
    %v3488 = vld [vmem:[%s13 + $0x90] sm:$0xff]
    %v3489 = vld [vmem:[%s13 + $0x98] sm:$0xff]
    %v3490 = vld [vmem:[%s13 + $0xa0] sm:$0xff]
    %v3491 = vld [vmem:[%s13 + $0xa8] sm:$0xff]
    %v3492 = vld [vmem:[%s13 + $0xb0] sm:$0xff]
    %v3493 = vld [vmem:[%s13 + $0xb8] sm:$0xff]
    %v3494 = vld [vmem:[%s13 + $0xc0] sm:$0xff]
    %v3495 = vld [vmem:[%s13 + $0xc8] sm:$0xff]
    %v3496 = vld [vmem:[%s13 + $0xd0] sm:$0xff]
    %v3497 = vld [vmem:[%s13 + $0xd8] sm:$0xff]
    %v3499 = vsel %vm947, %v3469, 0
    %3501 = vmatprep.subr.mxu0 0.0
    %3502 = vmatpush1.msra.mxu0 %v3470
    %3503 = vmatprep.subr.mxu0 0.0
    %3504 = vmatpush1.msra.mxu0 %v3471
    %3505 = vmatprep.subr.mxu0 0.0
    %3506 = vmatpush1.msra.mxu0 %v3472
    %3507 = vmatprep.subr.mxu0 0.0
    %3508 = vmatpush1.msra.mxu0 %v3473
    %3509 = vmatprep.subr.mxu0 0.0
    %3510 = vmatpush1.msra.mxu0 %v3474
    %3511 = vmatprep.subr.mxu0 0.0
    %3512 = vmatpush1.msra.mxu0 %v3475
    %3513 = vmatprep.subr.mxu0 0.0
    %3514 = vmatpush1.msra.mxu0 %v3476
    %3515 = vmatprep.subr.mxu0 0.0
    %3516 = vmatpush1.msra.mxu0 %v3477
    %3517 = vmatprep.subr.mxu0 0.0
    %3518 = vmatpush1.msra.mxu0 %v3478
    %3519 = vmatprep.subr.mxu0 0.0
    %3520 = vmatpush1.msra.mxu0 %v3479
    %3521 = vmatprep.subr.mxu0 0.0
    %3522 = vmatpush1.msra.mxu0 %v3480
    %3523 = vmatprep.subr.mxu0 0.0
    %3524 = vmatpush1.msra.mxu0 %v3481
    %3525 = vmatprep.subr.mxu0 0.0
    %3526 = vmatpush1.msra.mxu0 %v3482
    %3527 = vmatprep.subr.mxu0 0.0
    %3528 = vmatpush1.msra.mxu0 %v3483
    %3529 = vmatprep.subr.mxu0 0.0
    %3530 = vmatpush1.msra.mxu0 %v3484
    %3531 = vmatprep.subr.mxu0 0.0
    %3532 = vmatpush1.msra.mxu0 %v3485
    %3533 = vmatprep.subr.mxu0 0.0
    %3534 = vmatpush1.msra.mxu0 %v3486
    %3535 = vmatprep.subr.mxu0 0.0
    %3536 = vmatpush1.msra.mxu0 %v3487
    %3537 = vmatprep.subr.mxu0 0.0
    %3538 = vmatpush1.msra.mxu0 %v3488
    %3539 = vmatprep.subr.mxu0 0.0
    %3540 = vmatpush1.msra.mxu0 %v3489
    %3541 = vmatprep.subr.mxu0 0.0
    %3542 = vmatpush1.msra.mxu0 %v3490
    %3543 = vmatprep.subr.mxu0 0.0
    %3544 = vmatpush1.msra.mxu0 %v3491
    %3545 = vmatprep.subr.mxu0 0.0
    %3546 = vmatpush1.msra.mxu0 %v3492
    %3547 = vmatprep.subr.mxu0 0.0
    %3548 = vmatpush1.msra.mxu0 %v3493
    %3549 = vmatprep.subr.mxu0 0.0
    %3550 = vmatpush1.msra.mxu0 %v3494
    %3551 = vmatprep.subr.mxu0 0.0
    %3552 = vmatpush1.msra.mxu0 %v3495
    %3553 = vmatprep.subr.mxu0 0.0
    %3554 = vmatpush1.msra.mxu0 %v3496
    %3555 = vmatprep.subr.mxu0 0.0
    %3556 = vmatpush1.msra.mxu0 %v3497
    %3557 = vmatprep.subr.mxu0 0.0
    %3558 = vmatpush1.msra.mxu0 0.0
    %3559 = vmatprep.subr.mxu0 0.0
    %3560 = vmatpush1.msra.mxu0 0.0
    %3561 = vmatprep.subr.mxu0 0.0
    %3562 = vmatpush1.msra.mxu0 0.0
    %3563 = vmatprep.subr.mxu0 0.0
    %3564 = vmatpush1.msra.mxu0 0.0
    %3565 = vmatprep.mubr.f32.mxu0 %v3499
    %3566 = vmatmul.mubr.f32.gmra.mrb[0].mxu0 %v3468
    %v3567 = vpop.f32.mrb[0].mxu0
    %v3568 = vadd.f32 0.0, %v3567
    %v3569 = vpop.f32.mrb[0].mxu0
    %3570 = vdwg.mxu0
    %3572 = vrot.lane.b32.xlu0 %v3568, 16
    %v3573 = vpop.permute.xlu0 %3572
    %v3575 = vsel %vm100, %v3190, %v3573
    %v3577 = vsel %vm1899, %v3575, 0
    %3579 = vmatprep.subr.mxu0 0.0
    %3580 = vmatpush1.msra.mxu0 %v1484
    %3581 = vmatprep.subr.mxu0 0.0
    %3582 = vmatpush1.msra.mxu0 %v1485
    %3583 = vmatprep.subr.mxu0 0.0
    %3584 = vmatpush1.msra.mxu0 %v1486
    %3585 = vmatprep.subr.mxu0 0.0
    %3586 = vmatpush1.msra.mxu0 %v1487
    %3587 = vmatprep.subr.mxu0 0.0
    %3588 = vmatpush1.msra.mxu0 %v1488
    %3589 = vmatprep.subr.mxu0 0.0
    %3590 = vmatpush1.msra.mxu0 %v1489
    %3591 = vmatprep.subr.mxu0 0.0
    %3592 = vmatpush1.msra.mxu0 0.0
    %3593 = vmatprep.subr.mxu0 0.0
    %3594 = vmatpush1.msra.mxu0 0.0
    %3595 = vmatprep.subr.mxu0 0.0
    %3596 = vmatpush1.msra.mxu0 0.0
    %3597 = vmatprep.subr.mxu0 0.0
    %3598 = vmatpush1.msra.mxu0 0.0
    %3599 = vmatprep.subr.mxu0 0.0
    %3600 = vmatpush1.msra.mxu0 0.0
    %3601 = vmatprep.subr.mxu0 0.0
    %3602 = vmatpush1.msra.mxu0 0.0
    %3603 = vmatprep.subr.mxu0 0.0
    %3604 = vmatpush1.msra.mxu0 0.0
    %3605 = vmatprep.subr.mxu0 0.0
    %3606 = vmatpush1.msra.mxu0 0.0
    %3607 = vmatprep.subr.mxu0 0.0
    %3608 = vmatpush1.msra.mxu0 0.0
    %3609 = vmatprep.subr.mxu0 0.0
    %3610 = vmatpush1.msra.mxu0 0.0
    %3611 = vmatprep.subr.mxu0 0.0
    %3612 = vmatpush1.msra.mxu0 0.0
    %3613 = vmatprep.subr.mxu0 0.0
    %3614 = vmatpush1.msra.mxu0 0.0
    %3615 = vmatprep.subr.mxu0 0.0
    %3616 = vmatpush1.msra.mxu0 0.0
    %3617 = vmatprep.subr.mxu0 0.0
    %3618 = vmatpush1.msra.mxu0 0.0
    %3619 = vmatprep.subr.mxu0 0.0
    %3620 = vmatpush1.msra.mxu0 0.0
    %3621 = vmatprep.subr.mxu0 0.0
    %3622 = vmatpush1.msra.mxu0 0.0
    %3623 = vmatprep.subr.mxu0 0.0
    %3624 = vmatpush1.msra.mxu0 0.0
    %3625 = vmatprep.subr.mxu0 0.0
    %3626 = vmatpush1.msra.mxu0 0.0
    %3627 = vmatprep.subr.mxu0 0.0
    %3628 = vmatpush1.msra.mxu0 0.0
    %3629 = vmatprep.subr.mxu0 0.0
    %3630 = vmatpush1.msra.mxu0 0.0
    %3631 = vmatprep.subr.mxu0 0.0
    %3632 = vmatpush1.msra.mxu0 0.0
    %3633 = vmatprep.subr.mxu0 0.0
    %3634 = vmatpush1.msra.mxu0 0.0
    %3635 = vmatprep.subr.mxu0 0.0
    %3636 = vmatpush1.msra.mxu0 0.0
    %3637 = vmatprep.subr.mxu0 0.0
    %3638 = vmatpush1.msra.mxu0 0.0
    %3639 = vmatprep.subr.mxu0 0.0
    %3640 = vmatpush1.msra.mxu0 0.0
    %3641 = vmatprep.subr.mxu0 0.0
    %3642 = vmatpush1.msra.mxu0 0.0
    %3643 = vmatprep.mubr.f32.mxu0 0.0
    %3644 = vmatmul.mubr.f32.gmra.mrb[0].mxu0 %v3577
    %v3645 = vpop.f32.mrb[0].mxu0
    %v3646 = vadd.f32 %v1897, %v3645
    %v3647 = vpop.f32.mrb[0].mxu0
    %3648 = vdwg.mxu0
    %3649 = vmatprep.subr.mxu0 0.0
    %3650 = vmatpush1.msra.mxu0 %v1490
    %3651 = vmatprep.subr.mxu0 0.0
    %3652 = vmatpush1.msra.mxu0 %v1491
    %3653 = vmatprep.subr.mxu0 0.0
    %3654 = vmatpush1.msra.mxu0 %v1492
    %3655 = vmatprep.subr.mxu0 0.0
    %3656 = vmatpush1.msra.mxu0 %v1493
    %3657 = vmatprep.subr.mxu0 0.0
    %3658 = vmatpush1.msra.mxu0 0.0
    %3659 = vmatprep.subr.mxu0 0.0
    %3660 = vmatpush1.msra.mxu0 0.0
    %3661 = vmatprep.subr.mxu0 0.0
    %3662 = vmatpush1.msra.mxu0 0.0
    %3663 = vmatprep.subr.mxu0 0.0
    %3664 = vmatpush1.msra.mxu0 0.0
    %3665 = vmatprep.subr.mxu0 0.0
    %3666 = vmatpush1.msra.mxu0 0.0
    %3667 = vmatprep.subr.mxu0 0.0
    %3668 = vmatpush1.msra.mxu0 0.0
    %3669 = vmatprep.subr.mxu0 0.0
    %3670 = vmatpush1.msra.mxu0 0.0
    %3671 = vmatprep.subr.mxu0 0.0
    %3672 = vmatpush1.msra.mxu0 0.0
    %3673 = vmatprep.subr.mxu0 0.0
    %3674 = vmatpush1.msra.mxu0 0.0
    %3675 = vmatprep.subr.mxu0 0.0
    %3676 = vmatpush1.msra.mxu0 0.0
    %3677 = vmatprep.subr.mxu0 0.0
    %3678 = vmatpush1.msra.mxu0 0.0
    %3679 = vmatprep.subr.mxu0 0.0
    %3680 = vmatpush1.msra.mxu0 0.0
    %3681 = vmatprep.subr.mxu0 0.0
    %3682 = vmatpush1.msra.mxu0 0.0
    %3683 = vmatprep.subr.mxu0 0.0
    %3684 = vmatpush1.msra.mxu0 0.0
    %3685 = vmatprep.subr.mxu0 0.0
    %3686 = vmatpush1.msra.mxu0 0.0
    %3687 = vmatprep.subr.mxu0 0.0
    %3688 = vmatpush1.msra.mxu0 0.0
    %3689 = vmatprep.subr.mxu0 0.0
    %3690 = vmatpush1.msra.mxu0 0.0
    %3691 = vmatprep.subr.mxu0 0.0
    %3692 = vmatpush1.msra.mxu0 0.0
    %3693 = vmatprep.subr.mxu0 0.0
    %3694 = vmatpush1.msra.mxu0 0.0
    %3695 = vmatprep.subr.mxu0 0.0
    %3696 = vmatpush1.msra.mxu0 0.0
    %3697 = vmatprep.subr.mxu0 0.0
    %3698 = vmatpush1.msra.mxu0 0.0
    %3699 = vmatprep.subr.mxu0 0.0
    %3700 = vmatpush1.msra.mxu0 0.0
    %3701 = vmatprep.subr.mxu0 0.0
    %3702 = vmatpush1.msra.mxu0 0.0
    %3703 = vmatprep.subr.mxu0 0.0
    %3704 = vmatpush1.msra.mxu0 0.0
    %3705 = vmatprep.subr.mxu0 0.0
    %3706 = vmatpush1.msra.mxu0 0.0
    %3707 = vmatprep.subr.mxu0 0.0
    %3708 = vmatpush1.msra.mxu0 0.0
    %3709 = vmatprep.subr.mxu0 0.0
    %3710 = vmatpush1.msra.mxu0 0.0
    %3711 = vmatprep.subr.mxu0 0.0
    %3712 = vmatpush1.msra.mxu0 0.0
    %3713 = vmatprep.mubr.f32.mxu0 0.0
    %3714 = vmatmul.mubr.f32.gmra.mrb[0].mxu0 %v2922
    %v3715 = vpop.f32.mrb[0].mxu0
    %v3716 = vadd.f32 %v1977, %v3715
    %v3717 = vpop.f32.mrb[0].mxu0
    %3718 = vdwg.mxu0
    %v3719 = vadd.f32 %v3646, %v3716
    %v3720 = vxor.u32 %v3719, 2147483648
    %v3721 = vmul.f32 %v3720, 1.442695
    %v3722 = vpow.pop %v3721
    %v3723 = vadd.f32 %v3722, 1.0
    %v3724 = vrcp.pop %v3723
    %v3725 = vmul.f32 1.0, %v3724
    %3727 = vrot.lane.b32.xlu0 %v3716, 64
    %v3728 = vpop.permute.xlu0 %3727
    %v3730 = vmul.f32 %v3725, %v3728
    %3732 = vrot.lane.b32.xlu0 %v3730, 64
    %v3733 = vpop.permute.xlu0 %3732
    %v3735 = vadd.f32 %v3646, %v3733
    %v3736 = vtanh.pop %v3735
    %v3737 = vsub.f32 1.0, %v3725
    %3739 = vrot.lane.b32.xlu0 %v3736, 96
    %v3740 = vpop.permute.xlu0 %3739
    %v3742 = vmul.f32 %v3737, %v3740
    %v3743 = vmul.f32 %v3725, %v2912
    %v3744 = vadd.f32 %v3742, %v3743
    %v3745 = vld [vmem:[%s18] sm:$0xff]
    %v3746 = vld [vmem:[%s18 + $0x8] sm:$0xff]
    %v3747 = vld [vmem:[%s18 + $0x10] sm:$0xff]
    %v3748 = vld [vmem:[%s18 + $0x18] sm:$0xff]
    %v3749 = vld [vmem:[%s18 + $0x20] sm:$0xff]
    %v3750 = vld [vmem:[%s18 + $0x28] sm:$0xff]
    %3752 = vrot.lane.b32.xlu0 %v3744, 96
    %v3753 = vpop.permute.xlu0 %3752
    %v3754 = vsel %vm204, %v3753, 0
    %3756 = vmatprep.subr.mxu0 0.0
    %3757 = vmatpush1.msra.mxu0 %v1496
    %3758 = vmatprep.subr.mxu0 0.0
    %3759 = vmatpush1.msra.mxu0 %v1497
    %3760 = vmatprep.subr.mxu0 0.0
    %3761 = vmatpush1.msra.mxu0 %v1498
    %3762 = vmatprep.subr.mxu0 0.0
    %3763 = vmatpush1.msra.mxu0 %v1499
    %3764 = vmatprep.subr.mxu0 0.0
    %3765 = vmatpush1.msra.mxu0 0.0
    %3766 = vmatprep.subr.mxu0 0.0
    %3767 = vmatpush1.msra.mxu0 0.0
    %3768 = vmatprep.subr.mxu0 0.0
    %3769 = vmatpush1.msra.mxu0 0.0
    %3770 = vmatprep.subr.mxu0 0.0
    %3771 = vmatpush1.msra.mxu0 0.0
    %3772 = vmatprep.subr.mxu0 0.0
    %3773 = vmatpush1.msra.mxu0 0.0
    %3774 = vmatprep.subr.mxu0 0.0
    %3775 = vmatpush1.msra.mxu0 0.0
    %3776 = vmatprep.subr.mxu0 0.0
    %3777 = vmatpush1.msra.mxu0 0.0
    %3778 = vmatprep.subr.mxu0 0.0
    %3779 = vmatpush1.msra.mxu0 0.0
    %3780 = vmatprep.subr.mxu0 0.0
    %3781 = vmatpush1.msra.mxu0 0.0
    %3782 = vmatprep.subr.mxu0 0.0
    %3783 = vmatpush1.msra.mxu0 0.0
    %3784 = vmatprep.subr.mxu0 0.0
    %3785 = vmatpush1.msra.mxu0 0.0
    %3786 = vmatprep.subr.mxu0 0.0
    %3787 = vmatpush1.msra.mxu0 0.0
    %3788 = vmatprep.subr.mxu0 0.0
    %3789 = vmatpush1.msra.mxu0 0.0
    %3790 = vmatprep.subr.mxu0 0.0
    %3791 = vmatpush1.msra.mxu0 0.0
    %3792 = vmatprep.subr.mxu0 0.0
    %3793 = vmatpush1.msra.mxu0 0.0
    %3794 = vmatprep.subr.mxu0 0.0
    %3795 = vmatpush1.msra.mxu0 0.0
    %3796 = vmatprep.subr.mxu0 0.0
    %3797 = vmatpush1.msra.mxu0 0.0
    %3798 = vmatprep.subr.mxu0 0.0
    %3799 = vmatpush1.msra.mxu0 0.0
    %3800 = vmatprep.subr.mxu0 0.0
    %3801 = vmatpush1.msra.mxu0 0.0
    %3802 = vmatprep.subr.mxu0 0.0
    %3803 = vmatpush1.msra.mxu0 0.0
    %3804 = vmatprep.subr.mxu0 0.0
    %3805 = vmatpush1.msra.mxu0 0.0
    %3806 = vmatprep.subr.mxu0 0.0
    %3807 = vmatpush1.msra.mxu0 0.0
    %3808 = vmatprep.subr.mxu0 0.0
    %3809 = vmatpush1.msra.mxu0 0.0
    %3810 = vmatprep.subr.mxu0 0.0
    %3811 = vmatpush1.msra.mxu0 0.0
    %3812 = vmatprep.subr.mxu0 0.0
    %3813 = vmatpush1.msra.mxu0 0.0
    %3814 = vmatprep.subr.mxu0 0.0
    %3815 = vmatpush1.msra.mxu0 0.0
    %3816 = vmatprep.subr.mxu0 0.0
    %3817 = vmatpush1.msra.mxu0 0.0
    %3818 = vmatprep.subr.mxu0 0.0
    %3819 = vmatpush1.msra.mxu0 0.0
    %3820 = vmatprep.mubr.f32.mxu0 0.0
    %3821 = vmatmul.mubr.f32.gmra.mrb[0].mxu0 %v3754
    %v3822 = vpop.f32.mrb[0].mxu0
    %v3823 = vadd.f32 0.0, %v3822
    %v3824 = vpop.f32.mrb[0].mxu0
    %3825 = vdwg.mxu0
    %3826 = vmatprep.subr.mxu0 0.0
    %3827 = vmatpush1.msra.mxu0 %v3745
    %3828 = vmatprep.subr.mxu0 0.0
    %3829 = vmatpush1.msra.mxu0 %v3746
    %3830 = vmatprep.subr.mxu0 0.0
    %3831 = vmatpush1.msra.mxu0 %v3747
    %3832 = vmatprep.subr.mxu0 0.0
    %3833 = vmatpush1.msra.mxu0 %v3748
    %3834 = vmatprep.subr.mxu0 0.0
    %3835 = vmatpush1.msra.mxu0 %v3749
    %3836 = vmatprep.subr.mxu0 0.0
    %3837 = vmatpush1.msra.mxu0 %v3750
    %3838 = vmatprep.subr.mxu0 0.0
    %3839 = vmatpush1.msra.mxu0 0.0
    %3840 = vmatprep.subr.mxu0 0.0
    %3841 = vmatpush1.msra.mxu0 0.0
    %3842 = vmatprep.subr.mxu0 0.0
    %3843 = vmatpush1.msra.mxu0 0.0
    %3844 = vmatprep.subr.mxu0 0.0
    %3845 = vmatpush1.msra.mxu0 0.0
    %3846 = vmatprep.subr.mxu0 0.0
    %3847 = vmatpush1.msra.mxu0 0.0
    %3848 = vmatprep.subr.mxu0 0.0
    %3849 = vmatpush1.msra.mxu0 0.0
    %3850 = vmatprep.subr.mxu0 0.0
    %3851 = vmatpush1.msra.mxu0 0.0
    %3852 = vmatprep.subr.mxu0 0.0
    %3853 = vmatpush1.msra.mxu0 0.0
    %3854 = vmatprep.subr.mxu0 0.0
    %3855 = vmatpush1.msra.mxu0 0.0
    %3856 = vmatprep.subr.mxu0 0.0
    %3857 = vmatpush1.msra.mxu0 0.0
    %3858 = vmatprep.subr.mxu0 0.0
    %3859 = vmatpush1.msra.mxu0 0.0
    %3860 = vmatprep.subr.mxu0 0.0
    %3861 = vmatpush1.msra.mxu0 0.0
    %3862 = vmatprep.subr.mxu0 0.0
    %3863 = vmatpush1.msra.mxu0 0.0
    %3864 = vmatprep.subr.mxu0 0.0
    %3865 = vmatpush1.msra.mxu0 0.0
    %3866 = vmatprep.subr.mxu0 0.0
    %3867 = vmatpush1.msra.mxu0 0.0
    %3868 = vmatprep.subr.mxu0 0.0
    %3869 = vmatpush1.msra.mxu0 0.0
    %3870 = vmatprep.subr.mxu0 0.0
    %3871 = vmatpush1.msra.mxu0 0.0
    %3872 = vmatprep.subr.mxu0 0.0
    %3873 = vmatpush1.msra.mxu0 0.0
    %3874 = vmatprep.subr.mxu0 0.0
    %3875 = vmatpush1.msra.mxu0 0.0
    %3876 = vmatprep.subr.mxu0 0.0
    %3877 = vmatpush1.msra.mxu0 0.0
    %3878 = vmatprep.subr.mxu0 0.0
    %3879 = vmatpush1.msra.mxu0 0.0
    %3880 = vmatprep.subr.mxu0 0.0
    %3881 = vmatpush1.msra.mxu0 0.0
    %3882 = vmatprep.subr.mxu0 0.0
    %3883 = vmatpush1.msra.mxu0 0.0
    %3884 = vmatprep.subr.mxu0 0.0
    %3885 = vmatpush1.msra.mxu0 0.0
    %3886 = vmatprep.subr.mxu0 0.0
    %3887 = vmatpush1.msra.mxu0 0.0
    %3888 = vmatprep.subr.mxu0 0.0
    %3889 = vmatpush1.msra.mxu0 0.0
    %3890 = vmatprep.mubr.f32.mxu0 0.0
    %3891 = vmatmul.mubr.f32.gmra.mrb[0].mxu0 %v3577
    %v3892 = vpop.f32.mrb[0].mxu0
    %v3893 = vadd.f32 %v3823, %v3892
    %v3894 = vpop.f32.mrb[0].mxu0
    %3895 = vdwg.mxu0
    %v3896 = vadd.f32 %v3893, %v2230
    %3897 = vst [vmem:[#allocation6 + $0xc] sm:$0xf] %v3896
    %s3898 = sld [smem:[#allocation3 + $0x3]]
    %p3899 = scmp.eq.s32.totalorder %s3898, 0
    // Predicated region
    $region106: #{seq2seq_forward.1} parent=1 // pred_check
      %p3900 = pneg %p3899
    $region107: #{seq2seq_forward.1} parent=1 // pred_check_branch
      %3902 = sbr.rel (%p3900) target = $region109
    $region108: #{seq2seq_forward.1} parent=1 // pred_region
      %vm3903 = vcmask 1043456
      %v3904 = vsel %vm3903, %v3896, -inf
      %3905 = vmax.xlane.f32.xlu0 %v3904
      %v3906 = vpop.xlane.xlu0 %3905
      %vm3907 = vcmp.eq.f32.partialorder %v3896, %v3906
      %v3908 = vsel %vm3907, %v1502, 128
      %v3909 = vsel %vm3903, %v3908, 2147483647
      %v3910 = vand.u32 %v3909, 65535
      %v3911 = vshra.s32 %v3909, 16
      %v3912 = vcvt.s32.f32 %v3910
      %v3913 = vcvt.s32.f32 %v3911
      %3914 = vmin.xlane.f32.xlu0 %v3913
      %v3915 = vpop.xlane.xlu0 %3914
      %vm3916 = vcmp.eq.f32.partialorder %v3913, %v3915
      %v3917 = vsel %vm3916, %v3912, inf
      %3918 = vmin.xlane.f32.xlu0 %v3917
      %v3919 = vpop.xlane.xlu0 %3918
      %v3920 = vcvt.f32.s32 %v3919
      %v3921 = vcvt.f32.s32 %v3915
      %v3922 = vshll.u32 %v3921, 16
      %v3923 = vadd.s32 %v3922, %v3920
      %vm3924 = vcmp.eq.s32.totalorder %v1502, %v3923
      %v3925 = vsel %vm3924, 1, 0
      %v3926 = vcvt.s32.f32 %v3925
      %v3927 = vld [vmem:[%s3] sm:$0xff]
      %v3928 = vld [vmem:[%s3 + $0x8] sm:$0xff]
      %v3929 = vld [vmem:[%s3 + $0x10] sm:$0xff]
      %v3930 = vld [vmem:[%s3 + $0x18] sm:$0xff]
      %v3931 = vld [vmem:[%s3 + $0x20] sm:$0xff]
      %v3932 = vld [vmem:[%s3 + $0x28] sm:$0xff]
      %v3933 = vld [vmem:[%s3 + $0x30] sm:$0xff]
      %v3934 = vld [vmem:[%s3 + $0x38] sm:$0xff]
      %v3935 = vld [vmem:[%s3 + $0x40] sm:$0xff]
      %v3936 = vld [vmem:[%s3 + $0x48] sm:$0xff]
      %v3937 = vld [vmem:[%s3 + $0x50] sm:$0xff]
      %v3938 = vld [vmem:[%s3 + $0x58] sm:$0xff]
      %v3939 = vld [vmem:[%s3 + $0x60] sm:$0xff]
      %v3940 = vld [vmem:[%s3 + $0x68] sm:$0xff]
      %v3941 = vld [vmem:[%s3 + $0x70] sm:$0xff]
      %v3942 = vld [vmem:[%s3 + $0x78] sm:$0xff]
      %3943 = vmatprep.subr.mxu0 0.0
      %3944 = vmatpush1.msra.mxu0 %v3927
      %3945 = vmatprep.subr.mxu0 0.0
      %3946 = vmatpush1.msra.mxu0 %v3928
      %3947 = vmatprep.subr.mxu0 0.0
      %3948 = vmatpush1.msra.mxu0 %v3929
      %3949 = vmatprep.subr.mxu0 0.0
      %3950 = vmatpush1.msra.mxu0 %v3930
      %3951 = vmatprep.subr.mxu0 0.0
      %3952 = vmatpush1.msra.mxu0 %v3931
      %3953 = vmatprep.subr.mxu0 0.0
      %3954 = vmatpush1.msra.mxu0 %v3932
      %3955 = vmatprep.subr.mxu0 0.0
      %3956 = vmatpush1.msra.mxu0 %v3933
      %3957 = vmatprep.subr.mxu0 0.0
      %3958 = vmatpush1.msra.mxu0 %v3934
      %3959 = vmatprep.subr.mxu0 0.0
      %3960 = vmatpush1.msra.mxu0 %v3935
      %3961 = vmatprep.subr.mxu0 0.0
      %3962 = vmatpush1.msra.mxu0 %v3936
      %3963 = vmatprep.subr.mxu0 0.0
      %3964 = vmatpush1.msra.mxu0 %v3937
      %3965 = vmatprep.subr.mxu0 0.0
      %3966 = vmatpush1.msra.mxu0 %v3938
      %3967 = vmatprep.subr.mxu0 0.0
      %3968 = vmatpush1.msra.mxu0 %v3939
      %3969 = vmatprep.subr.mxu0 0.0
      %3970 = vmatpush1.msra.mxu0 %v3940
      %3971 = vmatprep.subr.mxu0 0.0
      %3972 = vmatpush1.msra.mxu0 %v3941
      %3973 = vmatprep.subr.mxu0 0.0
      %3974 = vmatpush1.msra.mxu0 %v3942
      %3975 = vmatprep.subr.mxu0 0.0
      %3976 = vmatpush1.msra.mxu0 0.0
      %3977 = vmatprep.subr.mxu0 0.0
      %3978 = vmatpush1.msra.mxu0 0.0
      %3979 = vmatprep.subr.mxu0 0.0
      %3980 = vmatpush1.msra.mxu0 0.0
      %3981 = vmatprep.subr.mxu0 0.0
      %3982 = vmatpush1.msra.mxu0 0.0
      %3983 = vmatprep.subr.mxu0 0.0
      %3984 = vmatpush1.msra.mxu0 0.0
      %3985 = vmatprep.subr.mxu0 0.0
      %3986 = vmatpush1.msra.mxu0 0.0
      %3987 = vmatprep.subr.mxu0 0.0
      %3988 = vmatpush1.msra.mxu0 0.0
      %3989 = vmatprep.subr.mxu0 0.0
      %3990 = vmatpush1.msra.mxu0 0.0
      %3991 = vmatprep.subr.mxu0 0.0
      %3992 = vmatpush1.msra.mxu0 0.0
      %3993 = vmatprep.subr.mxu0 0.0
      %3994 = vmatpush1.msra.mxu0 0.0
      %3995 = vmatprep.subr.mxu0 0.0
      %3996 = vmatpush1.msra.mxu0 0.0
      %3997 = vmatprep.subr.mxu0 0.0
      %3998 = vmatpush1.msra.mxu0 0.0
      %3999 = vmatprep.subr.mxu0 0.0
      %4000 = vmatpush1.msra.mxu0 0.0
      %4001 = vmatprep.subr.mxu0 0.0
      %4002 = vmatpush1.msra.mxu0 0.0
      %4003 = vmatprep.subr.mxu0 0.0
      %4004 = vmatpush1.msra.mxu0 0.0
      %4005 = vmatprep.subr.mxu0 0.0
      %4006 = vmatpush1.msra.mxu0 0.0
      %4007 = vmatprep.mubr.f32.mxu0 0.0
      %4008 = vmatmul.mubr.f32.gmra.mrb[0].mxu0 %v3926
      %v4009 = vpop.f32.mrb[0].mxu0
      %v4010 = vadd.f32 0.0, %v4009
      %v4011 = vpop.f32.mrb[0].mxu0
      %4012 = vdwg.mxu0
      %vm4013 = vcmask 125952
      %4014 = vst.msk [vmem:[#allocation2] sm:$0xf] %vm4013, %v4010
    $region109: #{seq2seq_forward.1} parent=1 // pred_fallthru
      _
    %p4015 = scmp.ne.s32.totalorder %s3898, 0
    // Predicated region
    $region110: #{seq2seq_forward.1} parent=1 // pred_check
      %p4016 = pneg %p4015
    $region111: #{seq2seq_forward.1} parent=1 // pred_check_branch
      %4018 = sbr.rel (%p4016) target = $region113
    $region112: #{seq2seq_forward.1} parent=1 // pred_region
      %v4019 = vld [vmem:[%s2 + $0xc] sm:$0xf]
      %vm4020 = vcmask 125952
      %4021 = vst.msk [vmem:[#allocation2] sm:$0xf] %vm4020, %v4019
    $region113: #{seq2seq_forward.1} parent=1 // pred_fallthru
      _
    %v4022 = vld [vmem:[#allocation2] sm:$0xf]
    %v4023 = vld [vmem:[%s9] sm:$0xff]
    %v4024 = vld [vmem:[%s9 + $0x8] sm:$0xff]
    %v4025 = vld [vmem:[%s9 + $0x10] sm:$0xff]
    %v4026 = vld [vmem:[%s9 + $0x18] sm:$0xff]
    %v4027 = vld [vmem:[%s9 + $0x20] sm:$0xff]
    %v4028 = vld [vmem:[%s9 + $0x28] sm:$0xff]
    %v4029 = vld [vmem:[%s9 + $0x30] sm:$0xff]
    %v4030 = vld [vmem:[%s9 + $0x38] sm:$0xff]
    %4031 = vmatprep.subr.mxu0 %v4024
    %4032 = vmatpush1.msra.mxu0 %v4023
    %4033 = vmatprep.subr.mxu0 %v4026
    %4034 = vmatpush1.msra.mxu0 %v4025
    %4035 = vmatprep.subr.mxu0 %v4028
    %4036 = vmatpush1.msra.mxu0 %v4027
    %4037 = vmatprep.subr.mxu0 %v4030
    %4038 = vmatpush1.msra.mxu0 %v4029
    %4039 = vmatprep.subr.mxu0 0.0
    %4040 = vmatpush1.msra.mxu0 0.0
    %4041 = vmatprep.subr.mxu0 0.0
    %4042 = vmatpush1.msra.mxu0 0.0
    %4043 = vmatprep.subr.mxu0 0.0
    %4044 = vmatpush1.msra.mxu0 0.0
    %4045 = vmatprep.subr.mxu0 0.0
    %4046 = vmatpush1.msra.mxu0 0.0
    %4047 = vmatprep.subr.mxu0 0.0
    %4048 = vmatpush1.msra.mxu0 0.0
    %4049 = vmatprep.subr.mxu0 0.0
    %4050 = vmatpush1.msra.mxu0 0.0
    %4051 = vmatprep.subr.mxu0 0.0
    %4052 = vmatpush1.msra.mxu0 0.0
    %4053 = vmatprep.subr.mxu0 0.0
    %4054 = vmatpush1.msra.mxu0 0.0
    %4055 = vmatprep.subr.mxu0 0.0
    %4056 = vmatpush1.msra.mxu0 0.0
    %4057 = vmatprep.subr.mxu0 0.0
    %4058 = vmatpush1.msra.mxu0 0.0
    %4059 = vmatprep.subr.mxu0 0.0
    %4060 = vmatpush1.msra.mxu0 0.0
    %4061 = vmatprep.subr.mxu0 0.0
    %4062 = vmatpush1.msra.mxu0 0.0
    %4063 = vmatprep.subr.mxu0 0.0
    %4064 = vmatpush1.msra.mxu0 0.0
    %4065 = vmatprep.subr.mxu0 0.0
    %4066 = vmatpush1.msra.mxu0 0.0
    %4067 = vmatprep.subr.mxu0 0.0
    %4068 = vmatpush1.msra.mxu0 0.0
    %4069 = vmatprep.subr.mxu0 0.0
    %4070 = vmatpush1.msra.mxu0 0.0
    %4071 = vmatprep.subr.mxu0 0.0
    %4072 = vmatpush1.msra.mxu0 0.0
    %4073 = vmatprep.subr.mxu0 0.0
    %4074 = vmatpush1.msra.mxu0 0.0
    %4075 = vmatprep.subr.mxu0 0.0
    %4076 = vmatpush1.msra.mxu0 0.0
    %4077 = vmatprep.subr.mxu0 0.0
    %4078 = vmatpush1.msra.mxu0 0.0
    %4079 = vmatprep.subr.mxu0 0.0
    %4080 = vmatpush1.msra.mxu0 0.0
    %4081 = vmatprep.subr.mxu0 0.0
    %4082 = vmatpush1.msra.mxu0 0.0
    %4083 = vmatprep.subr.mxu0 0.0
    %4084 = vmatpush1.msra.mxu0 0.0
    %4085 = vmatprep.subr.mxu0 0.0
    %4086 = vmatpush1.msra.mxu0 0.0
    %4087 = vmatprep.subr.mxu0 0.0
    %4088 = vmatpush1.msra.mxu0 0.0
    %4089 = vmatprep.subr.mxu0 0.0
    %4090 = vmatpush1.msra.mxu0 0.0
    %4091 = vmatprep.subr.mxu0 0.0
    %4092 = vmatpush1.msra.mxu0 0.0
    %4093 = vmatprep.subr.mxu0 0.0
    %4094 = vmatpush1.msra.mxu0 0.0
    %4095 = vmatprep.mubr.f32.mxu0 0.0
    %4096 = vmatmul.mubr.f32.gmra.mrb[0].mxu0 %v3754
    %v4097 = vpop.f32.mrb[0].mxu0
    %v4098 = vadd.f32 0.0, %v4097
    %v4099 = vpop.f32.mrb[0].mxu0
    %v4100 = vadd.f32 0.0, %v4099
    %4101 = vdwg.mxu0
    %v4102 = vadd.f32 %v1482, %v4098
    %v4103 = vadd.f32 %v1483, %v4100
    %v4104 = vtanh.pop %v4102
    %v4105 = vtanh.pop %v4103
    %v4106 = vld [vmem:[%s11] sm:$0xff]
    %v4107 = vld [vmem:[%s11 + $0x8] sm:$0xff]
    %v4108 = vld [vmem:[%s11 + $0x10] sm:$0xff]
    %v4109 = vld [vmem:[%s11 + $0x18] sm:$0xff]
    %v4110 = vld [vmem:[%s11 + $0x20] sm:$0xff]
    %v4111 = vld [vmem:[%s11 + $0x28] sm:$0xff]
    %v4112 = vld [vmem:[%s11 + $0x30] sm:$0xff]
    %v4113 = vld [vmem:[%s11 + $0x38] sm:$0xff]
    %v4114 = vld [vmem:[%s11 + $0x40] sm:$0xff]
    %v4115 = vld [vmem:[%s11 + $0x48] sm:$0xff]
    %v4116 = vld [vmem:[%s11 + $0x50] sm:$0xff]
    %v4117 = vld [vmem:[%s11 + $0x58] sm:$0xff]
    %v4118 = vld [vmem:[%s11 + $0x60] sm:$0xff]
    %v4119 = vld [vmem:[%s11 + $0x68] sm:$0xff]
    %v4120 = vld [vmem:[%s11 + $0x70] sm:$0xff]
    %v4121 = vld [vmem:[%s11 + $0x78] sm:$0xff]
    %v4122 = vld [vmem:[%s11 + $0x80] sm:$0xff]
    %v4123 = vld [vmem:[%s11 + $0x88] sm:$0xff]
    %v4124 = vld [vmem:[%s11 + $0x90] sm:$0xff]
    %v4125 = vld [vmem:[%s11 + $0x98] sm:$0xff]
    %v4126 = vld [vmem:[%s11 + $0xa0] sm:$0xff]
    %v4127 = vld [vmem:[%s11 + $0xa8] sm:$0xff]
    %v4128 = vld [vmem:[%s11 + $0xb0] sm:$0xff]
    %v4129 = vld [vmem:[%s11 + $0xb8] sm:$0xff]
    %v4130 = vld [vmem:[%s11 + $0xc0] sm:$0xff]
    %v4131 = vld [vmem:[%s11 + $0xc8] sm:$0xff]
    %v4132 = vld [vmem:[%s11 + $0xd0] sm:$0xff]
    %v4133 = vld [vmem:[%s11 + $0xd8] sm:$0xff]
    %v4135 = vsel %vm947, %v4105, 0
    %4137 = vmatprep.subr.mxu0 0.0
    %4138 = vmatpush1.msra.mxu0 %v4106
    %4139 = vmatprep.subr.mxu0 0.0
    %4140 = vmatpush1.msra.mxu0 %v4107
    %4141 = vmatprep.subr.mxu0 0.0
    %4142 = vmatpush1.msra.mxu0 %v4108
    %4143 = vmatprep.subr.mxu0 0.0
    %4144 = vmatpush1.msra.mxu0 %v4109
    %4145 = vmatprep.subr.mxu0 0.0
    %4146 = vmatpush1.msra.mxu0 %v4110
    %4147 = vmatprep.subr.mxu0 0.0
    %4148 = vmatpush1.msra.mxu0 %v4111
    %4149 = vmatprep.subr.mxu0 0.0
    %4150 = vmatpush1.msra.mxu0 %v4112
    %4151 = vmatprep.subr.mxu0 0.0
    %4152 = vmatpush1.msra.mxu0 %v4113
    %4153 = vmatprep.subr.mxu0 0.0
    %4154 = vmatpush1.msra.mxu0 %v4114
    %4155 = vmatprep.subr.mxu0 0.0
    %4156 = vmatpush1.msra.mxu0 %v4115
    %4157 = vmatprep.subr.mxu0 0.0
    %4158 = vmatpush1.msra.mxu0 %v4116
    %4159 = vmatprep.subr.mxu0 0.0
    %4160 = vmatpush1.msra.mxu0 %v4117
    %4161 = vmatprep.subr.mxu0 0.0
    %4162 = vmatpush1.msra.mxu0 %v4118
    %4163 = vmatprep.subr.mxu0 0.0
    %4164 = vmatpush1.msra.mxu0 %v4119
    %4165 = vmatprep.subr.mxu0 0.0
    %4166 = vmatpush1.msra.mxu0 %v4120
    %4167 = vmatprep.subr.mxu0 0.0
    %4168 = vmatpush1.msra.mxu0 %v4121
    %4169 = vmatprep.subr.mxu0 0.0
    %4170 = vmatpush1.msra.mxu0 %v4122
    %4171 = vmatprep.subr.mxu0 0.0
    %4172 = vmatpush1.msra.mxu0 %v4123
    %4173 = vmatprep.subr.mxu0 0.0
    %4174 = vmatpush1.msra.mxu0 %v4124
    %4175 = vmatprep.subr.mxu0 0.0
    %4176 = vmatpush1.msra.mxu0 %v4125
    %4177 = vmatprep.subr.mxu0 0.0
    %4178 = vmatpush1.msra.mxu0 %v4126
    %4179 = vmatprep.subr.mxu0 0.0
    %4180 = vmatpush1.msra.mxu0 %v4127
    %4181 = vmatprep.subr.mxu0 0.0
    %4182 = vmatpush1.msra.mxu0 %v4128
    %4183 = vmatprep.subr.mxu0 0.0
    %4184 = vmatpush1.msra.mxu0 %v4129
    %4185 = vmatprep.subr.mxu0 0.0
    %4186 = vmatpush1.msra.mxu0 %v4130
    %4187 = vmatprep.subr.mxu0 0.0
    %4188 = vmatpush1.msra.mxu0 %v4131
    %4189 = vmatprep.subr.mxu0 0.0
    %4190 = vmatpush1.msra.mxu0 %v4132
    %4191 = vmatprep.subr.mxu0 0.0
    %4192 = vmatpush1.msra.mxu0 %v4133
    %4193 = vmatprep.subr.mxu0 0.0
    %4194 = vmatpush1.msra.mxu0 0.0
    %4195 = vmatprep.subr.mxu0 0.0
    %4196 = vmatpush1.msra.mxu0 0.0
    %4197 = vmatprep.subr.mxu0 0.0
    %4198 = vmatpush1.msra.mxu0 0.0
    %4199 = vmatprep.subr.mxu0 0.0
    %4200 = vmatpush1.msra.mxu0 0.0
    %4201 = vmatprep.mubr.f32.mxu0 %v4135
    %4202 = vmatmul.mubr.f32.gmra.mrb[0].mxu0 %v4104
    %v4203 = vpop.f32.mrb[0].mxu0
    %v4204 = vadd.f32 0.0, %v4203
    %v4205 = vpop.f32.mrb[0].mxu0
    %4206 = vdwg.mxu0
    %v4207 = vsel %vm1689, %v4204, -inf
    %4208 = vmax.xlane.f32.xlu0 %v4207
    %v4209 = vpop.xlane.xlu0 %4208
    %v4210 = vsub.f32 %v4204, %v4209
    %v4211 = vmul.f32 %v4210, 1.442695
    %v4212 = vpow.pop %v4211
    %v4213 = vsel %vm1689, %v4212, 0.0
    %4214 = vadd.xlane.f32.xlu0 %v4213
    %v4215 = vpop.xlane.xlu0 %4214
    %v4216 = vrcp.pop %v4215
    %v4217 = vmul.f32 %v4212, %v4216
    %v4218 = vld [vmem:[%s12] sm:$0x7f]
    %v4219 = vld [vmem:[%s12 + $0x8] sm:$0x7f]
    %v4221 = vsel %vm1703, %v4217, 0
    %v4224 = vsel %vm1707, %v4218, 0
    %v4227 = vsel %vm1707, %v4219, 0
    %4229 = vmatprep.subr.mxu0 %v4227
    %4230 = vmatpush1.msra.mxu0 %v4224
    %4231 = vmatprep.subr.mxu0 0.0
    %4232 = vmatpush1.msra.mxu0 0.0
    %4233 = vmatprep.subr.mxu0 0.0
    %4234 = vmatpush1.msra.mxu0 0.0
    %4235 = vmatprep.subr.mxu0 0.0
    %4236 = vmatpush1.msra.mxu0 0.0
    %4237 = vmatprep.subr.mxu0 0.0
    %4238 = vmatpush1.msra.mxu0 0.0
    %4239 = vmatprep.subr.mxu0 0.0
    %4240 = vmatpush1.msra.mxu0 0.0
    %4241 = vmatprep.subr.mxu0 0.0
    %4242 = vmatpush1.msra.mxu0 0.0
    %4243 = vmatprep.subr.mxu0 0.0
    %4244 = vmatpush1.msra.mxu0 0.0
    %4245 = vmatprep.subr.mxu0 0.0
    %4246 = vmatpush1.msra.mxu0 0.0
    %4247 = vmatprep.subr.mxu0 0.0
    %4248 = vmatpush1.msra.mxu0 0.0
    %4249 = vmatprep.subr.mxu0 0.0
    %4250 = vmatpush1.msra.mxu0 0.0
    %4251 = vmatprep.subr.mxu0 0.0
    %4252 = vmatpush1.msra.mxu0 0.0
    %4253 = vmatprep.subr.mxu0 0.0
    %4254 = vmatpush1.msra.mxu0 0.0
    %4255 = vmatprep.subr.mxu0 0.0
    %4256 = vmatpush1.msra.mxu0 0.0
    %4257 = vmatprep.subr.mxu0 0.0
    %4258 = vmatpush1.msra.mxu0 0.0
    %4259 = vmatprep.subr.mxu0 0.0
    %4260 = vmatpush1.msra.mxu0 0.0
    %4261 = vmatprep.subr.mxu0 0.0
    %4262 = vmatpush1.msra.mxu0 0.0
    %4263 = vmatprep.subr.mxu0 0.0
    %4264 = vmatpush1.msra.mxu0 0.0
    %4265 = vmatprep.subr.mxu0 0.0
    %4266 = vmatpush1.msra.mxu0 0.0
    %4267 = vmatprep.subr.mxu0 0.0
    %4268 = vmatpush1.msra.mxu0 0.0
    %4269 = vmatprep.subr.mxu0 0.0
    %4270 = vmatpush1.msra.mxu0 0.0
    %4271 = vmatprep.subr.mxu0 0.0
    %4272 = vmatpush1.msra.mxu0 0.0
    %4273 = vmatprep.subr.mxu0 0.0
    %4274 = vmatpush1.msra.mxu0 0.0
    %4275 = vmatprep.subr.mxu0 0.0
    %4276 = vmatpush1.msra.mxu0 0.0
    %4277 = vmatprep.subr.mxu0 0.0
    %4278 = vmatpush1.msra.mxu0 0.0
    %4279 = vmatprep.subr.mxu0 0.0
    %4280 = vmatpush1.msra.mxu0 0.0
    %4281 = vmatprep.subr.mxu0 0.0
    %4282 = vmatpush1.msra.mxu0 0.0
    %4283 = vmatprep.subr.mxu0 0.0
    %4284 = vmatpush1.msra.mxu0 0.0
    %4285 = vmatprep.subr.mxu0 0.0
    %4286 = vmatpush1.msra.mxu0 0.0
    %4287 = vmatprep.subr.mxu0 0.0
    %4288 = vmatpush1.msra.mxu0 0.0
    %4289 = vmatprep.subr.mxu0 0.0
    %4290 = vmatpush1.msra.mxu0 0.0
    %4291 = vmatprep.subr.mxu0 0.0
    %4292 = vmatpush1.msra.mxu0 0.0
    %4293 = vmatprep.mubr.f32.mxu0 0.0
    %4294 = vmatmul.mubr.f32.gmra.mrb[0].mxu0 %v4221
    %v4295 = vpop.f32.mrb[0].mxu0
    %v4296 = vadd.f32 0.0, %v4295
    %v4297 = vpop.f32.mrb[0].mxu0
    %v4298 = vadd.f32 0.0, %v4297
    %4299 = vdwg.mxu0
    %v4300 = vmul.f32 %v4296, %v948
    %v4301 = vmul.f32 %v4298, %v950
    %v4302 = vld [vmem:[%s13] sm:$0xff]
    %v4303 = vld [vmem:[%s13 + $0x8] sm:$0xff]
    %v4304 = vld [vmem:[%s13 + $0x10] sm:$0xff]
    %v4305 = vld [vmem:[%s13 + $0x18] sm:$0xff]
    %v4306 = vld [vmem:[%s13 + $0x20] sm:$0xff]
    %v4307 = vld [vmem:[%s13 + $0x28] sm:$0xff]
    %v4308 = vld [vmem:[%s13 + $0x30] sm:$0xff]
    %v4309 = vld [vmem:[%s13 + $0x38] sm:$0xff]
    %v4310 = vld [vmem:[%s13 + $0x40] sm:$0xff]
    %v4311 = vld [vmem:[%s13 + $0x48] sm:$0xff]
    %v4312 = vld [vmem:[%s13 + $0x50] sm:$0xff]
    %v4313 = vld [vmem:[%s13 + $0x58] sm:$0xff]
    %v4314 = vld [vmem:[%s13 + $0x60] sm:$0xff]
    %v4315 = vld [vmem:[%s13 + $0x68] sm:$0xff]
    %v4316 = vld [vmem:[%s13 + $0x70] sm:$0xff]
    %v4317 = vld [vmem:[%s13 + $0x78] sm:$0xff]
    %v4318 = vld [vmem:[%s13 + $0x80] sm:$0xff]
    %v4319 = vld [vmem:[%s13 + $0x88] sm:$0xff]
    %v4320 = vld [vmem:[%s13 + $0x90] sm:$0xff]
    %v4321 = vld [vmem:[%s13 + $0x98] sm:$0xff]
    %v4322 = vld [vmem:[%s13 + $0xa0] sm:$0xff]
    %v4323 = vld [vmem:[%s13 + $0xa8] sm:$0xff]
    %v4324 = vld [vmem:[%s13 + $0xb0] sm:$0xff]
    %v4325 = vld [vmem:[%s13 + $0xb8] sm:$0xff]
    %v4326 = vld [vmem:[%s13 + $0xc0] sm:$0xff]
    %v4327 = vld [vmem:[%s13 + $0xc8] sm:$0xff]
    %v4328 = vld [vmem:[%s13 + $0xd0] sm:$0xff]
    %v4329 = vld [vmem:[%s13 + $0xd8] sm:$0xff]
    %v4331 = vsel %vm947, %v4301, 0
    %4333 = vmatprep.subr.mxu0 0.0
    %4334 = vmatpush1.msra.mxu0 %v4302
    %4335 = vmatprep.subr.mxu0 0.0
    %4336 = vmatpush1.msra.mxu0 %v4303
    %4337 = vmatprep.subr.mxu0 0.0
    %4338 = vmatpush1.msra.mxu0 %v4304
    %4339 = vmatprep.subr.mxu0 0.0
    %4340 = vmatpush1.msra.mxu0 %v4305
    %4341 = vmatprep.subr.mxu0 0.0
    %4342 = vmatpush1.msra.mxu0 %v4306
    %4343 = vmatprep.subr.mxu0 0.0
    %4344 = vmatpush1.msra.mxu0 %v4307
    %4345 = vmatprep.subr.mxu0 0.0
    %4346 = vmatpush1.msra.mxu0 %v4308
    %4347 = vmatprep.subr.mxu0 0.0
    %4348 = vmatpush1.msra.mxu0 %v4309
    %4349 = vmatprep.subr.mxu0 0.0
    %4350 = vmatpush1.msra.mxu0 %v4310
    %4351 = vmatprep.subr.mxu0 0.0
    %4352 = vmatpush1.msra.mxu0 %v4311
    %4353 = vmatprep.subr.mxu0 0.0
    %4354 = vmatpush1.msra.mxu0 %v4312
    %4355 = vmatprep.subr.mxu0 0.0
    %4356 = vmatpush1.msra.mxu0 %v4313
    %4357 = vmatprep.subr.mxu0 0.0
    %4358 = vmatpush1.msra.mxu0 %v4314
    %4359 = vmatprep.subr.mxu0 0.0
    %4360 = vmatpush1.msra.mxu0 %v4315
    %4361 = vmatprep.subr.mxu0 0.0
    %4362 = vmatpush1.msra.mxu0 %v4316
    %4363 = vmatprep.subr.mxu0 0.0
    %4364 = vmatpush1.msra.mxu0 %v4317
    %4365 = vmatprep.subr.mxu0 0.0
    %4366 = vmatpush1.msra.mxu0 %v4318
    %4367 = vmatprep.subr.mxu0 0.0
    %4368 = vmatpush1.msra.mxu0 %v4319
    %4369 = vmatprep.subr.mxu0 0.0
    %4370 = vmatpush1.msra.mxu0 %v4320
    %4371 = vmatprep.subr.mxu0 0.0
    %4372 = vmatpush1.msra.mxu0 %v4321
    %4373 = vmatprep.subr.mxu0 0.0
    %4374 = vmatpush1.msra.mxu0 %v4322
    %4375 = vmatprep.subr.mxu0 0.0
    %4376 = vmatpush1.msra.mxu0 %v4323
    %4377 = vmatprep.subr.mxu0 0.0
    %4378 = vmatpush1.msra.mxu0 %v4324
    %4379 = vmatprep.subr.mxu0 0.0
    %4380 = vmatpush1.msra.mxu0 %v4325
    %4381 = vmatprep.subr.mxu0 0.0
    %4382 = vmatpush1.msra.mxu0 %v4326
    %4383 = vmatprep.subr.mxu0 0.0
    %4384 = vmatpush1.msra.mxu0 %v4327
    %4385 = vmatprep.subr.mxu0 0.0
    %4386 = vmatpush1.msra.mxu0 %v4328
    %4387 = vmatprep.subr.mxu0 0.0
    %4388 = vmatpush1.msra.mxu0 %v4329
    %4389 = vmatprep.subr.mxu0 0.0
    %4390 = vmatpush1.msra.mxu0 0.0
    %4391 = vmatprep.subr.mxu0 0.0
    %4392 = vmatpush1.msra.mxu0 0.0
    %4393 = vmatprep.subr.mxu0 0.0
    %4394 = vmatpush1.msra.mxu0 0.0
    %4395 = vmatprep.subr.mxu0 0.0
    %4396 = vmatpush1.msra.mxu0 0.0
    %4397 = vmatprep.mubr.f32.mxu0 %v4331
    %4398 = vmatmul.mubr.f32.gmra.mrb[0].mxu0 %v4300
    %v4399 = vpop.f32.mrb[0].mxu0
    %v4400 = vadd.f32 0.0, %v4399
    %v4401 = vpop.f32.mrb[0].mxu0
    %4402 = vdwg.mxu0
    %4404 = vrot.lane.b32.xlu0 %v4400, 16
    %v4405 = vpop.permute.xlu0 %4404
    %v4407 = vsel %vm100, %v4022, %v4405
    %v4409 = vsel %vm1899, %v4407, 0
    %4411 = vmatprep.subr.mxu0 0.0
    %4412 = vmatpush1.msra.mxu0 %v1484
    %4413 = vmatprep.subr.mxu0 0.0
    %4414 = vmatpush1.msra.mxu0 %v1485
    %4415 = vmatprep.subr.mxu0 0.0
    %4416 = vmatpush1.msra.mxu0 %v1486
    %4417 = vmatprep.subr.mxu0 0.0
    %4418 = vmatpush1.msra.mxu0 %v1487
    %4419 = vmatprep.subr.mxu0 0.0
    %4420 = vmatpush1.msra.mxu0 %v1488
    %4421 = vmatprep.subr.mxu0 0.0
    %4422 = vmatpush1.msra.mxu0 %v1489
    %4423 = vmatprep.subr.mxu0 0.0
    %4424 = vmatpush1.msra.mxu0 0.0
    %4425 = vmatprep.subr.mxu0 0.0
    %4426 = vmatpush1.msra.mxu0 0.0
    %4427 = vmatprep.subr.mxu0 0.0
    %4428 = vmatpush1.msra.mxu0 0.0
    %4429 = vmatprep.subr.mxu0 0.0
    %4430 = vmatpush1.msra.mxu0 0.0
    %4431 = vmatprep.subr.mxu0 0.0
    %4432 = vmatpush1.msra.mxu0 0.0
    %4433 = vmatprep.subr.mxu0 0.0
    %4434 = vmatpush1.msra.mxu0 0.0
    %4435 = vmatprep.subr.mxu0 0.0
    %4436 = vmatpush1.msra.mxu0 0.0
    %4437 = vmatprep.subr.mxu0 0.0
    %4438 = vmatpush1.msra.mxu0 0.0
    %4439 = vmatprep.subr.mxu0 0.0
    %4440 = vmatpush1.msra.mxu0 0.0
    %4441 = vmatprep.subr.mxu0 0.0
    %4442 = vmatpush1.msra.mxu0 0.0
    %4443 = vmatprep.subr.mxu0 0.0
    %4444 = vmatpush1.msra.mxu0 0.0
    %4445 = vmatprep.subr.mxu0 0.0
    %4446 = vmatpush1.msra.mxu0 0.0
    %4447 = vmatprep.subr.mxu0 0.0
    %4448 = vmatpush1.msra.mxu0 0.0
    %4449 = vmatprep.subr.mxu0 0.0
    %4450 = vmatpush1.msra.mxu0 0.0
    %4451 = vmatprep.subr.mxu0 0.0
    %4452 = vmatpush1.msra.mxu0 0.0
    %4453 = vmatprep.subr.mxu0 0.0
    %4454 = vmatpush1.msra.mxu0 0.0
    %4455 = vmatprep.subr.mxu0 0.0
    %4456 = vmatpush1.msra.mxu0 0.0
    %4457 = vmatprep.subr.mxu0 0.0
    %4458 = vmatpush1.msra.mxu0 0.0
    %4459 = vmatprep.subr.mxu0 0.0
    %4460 = vmatpush1.msra.mxu0 0.0
    %4461 = vmatprep.subr.mxu0 0.0
    %4462 = vmatpush1.msra.mxu0 0.0
    %4463 = vmatprep.subr.mxu0 0.0
    %4464 = vmatpush1.msra.mxu0 0.0
    %4465 = vmatprep.subr.mxu0 0.0
    %4466 = vmatpush1.msra.mxu0 0.0
    %4467 = vmatprep.subr.mxu0 0.0
    %4468 = vmatpush1.msra.mxu0 0.0
    %4469 = vmatprep.subr.mxu0 0.0
    %4470 = vmatpush1.msra.mxu0 0.0
    %4471 = vmatprep.subr.mxu0 0.0
    %4472 = vmatpush1.msra.mxu0 0.0
    %4473 = vmatprep.subr.mxu0 0.0
    %4474 = vmatpush1.msra.mxu0 0.0
    %4475 = vmatprep.mubr.f32.mxu0 0.0
    %4476 = vmatmul.mubr.f32.gmra.mrb[0].mxu0 %v4409
    %v4477 = vpop.f32.mrb[0].mxu0
    %v4478 = vadd.f32 %v1897, %v4477
    %v4479 = vpop.f32.mrb[0].mxu0
    %4480 = vdwg.mxu0
    %4481 = vmatprep.subr.mxu0 0.0
    %4482 = vmatpush1.msra.mxu0 %v1490
    %4483 = vmatprep.subr.mxu0 0.0
    %4484 = vmatpush1.msra.mxu0 %v1491
    %4485 = vmatprep.subr.mxu0 0.0
    %4486 = vmatpush1.msra.mxu0 %v1492
    %4487 = vmatprep.subr.mxu0 0.0
    %4488 = vmatpush1.msra.mxu0 %v1493
    %4489 = vmatprep.subr.mxu0 0.0
    %4490 = vmatpush1.msra.mxu0 0.0
    %4491 = vmatprep.subr.mxu0 0.0
    %4492 = vmatpush1.msra.mxu0 0.0
    %4493 = vmatprep.subr.mxu0 0.0
    %4494 = vmatpush1.msra.mxu0 0.0
    %4495 = vmatprep.subr.mxu0 0.0
    %4496 = vmatpush1.msra.mxu0 0.0
    %4497 = vmatprep.subr.mxu0 0.0
    %4498 = vmatpush1.msra.mxu0 0.0
    %4499 = vmatprep.subr.mxu0 0.0
    %4500 = vmatpush1.msra.mxu0 0.0
    %4501 = vmatprep.subr.mxu0 0.0
    %4502 = vmatpush1.msra.mxu0 0.0
    %4503 = vmatprep.subr.mxu0 0.0
    %4504 = vmatpush1.msra.mxu0 0.0
    %4505 = vmatprep.subr.mxu0 0.0
    %4506 = vmatpush1.msra.mxu0 0.0
    %4507 = vmatprep.subr.mxu0 0.0
    %4508 = vmatpush1.msra.mxu0 0.0
    %4509 = vmatprep.subr.mxu0 0.0
    %4510 = vmatpush1.msra.mxu0 0.0
    %4511 = vmatprep.subr.mxu0 0.0
    %4512 = vmatpush1.msra.mxu0 0.0
    %4513 = vmatprep.subr.mxu0 0.0
    %4514 = vmatpush1.msra.mxu0 0.0
    %4515 = vmatprep.subr.mxu0 0.0
    %4516 = vmatpush1.msra.mxu0 0.0
    %4517 = vmatprep.subr.mxu0 0.0
    %4518 = vmatpush1.msra.mxu0 0.0
    %4519 = vmatprep.subr.mxu0 0.0
    %4520 = vmatpush1.msra.mxu0 0.0
    %4521 = vmatprep.subr.mxu0 0.0
    %4522 = vmatpush1.msra.mxu0 0.0
    %4523 = vmatprep.subr.mxu0 0.0
    %4524 = vmatpush1.msra.mxu0 0.0
    %4525 = vmatprep.subr.mxu0 0.0
    %4526 = vmatpush1.msra.mxu0 0.0
    %4527 = vmatprep.subr.mxu0 0.0
    %4528 = vmatpush1.msra.mxu0 0.0
    %4529 = vmatprep.subr.mxu0 0.0
    %4530 = vmatpush1.msra.mxu0 0.0
    %4531 = vmatprep.subr.mxu0 0.0
    %4532 = vmatpush1.msra.mxu0 0.0
    %4533 = vmatprep.subr.mxu0 0.0
    %4534 = vmatpush1.msra.mxu0 0.0
    %4535 = vmatprep.subr.mxu0 0.0
    %4536 = vmatpush1.msra.mxu0 0.0
    %4537 = vmatprep.subr.mxu0 0.0
    %4538 = vmatpush1.msra.mxu0 0.0
    %4539 = vmatprep.subr.mxu0 0.0
    %4540 = vmatpush1.msra.mxu0 0.0
    %4541 = vmatprep.subr.mxu0 0.0
    %4542 = vmatpush1.msra.mxu0 0.0
    %4543 = vmatprep.subr.mxu0 0.0
    %4544 = vmatpush1.msra.mxu0 0.0
    %4545 = vmatprep.mubr.f32.mxu0 0.0
    %4546 = vmatmul.mubr.f32.gmra.mrb[0].mxu0 %v3754
    %v4547 = vpop.f32.mrb[0].mxu0
    %v4548 = vadd.f32 %v1977, %v4547
    %v4549 = vpop.f32.mrb[0].mxu0
    %4550 = vdwg.mxu0
    %v4551 = vadd.f32 %v4478, %v4548
    %v4552 = vxor.u32 %v4551, 2147483648
    %v4553 = vmul.f32 %v4552, 1.442695
    %v4554 = vpow.pop %v4553
    %v4555 = vadd.f32 %v4554, 1.0
    %v4556 = vrcp.pop %v4555
    %v4557 = vmul.f32 1.0, %v4556
    %4559 = vrot.lane.b32.xlu0 %v4548, 64
    %v4560 = vpop.permute.xlu0 %4559
    %v4562 = vmul.f32 %v4557, %v4560
    %4564 = vrot.lane.b32.xlu0 %v4562, 64
    %v4565 = vpop.permute.xlu0 %4564
    %v4567 = vadd.f32 %v4478, %v4565
    %v4568 = vtanh.pop %v4567
    %v4569 = vsub.f32 1.0, %v4557
    %4571 = vrot.lane.b32.xlu0 %v4568, 96
    %v4572 = vpop.permute.xlu0 %4571
    %v4574 = vmul.f32 %v4569, %v4572
    %v4575 = vmul.f32 %v4557, %v3744
    %v4576 = vadd.f32 %v4574, %v4575
    %v4577 = vld [vmem:[%s18] sm:$0xff]
    %v4578 = vld [vmem:[%s18 + $0x8] sm:$0xff]
    %v4579 = vld [vmem:[%s18 + $0x10] sm:$0xff]
    %v4580 = vld [vmem:[%s18 + $0x18] sm:$0xff]
    %v4581 = vld [vmem:[%s18 + $0x20] sm:$0xff]
    %v4582 = vld [vmem:[%s18 + $0x28] sm:$0xff]
    %4584 = vrot.lane.b32.xlu0 %v4576, 96
    %v4585 = vpop.permute.xlu0 %4584
    %v4586 = vsel %vm204, %v4585, 0
    %4588 = vmatprep.subr.mxu0 0.0
    %4589 = vmatpush1.msra.mxu0 %v1496
    %4590 = vmatprep.subr.mxu0 0.0
    %4591 = vmatpush1.msra.mxu0 %v1497
    %4592 = vmatprep.subr.mxu0 0.0
    %4593 = vmatpush1.msra.mxu0 %v1498
    %4594 = vmatprep.subr.mxu0 0.0
    %4595 = vmatpush1.msra.mxu0 %v1499
    %4596 = vmatprep.subr.mxu0 0.0
    %4597 = vmatpush1.msra.mxu0 0.0
    %4598 = vmatprep.subr.mxu0 0.0
    %4599 = vmatpush1.msra.mxu0 0.0
    %4600 = vmatprep.subr.mxu0 0.0
    %4601 = vmatpush1.msra.mxu0 0.0
    %4602 = vmatprep.subr.mxu0 0.0
    %4603 = vmatpush1.msra.mxu0 0.0
    %4604 = vmatprep.subr.mxu0 0.0
    %4605 = vmatpush1.msra.mxu0 0.0
    %4606 = vmatprep.subr.mxu0 0.0
    %4607 = vmatpush1.msra.mxu0 0.0
    %4608 = vmatprep.subr.mxu0 0.0
    %4609 = vmatpush1.msra.mxu0 0.0
    %4610 = vmatprep.subr.mxu0 0.0
    %4611 = vmatpush1.msra.mxu0 0.0
    %4612 = vmatprep.subr.mxu0 0.0
    %4613 = vmatpush1.msra.mxu0 0.0
    %4614 = vmatprep.subr.mxu0 0.0
    %4615 = vmatpush1.msra.mxu0 0.0
    %4616 = vmatprep.subr.mxu0 0.0
    %4617 = vmatpush1.msra.mxu0 0.0
    %4618 = vmatprep.subr.mxu0 0.0
    %4619 = vmatpush1.msra.mxu0 0.0
    %4620 = vmatprep.subr.mxu0 0.0
    %4621 = vmatpush1.msra.mxu0 0.0
    %4622 = vmatprep.subr.mxu0 0.0
    %4623 = vmatpush1.msra.mxu0 0.0
    %4624 = vmatprep.subr.mxu0 0.0
    %4625 = vmatpush1.msra.mxu0 0.0
    %4626 = vmatprep.subr.mxu0 0.0
    %4627 = vmatpush1.msra.mxu0 0.0
    %4628 = vmatprep.subr.mxu0 0.0
    %4629 = vmatpush1.msra.mxu0 0.0
    %4630 = vmatprep.subr.mxu0 0.0
    %4631 = vmatpush1.msra.mxu0 0.0
    %4632 = vmatprep.subr.mxu0 0.0
    %4633 = vmatpush1.msra.mxu0 0.0
    %4634 = vmatprep.subr.mxu0 0.0
    %4635 = vmatpush1.msra.mxu0 0.0
    %4636 = vmatprep.subr.mxu0 0.0
    %4637 = vmatpush1.msra.mxu0 0.0
    %4638 = vmatprep.subr.mxu0 0.0
    %4639 = vmatpush1.msra.mxu0 0.0
    %4640 = vmatprep.subr.mxu0 0.0
    %4641 = vmatpush1.msra.mxu0 0.0
    %4642 = vmatprep.subr.mxu0 0.0
    %4643 = vmatpush1.msra.mxu0 0.0
    %4644 = vmatprep.subr.mxu0 0.0
    %4645 = vmatpush1.msra.mxu0 0.0
    %4646 = vmatprep.subr.mxu0 0.0
    %4647 = vmatpush1.msra.mxu0 0.0
    %4648 = vmatprep.subr.mxu0 0.0
    %4649 = vmatpush1.msra.mxu0 0.0
    %4650 = vmatprep.subr.mxu0 0.0
    %4651 = vmatpush1.msra.mxu0 0.0
    %4652 = vmatprep.mubr.f32.mxu0 0.0
    %4653 = vmatmul.mubr.f32.gmra.mrb[0].mxu0 %v4586
    %v4654 = vpop.f32.mrb[0].mxu0
    %v4655 = vadd.f32 0.0, %v4654
    %v4656 = vpop.f32.mrb[0].mxu0
    %4657 = vdwg.mxu0
    %4658 = vmatprep.subr.mxu0 0.0
    %4659 = vmatpush1.msra.mxu0 %v4577
    %4660 = vmatprep.subr.mxu0 0.0
    %4661 = vmatpush1.msra.mxu0 %v4578
    %4662 = vmatprep.subr.mxu0 0.0
    %4663 = vmatpush1.msra.mxu0 %v4579
    %4664 = vmatprep.subr.mxu0 0.0
    %4665 = vmatpush1.msra.mxu0 %v4580
    %4666 = vmatprep.subr.mxu0 0.0
    %4667 = vmatpush1.msra.mxu0 %v4581
    %4668 = vmatprep.subr.mxu0 0.0
    %4669 = vmatpush1.msra.mxu0 %v4582
    %4670 = vmatprep.subr.mxu0 0.0
    %4671 = vmatpush1.msra.mxu0 0.0
    %4672 = vmatprep.subr.mxu0 0.0
    %4673 = vmatpush1.msra.mxu0 0.0
    %4674 = vmatprep.subr.mxu0 0.0
    %4675 = vmatpush1.msra.mxu0 0.0
    %4676 = vmatprep.subr.mxu0 0.0
    %4677 = vmatpush1.msra.mxu0 0.0
    %4678 = vmatprep.subr.mxu0 0.0
    %4679 = vmatpush1.msra.mxu0 0.0
    %4680 = vmatprep.subr.mxu0 0.0
    %4681 = vmatpush1.msra.mxu0 0.0
    %4682 = vmatprep.subr.mxu0 0.0
    %4683 = vmatpush1.msra.mxu0 0.0
    %4684 = vmatprep.subr.mxu0 0.0
    %4685 = vmatpush1.msra.mxu0 0.0
    %4686 = vmatprep.subr.mxu0 0.0
    %4687 = vmatpush1.msra.mxu0 0.0
    %4688 = vmatprep.subr.mxu0 0.0
    %4689 = vmatpush1.msra.mxu0 0.0
    %4690 = vmatprep.subr.mxu0 0.0
    %4691 = vmatpush1.msra.mxu0 0.0
    %4692 = vmatprep.subr.mxu0 0.0
    %4693 = vmatpush1.msra.mxu0 0.0
    %4694 = vmatprep.subr.mxu0 0.0
    %4695 = vmatpush1.msra.mxu0 0.0
    %4696 = vmatprep.subr.mxu0 0.0
    %4697 = vmatpush1.msra.mxu0 0.0
    %4698 = vmatprep.subr.mxu0 0.0
    %4699 = vmatpush1.msra.mxu0 0.0
    %4700 = vmatprep.subr.mxu0 0.0
    %4701 = vmatpush1.msra.mxu0 0.0
    %4702 = vmatprep.subr.mxu0 0.0
    %4703 = vmatpush1.msra.mxu0 0.0
    %4704 = vmatprep.subr.mxu0 0.0
    %4705 = vmatpush1.msra.mxu0 0.0
    %4706 = vmatprep.subr.mxu0 0.0
    %4707 = vmatpush1.msra.mxu0 0.0
    %4708 = vmatprep.subr.mxu0 0.0
    %4709 = vmatpush1.msra.mxu0 0.0
    %4710 = vmatprep.subr.mxu0 0.0
    %4711 = vmatpush1.msra.mxu0 0.0
    %4712 = vmatprep.subr.mxu0 0.0
    %4713 = vmatpush1.msra.mxu0 0.0
    %4714 = vmatprep.subr.mxu0 0.0
    %4715 = vmatpush1.msra.mxu0 0.0
    %4716 = vmatprep.subr.mxu0 0.0
    %4717 = vmatpush1.msra.mxu0 0.0
    %4718 = vmatprep.subr.mxu0 0.0
    %4719 = vmatpush1.msra.mxu0 0.0
    %4720 = vmatprep.subr.mxu0 0.0
    %4721 = vmatpush1.msra.mxu0 0.0
    %4722 = vmatprep.mubr.f32.mxu0 0.0
    %4723 = vmatmul.mubr.f32.gmra.mrb[0].mxu0 %v4409
    %v4724 = vpop.f32.mrb[0].mxu0
    %v4725 = vadd.f32 %v4655, %v4724
    %v4726 = vpop.f32.mrb[0].mxu0
    %4727 = vdwg.mxu0
    %v4728 = vadd.f32 %v4725, %v2230
    %4729 = vst [vmem:[#allocation6 + $0x10] sm:$0xf] %v4728
    %s4730 = sld [smem:[#allocation3 + $0x4]]
    %p4731 = scmp.eq.s32.totalorder %s4730, 0
    // Predicated region
    $region114: #{seq2seq_forward.1} parent=1 // pred_check
      %p4732 = pneg %p4731
    $region115: #{seq2seq_forward.1} parent=1 // pred_check_branch
      %4734 = sbr.rel (%p4732) target = $region117
    $region116: #{seq2seq_forward.1} parent=1 // pred_region
      %vm4735 = vcmask 1043456
      %v4736 = vsel %vm4735, %v4728, -inf
      %4737 = vmax.xlane.f32.xlu0 %v4736
      %v4738 = vpop.xlane.xlu0 %4737
      %vm4739 = vcmp.eq.f32.partialorder %v4728, %v4738
      %v4740 = vsel %vm4739, %v1502, 128
      %v4741 = vsel %vm4735, %v4740, 2147483647
      %v4742 = vand.u32 %v4741, 65535
      %v4743 = vshra.s32 %v4741, 16
      %v4744 = vcvt.s32.f32 %v4742
      %v4745 = vcvt.s32.f32 %v4743
      %4746 = vmin.xlane.f32.xlu0 %v4745
      %v4747 = vpop.xlane.xlu0 %4746
      %vm4748 = vcmp.eq.f32.partialorder %v4745, %v4747
      %v4749 = vsel %vm4748, %v4744, inf
      %4750 = vmin.xlane.f32.xlu0 %v4749
      %v4751 = vpop.xlane.xlu0 %4750
      %v4752 = vcvt.f32.s32 %v4751
      %v4753 = vcvt.f32.s32 %v4747
      %v4754 = vshll.u32 %v4753, 16
      %v4755 = vadd.s32 %v4754, %v4752
      %vm4756 = vcmp.eq.s32.totalorder %v1502, %v4755
      %v4757 = vsel %vm4756, 1, 0
      %v4758 = vcvt.s32.f32 %v4757
      %v4759 = vld [vmem:[%s3] sm:$0xff]
      %v4760 = vld [vmem:[%s3 + $0x8] sm:$0xff]
      %v4761 = vld [vmem:[%s3 + $0x10] sm:$0xff]
      %v4762 = vld [vmem:[%s3 + $0x18] sm:$0xff]
      %v4763 = vld [vmem:[%s3 + $0x20] sm:$0xff]
      %v4764 = vld [vmem:[%s3 + $0x28] sm:$0xff]
      %v4765 = vld [vmem:[%s3 + $0x30] sm:$0xff]
      %v4766 = vld [vmem:[%s3 + $0x38] sm:$0xff]
      %v4767 = vld [vmem:[%s3 + $0x40] sm:$0xff]
      %v4768 = vld [vmem:[%s3 + $0x48] sm:$0xff]
      %v4769 = vld [vmem:[%s3 + $0x50] sm:$0xff]
      %v4770 = vld [vmem:[%s3 + $0x58] sm:$0xff]
      %v4771 = vld [vmem:[%s3 + $0x60] sm:$0xff]
      %v4772 = vld [vmem:[%s3 + $0x68] sm:$0xff]
      %v4773 = vld [vmem:[%s3 + $0x70] sm:$0xff]
      %v4774 = vld [vmem:[%s3 + $0x78] sm:$0xff]
      %4775 = vmatprep.subr.mxu0 0.0
      %4776 = vmatpush1.msra.mxu0 %v4759
      %4777 = vmatprep.subr.mxu0 0.0
      %4778 = vmatpush1.msra.mxu0 %v4760
      %4779 = vmatprep.subr.mxu0 0.0
      %4780 = vmatpush1.msra.mxu0 %v4761
      %4781 = vmatprep.subr.mxu0 0.0
      %4782 = vmatpush1.msra.mxu0 %v4762
      %4783 = vmatprep.subr.mxu0 0.0
      %4784 = vmatpush1.msra.mxu0 %v4763
      %4785 = vmatprep.subr.mxu0 0.0
      %4786 = vmatpush1.msra.mxu0 %v4764
      %4787 = vmatprep.subr.mxu0 0.0
      %4788 = vmatpush1.msra.mxu0 %v4765
      %4789 = vmatprep.subr.mxu0 0.0
      %4790 = vmatpush1.msra.mxu0 %v4766
      %4791 = vmatprep.subr.mxu0 0.0
      %4792 = vmatpush1.msra.mxu0 %v4767
      %4793 = vmatprep.subr.mxu0 0.0
      %4794 = vmatpush1.msra.mxu0 %v4768
      %4795 = vmatprep.subr.mxu0 0.0
      %4796 = vmatpush1.msra.mxu0 %v4769
      %4797 = vmatprep.subr.mxu0 0.0
      %4798 = vmatpush1.msra.mxu0 %v4770
      %4799 = vmatprep.subr.mxu0 0.0
      %4800 = vmatpush1.msra.mxu0 %v4771
      %4801 = vmatprep.subr.mxu0 0.0
      %4802 = vmatpush1.msra.mxu0 %v4772
      %4803 = vmatprep.subr.mxu0 0.0
      %4804 = vmatpush1.msra.mxu0 %v4773
      %4805 = vmatprep.subr.mxu0 0.0
      %4806 = vmatpush1.msra.mxu0 %v4774
      %4807 = vmatprep.subr.mxu0 0.0
      %4808 = vmatpush1.msra.mxu0 0.0
      %4809 = vmatprep.subr.mxu0 0.0
      %4810 = vmatpush1.msra.mxu0 0.0
      %4811 = vmatprep.subr.mxu0 0.0
      %4812 = vmatpush1.msra.mxu0 0.0
      %4813 = vmatprep.subr.mxu0 0.0
      %4814 = vmatpush1.msra.mxu0 0.0
      %4815 = vmatprep.subr.mxu0 0.0
      %4816 = vmatpush1.msra.mxu0 0.0
      %4817 = vmatprep.subr.mxu0 0.0
      %4818 = vmatpush1.msra.mxu0 0.0
      %4819 = vmatprep.subr.mxu0 0.0
      %4820 = vmatpush1.msra.mxu0 0.0
      %4821 = vmatprep.subr.mxu0 0.0
      %4822 = vmatpush1.msra.mxu0 0.0
      %4823 = vmatprep.subr.mxu0 0.0
      %4824 = vmatpush1.msra.mxu0 0.0
      %4825 = vmatprep.subr.mxu0 0.0
      %4826 = vmatpush1.msra.mxu0 0.0
      %4827 = vmatprep.subr.mxu0 0.0
      %4828 = vmatpush1.msra.mxu0 0.0
      %4829 = vmatprep.subr.mxu0 0.0
      %4830 = vmatpush1.msra.mxu0 0.0
      %4831 = vmatprep.subr.mxu0 0.0
      %4832 = vmatpush1.msra.mxu0 0.0
      %4833 = vmatprep.subr.mxu0 0.0
      %4834 = vmatpush1.msra.mxu0 0.0
      %4835 = vmatprep.subr.mxu0 0.0
      %4836 = vmatpush1.msra.mxu0 0.0
      %4837 = vmatprep.subr.mxu0 0.0
      %4838 = vmatpush1.msra.mxu0 0.0
      %4839 = vmatprep.mubr.f32.mxu0 0.0
      %4840 = vmatmul.mubr.f32.gmra.mrb[0].mxu0 %v4758
      %v4841 = vpop.f32.mrb[0].mxu0
      %v4842 = vadd.f32 0.0, %v4841
      %v4843 = vpop.f32.mrb[0].mxu0
      %4844 = vdwg.mxu0
      %vm4845 = vcmask 125952
      %4846 = vst.msk [vmem:[#allocation2] sm:$0xf] %vm4845, %v4842
    $region117: #{seq2seq_forward.1} parent=1 // pred_fallthru
      _
    %p4847 = scmp.ne.s32.totalorder %s4730, 0
    // Predicated region
    $region118: #{seq2seq_forward.1} parent=1 // pred_check
      %p4848 = pneg %p4847
    $region119: #{seq2seq_forward.1} parent=1 // pred_check_branch
      %4850 = sbr.rel (%p4848) target = $region121
    $region120: #{seq2seq_forward.1} parent=1 // pred_region
      %v4851 = vld [vmem:[%s2 + $0x10] sm:$0xf]
      %vm4852 = vcmask 125952
      %4853 = vst.msk [vmem:[#allocation2] sm:$0xf] %vm4852, %v4851
    $region121: #{seq2seq_forward.1} parent=1 // pred_fallthru
      _
    %v4854 = vld [vmem:[#allocation2] sm:$0xf]
    %v4855 = vld [vmem:[%s9] sm:$0xff]
    %v4856 = vld [vmem:[%s9 + $0x8] sm:$0xff]
    %v4857 = vld [vmem:[%s9 + $0x10] sm:$0xff]
    %v4858 = vld [vmem:[%s9 + $0x18] sm:$0xff]
    %v4859 = vld [vmem:[%s9 + $0x20] sm:$0xff]
    %v4860 = vld [vmem:[%s9 + $0x28] sm:$0xff]
    %v4861 = vld [vmem:[%s9 + $0x30] sm:$0xff]
    %v4862 = vld [vmem:[%s9 + $0x38] sm:$0xff]
    %4863 = vmatprep.subr.mxu0 %v4856
    %4864 = vmatpush1.msra.mxu0 %v4855
    %4865 = vmatprep.subr.mxu0 %v4858
    %4866 = vmatpush1.msra.mxu0 %v4857
    %4867 = vmatprep.subr.mxu0 %v4860
    %4868 = vmatpush1.msra.mxu0 %v4859
    %4869 = vmatprep.subr.mxu0 %v4862
    %4870 = vmatpush1.msra.mxu0 %v4861
    %4871 = vmatprep.subr.mxu0 0.0
    %4872 = vmatpush1.msra.mxu0 0.0
    %4873 = vmatprep.subr.mxu0 0.0
    %4874 = vmatpush1.msra.mxu0 0.0
    %4875 = vmatprep.subr.mxu0 0.0
    %4876 = vmatpush1.msra.mxu0 0.0
    %4877 = vmatprep.subr.mxu0 0.0
    %4878 = vmatpush1.msra.mxu0 0.0
    %4879 = vmatprep.subr.mxu0 0.0
    %4880 = vmatpush1.msra.mxu0 0.0
    %4881 = vmatprep.subr.mxu0 0.0
    %4882 = vmatpush1.msra.mxu0 0.0
    %4883 = vmatprep.subr.mxu0 0.0
    %4884 = vmatpush1.msra.mxu0 0.0
    %4885 = vmatprep.subr.mxu0 0.0
    %4886 = vmatpush1.msra.mxu0 0.0
    %4887 = vmatprep.subr.mxu0 0.0
    %4888 = vmatpush1.msra.mxu0 0.0
    %4889 = vmatprep.subr.mxu0 0.0
    %4890 = vmatpush1.msra.mxu0 0.0
    %4891 = vmatprep.subr.mxu0 0.0
    %4892 = vmatpush1.msra.mxu0 0.0
    %4893 = vmatprep.subr.mxu0 0.0
    %4894 = vmatpush1.msra.mxu0 0.0
    %4895 = vmatprep.subr.mxu0 0.0
    %4896 = vmatpush1.msra.mxu0 0.0
    %4897 = vmatprep.subr.mxu0 0.0
    %4898 = vmatpush1.msra.mxu0 0.0
    %4899 = vmatprep.subr.mxu0 0.0
    %4900 = vmatpush1.msra.mxu0 0.0
    %4901 = vmatprep.subr.mxu0 0.0
    %4902 = vmatpush1.msra.mxu0 0.0
    %4903 = vmatprep.subr.mxu0 0.0
    %4904 = vmatpush1.msra.mxu0 0.0
    %4905 = vmatprep.subr.mxu0 0.0
    %4906 = vmatpush1.msra.mxu0 0.0
    %4907 = vmatprep.subr.mxu0 0.0
    %4908 = vmatpush1.msra.mxu0 0.0
    %4909 = vmatprep.subr.mxu0 0.0
    %4910 = vmatpush1.msra.mxu0 0.0
    %4911 = vmatprep.subr.mxu0 0.0
    %4912 = vmatpush1.msra.mxu0 0.0
    %4913 = vmatprep.subr.mxu0 0.0
    %4914 = vmatpush1.msra.mxu0 0.0
    %4915 = vmatprep.subr.mxu0 0.0
    %4916 = vmatpush1.msra.mxu0 0.0
    %4917 = vmatprep.subr.mxu0 0.0
    %4918 = vmatpush1.msra.mxu0 0.0
    %4919 = vmatprep.subr.mxu0 0.0
    %4920 = vmatpush1.msra.mxu0 0.0
    %4921 = vmatprep.subr.mxu0 0.0
    %4922 = vmatpush1.msra.mxu0 0.0
    %4923 = vmatprep.subr.mxu0 0.0
    %4924 = vmatpush1.msra.mxu0 0.0
    %4925 = vmatprep.subr.mxu0 0.0
    %4926 = vmatpush1.msra.mxu0 0.0
    %4927 = vmatprep.mubr.f32.mxu0 0.0
    %4928 = vmatmul.mubr.f32.gmra.mrb[0].mxu0 %v4586
    %v4929 = vpop.f32.mrb[0].mxu0
    %v4930 = vadd.f32 0.0, %v4929
    %v4931 = vpop.f32.mrb[0].mxu0
    %v4932 = vadd.f32 0.0, %v4931
    %4933 = vdwg.mxu0
    %v4934 = vadd.f32 %v1482, %v4930
    %v4935 = vadd.f32 %v1483, %v4932
    %v4936 = vtanh.pop %v4934
    %v4937 = vtanh.pop %v4935
    %v4938 = vld [vmem:[%s11] sm:$0xff]
    %v4939 = vld [vmem:[%s11 + $0x8] sm:$0xff]
    %v4940 = vld [vmem:[%s11 + $0x10] sm:$0xff]
    %v4941 = vld [vmem:[%s11 + $0x18] sm:$0xff]
    %v4942 = vld [vmem:[%s11 + $0x20] sm:$0xff]
    %v4943 = vld [vmem:[%s11 + $0x28] sm:$0xff]
    %v4944 = vld [vmem:[%s11 + $0x30] sm:$0xff]
    %v4945 = vld [vmem:[%s11 + $0x38] sm:$0xff]
    %v4946 = vld [vmem:[%s11 + $0x40] sm:$0xff]
    %v4947 = vld [vmem:[%s11 + $0x48] sm:$0xff]
    %v4948 = vld [vmem:[%s11 + $0x50] sm:$0xff]
    %v4949 = vld [vmem:[%s11 + $0x58] sm:$0xff]
    %v4950 = vld [vmem:[%s11 + $0x60] sm:$0xff]
    %v4951 = vld [vmem:[%s11 + $0x68] sm:$0xff]
    %v4952 = vld [vmem:[%s11 + $0x70] sm:$0xff]
    %v4953 = vld [vmem:[%s11 + $0x78] sm:$0xff]
    %v4954 = vld [vmem:[%s11 + $0x80] sm:$0xff]
    %v4955 = vld [vmem:[%s11 + $0x88] sm:$0xff]
    %v4956 = vld [vmem:[%s11 + $0x90] sm:$0xff]
    %v4957 = vld [vmem:[%s11 + $0x98] sm:$0xff]
    %v4958 = vld [vmem:[%s11 + $0xa0] sm:$0xff]
    %v4959 = vld [vmem:[%s11 + $0xa8] sm:$0xff]
    %v4960 = vld [vmem:[%s11 + $0xb0] sm:$0xff]
    %v4961 = vld [vmem:[%s11 + $0xb8] sm:$0xff]
    %v4962 = vld [vmem:[%s11 + $0xc0] sm:$0xff]
    %v4963 = vld [vmem:[%s11 + $0xc8] sm:$0xff]
    %v4964 = vld [vmem:[%s11 + $0xd0] sm:$0xff]
    %v4965 = vld [vmem:[%s11 + $0xd8] sm:$0xff]
    %v4967 = vsel %vm947, %v4937, 0
    %4969 = vmatprep.subr.mxu0 0.0
    %4970 = vmatpush1.msra.mxu0 %v4938
    %4971 = vmatprep.subr.mxu0 0.0
    %4972 = vmatpush1.msra.mxu0 %v4939
    %4973 = vmatprep.subr.mxu0 0.0
    %4974 = vmatpush1.msra.mxu0 %v4940
    %4975 = vmatprep.subr.mxu0 0.0
    %4976 = vmatpush1.msra.mxu0 %v4941
    %4977 = vmatprep.subr.mxu0 0.0
    %4978 = vmatpush1.msra.mxu0 %v4942
    %4979 = vmatprep.subr.mxu0 0.0
    %4980 = vmatpush1.msra.mxu0 %v4943
    %4981 = vmatprep.subr.mxu0 0.0
    %4982 = vmatpush1.msra.mxu0 %v4944
    %4983 = vmatprep.subr.mxu0 0.0
    %4984 = vmatpush1.msra.mxu0 %v4945
    %4985 = vmatprep.subr.mxu0 0.0
    %4986 = vmatpush1.msra.mxu0 %v4946
    %4987 = vmatprep.subr.mxu0 0.0
    %4988 = vmatpush1.msra.mxu0 %v4947
    %4989 = vmatprep.subr.mxu0 0.0
    %4990 = vmatpush1.msra.mxu0 %v4948
    %4991 = vmatprep.subr.mxu0 0.0
    %4992 = vmatpush1.msra.mxu0 %v4949
    %4993 = vmatprep.subr.mxu0 0.0
    %4994 = vmatpush1.msra.mxu0 %v4950
    %4995 = vmatprep.subr.mxu0 0.0
    %4996 = vmatpush1.msra.mxu0 %v4951
    %4997 = vmatprep.subr.mxu0 0.0
    %4998 = vmatpush1.msra.mxu0 %v4952
    %4999 = vmatprep.subr.mxu0 0.0
    %5000 = vmatpush1.msra.mxu0 %v4953
    %5001 = vmatprep.subr.mxu0 0.0
    %5002 = vmatpush1.msra.mxu0 %v4954
    %5003 = vmatprep.subr.mxu0 0.0
    %5004 = vmatpush1.msra.mxu0 %v4955
    %5005 = vmatprep.subr.mxu0 0.0
    %5006 = vmatpush1.msra.mxu0 %v4956
    %5007 = vmatprep.subr.mxu0 0.0
    %5008 = vmatpush1.msra.mxu0 %v4957
    %5009 = vmatprep.subr.mxu0 0.0
    %5010 = vmatpush1.msra.mxu0 %v4958
    %5011 = vmatprep.subr.mxu0 0.0
    %5012 = vmatpush1.msra.mxu0 %v4959
    %5013 = vmatprep.subr.mxu0 0.0
    %5014 = vmatpush1.msra.mxu0 %v4960
    %5015 = vmatprep.subr.mxu0 0.0
    %5016 = vmatpush1.msra.mxu0 %v4961
    %5017 = vmatprep.subr.mxu0 0.0
    %5018 = vmatpush1.msra.mxu0 %v4962
    %5019 = vmatprep.subr.mxu0 0.0
    %5020 = vmatpush1.msra.mxu0 %v4963
    %5021 = vmatprep.subr.mxu0 0.0
    %5022 = vmatpush1.msra.mxu0 %v4964
    %5023 = vmatprep.subr.mxu0 0.0
    %5024 = vmatpush1.msra.mxu0 %v4965
    %5025 = vmatprep.subr.mxu0 0.0
    %5026 = vmatpush1.msra.mxu0 0.0
    %5027 = vmatprep.subr.mxu0 0.0
    %5028 = vmatpush1.msra.mxu0 0.0
    %5029 = vmatprep.subr.mxu0 0.0
    %5030 = vmatpush1.msra.mxu0 0.0
    %5031 = vmatprep.subr.mxu0 0.0
    %5032 = vmatpush1.msra.mxu0 0.0
    %5033 = vmatprep.mubr.f32.mxu0 %v4967
    %5034 = vmatmul.mubr.f32.gmra.mrb[0].mxu0 %v4936
    %v5035 = vpop.f32.mrb[0].mxu0
    %v5036 = vadd.f32 0.0, %v5035
    %v5037 = vpop.f32.mrb[0].mxu0
    %5038 = vdwg.mxu0
    %v5039 = vsel %vm1689, %v5036, -inf
    %5040 = vmax.xlane.f32.xlu0 %v5039
    %v5041 = vpop.xlane.xlu0 %5040
    %v5042 = vsub.f32 %v5036, %v5041
    %v5043 = vmul.f32 %v5042, 1.442695
    %v5044 = vpow.pop %v5043
    %v5045 = vsel %vm1689, %v5044, 0.0
    %5046 = vadd.xlane.f32.xlu0 %v5045
    %v5047 = vpop.xlane.xlu0 %5046
    %v5048 = vrcp.pop %v5047
    %v5049 = vmul.f32 %v5044, %v5048
    %v5050 = vld [vmem:[%s12] sm:$0x7f]
    %v5051 = vld [vmem:[%s12 + $0x8] sm:$0x7f]
    %v5053 = vsel %vm1703, %v5049, 0
    %v5056 = vsel %vm1707, %v5050, 0
    %v5059 = vsel %vm1707, %v5051, 0
    %5061 = vmatprep.subr.mxu0 %v5059
    %5062 = vmatpush1.msra.mxu0 %v5056
    %5063 = vmatprep.subr.mxu0 0.0
    %5064 = vmatpush1.msra.mxu0 0.0
    %5065 = vmatprep.subr.mxu0 0.0
    %5066 = vmatpush1.msra.mxu0 0.0
    %5067 = vmatprep.subr.mxu0 0.0
    %5068 = vmatpush1.msra.mxu0 0.0
    %5069 = vmatprep.subr.mxu0 0.0
    %5070 = vmatpush1.msra.mxu0 0.0
    %5071 = vmatprep.subr.mxu0 0.0
    %5072 = vmatpush1.msra.mxu0 0.0
    %5073 = vmatprep.subr.mxu0 0.0
    %5074 = vmatpush1.msra.mxu0 0.0
    %5075 = vmatprep.subr.mxu0 0.0
    %5076 = vmatpush1.msra.mxu0 0.0
    %5077 = vmatprep.subr.mxu0 0.0
    %5078 = vmatpush1.msra.mxu0 0.0
    %5079 = vmatprep.subr.mxu0 0.0
    %5080 = vmatpush1.msra.mxu0 0.0
    %5081 = vmatprep.subr.mxu0 0.0
    %5082 = vmatpush1.msra.mxu0 0.0
    %5083 = vmatprep.subr.mxu0 0.0
    %5084 = vmatpush1.msra.mxu0 0.0
    %5085 = vmatprep.subr.mxu0 0.0
    %5086 = vmatpush1.msra.mxu0 0.0
    %5087 = vmatprep.subr.mxu0 0.0
    %5088 = vmatpush1.msra.mxu0 0.0
    %5089 = vmatprep.subr.mxu0 0.0
    %5090 = vmatpush1.msra.mxu0 0.0
    %5091 = vmatprep.subr.mxu0 0.0
    %5092 = vmatpush1.msra.mxu0 0.0
    %5093 = vmatprep.subr.mxu0 0.0
    %5094 = vmatpush1.msra.mxu0 0.0
    %5095 = vmatprep.subr.mxu0 0.0
    %5096 = vmatpush1.msra.mxu0 0.0
    %5097 = vmatprep.subr.mxu0 0.0
    %5098 = vmatpush1.msra.mxu0 0.0
    %5099 = vmatprep.subr.mxu0 0.0
    %5100 = vmatpush1.msra.mxu0 0.0
    %5101 = vmatprep.subr.mxu0 0.0
    %5102 = vmatpush1.msra.mxu0 0.0
    %5103 = vmatprep.subr.mxu0 0.0
    %5104 = vmatpush1.msra.mxu0 0.0
    %5105 = vmatprep.subr.mxu0 0.0
    %5106 = vmatpush1.msra.mxu0 0.0
    %5107 = vmatprep.subr.mxu0 0.0
    %5108 = vmatpush1.msra.mxu0 0.0
    %5109 = vmatprep.subr.mxu0 0.0
    %5110 = vmatpush1.msra.mxu0 0.0
    %5111 = vmatprep.subr.mxu0 0.0
    %5112 = vmatpush1.msra.mxu0 0.0
    %5113 = vmatprep.subr.mxu0 0.0
    %5114 = vmatpush1.msra.mxu0 0.0
    %5115 = vmatprep.subr.mxu0 0.0
    %5116 = vmatpush1.msra.mxu0 0.0
    %5117 = vmatprep.subr.mxu0 0.0
    %5118 = vmatpush1.msra.mxu0 0.0
    %5119 = vmatprep.subr.mxu0 0.0
    %5120 = vmatpush1.msra.mxu0 0.0
    %5121 = vmatprep.subr.mxu0 0.0
    %5122 = vmatpush1.msra.mxu0 0.0
    %5123 = vmatprep.subr.mxu0 0.0
    %5124 = vmatpush1.msra.mxu0 0.0
    %5125 = vmatprep.mubr.f32.mxu0 0.0
    %5126 = vmatmul.mubr.f32.gmra.mrb[0].mxu0 %v5053
    %v5127 = vpop.f32.mrb[0].mxu0
    %v5128 = vadd.f32 0.0, %v5127
    %v5129 = vpop.f32.mrb[0].mxu0
    %v5130 = vadd.f32 0.0, %v5129
    %5131 = vdwg.mxu0
    %v5132 = vmul.f32 %v5128, %v948
    %v5133 = vmul.f32 %v5130, %v950
    %v5134 = vld [vmem:[%s13] sm:$0xff]
    %v5135 = vld [vmem:[%s13 + $0x8] sm:$0xff]
    %v5136 = vld [vmem:[%s13 + $0x10] sm:$0xff]
    %v5137 = vld [vmem:[%s13 + $0x18] sm:$0xff]
    %v5138 = vld [vmem:[%s13 + $0x20] sm:$0xff]
    %v5139 = vld [vmem:[%s13 + $0x28] sm:$0xff]
    %v5140 = vld [vmem:[%s13 + $0x30] sm:$0xff]
    %v5141 = vld [vmem:[%s13 + $0x38] sm:$0xff]
    %v5142 = vld [vmem:[%s13 + $0x40] sm:$0xff]
    %v5143 = vld [vmem:[%s13 + $0x48] sm:$0xff]
    %v5144 = vld [vmem:[%s13 + $0x50] sm:$0xff]
    %v5145 = vld [vmem:[%s13 + $0x58] sm:$0xff]
    %v5146 = vld [vmem:[%s13 + $0x60] sm:$0xff]
    %v5147 = vld [vmem:[%s13 + $0x68] sm:$0xff]
    %v5148 = vld [vmem:[%s13 + $0x70] sm:$0xff]
    %v5149 = vld [vmem:[%s13 + $0x78] sm:$0xff]
    %v5150 = vld [vmem:[%s13 + $0x80] sm:$0xff]
    %v5151 = vld [vmem:[%s13 + $0x88] sm:$0xff]
    %v5152 = vld [vmem:[%s13 + $0x90] sm:$0xff]
    %v5153 = vld [vmem:[%s13 + $0x98] sm:$0xff]
    %v5154 = vld [vmem:[%s13 + $0xa0] sm:$0xff]
    %v5155 = vld [vmem:[%s13 + $0xa8] sm:$0xff]
    %v5156 = vld [vmem:[%s13 + $0xb0] sm:$0xff]
    %v5157 = vld [vmem:[%s13 + $0xb8] sm:$0xff]
    %v5158 = vld [vmem:[%s13 + $0xc0] sm:$0xff]
    %v5159 = vld [vmem:[%s13 + $0xc8] sm:$0xff]
    %v5160 = vld [vmem:[%s13 + $0xd0] sm:$0xff]
    %v5161 = vld [vmem:[%s13 + $0xd8] sm:$0xff]
    %v5163 = vsel %vm947, %v5133, 0
    %5165 = vmatprep.subr.mxu0 0.0
    %5166 = vmatpush1.msra.mxu0 %v5134
    %5167 = vmatprep.subr.mxu0 0.0
    %5168 = vmatpush1.msra.mxu0 %v5135
    %5169 = vmatprep.subr.mxu0 0.0
    %5170 = vmatpush1.msra.mxu0 %v5136
    %5171 = vmatprep.subr.mxu0 0.0
    %5172 = vmatpush1.msra.mxu0 %v5137
    %5173 = vmatprep.subr.mxu0 0.0
    %5174 = vmatpush1.msra.mxu0 %v5138
    %5175 = vmatprep.subr.mxu0 0.0
    %5176 = vmatpush1.msra.mxu0 %v5139
    %5177 = vmatprep.subr.mxu0 0.0
    %5178 = vmatpush1.msra.mxu0 %v5140
    %5179 = vmatprep.subr.mxu0 0.0
    %5180 = vmatpush1.msra.mxu0 %v5141
    %5181 = vmatprep.subr.mxu0 0.0
    %5182 = vmatpush1.msra.mxu0 %v5142
    %5183 = vmatprep.subr.mxu0 0.0
    %5184 = vmatpush1.msra.mxu0 %v5143
    %5185 = vmatprep.subr.mxu0 0.0
    %5186 = vmatpush1.msra.mxu0 %v5144
    %5187 = vmatprep.subr.mxu0 0.0
    %5188 = vmatpush1.msra.mxu0 %v5145
    %5189 = vmatprep.subr.mxu0 0.0
    %5190 = vmatpush1.msra.mxu0 %v5146
    %5191 = vmatprep.subr.mxu0 0.0
    %5192 = vmatpush1.msra.mxu0 %v5147
    %5193 = vmatprep.subr.mxu0 0.0
    %5194 = vmatpush1.msra.mxu0 %v5148
    %5195 = vmatprep.subr.mxu0 0.0
    %5196 = vmatpush1.msra.mxu0 %v5149
    %5197 = vmatprep.subr.mxu0 0.0
    %5198 = vmatpush1.msra.mxu0 %v5150
    %5199 = vmatprep.subr.mxu0 0.0
    %5200 = vmatpush1.msra.mxu0 %v5151
    %5201 = vmatprep.subr.mxu0 0.0
    %5202 = vmatpush1.msra.mxu0 %v5152
    %5203 = vmatprep.subr.mxu0 0.0
    %5204 = vmatpush1.msra.mxu0 %v5153
    %5205 = vmatprep.subr.mxu0 0.0
    %5206 = vmatpush1.msra.mxu0 %v5154
    %5207 = vmatprep.subr.mxu0 0.0
    %5208 = vmatpush1.msra.mxu0 %v5155
    %5209 = vmatprep.subr.mxu0 0.0
    %5210 = vmatpush1.msra.mxu0 %v5156
    %5211 = vmatprep.subr.mxu0 0.0
    %5212 = vmatpush1.msra.mxu0 %v5157
    %5213 = vmatprep.subr.mxu0 0.0
    %5214 = vmatpush1.msra.mxu0 %v5158
    %5215 = vmatprep.subr.mxu0 0.0
    %5216 = vmatpush1.msra.mxu0 %v5159
    %5217 = vmatprep.subr.mxu0 0.0
    %5218 = vmatpush1.msra.mxu0 %v5160
    %5219 = vmatprep.subr.mxu0 0.0
    %5220 = vmatpush1.msra.mxu0 %v5161
    %5221 = vmatprep.subr.mxu0 0.0
    %5222 = vmatpush1.msra.mxu0 0.0
    %5223 = vmatprep.subr.mxu0 0.0
    %5224 = vmatpush1.msra.mxu0 0.0
    %5225 = vmatprep.subr.mxu0 0.0
    %5226 = vmatpush1.msra.mxu0 0.0
    %5227 = vmatprep.subr.mxu0 0.0
    %5228 = vmatpush1.msra.mxu0 0.0
    %5229 = vmatprep.mubr.f32.mxu0 %v5163
    %5230 = vmatmul.mubr.f32.gmra.mrb[0].mxu0 %v5132
    %v5231 = vpop.f32.mrb[0].mxu0
    %v5232 = vadd.f32 0.0, %v5231
    %v5233 = vpop.f32.mrb[0].mxu0
    %5234 = vdwg.mxu0
    %5236 = vrot.lane.b32.xlu0 %v5232, 16
    %v5237 = vpop.permute.xlu0 %5236
    %v5239 = vsel %vm100, %v4854, %v5237
    %v5241 = vsel %vm1899, %v5239, 0
    %5243 = vmatprep.subr.mxu0 0.0
    %5244 = vmatpush1.msra.mxu0 %v1484
    %5245 = vmatprep.subr.mxu0 0.0
    %5246 = vmatpush1.msra.mxu0 %v1485
    %5247 = vmatprep.subr.mxu0 0.0
    %5248 = vmatpush1.msra.mxu0 %v1486
    %5249 = vmatprep.subr.mxu0 0.0
    %5250 = vmatpush1.msra.mxu0 %v1487
    %5251 = vmatprep.subr.mxu0 0.0
    %5252 = vmatpush1.msra.mxu0 %v1488
    %5253 = vmatprep.subr.mxu0 0.0
    %5254 = vmatpush1.msra.mxu0 %v1489
    %5255 = vmatprep.subr.mxu0 0.0
    %5256 = vmatpush1.msra.mxu0 0.0
    %5257 = vmatprep.subr.mxu0 0.0
    %5258 = vmatpush1.msra.mxu0 0.0
    %5259 = vmatprep.subr.mxu0 0.0
    %5260 = vmatpush1.msra.mxu0 0.0
    %5261 = vmatprep.subr.mxu0 0.0
    %5262 = vmatpush1.msra.mxu0 0.0
    %5263 = vmatprep.subr.mxu0 0.0
    %5264 = vmatpush1.msra.mxu0 0.0
    %5265 = vmatprep.subr.mxu0 0.0
    %5266 = vmatpush1.msra.mxu0 0.0
    %5267 = vmatprep.subr.mxu0 0.0
    %5268 = vmatpush1.msra.mxu0 0.0
    %5269 = vmatprep.subr.mxu0 0.0
    %5270 = vmatpush1.msra.mxu0 0.0
    %5271 = vmatprep.subr.mxu0 0.0
    %5272 = vmatpush1.msra.mxu0 0.0
    %5273 = vmatprep.subr.mxu0 0.0
    %5274 = vmatpush1.msra.mxu0 0.0
    %5275 = vmatprep.subr.mxu0 0.0
    %5276 = vmatpush1.msra.mxu0 0.0
    %5277 = vmatprep.subr.mxu0 0.0
    %5278 = vmatpush1.msra.mxu0 0.0
    %5279 = vmatprep.subr.mxu0 0.0
    %5280 = vmatpush1.msra.mxu0 0.0
    %5281 = vmatprep.subr.mxu0 0.0
    %5282 = vmatpush1.msra.mxu0 0.0
    %5283 = vmatprep.subr.mxu0 0.0
    %5284 = vmatpush1.msra.mxu0 0.0
    %5285 = vmatprep.subr.mxu0 0.0
    %5286 = vmatpush1.msra.mxu0 0.0
    %5287 = vmatprep.subr.mxu0 0.0
    %5288 = vmatpush1.msra.mxu0 0.0
    %5289 = vmatprep.subr.mxu0 0.0
    %5290 = vmatpush1.msra.mxu0 0.0
    %5291 = vmatprep.subr.mxu0 0.0
    %5292 = vmatpush1.msra.mxu0 0.0
    %5293 = vmatprep.subr.mxu0 0.0
    %5294 = vmatpush1.msra.mxu0 0.0
    %5295 = vmatprep.subr.mxu0 0.0
    %5296 = vmatpush1.msra.mxu0 0.0
    %5297 = vmatprep.subr.mxu0 0.0
    %5298 = vmatpush1.msra.mxu0 0.0
    %5299 = vmatprep.subr.mxu0 0.0
    %5300 = vmatpush1.msra.mxu0 0.0
    %5301 = vmatprep.subr.mxu0 0.0
    %5302 = vmatpush1.msra.mxu0 0.0
    %5303 = vmatprep.subr.mxu0 0.0
    %5304 = vmatpush1.msra.mxu0 0.0
    %5305 = vmatprep.subr.mxu0 0.0
    %5306 = vmatpush1.msra.mxu0 0.0
    %5307 = vmatprep.mubr.f32.mxu0 0.0
    %5308 = vmatmul.mubr.f32.gmra.mrb[0].mxu0 %v5241
    %v5309 = vpop.f32.mrb[0].mxu0
    %v5310 = vadd.f32 %v1897, %v5309
    %v5311 = vpop.f32.mrb[0].mxu0
    %5312 = vdwg.mxu0
    %5313 = vmatprep.subr.mxu0 0.0
    %5314 = vmatpush1.msra.mxu0 %v1490
    %5315 = vmatprep.subr.mxu0 0.0
    %5316 = vmatpush1.msra.mxu0 %v1491
    %5317 = vmatprep.subr.mxu0 0.0
    %5318 = vmatpush1.msra.mxu0 %v1492
    %5319 = vmatprep.subr.mxu0 0.0
    %5320 = vmatpush1.msra.mxu0 %v1493
    %5321 = vmatprep.subr.mxu0 0.0
    %5322 = vmatpush1.msra.mxu0 0.0
    %5323 = vmatprep.subr.mxu0 0.0
    %5324 = vmatpush1.msra.mxu0 0.0
    %5325 = vmatprep.subr.mxu0 0.0
    %5326 = vmatpush1.msra.mxu0 0.0
    %5327 = vmatprep.subr.mxu0 0.0
    %5328 = vmatpush1.msra.mxu0 0.0
    %5329 = vmatprep.subr.mxu0 0.0
    %5330 = vmatpush1.msra.mxu0 0.0
    %5331 = vmatprep.subr.mxu0 0.0
    %5332 = vmatpush1.msra.mxu0 0.0
    %5333 = vmatprep.subr.mxu0 0.0
    %5334 = vmatpush1.msra.mxu0 0.0
    %5335 = vmatprep.subr.mxu0 0.0
    %5336 = vmatpush1.msra.mxu0 0.0
    %5337 = vmatprep.subr.mxu0 0.0
    %5338 = vmatpush1.msra.mxu0 0.0
    %5339 = vmatprep.subr.mxu0 0.0
    %5340 = vmatpush1.msra.mxu0 0.0
    %5341 = vmatprep.subr.mxu0 0.0
    %5342 = vmatpush1.msra.mxu0 0.0
    %5343 = vmatprep.subr.mxu0 0.0
    %5344 = vmatpush1.msra.mxu0 0.0
    %5345 = vmatprep.subr.mxu0 0.0
    %5346 = vmatpush1.msra.mxu0 0.0
    %5347 = vmatprep.subr.mxu0 0.0
    %5348 = vmatpush1.msra.mxu0 0.0
    %5349 = vmatprep.subr.mxu0 0.0
    %5350 = vmatpush1.msra.mxu0 0.0
    %5351 = vmatprep.subr.mxu0 0.0
    %5352 = vmatpush1.msra.mxu0 0.0
    %5353 = vmatprep.subr.mxu0 0.0
    %5354 = vmatpush1.msra.mxu0 0.0
    %5355 = vmatprep.subr.mxu0 0.0
    %5356 = vmatpush1.msra.mxu0 0.0
    %5357 = vmatprep.subr.mxu0 0.0
    %5358 = vmatpush1.msra.mxu0 0.0
    %5359 = vmatprep.subr.mxu0 0.0
    %5360 = vmatpush1.msra.mxu0 0.0
    %5361 = vmatprep.subr.mxu0 0.0
    %5362 = vmatpush1.msra.mxu0 0.0
    %5363 = vmatprep.subr.mxu0 0.0
    %5364 = vmatpush1.msra.mxu0 0.0
    %5365 = vmatprep.subr.mxu0 0.0
    %5366 = vmatpush1.msra.mxu0 0.0
    %5367 = vmatprep.subr.mxu0 0.0
    %5368 = vmatpush1.msra.mxu0 0.0
    %5369 = vmatprep.subr.mxu0 0.0
    %5370 = vmatpush1.msra.mxu0 0.0
    %5371 = vmatprep.subr.mxu0 0.0
    %5372 = vmatpush1.msra.mxu0 0.0
    %5373 = vmatprep.subr.mxu0 0.0
    %5374 = vmatpush1.msra.mxu0 0.0
    %5375 = vmatprep.subr.mxu0 0.0
    %5376 = vmatpush1.msra.mxu0 0.0
    %5377 = vmatprep.mubr.f32.mxu0 0.0
    %5378 = vmatmul.mubr.f32.gmra.mrb[0].mxu0 %v4586
    %v5379 = vpop.f32.mrb[0].mxu0
    %v5380 = vadd.f32 %v1977, %v5379
    %v5381 = vpop.f32.mrb[0].mxu0
    %5382 = vdwg.mxu0
    %v5383 = vadd.f32 %v5310, %v5380
    %v5384 = vxor.u32 %v5383, 2147483648
    %v5385 = vmul.f32 %v5384, 1.442695
    %v5386 = vpow.pop %v5385
    %v5387 = vadd.f32 %v5386, 1.0
    %v5388 = vrcp.pop %v5387
    %v5389 = vmul.f32 1.0, %v5388
    %5391 = vrot.lane.b32.xlu0 %v5380, 64
    %v5392 = vpop.permute.xlu0 %5391
    %v5394 = vmul.f32 %v5389, %v5392
    %5396 = vrot.lane.b32.xlu0 %v5394, 64
    %v5397 = vpop.permute.xlu0 %5396
    %v5399 = vadd.f32 %v5310, %v5397
    %v5400 = vtanh.pop %v5399
    %v5401 = vsub.f32 1.0, %v5389
    %5403 = vrot.lane.b32.xlu0 %v5400, 96
    %v5404 = vpop.permute.xlu0 %5403
    %v5406 = vmul.f32 %v5401, %v5404
    %v5407 = vmul.f32 %v5389, %v4576
    %v5408 = vadd.f32 %v5406, %v5407
    %v5409 = vld [vmem:[%s18] sm:$0xff]
    %v5410 = vld [vmem:[%s18 + $0x8] sm:$0xff]
    %v5411 = vld [vmem:[%s18 + $0x10] sm:$0xff]
    %v5412 = vld [vmem:[%s18 + $0x18] sm:$0xff]
    %v5413 = vld [vmem:[%s18 + $0x20] sm:$0xff]
    %v5414 = vld [vmem:[%s18 + $0x28] sm:$0xff]
    %5416 = vrot.lane.b32.xlu0 %v5408, 96
    %v5417 = vpop.permute.xlu0 %5416
    %v5418 = vsel %vm204, %v5417, 0
    %5420 = vmatprep.subr.mxu0 0.0
    %5421 = vmatpush1.msra.mxu0 %v1496
    %5422 = vmatprep.subr.mxu0 0.0
    %5423 = vmatpush1.msra.mxu0 %v1497
    %5424 = vmatprep.subr.mxu0 0.0
    %5425 = vmatpush1.msra.mxu0 %v1498
    %5426 = vmatprep.subr.mxu0 0.0
    %5427 = vmatpush1.msra.mxu0 %v1499
    %5428 = vmatprep.subr.mxu0 0.0
    %5429 = vmatpush1.msra.mxu0 0.0
    %5430 = vmatprep.subr.mxu0 0.0
    %5431 = vmatpush1.msra.mxu0 0.0
    %5432 = vmatprep.subr.mxu0 0.0
    %5433 = vmatpush1.msra.mxu0 0.0
    %5434 = vmatprep.subr.mxu0 0.0
    %5435 = vmatpush1.msra.mxu0 0.0
    %5436 = vmatprep.subr.mxu0 0.0
    %5437 = vmatpush1.msra.mxu0 0.0
    %5438 = vmatprep.subr.mxu0 0.0
    %5439 = vmatpush1.msra.mxu0 0.0
    %5440 = vmatprep.subr.mxu0 0.0
    %5441 = vmatpush1.msra.mxu0 0.0
    %5442 = vmatprep.subr.mxu0 0.0
    %5443 = vmatpush1.msra.mxu0 0.0
    %5444 = vmatprep.subr.mxu0 0.0
    %5445 = vmatpush1.msra.mxu0 0.0
    %5446 = vmatprep.subr.mxu0 0.0
    %5447 = vmatpush1.msra.mxu0 0.0
    %5448 = vmatprep.subr.mxu0 0.0
    %5449 = vmatpush1.msra.mxu0 0.0
    %5450 = vmatprep.subr.mxu0 0.0
    %5451 = vmatpush1.msra.mxu0 0.0
    %5452 = vmatprep.subr.mxu0 0.0
    %5453 = vmatpush1.msra.mxu0 0.0
    %5454 = vmatprep.subr.mxu0 0.0
    %5455 = vmatpush1.msra.mxu0 0.0
    %5456 = vmatprep.subr.mxu0 0.0
    %5457 = vmatpush1.msra.mxu0 0.0
    %5458 = vmatprep.subr.mxu0 0.0
    %5459 = vmatpush1.msra.mxu0 0.0
    %5460 = vmatprep.subr.mxu0 0.0
    %5461 = vmatpush1.msra.mxu0 0.0
    %5462 = vmatprep.subr.mxu0 0.0
    %5463 = vmatpush1.msra.mxu0 0.0
    %5464 = vmatprep.subr.mxu0 0.0
    %5465 = vmatpush1.msra.mxu0 0.0
    %5466 = vmatprep.subr.mxu0 0.0
    %5467 = vmatpush1.msra.mxu0 0.0
    %5468 = vmatprep.subr.mxu0 0.0
    %5469 = vmatpush1.msra.mxu0 0.0
    %5470 = vmatprep.subr.mxu0 0.0
    %5471 = vmatpush1.msra.mxu0 0.0
    %5472 = vmatprep.subr.mxu0 0.0
    %5473 = vmatpush1.msra.mxu0 0.0
    %5474 = vmatprep.subr.mxu0 0.0
    %5475 = vmatpush1.msra.mxu0 0.0
    %5476 = vmatprep.subr.mxu0 0.0
    %5477 = vmatpush1.msra.mxu0 0.0
    %5478 = vmatprep.subr.mxu0 0.0
    %5479 = vmatpush1.msra.mxu0 0.0
    %5480 = vmatprep.subr.mxu0 0.0
    %5481 = vmatpush1.msra.mxu0 0.0
    %5482 = vmatprep.subr.mxu0 0.0
    %5483 = vmatpush1.msra.mxu0 0.0
    %5484 = vmatprep.mubr.f32.mxu0 0.0
    %5485 = vmatmul.mubr.f32.gmra.mrb[0].mxu0 %v5418
    %v5486 = vpop.f32.mrb[0].mxu0
    %v5487 = vadd.f32 0.0, %v5486
    %v5488 = vpop.f32.mrb[0].mxu0
    %5489 = vdwg.mxu0
    %5490 = vmatprep.subr.mxu0 0.0
    %5491 = vmatpush1.msra.mxu0 %v5409
    %5492 = vmatprep.subr.mxu0 0.0
    %5493 = vmatpush1.msra.mxu0 %v5410
    %5494 = vmatprep.subr.mxu0 0.0
    %5495 = vmatpush1.msra.mxu0 %v5411
    %5496 = vmatprep.subr.mxu0 0.0
    %5497 = vmatpush1.msra.mxu0 %v5412
    %5498 = vmatprep.subr.mxu0 0.0
    %5499 = vmatpush1.msra.mxu0 %v5413
    %5500 = vmatprep.subr.mxu0 0.0
    %5501 = vmatpush1.msra.mxu0 %v5414
    %5502 = vmatprep.subr.mxu0 0.0
    %5503 = vmatpush1.msra.mxu0 0.0
    %5504 = vmatprep.subr.mxu0 0.0
    %5505 = vmatpush1.msra.mxu0 0.0
    %5506 = vmatprep.subr.mxu0 0.0
    %5507 = vmatpush1.msra.mxu0 0.0
    %5508 = vmatprep.subr.mxu0 0.0
    %5509 = vmatpush1.msra.mxu0 0.0
    %5510 = vmatprep.subr.mxu0 0.0
    %5511 = vmatpush1.msra.mxu0 0.0
    %5512 = vmatprep.subr.mxu0 0.0
    %5513 = vmatpush1.msra.mxu0 0.0
    %5514 = vmatprep.subr.mxu0 0.0
    %5515 = vmatpush1.msra.mxu0 0.0
    %5516 = vmatprep.subr.mxu0 0.0
    %5517 = vmatpush1.msra.mxu0 0.0
    %5518 = vmatprep.subr.mxu0 0.0
    %5519 = vmatpush1.msra.mxu0 0.0
    %5520 = vmatprep.subr.mxu0 0.0
    %5521 = vmatpush1.msra.mxu0 0.0
    %5522 = vmatprep.subr.mxu0 0.0
    %5523 = vmatpush1.msra.mxu0 0.0
    %5524 = vmatprep.subr.mxu0 0.0
    %5525 = vmatpush1.msra.mxu0 0.0
    %5526 = vmatprep.subr.mxu0 0.0
    %5527 = vmatpush1.msra.mxu0 0.0
    %5528 = vmatprep.subr.mxu0 0.0
    %5529 = vmatpush1.msra.mxu0 0.0
    %5530 = vmatprep.subr.mxu0 0.0
    %5531 = vmatpush1.msra.mxu0 0.0
    %5532 = vmatprep.subr.mxu0 0.0
    %5533 = vmatpush1.msra.mxu0 0.0
    %5534 = vmatprep.subr.mxu0 0.0
    %5535 = vmatpush1.msra.mxu0 0.0
    %5536 = vmatprep.subr.mxu0 0.0
    %5537 = vmatpush1.msra.mxu0 0.0
    %5538 = vmatprep.subr.mxu0 0.0
    %5539 = vmatpush1.msra.mxu0 0.0
    %5540 = vmatprep.subr.mxu0 0.0
    %5541 = vmatpush1.msra.mxu0 0.0
    %5542 = vmatprep.subr.mxu0 0.0
    %5543 = vmatpush1.msra.mxu0 0.0
    %5544 = vmatprep.subr.mxu0 0.0
    %5545 = vmatpush1.msra.mxu0 0.0
    %5546 = vmatprep.subr.mxu0 0.0
    %5547 = vmatpush1.msra.mxu0 0.0
    %5548 = vmatprep.subr.mxu0 0.0
    %5549 = vmatpush1.msra.mxu0 0.0
    %5550 = vmatprep.subr.mxu0 0.0
    %5551 = vmatpush1.msra.mxu0 0.0
    %5552 = vmatprep.subr.mxu0 0.0
    %5553 = vmatpush1.msra.mxu0 0.0
    %5554 = vmatprep.mubr.f32.mxu0 0.0
    %5555 = vmatmul.mubr.f32.gmra.mrb[0].mxu0 %v5241
    %v5556 = vpop.f32.mrb[0].mxu0
    %v5557 = vadd.f32 %v5487, %v5556
    %v5558 = vpop.f32.mrb[0].mxu0
    %5559 = vdwg.mxu0
    %v5560 = vadd.f32 %v5557, %v2230
    %5561 = vst [vmem:[#allocation6 + $0x14] sm:$0xf] %v5560
    %s5562 = sld [smem:[#allocation3 + $0x5]]
    %p5563 = scmp.eq.s32.totalorder %s5562, 0
    // Predicated region
    $region122: #{seq2seq_forward.1} parent=1 // pred_check
      %p5564 = pneg %p5563
    $region123: #{seq2seq_forward.1} parent=1 // pred_check_branch
      %5566 = sbr.rel (%p5564) target = $region125
    $region124: #{seq2seq_forward.1} parent=1 // pred_region
      %vm5567 = vcmask 1043456
      %v5568 = vsel %vm5567, %v5560, -inf
      %5569 = vmax.xlane.f32.xlu0 %v5568
      %v5570 = vpop.xlane.xlu0 %5569
      %vm5571 = vcmp.eq.f32.partialorder %v5560, %v5570
      %v5572 = vsel %vm5571, %v1502, 128
      %v5573 = vsel %vm5567, %v5572, 2147483647
      %v5574 = vand.u32 %v5573, 65535
      %v5575 = vshra.s32 %v5573, 16
      %v5576 = vcvt.s32.f32 %v5574
      %v5577 = vcvt.s32.f32 %v5575
      %5578 = vmin.xlane.f32.xlu0 %v5577
      %v5579 = vpop.xlane.xlu0 %5578
      %vm5580 = vcmp.eq.f32.partialorder %v5577, %v5579
      %v5581 = vsel %vm5580, %v5576, inf
      %5582 = vmin.xlane.f32.xlu0 %v5581
      %v5583 = vpop.xlane.xlu0 %5582
      %v5584 = vcvt.f32.s32 %v5583
      %v5585 = vcvt.f32.s32 %v5579
      %v5586 = vshll.u32 %v5585, 16
      %v5587 = vadd.s32 %v5586, %v5584
      %vm5588 = vcmp.eq.s32.totalorder %v1502, %v5587
      %v5589 = vsel %vm5588, 1, 0
      %v5590 = vcvt.s32.f32 %v5589
      %v5591 = vld [vmem:[%s3] sm:$0xff]
      %v5592 = vld [vmem:[%s3 + $0x8] sm:$0xff]
      %v5593 = vld [vmem:[%s3 + $0x10] sm:$0xff]
      %v5594 = vld [vmem:[%s3 + $0x18] sm:$0xff]
      %v5595 = vld [vmem:[%s3 + $0x20] sm:$0xff]
      %v5596 = vld [vmem:[%s3 + $0x28] sm:$0xff]
      %v5597 = vld [vmem:[%s3 + $0x30] sm:$0xff]
      %v5598 = vld [vmem:[%s3 + $0x38] sm:$0xff]
      %v5599 = vld [vmem:[%s3 + $0x40] sm:$0xff]
      %v5600 = vld [vmem:[%s3 + $0x48] sm:$0xff]
      %v5601 = vld [vmem:[%s3 + $0x50] sm:$0xff]
      %v5602 = vld [vmem:[%s3 + $0x58] sm:$0xff]
      %v5603 = vld [vmem:[%s3 + $0x60] sm:$0xff]
      %v5604 = vld [vmem:[%s3 + $0x68] sm:$0xff]
      %v5605 = vld [vmem:[%s3 + $0x70] sm:$0xff]
      %v5606 = vld [vmem:[%s3 + $0x78] sm:$0xff]
      %5607 = vmatprep.subr.mxu0 0.0
      %5608 = vmatpush1.msra.mxu0 %v5591
      %5609 = vmatprep.subr.mxu0 0.0
      %5610 = vmatpush1.msra.mxu0 %v5592
      %5611 = vmatprep.subr.mxu0 0.0
      %5612 = vmatpush1.msra.mxu0 %v5593
      %5613 = vmatprep.subr.mxu0 0.0
      %5614 = vmatpush1.msra.mxu0 %v5594
      %5615 = vmatprep.subr.mxu0 0.0
      %5616 = vmatpush1.msra.mxu0 %v5595
      %5617 = vmatprep.subr.mxu0 0.0
      %5618 = vmatpush1.msra.mxu0 %v5596
      %5619 = vmatprep.subr.mxu0 0.0
      %5620 = vmatpush1.msra.mxu0 %v5597
      %5621 = vmatprep.subr.mxu0 0.0
      %5622 = vmatpush1.msra.mxu0 %v5598
      %5623 = vmatprep.subr.mxu0 0.0
      %5624 = vmatpush1.msra.mxu0 %v5599
      %5625 = vmatprep.subr.mxu0 0.0
      %5626 = vmatpush1.msra.mxu0 %v5600
      %5627 = vmatprep.subr.mxu0 0.0
      %5628 = vmatpush1.msra.mxu0 %v5601
      %5629 = vmatprep.subr.mxu0 0.0
      %5630 = vmatpush1.msra.mxu0 %v5602
      %5631 = vmatprep.subr.mxu0 0.0
      %5632 = vmatpush1.msra.mxu0 %v5603
      %5633 = vmatprep.subr.mxu0 0.0
      %5634 = vmatpush1.msra.mxu0 %v5604
      %5635 = vmatprep.subr.mxu0 0.0
      %5636 = vmatpush1.msra.mxu0 %v5605
      %5637 = vmatprep.subr.mxu0 0.0
      %5638 = vmatpush1.msra.mxu0 %v5606
      %5639 = vmatprep.subr.mxu0 0.0
      %5640 = vmatpush1.msra.mxu0 0.0
      %5641 = vmatprep.subr.mxu0 0.0
      %5642 = vmatpush1.msra.mxu0 0.0
      %5643 = vmatprep.subr.mxu0 0.0
      %5644 = vmatpush1.msra.mxu0 0.0
      %5645 = vmatprep.subr.mxu0 0.0
      %5646 = vmatpush1.msra.mxu0 0.0
      %5647 = vmatprep.subr.mxu0 0.0
      %5648 = vmatpush1.msra.mxu0 0.0
      %5649 = vmatprep.subr.mxu0 0.0
      %5650 = vmatpush1.msra.mxu0 0.0
      %5651 = vmatprep.subr.mxu0 0.0
      %5652 = vmatpush1.msra.mxu0 0.0
      %5653 = vmatprep.subr.mxu0 0.0
      %5654 = vmatpush1.msra.mxu0 0.0
      %5655 = vmatprep.subr.mxu0 0.0
      %5656 = vmatpush1.msra.mxu0 0.0
      %5657 = vmatprep.subr.mxu0 0.0
      %5658 = vmatpush1.msra.mxu0 0.0
      %5659 = vmatprep.subr.mxu0 0.0
      %5660 = vmatpush1.msra.mxu0 0.0
      %5661 = vmatprep.subr.mxu0 0.0
      %5662 = vmatpush1.msra.mxu0 0.0
      %5663 = vmatprep.subr.mxu0 0.0
      %5664 = vmatpush1.msra.mxu0 0.0
      %5665 = vmatprep.subr.mxu0 0.0
      %5666 = vmatpush1.msra.mxu0 0.0
      %5667 = vmatprep.subr.mxu0 0.0
      %5668 = vmatpush1.msra.mxu0 0.0
      %5669 = vmatprep.subr.mxu0 0.0
      %5670 = vmatpush1.msra.mxu0 0.0
      %5671 = vmatprep.mubr.f32.mxu0 0.0
      %5672 = vmatmul.mubr.f32.gmra.mrb[0].mxu0 %v5590
      %v5673 = vpop.f32.mrb[0].mxu0
      %v5674 = vadd.f32 0.0, %v5673
      %v5675 = vpop.f32.mrb[0].mxu0
      %5676 = vdwg.mxu0
      %vm5677 = vcmask 125952
      %5678 = vst.msk [vmem:[#allocation2] sm:$0xf] %vm5677, %v5674
    $region125: #{seq2seq_forward.1} parent=1 // pred_fallthru
      _
    %p5679 = scmp.ne.s32.totalorder %s5562, 0
    // Predicated region
    $region126: #{seq2seq_forward.1} parent=1 // pred_check
      %p5680 = pneg %p5679
    $region127: #{seq2seq_forward.1} parent=1 // pred_check_branch
      %5682 = sbr.rel (%p5680) target = $region129
    $region128: #{seq2seq_forward.1} parent=1 // pred_region
      %v5683 = vld [vmem:[%s2 + $0x14] sm:$0xf]
      %vm5684 = vcmask 125952
      %5685 = vst.msk [vmem:[#allocation2] sm:$0xf] %vm5684, %v5683
    $region129: #{seq2seq_forward.1} parent=1 // pred_fallthru
      _
    %v5686 = vld [vmem:[#allocation2] sm:$0xf]
    %v5687 = vld [vmem:[%s9] sm:$0xff]
    %v5688 = vld [vmem:[%s9 + $0x8] sm:$0xff]
    %v5689 = vld [vmem:[%s9 + $0x10] sm:$0xff]
    %v5690 = vld [vmem:[%s9 + $0x18] sm:$0xff]
    %v5691 = vld [vmem:[%s9 + $0x20] sm:$0xff]
    %v5692 = vld [vmem:[%s9 + $0x28] sm:$0xff]
    %v5693 = vld [vmem:[%s9 + $0x30] sm:$0xff]
    %v5694 = vld [vmem:[%s9 + $0x38] sm:$0xff]
    %5695 = vmatprep.subr.mxu0 %v5688
    %5696 = vmatpush1.msra.mxu0 %v5687
    %5697 = vmatprep.subr.mxu0 %v5690
    %5698 = vmatpush1.msra.mxu0 %v5689
    %5699 = vmatprep.subr.mxu0 %v5692
    %5700 = vmatpush1.msra.mxu0 %v5691
    %5701 = vmatprep.subr.mxu0 %v5694
    %5702 = vmatpush1.msra.mxu0 %v5693
    %5703 = vmatprep.subr.mxu0 0.0
    %5704 = vmatpush1.msra.mxu0 0.0
    %5705 = vmatprep.subr.mxu0 0.0
    %5706 = vmatpush1.msra.mxu0 0.0
    %5707 = vmatprep.subr.mxu0 0.0
    %5708 = vmatpush1.msra.mxu0 0.0
    %5709 = vmatprep.subr.mxu0 0.0
    %5710 = vmatpush1.msra.mxu0 0.0
    %5711 = vmatprep.subr.mxu0 0.0
    %5712 = vmatpush1.msra.mxu0 0.0
    %5713 = vmatprep.subr.mxu0 0.0
    %5714 = vmatpush1.msra.mxu0 0.0
    %5715 = vmatprep.subr.mxu0 0.0
    %5716 = vmatpush1.msra.mxu0 0.0
    %5717 = vmatprep.subr.mxu0 0.0
    %5718 = vmatpush1.msra.mxu0 0.0
    %5719 = vmatprep.subr.mxu0 0.0
    %5720 = vmatpush1.msra.mxu0 0.0
    %5721 = vmatprep.subr.mxu0 0.0
    %5722 = vmatpush1.msra.mxu0 0.0
    %5723 = vmatprep.subr.mxu0 0.0
    %5724 = vmatpush1.msra.mxu0 0.0
    %5725 = vmatprep.subr.mxu0 0.0
    %5726 = vmatpush1.msra.mxu0 0.0
    %5727 = vmatprep.subr.mxu0 0.0
    %5728 = vmatpush1.msra.mxu0 0.0
    %5729 = vmatprep.subr.mxu0 0.0
    %5730 = vmatpush1.msra.mxu0 0.0
    %5731 = vmatprep.subr.mxu0 0.0
    %5732 = vmatpush1.msra.mxu0 0.0
    %5733 = vmatprep.subr.mxu0 0.0
    %5734 = vmatpush1.msra.mxu0 0.0
    %5735 = vmatprep.subr.mxu0 0.0
    %5736 = vmatpush1.msra.mxu0 0.0
    %5737 = vmatprep.subr.mxu0 0.0
    %5738 = vmatpush1.msra.mxu0 0.0
    %5739 = vmatprep.subr.mxu0 0.0
    %5740 = vmatpush1.msra.mxu0 0.0
    %5741 = vmatprep.subr.mxu0 0.0
    %5742 = vmatpush1.msra.mxu0 0.0
    %5743 = vmatprep.subr.mxu0 0.0
    %5744 = vmatpush1.msra.mxu0 0.0
    %5745 = vmatprep.subr.mxu0 0.0
    %5746 = vmatpush1.msra.mxu0 0.0
    %5747 = vmatprep.subr.mxu0 0.0
    %5748 = vmatpush1.msra.mxu0 0.0
    %5749 = vmatprep.subr.mxu0 0.0
    %5750 = vmatpush1.msra.mxu0 0.0
    %5751 = vmatprep.subr.mxu0 0.0
    %5752 = vmatpush1.msra.mxu0 0.0
    %5753 = vmatprep.subr.mxu0 0.0
    %5754 = vmatpush1.msra.mxu0 0.0
    %5755 = vmatprep.subr.mxu0 0.0
    %5756 = vmatpush1.msra.mxu0 0.0
    %5757 = vmatprep.subr.mxu0 0.0
    %5758 = vmatpush1.msra.mxu0 0.0
    %5759 = vmatprep.mubr.f32.mxu0 0.0
    %5760 = vmatmul.mubr.f32.gmra.mrb[0].mxu0 %v5418
    %v5761 = vpop.f32.mrb[0].mxu0
    %v5762 = vadd.f32 0.0, %v5761
    %v5763 = vpop.f32.mrb[0].mxu0
    %v5764 = vadd.f32 0.0, %v5763
    %5765 = vdwg.mxu0
    %v5766 = vadd.f32 %v1482, %v5762
    %v5767 = vadd.f32 %v1483, %v5764
    %v5768 = vtanh.pop %v5766
    %v5769 = vtanh.pop %v5767
    %v5770 = vld [vmem:[%s11] sm:$0xff]
    %v5771 = vld [vmem:[%s11 + $0x8] sm:$0xff]
    %v5772 = vld [vmem:[%s11 + $0x10] sm:$0xff]
    %v5773 = vld [vmem:[%s11 + $0x18] sm:$0xff]
    %v5774 = vld [vmem:[%s11 + $0x20] sm:$0xff]
    %v5775 = vld [vmem:[%s11 + $0x28] sm:$0xff]
    %v5776 = vld [vmem:[%s11 + $0x30] sm:$0xff]
    %v5777 = vld [vmem:[%s11 + $0x38] sm:$0xff]
    %v5778 = vld [vmem:[%s11 + $0x40] sm:$0xff]
    %v5779 = vld [vmem:[%s11 + $0x48] sm:$0xff]
    %v5780 = vld [vmem:[%s11 + $0x50] sm:$0xff]
    %v5781 = vld [vmem:[%s11 + $0x58] sm:$0xff]
    %v5782 = vld [vmem:[%s11 + $0x60] sm:$0xff]
    %v5783 = vld [vmem:[%s11 + $0x68] sm:$0xff]
    %v5784 = vld [vmem:[%s11 + $0x70] sm:$0xff]
    %v5785 = vld [vmem:[%s11 + $0x78] sm:$0xff]
    %v5786 = vld [vmem:[%s11 + $0x80] sm:$0xff]
    %v5787 = vld [vmem:[%s11 + $0x88] sm:$0xff]
    %v5788 = vld [vmem:[%s11 + $0x90] sm:$0xff]
    %v5789 = vld [vmem:[%s11 + $0x98] sm:$0xff]
    %v5790 = vld [vmem:[%s11 + $0xa0] sm:$0xff]
    %v5791 = vld [vmem:[%s11 + $0xa8] sm:$0xff]
    %v5792 = vld [vmem:[%s11 + $0xb0] sm:$0xff]
    %v5793 = vld [vmem:[%s11 + $0xb8] sm:$0xff]
    %v5794 = vld [vmem:[%s11 + $0xc0] sm:$0xff]
    %v5795 = vld [vmem:[%s11 + $0xc8] sm:$0xff]
    %v5796 = vld [vmem:[%s11 + $0xd0] sm:$0xff]
    %v5797 = vld [vmem:[%s11 + $0xd8] sm:$0xff]
    %v5799 = vsel %vm947, %v5769, 0
    %5801 = vmatprep.subr.mxu0 0.0
    %5802 = vmatpush1.msra.mxu0 %v5770
    %5803 = vmatprep.subr.mxu0 0.0
    %5804 = vmatpush1.msra.mxu0 %v5771
    %5805 = vmatprep.subr.mxu0 0.0
    %5806 = vmatpush1.msra.mxu0 %v5772
    %5807 = vmatprep.subr.mxu0 0.0
    %5808 = vmatpush1.msra.mxu0 %v5773
    %5809 = vmatprep.subr.mxu0 0.0
    %5810 = vmatpush1.msra.mxu0 %v5774
    %5811 = vmatprep.subr.mxu0 0.0
    %5812 = vmatpush1.msra.mxu0 %v5775
    %5813 = vmatprep.subr.mxu0 0.0
    %5814 = vmatpush1.msra.mxu0 %v5776
    %5815 = vmatprep.subr.mxu0 0.0
    %5816 = vmatpush1.msra.mxu0 %v5777
    %5817 = vmatprep.subr.mxu0 0.0
    %5818 = vmatpush1.msra.mxu0 %v5778
    %5819 = vmatprep.subr.mxu0 0.0
    %5820 = vmatpush1.msra.mxu0 %v5779
    %5821 = vmatprep.subr.mxu0 0.0
    %5822 = vmatpush1.msra.mxu0 %v5780
    %5823 = vmatprep.subr.mxu0 0.0
    %5824 = vmatpush1.msra.mxu0 %v5781
    %5825 = vmatprep.subr.mxu0 0.0
    %5826 = vmatpush1.msra.mxu0 %v5782
    %5827 = vmatprep.subr.mxu0 0.0
    %5828 = vmatpush1.msra.mxu0 %v5783
    %5829 = vmatprep.subr.mxu0 0.0
    %5830 = vmatpush1.msra.mxu0 %v5784
    %5831 = vmatprep.subr.mxu0 0.0
    %5832 = vmatpush1.msra.mxu0 %v5785
    %5833 = vmatprep.subr.mxu0 0.0
    %5834 = vmatpush1.msra.mxu0 %v5786
    %5835 = vmatprep.subr.mxu0 0.0
    %5836 = vmatpush1.msra.mxu0 %v5787
    %5837 = vmatprep.subr.mxu0 0.0
    %5838 = vmatpush1.msra.mxu0 %v5788
    %5839 = vmatprep.subr.mxu0 0.0
    %5840 = vmatpush1.msra.mxu0 %v5789
    %5841 = vmatprep.subr.mxu0 0.0
    %5842 = vmatpush1.msra.mxu0 %v5790
    %5843 = vmatprep.subr.mxu0 0.0
    %5844 = vmatpush1.msra.mxu0 %v5791
    %5845 = vmatprep.subr.mxu0 0.0
    %5846 = vmatpush1.msra.mxu0 %v5792
    %5847 = vmatprep.subr.mxu0 0.0
    %5848 = vmatpush1.msra.mxu0 %v5793
    %5849 = vmatprep.subr.mxu0 0.0
    %5850 = vmatpush1.msra.mxu0 %v5794
    %5851 = vmatprep.subr.mxu0 0.0
    %5852 = vmatpush1.msra.mxu0 %v5795
    %5853 = vmatprep.subr.mxu0 0.0
    %5854 = vmatpush1.msra.mxu0 %v5796
    %5855 = vmatprep.subr.mxu0 0.0
    %5856 = vmatpush1.msra.mxu0 %v5797
    %5857 = vmatprep.subr.mxu0 0.0
    %5858 = vmatpush1.msra.mxu0 0.0
    %5859 = vmatprep.subr.mxu0 0.0
    %5860 = vmatpush1.msra.mxu0 0.0
    %5861 = vmatprep.subr.mxu0 0.0
    %5862 = vmatpush1.msra.mxu0 0.0
    %5863 = vmatprep.subr.mxu0 0.0
    %5864 = vmatpush1.msra.mxu0 0.0
    %5865 = vmatprep.mubr.f32.mxu0 %v5799
    %5866 = vmatmul.mubr.f32.gmra.mrb[0].mxu0 %v5768
    %v5867 = vpop.f32.mrb[0].mxu0
    %v5868 = vadd.f32 0.0, %v5867
    %v5869 = vpop.f32.mrb[0].mxu0
    %5870 = vdwg.mxu0
    %v5871 = vsel %vm1689, %v5868, -inf
    %5872 = vmax.xlane.f32.xlu0 %v5871
    %v5873 = vpop.xlane.xlu0 %5872
    %v5874 = vsub.f32 %v5868, %v5873
    %v5875 = vmul.f32 %v5874, 1.442695
    %v5876 = vpow.pop %v5875
    %v5877 = vsel %vm1689, %v5876, 0.0
    %5878 = vadd.xlane.f32.xlu0 %v5877
    %v5879 = vpop.xlane.xlu0 %5878
    %v5880 = vrcp.pop %v5879
    %v5881 = vmul.f32 %v5876, %v5880
    %v5882 = vld [vmem:[%s12] sm:$0x7f]
    %v5883 = vld [vmem:[%s12 + $0x8] sm:$0x7f]
    %v5885 = vsel %vm1703, %v5881, 0
    %v5888 = vsel %vm1707, %v5882, 0
    %v5891 = vsel %vm1707, %v5883, 0
    %5893 = vmatprep.subr.mxu0 %v5891
    %5894 = vmatpush1.msra.mxu0 %v5888
    %5895 = vmatprep.subr.mxu0 0.0
    %5896 = vmatpush1.msra.mxu0 0.0
    %5897 = vmatprep.subr.mxu0 0.0
    %5898 = vmatpush1.msra.mxu0 0.0
    %5899 = vmatprep.subr.mxu0 0.0
    %5900 = vmatpush1.msra.mxu0 0.0
    %5901 = vmatprep.subr.mxu0 0.0
    %5902 = vmatpush1.msra.mxu0 0.0
    %5903 = vmatprep.subr.mxu0 0.0
    %5904 = vmatpush1.msra.mxu0 0.0
    %5905 = vmatprep.subr.mxu0 0.0
    %5906 = vmatpush1.msra.mxu0 0.0
    %5907 = vmatprep.subr.mxu0 0.0
    %5908 = vmatpush1.msra.mxu0 0.0
    %5909 = vmatprep.subr.mxu0 0.0
    %5910 = vmatpush1.msra.mxu0 0.0
    %5911 = vmatprep.subr.mxu0 0.0
    %5912 = vmatpush1.msra.mxu0 0.0
    %5913 = vmatprep.subr.mxu0 0.0
    %5914 = vmatpush1.msra.mxu0 0.0
    %5915 = vmatprep.subr.mxu0 0.0
    %5916 = vmatpush1.msra.mxu0 0.0
    %5917 = vmatprep.subr.mxu0 0.0
    %5918 = vmatpush1.msra.mxu0 0.0
    %5919 = vmatprep.subr.mxu0 0.0
    %5920 = vmatpush1.msra.mxu0 0.0
    %5921 = vmatprep.subr.mxu0 0.0
    %5922 = vmatpush1.msra.mxu0 0.0
    %5923 = vmatprep.subr.mxu0 0.0
    %5924 = vmatpush1.msra.mxu0 0.0
    %5925 = vmatprep.subr.mxu0 0.0
    %5926 = vmatpush1.msra.mxu0 0.0
    %5927 = vmatprep.subr.mxu0 0.0
    %5928 = vmatpush1.msra.mxu0 0.0
    %5929 = vmatprep.subr.mxu0 0.0
    %5930 = vmatpush1.msra.mxu0 0.0
    %5931 = vmatprep.subr.mxu0 0.0
    %5932 = vmatpush1.msra.mxu0 0.0
    %5933 = vmatprep.subr.mxu0 0.0
    %5934 = vmatpush1.msra.mxu0 0.0
    %5935 = vmatprep.subr.mxu0 0.0
    %5936 = vmatpush1.msra.mxu0 0.0
    %5937 = vmatprep.subr.mxu0 0.0
    %5938 = vmatpush1.msra.mxu0 0.0
    %5939 = vmatprep.subr.mxu0 0.0
    %5940 = vmatpush1.msra.mxu0 0.0
    %5941 = vmatprep.subr.mxu0 0.0
    %5942 = vmatpush1.msra.mxu0 0.0
    %5943 = vmatprep.subr.mxu0 0.0
    %5944 = vmatpush1.msra.mxu0 0.0
    %5945 = vmatprep.subr.mxu0 0.0
    %5946 = vmatpush1.msra.mxu0 0.0
    %5947 = vmatprep.subr.mxu0 0.0
    %5948 = vmatpush1.msra.mxu0 0.0
    %5949 = vmatprep.subr.mxu0 0.0
    %5950 = vmatpush1.msra.mxu0 0.0
    %5951 = vmatprep.subr.mxu0 0.0
    %5952 = vmatpush1.msra.mxu0 0.0
    %5953 = vmatprep.subr.mxu0 0.0
    %5954 = vmatpush1.msra.mxu0 0.0
    %5955 = vmatprep.subr.mxu0 0.0
    %5956 = vmatpush1.msra.mxu0 0.0
    %5957 = vmatprep.mubr.f32.mxu0 0.0
    %5958 = vmatmul.mubr.f32.gmra.mrb[0].mxu0 %v5885
    %v5959 = vpop.f32.mrb[0].mxu0
    %v5960 = vadd.f32 0.0, %v5959
    %v5961 = vpop.f32.mrb[0].mxu0
    %v5962 = vadd.f32 0.0, %v5961
    %5963 = vdwg.mxu0
    %v5964 = vmul.f32 %v5960, %v948
    %v5965 = vmul.f32 %v5962, %v950
    %v5966 = vld [vmem:[%s13] sm:$0xff]
    %v5967 = vld [vmem:[%s13 + $0x8] sm:$0xff]
    %v5968 = vld [vmem:[%s13 + $0x10] sm:$0xff]
    %v5969 = vld [vmem:[%s13 + $0x18] sm:$0xff]
    %v5970 = vld [vmem:[%s13 + $0x20] sm:$0xff]
    %v5971 = vld [vmem:[%s13 + $0x28] sm:$0xff]
    %v5972 = vld [vmem:[%s13 + $0x30] sm:$0xff]
    %v5973 = vld [vmem:[%s13 + $0x38] sm:$0xff]
    %v5974 = vld [vmem:[%s13 + $0x40] sm:$0xff]
    %v5975 = vld [vmem:[%s13 + $0x48] sm:$0xff]
    %v5976 = vld [vmem:[%s13 + $0x50] sm:$0xff]
    %v5977 = vld [vmem:[%s13 + $0x58] sm:$0xff]
    %v5978 = vld [vmem:[%s13 + $0x60] sm:$0xff]
    %v5979 = vld [vmem:[%s13 + $0x68] sm:$0xff]
    %v5980 = vld [vmem:[%s13 + $0x70] sm:$0xff]
    %v5981 = vld [vmem:[%s13 + $0x78] sm:$0xff]
    %v5982 = vld [vmem:[%s13 + $0x80] sm:$0xff]
    %v5983 = vld [vmem:[%s13 + $0x88] sm:$0xff]
    %v5984 = vld [vmem:[%s13 + $0x90] sm:$0xff]
    %v5985 = vld [vmem:[%s13 + $0x98] sm:$0xff]
    %v5986 = vld [vmem:[%s13 + $0xa0] sm:$0xff]
    %v5987 = vld [vmem:[%s13 + $0xa8] sm:$0xff]
    %v5988 = vld [vmem:[%s13 + $0xb0] sm:$0xff]
    %v5989 = vld [vmem:[%s13 + $0xb8] sm:$0xff]
    %v5990 = vld [vmem:[%s13 + $0xc0] sm:$0xff]
    %v5991 = vld [vmem:[%s13 + $0xc8] sm:$0xff]
    %v5992 = vld [vmem:[%s13 + $0xd0] sm:$0xff]
    %v5993 = vld [vmem:[%s13 + $0xd8] sm:$0xff]
    %v5995 = vsel %vm947, %v5965, 0
    %5997 = vmatprep.subr.mxu0 0.0
    %5998 = vmatpush1.msra.mxu0 %v5966
    %5999 = vmatprep.subr.mxu0 0.0
    %6000 = vmatpush1.msra.mxu0 %v5967
    %6001 = vmatprep.subr.mxu0 0.0
    %6002 = vmatpush1.msra.mxu0 %v5968
    %6003 = vmatprep.subr.mxu0 0.0
    %6004 = vmatpush1.msra.mxu0 %v5969
    %6005 = vmatprep.subr.mxu0 0.0
    %6006 = vmatpush1.msra.mxu0 %v5970
    %6007 = vmatprep.subr.mxu0 0.0
    %6008 = vmatpush1.msra.mxu0 %v5971
    %6009 = vmatprep.subr.mxu0 0.0
    %6010 = vmatpush1.msra.mxu0 %v5972
    %6011 = vmatprep.subr.mxu0 0.0
    %6012 = vmatpush1.msra.mxu0 %v5973
    %6013 = vmatprep.subr.mxu0 0.0
    %6014 = vmatpush1.msra.mxu0 %v5974
    %6015 = vmatprep.subr.mxu0 0.0
    %6016 = vmatpush1.msra.mxu0 %v5975
    %6017 = vmatprep.subr.mxu0 0.0
    %6018 = vmatpush1.msra.mxu0 %v5976
    %6019 = vmatprep.subr.mxu0 0.0
    %6020 = vmatpush1.msra.mxu0 %v5977
    %6021 = vmatprep.subr.mxu0 0.0
    %6022 = vmatpush1.msra.mxu0 %v5978
    %6023 = vmatprep.subr.mxu0 0.0
    %6024 = vmatpush1.msra.mxu0 %v5979
    %6025 = vmatprep.subr.mxu0 0.0
    %6026 = vmatpush1.msra.mxu0 %v5980
    %6027 = vmatprep.subr.mxu0 0.0
    %6028 = vmatpush1.msra.mxu0 %v5981
    %6029 = vmatprep.subr.mxu0 0.0
    %6030 = vmatpush1.msra.mxu0 %v5982
    %6031 = vmatprep.subr.mxu0 0.0
    %6032 = vmatpush1.msra.mxu0 %v5983
    %6033 = vmatprep.subr.mxu0 0.0
    %6034 = vmatpush1.msra.mxu0 %v5984
    %6035 = vmatprep.subr.mxu0 0.0
    %6036 = vmatpush1.msra.mxu0 %v5985
    %6037 = vmatprep.subr.mxu0 0.0
    %6038 = vmatpush1.msra.mxu0 %v5986
    %6039 = vmatprep.subr.mxu0 0.0
    %6040 = vmatpush1.msra.mxu0 %v5987
    %6041 = vmatprep.subr.mxu0 0.0
    %6042 = vmatpush1.msra.mxu0 %v5988
    %6043 = vmatprep.subr.mxu0 0.0
    %6044 = vmatpush1.msra.mxu0 %v5989
    %6045 = vmatprep.subr.mxu0 0.0
    %6046 = vmatpush1.msra.mxu0 %v5990
    %6047 = vmatprep.subr.mxu0 0.0
    %6048 = vmatpush1.msra.mxu0 %v5991
    %6049 = vmatprep.subr.mxu0 0.0
    %6050 = vmatpush1.msra.mxu0 %v5992
    %6051 = vmatprep.subr.mxu0 0.0
    %6052 = vmatpush1.msra.mxu0 %v5993
    %6053 = vmatprep.subr.mxu0 0.0
    %6054 = vmatpush1.msra.mxu0 0.0
    %6055 = vmatprep.subr.mxu0 0.0
    %6056 = vmatpush1.msra.mxu0 0.0
    %6057 = vmatprep.subr.mxu0 0.0
    %6058 = vmatpush1.msra.mxu0 0.0
    %6059 = vmatprep.subr.mxu0 0.0
    %6060 = vmatpush1.msra.mxu0 0.0
    %6061 = vmatprep.mubr.f32.mxu0 %v5995
    %6062 = vmatmul.mubr.f32.gmra.mrb[0].mxu0 %v5964
    %v6063 = vpop.f32.mrb[0].mxu0
    %v6064 = vadd.f32 0.0, %v6063
    %v6065 = vpop.f32.mrb[0].mxu0
    %6066 = vdwg.mxu0
    %6068 = vrot.lane.b32.xlu0 %v6064, 16
    %v6069 = vpop.permute.xlu0 %6068
    %v6071 = vsel %vm100, %v5686, %v6069
    %v6073 = vsel %vm1899, %v6071, 0
    %6075 = vmatprep.subr.mxu0 0.0
    %6076 = vmatpush1.msra.mxu0 %v1484
    %6077 = vmatprep.subr.mxu0 0.0
    %6078 = vmatpush1.msra.mxu0 %v1485
    %6079 = vmatprep.subr.mxu0 0.0
    %6080 = vmatpush1.msra.mxu0 %v1486
    %6081 = vmatprep.subr.mxu0 0.0
    %6082 = vmatpush1.msra.mxu0 %v1487
    %6083 = vmatprep.subr.mxu0 0.0
    %6084 = vmatpush1.msra.mxu0 %v1488
    %6085 = vmatprep.subr.mxu0 0.0
    %6086 = vmatpush1.msra.mxu0 %v1489
    %6087 = vmatprep.subr.mxu0 0.0
    %6088 = vmatpush1.msra.mxu0 0.0
    %6089 = vmatprep.subr.mxu0 0.0
    %6090 = vmatpush1.msra.mxu0 0.0
    %6091 = vmatprep.subr.mxu0 0.0
    %6092 = vmatpush1.msra.mxu0 0.0
    %6093 = vmatprep.subr.mxu0 0.0
    %6094 = vmatpush1.msra.mxu0 0.0
    %6095 = vmatprep.subr.mxu0 0.0
    %6096 = vmatpush1.msra.mxu0 0.0
    %6097 = vmatprep.subr.mxu0 0.0
    %6098 = vmatpush1.msra.mxu0 0.0
    %6099 = vmatprep.subr.mxu0 0.0
    %6100 = vmatpush1.msra.mxu0 0.0
    %6101 = vmatprep.subr.mxu0 0.0
    %6102 = vmatpush1.msra.mxu0 0.0
    %6103 = vmatprep.subr.mxu0 0.0
    %6104 = vmatpush1.msra.mxu0 0.0
    %6105 = vmatprep.subr.mxu0 0.0
    %6106 = vmatpush1.msra.mxu0 0.0
    %6107 = vmatprep.subr.mxu0 0.0
    %6108 = vmatpush1.msra.mxu0 0.0
    %6109 = vmatprep.subr.mxu0 0.0
    %6110 = vmatpush1.msra.mxu0 0.0
    %6111 = vmatprep.subr.mxu0 0.0
    %6112 = vmatpush1.msra.mxu0 0.0
    %6113 = vmatprep.subr.mxu0 0.0
    %6114 = vmatpush1.msra.mxu0 0.0
    %6115 = vmatprep.subr.mxu0 0.0
    %6116 = vmatpush1.msra.mxu0 0.0
    %6117 = vmatprep.subr.mxu0 0.0
    %6118 = vmatpush1.msra.mxu0 0.0
    %6119 = vmatprep.subr.mxu0 0.0
    %6120 = vmatpush1.msra.mxu0 0.0
    %6121 = vmatprep.subr.mxu0 0.0
    %6122 = vmatpush1.msra.mxu0 0.0
    %6123 = vmatprep.subr.mxu0 0.0
    %6124 = vmatpush1.msra.mxu0 0.0
    %6125 = vmatprep.subr.mxu0 0.0
    %6126 = vmatpush1.msra.mxu0 0.0
    %6127 = vmatprep.subr.mxu0 0.0
    %6128 = vmatpush1.msra.mxu0 0.0
    %6129 = vmatprep.subr.mxu0 0.0
    %6130 = vmatpush1.msra.mxu0 0.0
    %6131 = vmatprep.subr.mxu0 0.0
    %6132 = vmatpush1.msra.mxu0 0.0
    %6133 = vmatprep.subr.mxu0 0.0
    %6134 = vmatpush1.msra.mxu0 0.0
    %6135 = vmatprep.subr.mxu0 0.0
    %6136 = vmatpush1.msra.mxu0 0.0
    %6137 = vmatprep.subr.mxu0 0.0
    %6138 = vmatpush1.msra.mxu0 0.0
    %6139 = vmatprep.mubr.f32.mxu0 0.0
    %6140 = vmatmul.mubr.f32.gmra.mrb[0].mxu0 %v6073
    %v6141 = vpop.f32.mrb[0].mxu0
    %v6142 = vadd.f32 %v1897, %v6141
    %v6143 = vpop.f32.mrb[0].mxu0
    %6144 = vdwg.mxu0
    %6145 = vmatprep.subr.mxu0 0.0
    %6146 = vmatpush1.msra.mxu0 %v1490
    %6147 = vmatprep.subr.mxu0 0.0
    %6148 = vmatpush1.msra.mxu0 %v1491
    %6149 = vmatprep.subr.mxu0 0.0
    %6150 = vmatpush1.msra.mxu0 %v1492
    %6151 = vmatprep.subr.mxu0 0.0
    %6152 = vmatpush1.msra.mxu0 %v1493
    %6153 = vmatprep.subr.mxu0 0.0
    %6154 = vmatpush1.msra.mxu0 0.0
    %6155 = vmatprep.subr.mxu0 0.0
    %6156 = vmatpush1.msra.mxu0 0.0
    %6157 = vmatprep.subr.mxu0 0.0
    %6158 = vmatpush1.msra.mxu0 0.0
    %6159 = vmatprep.subr.mxu0 0.0
    %6160 = vmatpush1.msra.mxu0 0.0
    %6161 = vmatprep.subr.mxu0 0.0
    %6162 = vmatpush1.msra.mxu0 0.0
    %6163 = vmatprep.subr.mxu0 0.0
    %6164 = vmatpush1.msra.mxu0 0.0
    %6165 = vmatprep.subr.mxu0 0.0
    %6166 = vmatpush1.msra.mxu0 0.0
    %6167 = vmatprep.subr.mxu0 0.0
    %6168 = vmatpush1.msra.mxu0 0.0
    %6169 = vmatprep.subr.mxu0 0.0
    %6170 = vmatpush1.msra.mxu0 0.0
    %6171 = vmatprep.subr.mxu0 0.0
    %6172 = vmatpush1.msra.mxu0 0.0
    %6173 = vmatprep.subr.mxu0 0.0
    %6174 = vmatpush1.msra.mxu0 0.0
    %6175 = vmatprep.subr.mxu0 0.0
    %6176 = vmatpush1.msra.mxu0 0.0
    %6177 = vmatprep.subr.mxu0 0.0
    %6178 = vmatpush1.msra.mxu0 0.0
    %6179 = vmatprep.subr.mxu0 0.0
    %6180 = vmatpush1.msra.mxu0 0.0
    %6181 = vmatprep.subr.mxu0 0.0
    %6182 = vmatpush1.msra.mxu0 0.0
    %6183 = vmatprep.subr.mxu0 0.0
    %6184 = vmatpush1.msra.mxu0 0.0
    %6185 = vmatprep.subr.mxu0 0.0
    %6186 = vmatpush1.msra.mxu0 0.0
    %6187 = vmatprep.subr.mxu0 0.0
    %6188 = vmatpush1.msra.mxu0 0.0
    %6189 = vmatprep.subr.mxu0 0.0
    %6190 = vmatpush1.msra.mxu0 0.0
    %6191 = vmatprep.subr.mxu0 0.0
    %6192 = vmatpush1.msra.mxu0 0.0
    %6193 = vmatprep.subr.mxu0 0.0
    %6194 = vmatpush1.msra.mxu0 0.0
    %6195 = vmatprep.subr.mxu0 0.0
    %6196 = vmatpush1.msra.mxu0 0.0
    %6197 = vmatprep.subr.mxu0 0.0
    %6198 = vmatpush1.msra.mxu0 0.0
    %6199 = vmatprep.subr.mxu0 0.0
    %6200 = vmatpush1.msra.mxu0 0.0
    %6201 = vmatprep.subr.mxu0 0.0
    %6202 = vmatpush1.msra.mxu0 0.0
    %6203 = vmatprep.subr.mxu0 0.0
    %6204 = vmatpush1.msra.mxu0 0.0
    %6205 = vmatprep.subr.mxu0 0.0
    %6206 = vmatpush1.msra.mxu0 0.0
    %6207 = vmatprep.subr.mxu0 0.0
    %6208 = vmatpush1.msra.mxu0 0.0
    %6209 = vmatprep.mubr.f32.mxu0 0.0
    %6210 = vmatmul.mubr.f32.gmra.mrb[0].mxu0 %v5418
    %v6211 = vpop.f32.mrb[0].mxu0
    %v6212 = vadd.f32 %v1977, %v6211
    %v6213 = vpop.f32.mrb[0].mxu0
    %6214 = vdwg.mxu0
    %v6215 = vadd.f32 %v6142, %v6212
    %v6216 = vxor.u32 %v6215, 2147483648
    %v6217 = vmul.f32 %v6216, 1.442695
    %v6218 = vpow.pop %v6217
    %v6219 = vadd.f32 %v6218, 1.0
    %v6220 = vrcp.pop %v6219
    %v6221 = vmul.f32 1.0, %v6220
    %6223 = vrot.lane.b32.xlu0 %v6212, 64
    %v6224 = vpop.permute.xlu0 %6223
    %v6226 = vmul.f32 %v6221, %v6224
    %6228 = vrot.lane.b32.xlu0 %v6226, 64
    %v6229 = vpop.permute.xlu0 %6228
    %v6231 = vadd.f32 %v6142, %v6229
    %v6232 = vtanh.pop %v6231
    %v6233 = vsub.f32 1.0, %v6221
    %6235 = vrot.lane.b32.xlu0 %v6232, 96
    %v6236 = vpop.permute.xlu0 %6235
    %v6238 = vmul.f32 %v6233, %v6236
    %v6239 = vmul.f32 %v6221, %v5408
    %v6240 = vadd.f32 %v6238, %v6239
    %v6241 = vld [vmem:[%s18] sm:$0xff]
    %v6242 = vld [vmem:[%s18 + $0x8] sm:$0xff]
    %v6243 = vld [vmem:[%s18 + $0x10] sm:$0xff]
    %v6244 = vld [vmem:[%s18 + $0x18] sm:$0xff]
    %v6245 = vld [vmem:[%s18 + $0x20] sm:$0xff]
    %v6246 = vld [vmem:[%s18 + $0x28] sm:$0xff]
    %6248 = vrot.lane.b32.xlu0 %v6240, 96
    %v6249 = vpop.permute.xlu0 %6248
    %v6250 = vsel %vm204, %v6249, 0
    %6252 = vmatprep.subr.mxu0 0.0
    %6253 = vmatpush1.msra.mxu0 %v1496
    %6254 = vmatprep.subr.mxu0 0.0
    %6255 = vmatpush1.msra.mxu0 %v1497
    %6256 = vmatprep.subr.mxu0 0.0
    %6257 = vmatpush1.msra.mxu0 %v1498
    %6258 = vmatprep.subr.mxu0 0.0
    %6259 = vmatpush1.msra.mxu0 %v1499
    %6260 = vmatprep.subr.mxu0 0.0
    %6261 = vmatpush1.msra.mxu0 0.0
    %6262 = vmatprep.subr.mxu0 0.0
    %6263 = vmatpush1.msra.mxu0 0.0
    %6264 = vmatprep.subr.mxu0 0.0
    %6265 = vmatpush1.msra.mxu0 0.0
    %6266 = vmatprep.subr.mxu0 0.0
    %6267 = vmatpush1.msra.mxu0 0.0
    %6268 = vmatprep.subr.mxu0 0.0
    %6269 = vmatpush1.msra.mxu0 0.0
    %6270 = vmatprep.subr.mxu0 0.0
    %6271 = vmatpush1.msra.mxu0 0.0
    %6272 = vmatprep.subr.mxu0 0.0
    %6273 = vmatpush1.msra.mxu0 0.0
    %6274 = vmatprep.subr.mxu0 0.0
    %6275 = vmatpush1.msra.mxu0 0.0
    %6276 = vmatprep.subr.mxu0 0.0
    %6277 = vmatpush1.msra.mxu0 0.0
    %6278 = vmatprep.subr.mxu0 0.0
    %6279 = vmatpush1.msra.mxu0 0.0
    %6280 = vmatprep.subr.mxu0 0.0
    %6281 = vmatpush1.msra.mxu0 0.0
    %6282 = vmatprep.subr.mxu0 0.0
    %6283 = vmatpush1.msra.mxu0 0.0
    %6284 = vmatprep.subr.mxu0 0.0
    %6285 = vmatpush1.msra.mxu0 0.0
    %6286 = vmatprep.subr.mxu0 0.0
    %6287 = vmatpush1.msra.mxu0 0.0
    %6288 = vmatprep.subr.mxu0 0.0
    %6289 = vmatpush1.msra.mxu0 0.0
    %6290 = vmatprep.subr.mxu0 0.0
    %6291 = vmatpush1.msra.mxu0 0.0
    %6292 = vmatprep.subr.mxu0 0.0
    %6293 = vmatpush1.msra.mxu0 0.0
    %6294 = vmatprep.subr.mxu0 0.0
    %6295 = vmatpush1.msra.mxu0 0.0
    %6296 = vmatprep.subr.mxu0 0.0
    %6297 = vmatpush1.msra.mxu0 0.0
    %6298 = vmatprep.subr.mxu0 0.0
    %6299 = vmatpush1.msra.mxu0 0.0
    %6300 = vmatprep.subr.mxu0 0.0
    %6301 = vmatpush1.msra.mxu0 0.0
    %6302 = vmatprep.subr.mxu0 0.0
    %6303 = vmatpush1.msra.mxu0 0.0
    %6304 = vmatprep.subr.mxu0 0.0
    %6305 = vmatpush1.msra.mxu0 0.0
    %6306 = vmatprep.subr.mxu0 0.0
    %6307 = vmatpush1.msra.mxu0 0.0
    %6308 = vmatprep.subr.mxu0 0.0
    %6309 = vmatpush1.msra.mxu0 0.0
    %6310 = vmatprep.subr.mxu0 0.0
    %6311 = vmatpush1.msra.mxu0 0.0
    %6312 = vmatprep.subr.mxu0 0.0
    %6313 = vmatpush1.msra.mxu0 0.0
    %6314 = vmatprep.subr.mxu0 0.0
    %6315 = vmatpush1.msra.mxu0 0.0
    %6316 = vmatprep.mubr.f32.mxu0 0.0
    %6317 = vmatmul.mubr.f32.gmra.mrb[0].mxu0 %v6250
    %v6318 = vpop.f32.mrb[0].mxu0
    %v6319 = vadd.f32 0.0, %v6318
    %v6320 = vpop.f32.mrb[0].mxu0
    %6321 = vdwg.mxu0
    %6322 = vmatprep.subr.mxu0 0.0
    %6323 = vmatpush1.msra.mxu0 %v6241
    %6324 = vmatprep.subr.mxu0 0.0
    %6325 = vmatpush1.msra.mxu0 %v6242
    %6326 = vmatprep.subr.mxu0 0.0
    %6327 = vmatpush1.msra.mxu0 %v6243
    %6328 = vmatprep.subr.mxu0 0.0
    %6329 = vmatpush1.msra.mxu0 %v6244
    %6330 = vmatprep.subr.mxu0 0.0
    %6331 = vmatpush1.msra.mxu0 %v6245
    %6332 = vmatprep.subr.mxu0 0.0
    %6333 = vmatpush1.msra.mxu0 %v6246
    %6334 = vmatprep.subr.mxu0 0.0
    %6335 = vmatpush1.msra.mxu0 0.0
    %6336 = vmatprep.subr.mxu0 0.0
    %6337 = vmatpush1.msra.mxu0 0.0
    %6338 = vmatprep.subr.mxu0 0.0
    %6339 = vmatpush1.msra.mxu0 0.0
    %6340 = vmatprep.subr.mxu0 0.0
    %6341 = vmatpush1.msra.mxu0 0.0
    %6342 = vmatprep.subr.mxu0 0.0
    %6343 = vmatpush1.msra.mxu0 0.0
    %6344 = vmatprep.subr.mxu0 0.0
    %6345 = vmatpush1.msra.mxu0 0.0
    %6346 = vmatprep.subr.mxu0 0.0
    %6347 = vmatpush1.msra.mxu0 0.0
    %6348 = vmatprep.subr.mxu0 0.0
    %6349 = vmatpush1.msra.mxu0 0.0
    %6350 = vmatprep.subr.mxu0 0.0
    %6351 = vmatpush1.msra.mxu0 0.0
    %6352 = vmatprep.subr.mxu0 0.0
    %6353 = vmatpush1.msra.mxu0 0.0
    %6354 = vmatprep.subr.mxu0 0.0
    %6355 = vmatpush1.msra.mxu0 0.0
    %6356 = vmatprep.subr.mxu0 0.0
    %6357 = vmatpush1.msra.mxu0 0.0
    %6358 = vmatprep.subr.mxu0 0.0
    %6359 = vmatpush1.msra.mxu0 0.0
    %6360 = vmatprep.subr.mxu0 0.0
    %6361 = vmatpush1.msra.mxu0 0.0
    %6362 = vmatprep.subr.mxu0 0.0
    %6363 = vmatpush1.msra.mxu0 0.0
    %6364 = vmatprep.subr.mxu0 0.0
    %6365 = vmatpush1.msra.mxu0 0.0
    %6366 = vmatprep.subr.mxu0 0.0
    %6367 = vmatpush1.msra.mxu0 0.0
    %6368 = vmatprep.subr.mxu0 0.0
    %6369 = vmatpush1.msra.mxu0 0.0
    %6370 = vmatprep.subr.mxu0 0.0
    %6371 = vmatpush1.msra.mxu0 0.0
    %6372 = vmatprep.subr.mxu0 0.0
    %6373 = vmatpush1.msra.mxu0 0.0
    %6374 = vmatprep.subr.mxu0 0.0
    %6375 = vmatpush1.msra.mxu0 0.0
    %6376 = vmatprep.subr.mxu0 0.0
    %6377 = vmatpush1.msra.mxu0 0.0
    %6378 = vmatprep.subr.mxu0 0.0
    %6379 = vmatpush1.msra.mxu0 0.0
    %6380 = vmatprep.subr.mxu0 0.0
    %6381 = vmatpush1.msra.mxu0 0.0
    %6382 = vmatprep.subr.mxu0 0.0
    %6383 = vmatpush1.msra.mxu0 0.0
    %6384 = vmatprep.subr.mxu0 0.0
    %6385 = vmatpush1.msra.mxu0 0.0
    %6386 = vmatprep.mubr.f32.mxu0 0.0
    %6387 = vmatmul.mubr.f32.gmra.mrb[0].mxu0 %v6073
    %v6388 = vpop.f32.mrb[0].mxu0
    %v6389 = vadd.f32 %v6319, %v6388
    %v6390 = vpop.f32.mrb[0].mxu0
    %6391 = vdwg.mxu0
    %v6392 = vadd.f32 %v6389, %v2230
    %6393 = vst [vmem:[#allocation6 + $0x18] sm:$0xf] %v6392
    %s6394 = sld [smem:[#allocation3 + $0x6]]
    %p6395 = scmp.eq.s32.totalorder %s6394, 0
    // Predicated region
    $region130: #{seq2seq_forward.1} parent=1 // pred_check
      %p6396 = pneg %p6395
    $region131: #{seq2seq_forward.1} parent=1 // pred_check_branch
      %6398 = sbr.rel (%p6396) target = $region133
    $region132: #{seq2seq_forward.1} parent=1 // pred_region
      %vm6399 = vcmask 1043456
      %v6400 = vsel %vm6399, %v6392, -inf
      %6401 = vmax.xlane.f32.xlu0 %v6400
      %v6402 = vpop.xlane.xlu0 %6401
      %vm6403 = vcmp.eq.f32.partialorder %v6392, %v6402
      %v6404 = vsel %vm6403, %v1502, 128
      %v6405 = vsel %vm6399, %v6404, 2147483647
      %v6406 = vand.u32 %v6405, 65535
      %v6407 = vshra.s32 %v6405, 16
      %v6408 = vcvt.s32.f32 %v6406
      %v6409 = vcvt.s32.f32 %v6407
      %6410 = vmin.xlane.f32.xlu0 %v6409
      %v6411 = vpop.xlane.xlu0 %6410
      %vm6412 = vcmp.eq.f32.partialorder %v6409, %v6411
      %v6413 = vsel %vm6412, %v6408, inf
      %6414 = vmin.xlane.f32.xlu0 %v6413
      %v6415 = vpop.xlane.xlu0 %6414
      %v6416 = vcvt.f32.s32 %v6415
      %v6417 = vcvt.f32.s32 %v6411
      %v6418 = vshll.u32 %v6417, 16
      %v6419 = vadd.s32 %v6418, %v6416
      %vm6420 = vcmp.eq.s32.totalorder %v1502, %v6419
      %v6421 = vsel %vm6420, 1, 0
      %v6422 = vcvt.s32.f32 %v6421
      %v6423 = vld [vmem:[%s3] sm:$0xff]
      %v6424 = vld [vmem:[%s3 + $0x8] sm:$0xff]
      %v6425 = vld [vmem:[%s3 + $0x10] sm:$0xff]
      %v6426 = vld [vmem:[%s3 + $0x18] sm:$0xff]
      %v6427 = vld [vmem:[%s3 + $0x20] sm:$0xff]
      %v6428 = vld [vmem:[%s3 + $0x28] sm:$0xff]
      %v6429 = vld [vmem:[%s3 + $0x30] sm:$0xff]
      %v6430 = vld [vmem:[%s3 + $0x38] sm:$0xff]
      %v6431 = vld [vmem:[%s3 + $0x40] sm:$0xff]
      %v6432 = vld [vmem:[%s3 + $0x48] sm:$0xff]
      %v6433 = vld [vmem:[%s3 + $0x50] sm:$0xff]
      %v6434 = vld [vmem:[%s3 + $0x58] sm:$0xff]
      %v6435 = vld [vmem:[%s3 + $0x60] sm:$0xff]
      %v6436 = vld [vmem:[%s3 + $0x68] sm:$0xff]
      %v6437 = vld [vmem:[%s3 + $0x70] sm:$0xff]
      %v6438 = vld [vmem:[%s3 + $0x78] sm:$0xff]
      %6439 = vmatprep.subr.mxu0 0.0
      %6440 = vmatpush1.msra.mxu0 %v6423
      %6441 = vmatprep.subr.mxu0 0.0
      %6442 = vmatpush1.msra.mxu0 %v6424
      %6443 = vmatprep.subr.mxu0 0.0
      %6444 = vmatpush1.msra.mxu0 %v6425
      %6445 = vmatprep.subr.mxu0 0.0
      %6446 = vmatpush1.msra.mxu0 %v6426
      %6447 = vmatprep.subr.mxu0 0.0
      %6448 = vmatpush1.msra.mxu0 %v6427
      %6449 = vmatprep.subr.mxu0 0.0
      %6450 = vmatpush1.msra.mxu0 %v6428
      %6451 = vmatprep.subr.mxu0 0.0
      %6452 = vmatpush1.msra.mxu0 %v6429
      %6453 = vmatprep.subr.mxu0 0.0
      %6454 = vmatpush1.msra.mxu0 %v6430
      %6455 = vmatprep.subr.mxu0 0.0
      %6456 = vmatpush1.msra.mxu0 %v6431
      %6457 = vmatprep.subr.mxu0 0.0
      %6458 = vmatpush1.msra.mxu0 %v6432
      %6459 = vmatprep.subr.mxu0 0.0
      %6460 = vmatpush1.msra.mxu0 %v6433
      %6461 = vmatprep.subr.mxu0 0.0
      %6462 = vmatpush1.msra.mxu0 %v6434
      %6463 = vmatprep.subr.mxu0 0.0
      %6464 = vmatpush1.msra.mxu0 %v6435
      %6465 = vmatprep.subr.mxu0 0.0
      %6466 = vmatpush1.msra.mxu0 %v6436
      %6467 = vmatprep.subr.mxu0 0.0
      %6468 = vmatpush1.msra.mxu0 %v6437
      %6469 = vmatprep.subr.mxu0 0.0
      %6470 = vmatpush1.msra.mxu0 %v6438
      %6471 = vmatprep.subr.mxu0 0.0
      %6472 = vmatpush1.msra.mxu0 0.0
      %6473 = vmatprep.subr.mxu0 0.0
      %6474 = vmatpush1.msra.mxu0 0.0
      %6475 = vmatprep.subr.mxu0 0.0
      %6476 = vmatpush1.msra.mxu0 0.0
      %6477 = vmatprep.subr.mxu0 0.0
      %6478 = vmatpush1.msra.mxu0 0.0
      %6479 = vmatprep.subr.mxu0 0.0
      %6480 = vmatpush1.msra.mxu0 0.0
      %6481 = vmatprep.subr.mxu0 0.0
      %6482 = vmatpush1.msra.mxu0 0.0
      %6483 = vmatprep.subr.mxu0 0.0
      %6484 = vmatpush1.msra.mxu0 0.0
      %6485 = vmatprep.subr.mxu0 0.0
      %6486 = vmatpush1.msra.mxu0 0.0
      %6487 = vmatprep.subr.mxu0 0.0
      %6488 = vmatpush1.msra.mxu0 0.0
      %6489 = vmatprep.subr.mxu0 0.0
      %6490 = vmatpush1.msra.mxu0 0.0
      %6491 = vmatprep.subr.mxu0 0.0
      %6492 = vmatpush1.msra.mxu0 0.0
      %6493 = vmatprep.subr.mxu0 0.0
      %6494 = vmatpush1.msra.mxu0 0.0
      %6495 = vmatprep.subr.mxu0 0.0
      %6496 = vmatpush1.msra.mxu0 0.0
      %6497 = vmatprep.subr.mxu0 0.0
      %6498 = vmatpush1.msra.mxu0 0.0
      %6499 = vmatprep.subr.mxu0 0.0
      %6500 = vmatpush1.msra.mxu0 0.0
      %6501 = vmatprep.subr.mxu0 0.0
      %6502 = vmatpush1.msra.mxu0 0.0
      %6503 = vmatprep.mubr.f32.mxu0 0.0
      %6504 = vmatmul.mubr.f32.gmra.mrb[0].mxu0 %v6422
      %v6505 = vpop.f32.mrb[0].mxu0
      %v6506 = vadd.f32 0.0, %v6505
      %v6507 = vpop.f32.mrb[0].mxu0
      %6508 = vdwg.mxu0
      %vm6509 = vcmask 125952
      %6510 = vst.msk [vmem:[#allocation2] sm:$0xf] %vm6509, %v6506
    $region133: #{seq2seq_forward.1} parent=1 // pred_fallthru
      _
    %p6511 = scmp.ne.s32.totalorder %s6394, 0
    // Predicated region
    $region134: #{seq2seq_forward.1} parent=1 // pred_check
      %p6512 = pneg %p6511
    $region135: #{seq2seq_forward.1} parent=1 // pred_check_branch
      %6514 = sbr.rel (%p6512) target = $region137
    $region136: #{seq2seq_forward.1} parent=1 // pred_region
      %v6515 = vld [vmem:[%s2 + $0x18] sm:$0xf]
      %vm6516 = vcmask 125952
      %6517 = vst.msk [vmem:[#allocation2] sm:$0xf] %vm6516, %v6515
    $region137: #{seq2seq_forward.1} parent=1 // pred_fallthru
      _
    %v6518 = vld [vmem:[#allocation2] sm:$0xf]
    %v6519 = vld [vmem:[%s9] sm:$0xff]
    %v6520 = vld [vmem:[%s9 + $0x8] sm:$0xff]
    %v6521 = vld [vmem:[%s9 + $0x10] sm:$0xff]
    %v6522 = vld [vmem:[%s9 + $0x18] sm:$0xff]
    %v6523 = vld [vmem:[%s9 + $0x20] sm:$0xff]
    %v6524 = vld [vmem:[%s9 + $0x28] sm:$0xff]
    %v6525 = vld [vmem:[%s9 + $0x30] sm:$0xff]
    %v6526 = vld [vmem:[%s9 + $0x38] sm:$0xff]
    %6527 = vmatprep.subr.mxu0 %v6520
    %6528 = vmatpush1.msra.mxu0 %v6519
    %6529 = vmatprep.subr.mxu0 %v6522
    %6530 = vmatpush1.msra.mxu0 %v6521
    %6531 = vmatprep.subr.mxu0 %v6524
    %6532 = vmatpush1.msra.mxu0 %v6523
    %6533 = vmatprep.subr.mxu0 %v6526
    %6534 = vmatpush1.msra.mxu0 %v6525
    %6535 = vmatprep.subr.mxu0 0.0
    %6536 = vmatpush1.msra.mxu0 0.0
    %6537 = vmatprep.subr.mxu0 0.0
    %6538 = vmatpush1.msra.mxu0 0.0
    %6539 = vmatprep.subr.mxu0 0.0
    %6540 = vmatpush1.msra.mxu0 0.0
    %6541 = vmatprep.subr.mxu0 0.0
    %6542 = vmatpush1.msra.mxu0 0.0
    %6543 = vmatprep.subr.mxu0 0.0
    %6544 = vmatpush1.msra.mxu0 0.0
    %6545 = vmatprep.subr.mxu0 0.0
    %6546 = vmatpush1.msra.mxu0 0.0
    %6547 = vmatprep.subr.mxu0 0.0
    %6548 = vmatpush1.msra.mxu0 0.0
    %6549 = vmatprep.subr.mxu0 0.0
    %6550 = vmatpush1.msra.mxu0 0.0
    %6551 = vmatprep.subr.mxu0 0.0
    %6552 = vmatpush1.msra.mxu0 0.0
    %6553 = vmatprep.subr.mxu0 0.0
    %6554 = vmatpush1.msra.mxu0 0.0
    %6555 = vmatprep.subr.mxu0 0.0
    %6556 = vmatpush1.msra.mxu0 0.0
    %6557 = vmatprep.subr.mxu0 0.0
    %6558 = vmatpush1.msra.mxu0 0.0
    %6559 = vmatprep.subr.mxu0 0.0
    %6560 = vmatpush1.msra.mxu0 0.0
    %6561 = vmatprep.subr.mxu0 0.0
    %6562 = vmatpush1.msra.mxu0 0.0
    %6563 = vmatprep.subr.mxu0 0.0
    %6564 = vmatpush1.msra.mxu0 0.0
    %6565 = vmatprep.subr.mxu0 0.0
    %6566 = vmatpush1.msra.mxu0 0.0
    %6567 = vmatprep.subr.mxu0 0.0
    %6568 = vmatpush1.msra.mxu0 0.0
    %6569 = vmatprep.subr.mxu0 0.0
    %6570 = vmatpush1.msra.mxu0 0.0
    %6571 = vmatprep.subr.mxu0 0.0
    %6572 = vmatpush1.msra.mxu0 0.0
    %6573 = vmatprep.subr.mxu0 0.0
    %6574 = vmatpush1.msra.mxu0 0.0
    %6575 = vmatprep.subr.mxu0 0.0
    %6576 = vmatpush1.msra.mxu0 0.0
    %6577 = vmatprep.subr.mxu0 0.0
    %6578 = vmatpush1.msra.mxu0 0.0
    %6579 = vmatprep.subr.mxu0 0.0
    %6580 = vmatpush1.msra.mxu0 0.0
    %6581 = vmatprep.subr.mxu0 0.0
    %6582 = vmatpush1.msra.mxu0 0.0
    %6583 = vmatprep.subr.mxu0 0.0
    %6584 = vmatpush1.msra.mxu0 0.0
    %6585 = vmatprep.subr.mxu0 0.0
    %6586 = vmatpush1.msra.mxu0 0.0
    %6587 = vmatprep.subr.mxu0 0.0
    %6588 = vmatpush1.msra.mxu0 0.0
    %6589 = vmatprep.subr.mxu0 0.0
    %6590 = vmatpush1.msra.mxu0 0.0
    %6591 = vmatprep.mubr.f32.mxu0 0.0
    %6592 = vmatmul.mubr.f32.gmra.mrb[0].mxu0 %v6250
    %v6593 = vpop.f32.mrb[0].mxu0
    %v6594 = vadd.f32 0.0, %v6593
    %v6595 = vpop.f32.mrb[0].mxu0
    %v6596 = vadd.f32 0.0, %v6595
    %6597 = vdwg.mxu0
    %v6598 = vadd.f32 %v1482, %v6594
    %v6599 = vadd.f32 %v1483, %v6596
    %v6600 = vtanh.pop %v6598
    %v6601 = vtanh.pop %v6599
    %v6602 = vld [vmem:[%s11] sm:$0xff]
    %v6603 = vld [vmem:[%s11 + $0x8] sm:$0xff]
    %v6604 = vld [vmem:[%s11 + $0x10] sm:$0xff]
    %v6605 = vld [vmem:[%s11 + $0x18] sm:$0xff]
    %v6606 = vld [vmem:[%s11 + $0x20] sm:$0xff]
    %v6607 = vld [vmem:[%s11 + $0x28] sm:$0xff]
    %v6608 = vld [vmem:[%s11 + $0x30] sm:$0xff]
    %v6609 = vld [vmem:[%s11 + $0x38] sm:$0xff]
    %v6610 = vld [vmem:[%s11 + $0x40] sm:$0xff]
    %v6611 = vld [vmem:[%s11 + $0x48] sm:$0xff]
    %v6612 = vld [vmem:[%s11 + $0x50] sm:$0xff]
    %v6613 = vld [vmem:[%s11 + $0x58] sm:$0xff]
    %v6614 = vld [vmem:[%s11 + $0x60] sm:$0xff]
    %v6615 = vld [vmem:[%s11 + $0x68] sm:$0xff]
    %v6616 = vld [vmem:[%s11 + $0x70] sm:$0xff]
    %v6617 = vld [vmem:[%s11 + $0x78] sm:$0xff]
    %v6618 = vld [vmem:[%s11 + $0x80] sm:$0xff]
    %v6619 = vld [vmem:[%s11 + $0x88] sm:$0xff]
    %v6620 = vld [vmem:[%s11 + $0x90] sm:$0xff]
    %v6621 = vld [vmem:[%s11 + $0x98] sm:$0xff]
    %v6622 = vld [vmem:[%s11 + $0xa0] sm:$0xff]
    %v6623 = vld [vmem:[%s11 + $0xa8] sm:$0xff]
    %v6624 = vld [vmem:[%s11 + $0xb0] sm:$0xff]
    %v6625 = vld [vmem:[%s11 + $0xb8] sm:$0xff]
    %v6626 = vld [vmem:[%s11 + $0xc0] sm:$0xff]
    %v6627 = vld [vmem:[%s11 + $0xc8] sm:$0xff]
    %v6628 = vld [vmem:[%s11 + $0xd0] sm:$0xff]
    %v6629 = vld [vmem:[%s11 + $0xd8] sm:$0xff]
    %v6631 = vsel %vm947, %v6601, 0
    %6633 = vmatprep.subr.mxu0 0.0
    %6634 = vmatpush1.msra.mxu0 %v6602
    %6635 = vmatprep.subr.mxu0 0.0
    %6636 = vmatpush1.msra.mxu0 %v6603
    %6637 = vmatprep.subr.mxu0 0.0
    %6638 = vmatpush1.msra.mxu0 %v6604
    %6639 = vmatprep.subr.mxu0 0.0
    %6640 = vmatpush1.msra.mxu0 %v6605
    %6641 = vmatprep.subr.mxu0 0.0
    %6642 = vmatpush1.msra.mxu0 %v6606
    %6643 = vmatprep.subr.mxu0 0.0
    %6644 = vmatpush1.msra.mxu0 %v6607
    %6645 = vmatprep.subr.mxu0 0.0
    %6646 = vmatpush1.msra.mxu0 %v6608
    %6647 = vmatprep.subr.mxu0 0.0
    %6648 = vmatpush1.msra.mxu0 %v6609
    %6649 = vmatprep.subr.mxu0 0.0
    %6650 = vmatpush1.msra.mxu0 %v6610
    %6651 = vmatprep.subr.mxu0 0.0
    %6652 = vmatpush1.msra.mxu0 %v6611
    %6653 = vmatprep.subr.mxu0 0.0
    %6654 = vmatpush1.msra.mxu0 %v6612
    %6655 = vmatprep.subr.mxu0 0.0
    %6656 = vmatpush1.msra.mxu0 %v6613
    %6657 = vmatprep.subr.mxu0 0.0
    %6658 = vmatpush1.msra.mxu0 %v6614
    %6659 = vmatprep.subr.mxu0 0.0
    %6660 = vmatpush1.msra.mxu0 %v6615
    %6661 = vmatprep.subr.mxu0 0.0
    %6662 = vmatpush1.msra.mxu0 %v6616
    %6663 = vmatprep.subr.mxu0 0.0
    %6664 = vmatpush1.msra.mxu0 %v6617
    %6665 = vmatprep.subr.mxu0 0.0
    %6666 = vmatpush1.msra.mxu0 %v6618
    %6667 = vmatprep.subr.mxu0 0.0
    %6668 = vmatpush1.msra.mxu0 %v6619
    %6669 = vmatprep.subr.mxu0 0.0
    %6670 = vmatpush1.msra.mxu0 %v6620
    %6671 = vmatprep.subr.mxu0 0.0
    %6672 = vmatpush1.msra.mxu0 %v6621
    %6673 = vmatprep.subr.mxu0 0.0
    %6674 = vmatpush1.msra.mxu0 %v6622
    %6675 = vmatprep.subr.mxu0 0.0
    %6676 = vmatpush1.msra.mxu0 %v6623
    %6677 = vmatprep.subr.mxu0 0.0
    %6678 = vmatpush1.msra.mxu0 %v6624
    %6679 = vmatprep.subr.mxu0 0.0
    %6680 = vmatpush1.msra.mxu0 %v6625
    %6681 = vmatprep.subr.mxu0 0.0
    %6682 = vmatpush1.msra.mxu0 %v6626
    %6683 = vmatprep.subr.mxu0 0.0
    %6684 = vmatpush1.msra.mxu0 %v6627
    %6685 = vmatprep.subr.mxu0 0.0
    %6686 = vmatpush1.msra.mxu0 %v6628
    %6687 = vmatprep.subr.mxu0 0.0
    %6688 = vmatpush1.msra.mxu0 %v6629
    %6689 = vmatprep.subr.mxu0 0.0
    %6690 = vmatpush1.msra.mxu0 0.0
    %6691 = vmatprep.subr.mxu0 0.0
    %6692 = vmatpush1.msra.mxu0 0.0
    %6693 = vmatprep.subr.mxu0 0.0
    %6694 = vmatpush1.msra.mxu0 0.0
    %6695 = vmatprep.subr.mxu0 0.0
    %6696 = vmatpush1.msra.mxu0 0.0
    %6697 = vmatprep.mubr.f32.mxu0 %v6631
    %6698 = vmatmul.mubr.f32.gmra.mrb[0].mxu0 %v6600
    %v6699 = vpop.f32.mrb[0].mxu0
    %v6700 = vadd.f32 0.0, %v6699
    %v6701 = vpop.f32.mrb[0].mxu0
    %6702 = vdwg.mxu0
    %v6703 = vsel %vm1689, %v6700, -inf
    %6704 = vmax.xlane.f32.xlu0 %v6703
    %v6705 = vpop.xlane.xlu0 %6704
    %v6706 = vsub.f32 %v6700, %v6705
    %v6707 = vmul.f32 %v6706, 1.442695
    %v6708 = vpow.pop %v6707
    %v6709 = vsel %vm1689, %v6708, 0.0
    %6710 = vadd.xlane.f32.xlu0 %v6709
    %v6711 = vpop.xlane.xlu0 %6710
    %v6712 = vrcp.pop %v6711
    %v6713 = vmul.f32 %v6708, %v6712
    %v6714 = vld [vmem:[%s12] sm:$0x7f]
    %v6715 = vld [vmem:[%s12 + $0x8] sm:$0x7f]
    %v6717 = vsel %vm1703, %v6713, 0
    %v6720 = vsel %vm1707, %v6714, 0
    %v6723 = vsel %vm1707, %v6715, 0
    %6725 = vmatprep.subr.mxu0 %v6723
    %6726 = vmatpush1.msra.mxu0 %v6720
    %6727 = vmatprep.subr.mxu0 0.0
    %6728 = vmatpush1.msra.mxu0 0.0
    %6729 = vmatprep.subr.mxu0 0.0
    %6730 = vmatpush1.msra.mxu0 0.0
    %6731 = vmatprep.subr.mxu0 0.0
    %6732 = vmatpush1.msra.mxu0 0.0
    %6733 = vmatprep.subr.mxu0 0.0
    %6734 = vmatpush1.msra.mxu0 0.0
    %6735 = vmatprep.subr.mxu0 0.0
    %6736 = vmatpush1.msra.mxu0 0.0
    %6737 = vmatprep.subr.mxu0 0.0
    %6738 = vmatpush1.msra.mxu0 0.0
    %6739 = vmatprep.subr.mxu0 0.0
    %6740 = vmatpush1.msra.mxu0 0.0
    %6741 = vmatprep.subr.mxu0 0.0
    %6742 = vmatpush1.msra.mxu0 0.0
    %6743 = vmatprep.subr.mxu0 0.0
    %6744 = vmatpush1.msra.mxu0 0.0
    %6745 = vmatprep.subr.mxu0 0.0
    %6746 = vmatpush1.msra.mxu0 0.0
    %6747 = vmatprep.subr.mxu0 0.0
    %6748 = vmatpush1.msra.mxu0 0.0
    %6749 = vmatprep.subr.mxu0 0.0
    %6750 = vmatpush1.msra.mxu0 0.0
    %6751 = vmatprep.subr.mxu0 0.0
    %6752 = vmatpush1.msra.mxu0 0.0
    %6753 = vmatprep.subr.mxu0 0.0
    %6754 = vmatpush1.msra.mxu0 0.0
    %6755 = vmatprep.subr.mxu0 0.0
    %6756 = vmatpush1.msra.mxu0 0.0
    %6757 = vmatprep.subr.mxu0 0.0
    %6758 = vmatpush1.msra.mxu0 0.0
    %6759 = vmatprep.subr.mxu0 0.0
    %6760 = vmatpush1.msra.mxu0 0.0
    %6761 = vmatprep.subr.mxu0 0.0
    %6762 = vmatpush1.msra.mxu0 0.0
    %6763 = vmatprep.subr.mxu0 0.0
    %6764 = vmatpush1.msra.mxu0 0.0
    %6765 = vmatprep.subr.mxu0 0.0
    %6766 = vmatpush1.msra.mxu0 0.0
    %6767 = vmatprep.subr.mxu0 0.0
    %6768 = vmatpush1.msra.mxu0 0.0
    %6769 = vmatprep.subr.mxu0 0.0
    %6770 = vmatpush1.msra.mxu0 0.0
    %6771 = vmatprep.subr.mxu0 0.0
    %6772 = vmatpush1.msra.mxu0 0.0
    %6773 = vmatprep.subr.mxu0 0.0
    %6774 = vmatpush1.msra.mxu0 0.0
    %6775 = vmatprep.subr.mxu0 0.0
    %6776 = vmatpush1.msra.mxu0 0.0
    %6777 = vmatprep.subr.mxu0 0.0
    %6778 = vmatpush1.msra.mxu0 0.0
    %6779 = vmatprep.subr.mxu0 0.0
    %6780 = vmatpush1.msra.mxu0 0.0
    %6781 = vmatprep.subr.mxu0 0.0
    %6782 = vmatpush1.msra.mxu0 0.0
    %6783 = vmatprep.subr.mxu0 0.0
    %6784 = vmatpush1.msra.mxu0 0.0
    %6785 = vmatprep.subr.mxu0 0.0
    %6786 = vmatpush1.msra.mxu0 0.0
    %6787 = vmatprep.subr.mxu0 0.0
    %6788 = vmatpush1.msra.mxu0 0.0
    %6789 = vmatprep.mubr.f32.mxu0 0.0
    %6790 = vmatmul.mubr.f32.gmra.mrb[0].mxu0 %v6717
    %v6791 = vpop.f32.mrb[0].mxu0
    %v6792 = vadd.f32 0.0, %v6791
    %v6793 = vpop.f32.mrb[0].mxu0
    %v6794 = vadd.f32 0.0, %v6793
    %6795 = vdwg.mxu0
    %v6796 = vmul.f32 %v6792, %v948
    %v6797 = vmul.f32 %v6794, %v950
    %v6798 = vld [vmem:[%s13] sm:$0xff]
    %v6799 = vld [vmem:[%s13 + $0x8] sm:$0xff]
    %v6800 = vld [vmem:[%s13 + $0x10] sm:$0xff]
    %v6801 = vld [vmem:[%s13 + $0x18] sm:$0xff]
    %v6802 = vld [vmem:[%s13 + $0x20] sm:$0xff]
    %v6803 = vld [vmem:[%s13 + $0x28] sm:$0xff]
    %v6804 = vld [vmem:[%s13 + $0x30] sm:$0xff]
    %v6805 = vld [vmem:[%s13 + $0x38] sm:$0xff]
    %v6806 = vld [vmem:[%s13 + $0x40] sm:$0xff]
    %v6807 = vld [vmem:[%s13 + $0x48] sm:$0xff]
    %v6808 = vld [vmem:[%s13 + $0x50] sm:$0xff]
    %v6809 = vld [vmem:[%s13 + $0x58] sm:$0xff]
    %v6810 = vld [vmem:[%s13 + $0x60] sm:$0xff]
    %v6811 = vld [vmem:[%s13 + $0x68] sm:$0xff]
    %v6812 = vld [vmem:[%s13 + $0x70] sm:$0xff]
    %v6813 = vld [vmem:[%s13 + $0x78] sm:$0xff]
    %v6814 = vld [vmem:[%s13 + $0x80] sm:$0xff]
    %v6815 = vld [vmem:[%s13 + $0x88] sm:$0xff]
    %v6816 = vld [vmem:[%s13 + $0x90] sm:$0xff]
    %v6817 = vld [vmem:[%s13 + $0x98] sm:$0xff]
    %v6818 = vld [vmem:[%s13 + $0xa0] sm:$0xff]
    %v6819 = vld [vmem:[%s13 + $0xa8] sm:$0xff]
    %v6820 = vld [vmem:[%s13 + $0xb0] sm:$0xff]
    %v6821 = vld [vmem:[%s13 + $0xb8] sm:$0xff]
    %v6822 = vld [vmem:[%s13 + $0xc0] sm:$0xff]
    %v6823 = vld [vmem:[%s13 + $0xc8] sm:$0xff]
    %v6824 = vld [vmem:[%s13 + $0xd0] sm:$0xff]
    %v6825 = vld [vmem:[%s13 + $0xd8] sm:$0xff]
    %v6827 = vsel %vm947, %v6797, 0
    %6829 = vmatprep.subr.mxu0 0.0
    %6830 = vmatpush1.msra.mxu0 %v6798
    %6831 = vmatprep.subr.mxu0 0.0
    %6832 = vmatpush1.msra.mxu0 %v6799
    %6833 = vmatprep.subr.mxu0 0.0
    %6834 = vmatpush1.msra.mxu0 %v6800
    %6835 = vmatprep.subr.mxu0 0.0
    %6836 = vmatpush1.msra.mxu0 %v6801
    %6837 = vmatprep.subr.mxu0 0.0
    %6838 = vmatpush1.msra.mxu0 %v6802
    %6839 = vmatprep.subr.mxu0 0.0
    %6840 = vmatpush1.msra.mxu0 %v6803
    %6841 = vmatprep.subr.mxu0 0.0
    %6842 = vmatpush1.msra.mxu0 %v6804
    %6843 = vmatprep.subr.mxu0 0.0
    %6844 = vmatpush1.msra.mxu0 %v6805
    %6845 = vmatprep.subr.mxu0 0.0
    %6846 = vmatpush1.msra.mxu0 %v6806
    %6847 = vmatprep.subr.mxu0 0.0
    %6848 = vmatpush1.msra.mxu0 %v6807
    %6849 = vmatprep.subr.mxu0 0.0
    %6850 = vmatpush1.msra.mxu0 %v6808
    %6851 = vmatprep.subr.mxu0 0.0
    %6852 = vmatpush1.msra.mxu0 %v6809
    %6853 = vmatprep.subr.mxu0 0.0
    %6854 = vmatpush1.msra.mxu0 %v6810
    %6855 = vmatprep.subr.mxu0 0.0
    %6856 = vmatpush1.msra.mxu0 %v6811
    %6857 = vmatprep.subr.mxu0 0.0
    %6858 = vmatpush1.msra.mxu0 %v6812
    %6859 = vmatprep.subr.mxu0 0.0
    %6860 = vmatpush1.msra.mxu0 %v6813
    %6861 = vmatprep.subr.mxu0 0.0
    %6862 = vmatpush1.msra.mxu0 %v6814
    %6863 = vmatprep.subr.mxu0 0.0
    %6864 = vmatpush1.msra.mxu0 %v6815
    %6865 = vmatprep.subr.mxu0 0.0
    %6866 = vmatpush1.msra.mxu0 %v6816
    %6867 = vmatprep.subr.mxu0 0.0
    %6868 = vmatpush1.msra.mxu0 %v6817
    %6869 = vmatprep.subr.mxu0 0.0
    %6870 = vmatpush1.msra.mxu0 %v6818
    %6871 = vmatprep.subr.mxu0 0.0
    %6872 = vmatpush1.msra.mxu0 %v6819
    %6873 = vmatprep.subr.mxu0 0.0
    %6874 = vmatpush1.msra.mxu0 %v6820
    %6875 = vmatprep.subr.mxu0 0.0
    %6876 = vmatpush1.msra.mxu0 %v6821
    %6877 = vmatprep.subr.mxu0 0.0
    %6878 = vmatpush1.msra.mxu0 %v6822
    %6879 = vmatprep.subr.mxu0 0.0
    %6880 = vmatpush1.msra.mxu0 %v6823
    %6881 = vmatprep.subr.mxu0 0.0
    %6882 = vmatpush1.msra.mxu0 %v6824
    %6883 = vmatprep.subr.mxu0 0.0
    %6884 = vmatpush1.msra.mxu0 %v6825
    %6885 = vmatprep.subr.mxu0 0.0
    %6886 = vmatpush1.msra.mxu0 0.0
    %6887 = vmatprep.subr.mxu0 0.0
    %6888 = vmatpush1.msra.mxu0 0.0
    %6889 = vmatprep.subr.mxu0 0.0
    %6890 = vmatpush1.msra.mxu0 0.0
    %6891 = vmatprep.subr.mxu0 0.0
    %6892 = vmatpush1.msra.mxu0 0.0
    %6893 = vmatprep.mubr.f32.mxu0 %v6827
    %6894 = vmatmul.mubr.f32.gmra.mrb[0].mxu0 %v6796
    %v6895 = vpop.f32.mrb[0].mxu0
    %v6896 = vadd.f32 0.0, %v6895
    %v6897 = vpop.f32.mrb[0].mxu0
    %6898 = vdwg.mxu0
    %6900 = vrot.lane.b32.xlu0 %v6896, 16
    %v6901 = vpop.permute.xlu0 %6900
    %v6903 = vsel %vm100, %v6518, %v6901
    %v6905 = vsel %vm1899, %v6903, 0
    %6907 = vmatprep.subr.mxu0 0.0
    %6908 = vmatpush1.msra.mxu0 %v1484
    %6909 = vmatprep.subr.mxu0 0.0
    %6910 = vmatpush1.msra.mxu0 %v1485
    %6911 = vmatprep.subr.mxu0 0.0
    %6912 = vmatpush1.msra.mxu0 %v1486
    %6913 = vmatprep.subr.mxu0 0.0
    %6914 = vmatpush1.msra.mxu0 %v1487
    %6915 = vmatprep.subr.mxu0 0.0
    %6916 = vmatpush1.msra.mxu0 %v1488
    %6917 = vmatprep.subr.mxu0 0.0
    %6918 = vmatpush1.msra.mxu0 %v1489
    %6919 = vmatprep.subr.mxu0 0.0
    %6920 = vmatpush1.msra.mxu0 0.0
    %6921 = vmatprep.subr.mxu0 0.0
    %6922 = vmatpush1.msra.mxu0 0.0
    %6923 = vmatprep.subr.mxu0 0.0
    %6924 = vmatpush1.msra.mxu0 0.0
    %6925 = vmatprep.subr.mxu0 0.0
    %6926 = vmatpush1.msra.mxu0 0.0
    %6927 = vmatprep.subr.mxu0 0.0
    %6928 = vmatpush1.msra.mxu0 0.0
    %6929 = vmatprep.subr.mxu0 0.0
    %6930 = vmatpush1.msra.mxu0 0.0
    %6931 = vmatprep.subr.mxu0 0.0
    %6932 = vmatpush1.msra.mxu0 0.0
    %6933 = vmatprep.subr.mxu0 0.0
    %6934 = vmatpush1.msra.mxu0 0.0
    %6935 = vmatprep.subr.mxu0 0.0
    %6936 = vmatpush1.msra.mxu0 0.0
    %6937 = vmatprep.subr.mxu0 0.0
    %6938 = vmatpush1.msra.mxu0 0.0
    %6939 = vmatprep.subr.mxu0 0.0
    %6940 = vmatpush1.msra.mxu0 0.0
    %6941 = vmatprep.subr.mxu0 0.0
    %6942 = vmatpush1.msra.mxu0 0.0
    %6943 = vmatprep.subr.mxu0 0.0
    %6944 = vmatpush1.msra.mxu0 0.0
    %6945 = vmatprep.subr.mxu0 0.0
    %6946 = vmatpush1.msra.mxu0 0.0
    %6947 = vmatprep.subr.mxu0 0.0
    %6948 = vmatpush1.msra.mxu0 0.0
    %6949 = vmatprep.subr.mxu0 0.0
    %6950 = vmatpush1.msra.mxu0 0.0
    %6951 = vmatprep.subr.mxu0 0.0
    %6952 = vmatpush1.msra.mxu0 0.0
    %6953 = vmatprep.subr.mxu0 0.0
    %6954 = vmatpush1.msra.mxu0 0.0
    %6955 = vmatprep.subr.mxu0 0.0
    %6956 = vmatpush1.msra.mxu0 0.0
    %6957 = vmatprep.subr.mxu0 0.0
    %6958 = vmatpush1.msra.mxu0 0.0
    %6959 = vmatprep.subr.mxu0 0.0
    %6960 = vmatpush1.msra.mxu0 0.0
    %6961 = vmatprep.subr.mxu0 0.0
    %6962 = vmatpush1.msra.mxu0 0.0
    %6963 = vmatprep.subr.mxu0 0.0
    %6964 = vmatpush1.msra.mxu0 0.0
    %6965 = vmatprep.subr.mxu0 0.0
    %6966 = vmatpush1.msra.mxu0 0.0
    %6967 = vmatprep.subr.mxu0 0.0
    %6968 = vmatpush1.msra.mxu0 0.0
    %6969 = vmatprep.subr.mxu0 0.0
    %6970 = vmatpush1.msra.mxu0 0.0
    %6971 = vmatprep.mubr.f32.mxu0 0.0
    %6972 = vmatmul.mubr.f32.gmra.mrb[0].mxu0 %v6905
    %v6973 = vpop.f32.mrb[0].mxu0
    %v6974 = vadd.f32 %v1897, %v6973
    %v6975 = vpop.f32.mrb[0].mxu0
    %6976 = vdwg.mxu0
    %6977 = vmatprep.subr.mxu0 0.0
    %6978 = vmatpush1.msra.mxu0 %v1490
    %6979 = vmatprep.subr.mxu0 0.0
    %6980 = vmatpush1.msra.mxu0 %v1491
    %6981 = vmatprep.subr.mxu0 0.0
    %6982 = vmatpush1.msra.mxu0 %v1492
    %6983 = vmatprep.subr.mxu0 0.0
    %6984 = vmatpush1.msra.mxu0 %v1493
    %6985 = vmatprep.subr.mxu0 0.0
    %6986 = vmatpush1.msra.mxu0 0.0
    %6987 = vmatprep.subr.mxu0 0.0
    %6988 = vmatpush1.msra.mxu0 0.0
    %6989 = vmatprep.subr.mxu0 0.0
    %6990 = vmatpush1.msra.mxu0 0.0
    %6991 = vmatprep.subr.mxu0 0.0
    %6992 = vmatpush1.msra.mxu0 0.0
    %6993 = vmatprep.subr.mxu0 0.0
    %6994 = vmatpush1.msra.mxu0 0.0
    %6995 = vmatprep.subr.mxu0 0.0
    %6996 = vmatpush1.msra.mxu0 0.0
    %6997 = vmatprep.subr.mxu0 0.0
    %6998 = vmatpush1.msra.mxu0 0.0
    %6999 = vmatprep.subr.mxu0 0.0
    %7000 = vmatpush1.msra.mxu0 0.0
    %7001 = vmatprep.subr.mxu0 0.0
    %7002 = vmatpush1.msra.mxu0 0.0
    %7003 = vmatprep.subr.mxu0 0.0
    %7004 = vmatpush1.msra.mxu0 0.0
    %7005 = vmatprep.subr.mxu0 0.0
    %7006 = vmatpush1.msra.mxu0 0.0
    %7007 = vmatprep.subr.mxu0 0.0
    %7008 = vmatpush1.msra.mxu0 0.0
    %7009 = vmatprep.subr.mxu0 0.0
    %7010 = vmatpush1.msra.mxu0 0.0
    %7011 = vmatprep.subr.mxu0 0.0
    %7012 = vmatpush1.msra.mxu0 0.0
    %7013 = vmatprep.subr.mxu0 0.0
    %7014 = vmatpush1.msra.mxu0 0.0
    %7015 = vmatprep.subr.mxu0 0.0
    %7016 = vmatpush1.msra.mxu0 0.0
    %7017 = vmatprep.subr.mxu0 0.0
    %7018 = vmatpush1.msra.mxu0 0.0
    %7019 = vmatprep.subr.mxu0 0.0
    %7020 = vmatpush1.msra.mxu0 0.0
    %7021 = vmatprep.subr.mxu0 0.0
    %7022 = vmatpush1.msra.mxu0 0.0
    %7023 = vmatprep.subr.mxu0 0.0
    %7024 = vmatpush1.msra.mxu0 0.0
    %7025 = vmatprep.subr.mxu0 0.0
    %7026 = vmatpush1.msra.mxu0 0.0
    %7027 = vmatprep.subr.mxu0 0.0
    %7028 = vmatpush1.msra.mxu0 0.0
    %7029 = vmatprep.subr.mxu0 0.0
    %7030 = vmatpush1.msra.mxu0 0.0
    %7031 = vmatprep.subr.mxu0 0.0
    %7032 = vmatpush1.msra.mxu0 0.0
    %7033 = vmatprep.subr.mxu0 0.0
    %7034 = vmatpush1.msra.mxu0 0.0
    %7035 = vmatprep.subr.mxu0 0.0
    %7036 = vmatpush1.msra.mxu0 0.0
    %7037 = vmatprep.subr.mxu0 0.0
    %7038 = vmatpush1.msra.mxu0 0.0
    %7039 = vmatprep.subr.mxu0 0.0
    %7040 = vmatpush1.msra.mxu0 0.0
    %7041 = vmatprep.mubr.f32.mxu0 0.0
    %7042 = vmatmul.mubr.f32.gmra.mrb[0].mxu0 %v6250
    %v7043 = vpop.f32.mrb[0].mxu0
    %v7044 = vadd.f32 %v1977, %v7043
    %v7045 = vpop.f32.mrb[0].mxu0
    %7046 = vdwg.mxu0
    %v7047 = vadd.f32 %v6974, %v7044
    %v7048 = vxor.u32 %v7047, 2147483648
    %v7049 = vmul.f32 %v7048, 1.442695
    %v7050 = vpow.pop %v7049
    %v7051 = vadd.f32 %v7050, 1.0
    %v7052 = vrcp.pop %v7051
    %v7053 = vmul.f32 1.0, %v7052
    %7055 = vrot.lane.b32.xlu0 %v7044, 64
    %v7056 = vpop.permute.xlu0 %7055
    %v7058 = vmul.f32 %v7053, %v7056
    %7060 = vrot.lane.b32.xlu0 %v7058, 64
    %v7061 = vpop.permute.xlu0 %7060
    %v7063 = vadd.f32 %v6974, %v7061
    %v7064 = vtanh.pop %v7063
    %v7065 = vsub.f32 1.0, %v7053
    %7067 = vrot.lane.b32.xlu0 %v7064, 96
    %v7068 = vpop.permute.xlu0 %7067
    %v7070 = vmul.f32 %v7065, %v7068
    %v7071 = vmul.f32 %v7053, %v6240
    %v7072 = vadd.f32 %v7070, %v7071
    %v7073 = vld [vmem:[%s18] sm:$0xff]
    %v7074 = vld [vmem:[%s18 + $0x8] sm:$0xff]
    %v7075 = vld [vmem:[%s18 + $0x10] sm:$0xff]
    %v7076 = vld [vmem:[%s18 + $0x18] sm:$0xff]
    %v7077 = vld [vmem:[%s18 + $0x20] sm:$0xff]
    %v7078 = vld [vmem:[%s18 + $0x28] sm:$0xff]
    %7080 = vrot.lane.b32.xlu0 %v7072, 96
    %v7081 = vpop.permute.xlu0 %7080
    %v7082 = vsel %vm204, %v7081, 0
    %7084 = vmatprep.subr.mxu0 0.0
    %7085 = vmatpush1.msra.mxu0 %v1496
    %7086 = vmatprep.subr.mxu0 0.0
    %7087 = vmatpush1.msra.mxu0 %v1497
    %7088 = vmatprep.subr.mxu0 0.0
    %7089 = vmatpush1.msra.mxu0 %v1498
    %7090 = vmatprep.subr.mxu0 0.0
    %7091 = vmatpush1.msra.mxu0 %v1499
    %7092 = vmatprep.subr.mxu0 0.0
    %7093 = vmatpush1.msra.mxu0 0.0
    %7094 = vmatprep.subr.mxu0 0.0
    %7095 = vmatpush1.msra.mxu0 0.0
    %7096 = vmatprep.subr.mxu0 0.0
    %7097 = vmatpush1.msra.mxu0 0.0
    %7098 = vmatprep.subr.mxu0 0.0
    %7099 = vmatpush1.msra.mxu0 0.0
    %7100 = vmatprep.subr.mxu0 0.0
    %7101 = vmatpush1.msra.mxu0 0.0
    %7102 = vmatprep.subr.mxu0 0.0
    %7103 = vmatpush1.msra.mxu0 0.0
    %7104 = vmatprep.subr.mxu0 0.0
    %7105 = vmatpush1.msra.mxu0 0.0
    %7106 = vmatprep.subr.mxu0 0.0
    %7107 = vmatpush1.msra.mxu0 0.0
    %7108 = vmatprep.subr.mxu0 0.0
    %7109 = vmatpush1.msra.mxu0 0.0
    %7110 = vmatprep.subr.mxu0 0.0
    %7111 = vmatpush1.msra.mxu0 0.0
    %7112 = vmatprep.subr.mxu0 0.0
    %7113 = vmatpush1.msra.mxu0 0.0
    %7114 = vmatprep.subr.mxu0 0.0
    %7115 = vmatpush1.msra.mxu0 0.0
    %7116 = vmatprep.subr.mxu0 0.0
    %7117 = vmatpush1.msra.mxu0 0.0
    %7118 = vmatprep.subr.mxu0 0.0
    %7119 = vmatpush1.msra.mxu0 0.0
    %7120 = vmatprep.subr.mxu0 0.0
    %7121 = vmatpush1.msra.mxu0 0.0
    %7122 = vmatprep.subr.mxu0 0.0
    %7123 = vmatpush1.msra.mxu0 0.0
    %7124 = vmatprep.subr.mxu0 0.0
    %7125 = vmatpush1.msra.mxu0 0.0
    %7126 = vmatprep.subr.mxu0 0.0
    %7127 = vmatpush1.msra.mxu0 0.0
    %7128 = vmatprep.subr.mxu0 0.0
    %7129 = vmatpush1.msra.mxu0 0.0
    %7130 = vmatprep.subr.mxu0 0.0
    %7131 = vmatpush1.msra.mxu0 0.0
    %7132 = vmatprep.subr.mxu0 0.0
    %7133 = vmatpush1.msra.mxu0 0.0
    %7134 = vmatprep.subr.mxu0 0.0
    %7135 = vmatpush1.msra.mxu0 0.0
    %7136 = vmatprep.subr.mxu0 0.0
    %7137 = vmatpush1.msra.mxu0 0.0
    %7138 = vmatprep.subr.mxu0 0.0
    %7139 = vmatpush1.msra.mxu0 0.0
    %7140 = vmatprep.subr.mxu0 0.0
    %7141 = vmatpush1.msra.mxu0 0.0
    %7142 = vmatprep.subr.mxu0 0.0
    %7143 = vmatpush1.msra.mxu0 0.0
    %7144 = vmatprep.subr.mxu0 0.0
    %7145 = vmatpush1.msra.mxu0 0.0
    %7146 = vmatprep.subr.mxu0 0.0
    %7147 = vmatpush1.msra.mxu0 0.0
    %7148 = vmatprep.mubr.f32.mxu0 0.0
    %7149 = vmatmul.mubr.f32.gmra.mrb[0].mxu0 %v7082
    %v7150 = vpop.f32.mrb[0].mxu0
    %v7151 = vadd.f32 0.0, %v7150
    %v7152 = vpop.f32.mrb[0].mxu0
    %7153 = vdwg.mxu0
    %7154 = vmatprep.subr.mxu0 0.0
    %7155 = vmatpush1.msra.mxu0 %v7073
    %7156 = vmatprep.subr.mxu0 0.0
    %7157 = vmatpush1.msra.mxu0 %v7074
    %7158 = vmatprep.subr.mxu0 0.0
    %7159 = vmatpush1.msra.mxu0 %v7075
    %7160 = vmatprep.subr.mxu0 0.0
    %7161 = vmatpush1.msra.mxu0 %v7076
    %7162 = vmatprep.subr.mxu0 0.0
    %7163 = vmatpush1.msra.mxu0 %v7077
    %7164 = vmatprep.subr.mxu0 0.0
    %7165 = vmatpush1.msra.mxu0 %v7078
    %7166 = vmatprep.subr.mxu0 0.0
    %7167 = vmatpush1.msra.mxu0 0.0
    %7168 = vmatprep.subr.mxu0 0.0
    %7169 = vmatpush1.msra.mxu0 0.0
    %7170 = vmatprep.subr.mxu0 0.0
    %7171 = vmatpush1.msra.mxu0 0.0
    %7172 = vmatprep.subr.mxu0 0.0
    %7173 = vmatpush1.msra.mxu0 0.0
    %7174 = vmatprep.subr.mxu0 0.0
    %7175 = vmatpush1.msra.mxu0 0.0
    %7176 = vmatprep.subr.mxu0 0.0
    %7177 = vmatpush1.msra.mxu0 0.0
    %7178 = vmatprep.subr.mxu0 0.0
    %7179 = vmatpush1.msra.mxu0 0.0
    %7180 = vmatprep.subr.mxu0 0.0
    %7181 = vmatpush1.msra.mxu0 0.0
    %7182 = vmatprep.subr.mxu0 0.0
    %7183 = vmatpush1.msra.mxu0 0.0
    %7184 = vmatprep.subr.mxu0 0.0
    %7185 = vmatpush1.msra.mxu0 0.0
    %7186 = vmatprep.subr.mxu0 0.0
    %7187 = vmatpush1.msra.mxu0 0.0
    %7188 = vmatprep.subr.mxu0 0.0
    %7189 = vmatpush1.msra.mxu0 0.0
    %7190 = vmatprep.subr.mxu0 0.0
    %7191 = vmatpush1.msra.mxu0 0.0
    %7192 = vmatprep.subr.mxu0 0.0
    %7193 = vmatpush1.msra.mxu0 0.0
    %7194 = vmatprep.subr.mxu0 0.0
    %7195 = vmatpush1.msra.mxu0 0.0
    %7196 = vmatprep.subr.mxu0 0.0
    %7197 = vmatpush1.msra.mxu0 0.0
    %7198 = vmatprep.subr.mxu0 0.0
    %7199 = vmatpush1.msra.mxu0 0.0
    %7200 = vmatprep.subr.mxu0 0.0
    %7201 = vmatpush1.msra.mxu0 0.0
    %7202 = vmatprep.subr.mxu0 0.0
    %7203 = vmatpush1.msra.mxu0 0.0
    %7204 = vmatprep.subr.mxu0 0.0
    %7205 = vmatpush1.msra.mxu0 0.0
    %7206 = vmatprep.subr.mxu0 0.0
    %7207 = vmatpush1.msra.mxu0 0.0
    %7208 = vmatprep.subr.mxu0 0.0
    %7209 = vmatpush1.msra.mxu0 0.0
    %7210 = vmatprep.subr.mxu0 0.0
    %7211 = vmatpush1.msra.mxu0 0.0
    %7212 = vmatprep.subr.mxu0 0.0
    %7213 = vmatpush1.msra.mxu0 0.0
    %7214 = vmatprep.subr.mxu0 0.0
    %7215 = vmatpush1.msra.mxu0 0.0
    %7216 = vmatprep.subr.mxu0 0.0
    %7217 = vmatpush1.msra.mxu0 0.0
    %7218 = vmatprep.mubr.f32.mxu0 0.0
    %7219 = vmatmul.mubr.f32.gmra.mrb[0].mxu0 %v6905
    %v7220 = vpop.f32.mrb[0].mxu0
    %v7221 = vadd.f32 %v7151, %v7220
    %v7222 = vpop.f32.mrb[0].mxu0
    %7223 = vdwg.mxu0
    %v7224 = vadd.f32 %v7221, %v2230
    %7225 = vst [vmem:[#allocation6 + $0x1c] sm:$0xf] %v7224
    // Predicated region
    $region138: #{seq2seq_forward.1} parent=1 // pred_check
      _
    $region139: #{seq2seq_forward.1} parent=1 // pred_check_branch
      %7227 = sbr.rel (0) target = $region141
    $region140: #{seq2seq_forward.1} parent=1 // pred_region
      %s7229 = ssub.s32 512, 512
      %7230 = vsyncadd [#allocation4], %s7229
      %s7231 = sshll.u32 [#allocation6], 4
      %s7232 = int_to_ptr.vmem [resolvable:$true] %s7231
      %7237 = dma.vmem_to_hbm [thread:$0]  %s7232, 512, %s21, [#allocation4], 128, 128, 8
    $region141: #{seq2seq_forward.1} parent=1 // pred_fallthru
      _
    // Predicated region
    $region142: #{seq2seq_forward.1} parent=1 // pred_check
      _
    $region143: #{seq2seq_forward.1} parent=1 // pred_check_branch
      %7239 = sbr.rel (0) target = $region145
    $region144: #{seq2seq_forward.1} parent=1 // pred_region
      %7240 = dma.done [#allocation4], 512
    $region145: #{seq2seq_forward.1} parent=1 // pred_fallthru
      _
    %7241 = vsyncpa [#allocation4], 1
    %7242 = vsyncpa [#allocation5], 1

</llo_original>
